<compile_context>
chip_gen: v5e
topology: v5e:2x2
jax: 0.10.0
libtpu: 0.0.40
codegen_flags: <defaults>
</compile_context>

<pallas_src>
import functools
import math

import jax
import jax.numpy as jnp
from jax.experimental import pallas as pl
from jax.experimental.pallas import tpu as pltpu

BN_EPS = 1e-5  # nn.BatchNorm2d default


# ---------------------------------------------------------------------------
# Fused BasicConv: Conv2d(no bias) -> BatchNorm2d(batch stats) -> ReLU
# One pallas_call per layer; whole batch in the MXU M dimension.
# ---------------------------------------------------------------------------
def _conv_bn_relu_kernel(x_ref, w_ref, g_ref, b_ref, o_ref, xpad_ref, col_ref,
                         *, stride, pad, ksize):
    """One grid step = one output-channel tile j (whole batch per step).

    x_ref   : (N, H, W, Cin)            bf16  unpadded input (full batch)
    w_ref   : (ksize*ksize*Cin, TCout)  bf16  im2col-ordered weights
    g_ref   : (1, TCout)                f32   BN gamma
    b_ref   : (1, TCout)                f32   BN beta
    o_ref   : (N, Ho*Wo, TCout)         bf16  activated output
    xpad_ref: (N, Hp, Wp, Cin)          bf16  VMEM scratch, zero halo
    col_ref : (N, Ho, Wo, ksize^2*Cin)  bf16  VMEM scratch, im2col matrix
    """
    j = pl.program_id(0)
    N, H, W, Cin = x_ref.shape
    _, Ho, Wo, KKC = col_ref.shape

    # Build im2col once per layer (scratch persists across cout tiles).
    @pl.when(j == 0)
    def _():
        xpad_ref[...] = jnp.zeros_like(xpad_ref)
        xpad_ref[:, pad:pad + H, pad:pad + W, :] = x_ref[...]
        for kh in range(ksize):
            for kw in range(ksize):
                if stride == 1:
                    patch = xpad_ref[:, kh:kh + Ho, kw:kw + Wo, :]
                else:
                    patch = xpad_ref[:, kh:kh + (Ho - 1) * stride + 1,
                                     kw:kw + (Wo - 1) * stride + 1, :]
                    patch = patch[:, ::stride, ::stride, :]
                t = kh * ksize + kw
                col_ref[:, :, :, t * Cin:(t + 1) * Cin] = patch

    # One fat MXU contraction: (N*Ho*Wo, KKC) @ (KKC, TCout) -> f32.
    acc = jnp.dot(col_ref[...].reshape(N * Ho * Wo, KKC), w_ref[...],
                  preferred_element_type=jnp.float32)

    # Exact BatchNorm batch statistics (whole batch is in this block), fused
    # with the affine + ReLU on the f32 accumulator.
    cnt = acc.shape[0]
    mean = jnp.sum(acc, axis=0, keepdims=True) / cnt
    var = jnp.maximum(jnp.sum(acc * acc, axis=0, keepdims=True) / cnt - mean * mean, 0.0)
    scale = g_ref[...] * jax.lax.rsqrt(var + BN_EPS)
    shift = b_ref[...] - mean * scale
    out = jnp.maximum(acc * scale + shift, 0.0)
    o_ref[...] = out.reshape(o_ref.shape).astype(o_ref.dtype)


def conv_bn_relu(x, w, gamma, beta, *, stride=1, pad=1, ksize=3):
    """BasicConv forward.  x: (N,H,W,Cin) bf16 NHWC; w: (ksize^2*Cin, Cout) bf16
    (HWIO reshaped to im2col order); gamma/beta: (Cout,) f32.  Returns NHWC bf16."""
    N, H, W, Cin = x.shape
    KKC, Cout = w.shape
    assert KKC == ksize * ksize * Cin
    Hp, Wp = H + 2 * pad, W + 2 * pad
    Ho = (Hp - ksize) // stride + 1
    Wo = (Wp - ksize) // stride + 1
    P = Ho * Wo
    # TCout=512 keeps the double-buffered weight block <= 18 MiB (v7x-safe) and
    # makes nj==1 for every layer except the 1024-out ones (nj=2).
    TCout = Cout if Cout <= 512 else 512
    assert Cout % TCout == 0
    nj = Cout // TCout

    y = pl.pallas_call(
        functools.partial(_conv_bn_relu_kernel, stride=stride, pad=pad, ksize=ksize),
        grid=(nj,),
        in_specs=[
            pl.BlockSpec((N, H, W, Cin), lambda j: (0, 0, 0, 0)),
            pl.BlockSpec((KKC, TCout), lambda j: (0, j)),
            pl.BlockSpec((1, TCout), lambda j: (0, j)),
            pl.BlockSpec((1, TCout), lambda j: (0, j)),
        ],
        out_specs=pl.BlockSpec((N, P, TCout), lambda j: (0, 0, j)),
        out_shape=jax.ShapeDtypeStruct((N, P, Cout), jnp.bfloat16),
        scratch_shapes=[
            pltpu.VMEM((N, Hp, Wp, Cin), x.dtype),
            pltpu.VMEM((N, Ho, Wo, KKC), x.dtype),
        ],
        compiler_params=pltpu.CompilerParams(
            # "arbitrary": im2col scratch is built at j==0 and reused at j>0.
            dimension_semantics=("arbitrary",),
            vmem_limit_bytes=48 * 1024 * 1024),
        cost_estimate=pl.CostEstimate(
            flops=2 * N * P * KKC * Cout, transcendentals=0,
            bytes_accessed=2 * (N * H * W * Cin + KKC * Cout + N * P * Cout)),
    )(x, w, gamma.reshape(1, Cout).astype(jnp.float32),
      beta.reshape(1, Cout).astype(jnp.float32))
    return y.reshape(N, Ho, Wo, Cout)


# ---------------------------------------------------------------------------
# Fused CBAM: channel attention (pool + shared MLP + sigmoid + multiply) and
# spatial attention (mean/max planes + 7x7 conv + sigmoid + multiply) in one
# kernel launch, grid over batch.
# ---------------------------------------------------------------------------
def _cbam_kernel(x_ref, w1_ref, w2_ref, sw_ref, sb_ref, o_ref, plane_ref,
                 *, ksize, pad):
    """x_ref: (1,H,W,C) bf16; w1: (C,C/16) bf16; w2: (C/16,C) bf16;
    sw: (1, 2*ksize^2) f32 SMEM (tap-major, [avg,max] interleaved);
    sb: (1,1) f32 SMEM; plane_ref: (2, Hp, Wp) f32 VMEM scratch."""
    i = pl.program_id(0)
    _, H, W, C = x_ref.shape
    x = x_ref[0]                                       # (H, W, C) bf16
    xf = x.reshape(H * W, C).astype(jnp.float32)       # (P, C)

    # ---- channel attention: sigmoid(MLP(avgpool) + MLP(maxpool)) ----
    avg = (jnp.sum(xf, axis=0, keepdims=True) / (H * W)).astype(jnp.bfloat16)
    mx = jnp.max(xf, axis=0, keepdims=True).astype(jnp.bfloat16)

    def mlp(v):
        h = jnp.maximum(
            jnp.dot(v, w1_ref[...], preferred_element_type=jnp.float32), 0.0)
        return jnp.dot(h.astype(jnp.bfloat16), w2_ref[...],
                       preferred_element_type=jnp.float32)

    att = 1.0 / (1.0 + jnp.exp(-(mlp(avg) + mlp(mx))))          # (1, C) f32
    xa = xf * att                                               # channel-attended
    xa3 = xa.reshape(H, W, C)

    # ---- spatial attention: sigmoid(conv7x7([mean_c; max_c])) * x ----
    @pl.when(i == 0)
    def _():  # halo only needs zeroing once; interior is rewritten every step
        plane_ref[...] = jnp.zeros_like(plane_ref)
    plane_ref[0, pad:pad + H, pad:pad + W] = jnp.mean(xa3, axis=-1)
    plane_ref[1, pad:pad + H, pad:pad + W] = jnp.max(xa3, axis=-1)

    acc = jnp.full((H, W), sb_ref[0, 0], jnp.float32)
    for kh in range(ksize):
        for kw in range(ksize):
            t = 2 * (kh * ksize + kw)
            acc = acc + plane_ref[0, kh:kh + H, kw:kw + W] * sw_ref[0, t]
            acc = acc + plane_ref[1, kh:kh + H, kw:kw + W] * sw_ref[0, t + 1]
    mask = 1.0 / (1.0 + jnp.exp(-acc))                           # (H, W)
    o_ref[0] = (xa3 * mask[:, :, None]).astype(o_ref.dtype)


def cbam(x, p, *, ksize=7, pad=3):
    """CBAM block.  x: (N, H, W, C) bf16 -> (N, H, W, C) bf16."""
    N, H, W, C = x.shape
    hid = p["w1"].shape[1]
    return pl.pallas_call(
        functools.partial(_cbam_kernel, ksize=ksize, pad=pad),
        grid=(N,),
        in_specs=[pl.BlockSpec((1, H, W, C), lambda i: (i, 0, 0, 0)),
                  pl.BlockSpec((C, hid), lambda i: (0, 0)),
                  pl.BlockSpec((hid, C), lambda i: (0, 0)),
                  pl.BlockSpec(memory_space=pltpu.MemorySpace.SMEM),
                  pl.BlockSpec(memory_space=pltpu.MemorySpace.SMEM)],
        out_specs=pl.BlockSpec((1, H, W, C), lambda i: (i, 0, 0, 0)),
        out_shape=jax.ShapeDtypeStruct((N, H, W, C), jnp.bfloat16),
        scratch_shapes=[pltpu.VMEM((2, H + 2 * pad, W + 2 * pad), jnp.float32)],
        compiler_params=pltpu.CompilerParams(dimension_semantics=("arbitrary",)),
    )(x, p["w1"], p["w2"], p["sw"], p["sb"])


# ---------------------------------------------------------------------------
# fc head: tiled y = act(x @ w + b) with fat K tiles (weight-BW bound, M tiny)
# ---------------------------------------------------------------------------
def _linear_kernel(x_ref, w_ref, b_ref, o_ref, *, relu):
    k = pl.program_id(1)

    @pl.when(k == 0)
    def _():
        o_ref[...] = jnp.zeros_like(o_ref)

    o_ref[...] += jnp.dot(x_ref[...], w_ref[...], preferred_element_type=jnp.float32)

    @pl.when(k == pl.num_programs(1) - 1)
    def _():
        out = o_ref[...] + b_ref[...]
        if relu:
            out = jnp.maximum(out, 0.0)
        o_ref[...] = out


def linear(x, w, b, *, relu=False):
    """x: (M, K); w: (K, Cout) bf16; b: (Cout,) f32 -> (M, Cout) f32."""
    M, K = x.shape
    Kw, Cout = w.shape
    assert K == Kw
    if K % 4096 == 0:
        TK = 4096            # fc1: 4 grid steps, 8 MiB weight blocks
    elif K % 2048 == 0:
        TK = 2048
    elif K % 1024 == 0:
        TK = 1024
    else:
        TK = K
    TN = 1024 if Cout % 1024 == 0 else (512 if Cout % 512 == 0 else Cout)
    return pl.pallas_call(
        functools.partial(_linear_kernel, relu=relu),
        grid=(Cout // TN, K // TK),
        in_specs=[pl.BlockSpec((M, TK), lambda j, k: (0, k)),
                  pl.BlockSpec((TK, TN), lambda j, k: (k, j)),
                  pl.BlockSpec((1, TN), lambda j, k: (0, j))],
        out_specs=pl.BlockSpec((M, TN), lambda j, k: (0, j)),
        out_shape=jax.ShapeDtypeStruct((M, Cout), jnp.float32),
        compiler_params=pltpu.CompilerParams(
            dimension_semantics=("parallel", "arbitrary"),
            vmem_limit_bytes=48 * 1024 * 1024),
        cost_estimate=pl.CostEstimate(
            flops=2 * M * K * Cout, transcendentals=0,
            bytes_accessed=2 * (M * K + K * Cout) + 4 * M * Cout),
    )(x.astype(jnp.bfloat16), w.astype(jnp.bfloat16),
      b.reshape(1, Cout).astype(jnp.float32))


# ---------------------------------------------------------------------------
# SCNet parameters + forward
# ---------------------------------------------------------------------------
def _uniform(key, shape, bound):
    return jax.random.uniform(key, shape, jnp.float32, -bound, bound)


def init_params(key, nc=7):
    keys = iter(jax.random.split(key, 64))

    def conv_p(cin, cout, k=3):
        w = _uniform(next(keys), (k, k, cin, cout), 1.0 / math.sqrt(cin * k * k))
        return {"w": w.reshape(k * k * cin, cout).astype(jnp.bfloat16),   # im2col order
                "gamma": jnp.ones((cout,), jnp.float32),
                "beta": jnp.zeros((cout,), jnp.float32)}

    def cbam_p(c, ratio=16):
        h = c // ratio
        w1 = _uniform(next(keys), (c, h), 1.0 / math.sqrt(c))
        w2 = _uniform(next(keys), (h, c), 1.0 / math.sqrt(h))
        bs = 1.0 / math.sqrt(2 * 7 * 7)
        sw = _uniform(next(keys), (7, 7, 2), bs)          # (kh, kw, [avg, max])
        sb = _uniform(next(keys), (1, 1), bs)
        return {"w1": w1.astype(jnp.bfloat16), "w2": w2.astype(jnp.bfloat16),
                "sw": sw.reshape(1, 2 * 49), "sb": sb}

    def lin_p(cin, cout):
        b = 1.0 / math.sqrt(cin)
        # fc1 weight rows are stored in NHWC-flatten order (equivalent to
        # permuting torch's view(N,-1)/NCHW rows once at init), so the forward
        # needs no runtime NHWC->NCHW transpose before the flatten.
        return {"w": _uniform(next(keys), (cin, cout), b).astype(jnp.bfloat16),
                "b": _uniform(next(keys), (cout,), b)}

    def stage1_p():
        return {"c0": conv_p(3, 64), "cbam": cbam_p(64),
                "c1": conv_p(64, 64), "c2": conv_p(64, 64), "c3": conv_p(64, 128),
                "c4": conv_p(128, 128), "c5": conv_p(128, 128)}

    stage2_p = {"cbam0": cbam_p(256),
                "c0": conv_p(256, 256), "c1": conv_p(256, 256), "c2": conv_p(256, 256),
                "c3": conv_p(256, 512), "c4": conv_p(512, 512), "c5": conv_p(512, 512),
                "c6": conv_p(512, 1024), "c7": conv_p(1024, 1024),
                "cbam1": cbam_p(1024), "c8": conv_p(1024, 1024)}

    return {"s1g": stage1_p(), "s1u": stage1_p(), "s2": stage2_p,
            "fc1": lin_p(16384, 1024), "fc2": lin_p(1024, 512), "fc3": lin_p(512, nc)}


def scnet_forward(params, x_nchw):
    """SCNet forward (training-mode BatchNorm).  x_nchw: (N, 6, 64, 64) f32."""
    N = x_nchw.shape[0]
    # TODO(synk): NCHW->NHWC transpose, the g/u channel concat and the final
    # flatten stay in plain XLA (negligible data movement, no kernel win).
    x = jnp.transpose(x_nchw, (0, 2, 3, 1)).astype(jnp.bfloat16)   # NHWC once, bf16

    def stage1(z, p):
        z = conv_bn_relu(z, **p["c0"], stride=2)    # 64x64x3  -> 32x32x64
        z = cbam(z, p["cbam"])
        z = conv_bn_relu(z, **p["c1"])
        z = conv_bn_relu(z, **p["c2"])
        z = conv_bn_relu(z, **p["c3"], stride=2)    # 32x32x64 -> 16x16x128
        z = conv_bn_relu(z, **p["c4"])
        z = conv_bn_relu(z, **p["c5"])
        return z

    g = stage1(x[..., 0:3], params["s1g"])
    u = stage1(x[..., 3:6], params["s1u"])
    z = jnp.concatenate([g, u], axis=-1)            # (N, 16, 16, 256)

    p = params["s2"]
    z = cbam(z, p["cbam0"])
    z = conv_bn_relu(z, **p["c0"])
    z = conv_bn_relu(z, **p["c1"])
    z = conv_bn_relu(z, **p["c2"])
    z = conv_bn_relu(z, **p["c3"], stride=2)        # -> 8x8x512
    z = conv_bn_relu(z, **p["c4"])
    z = conv_bn_relu(z, **p["c5"])
    z = conv_bn_relu(z, **p["c6"], stride=2)        # -> 4x4x1024
    z = conv_bn_relu(z, **p["c7"])
    z = cbam(z, p["cbam1"])
    z = conv_bn_relu(z, **p["c8"])

    # NHWC flatten; fc1 rows are stored in matching order (see init_params).
    z = z.reshape(N, -1)                            # (N, 16384)

    z = linear(z, params["fc1"]["w"], params["fc1"]["b"], relu=True)
    z = linear(z, params["fc2"]["w"], params["fc2"]["b"], relu=True)
    return linear(z, params["fc3"]["w"], params["fc3"]["b"], relu=False)


# ---------------------------------------------------------------------------
# Pure-JAX references for unit checks
# ---------------------------------------------------------------------------
def _basic_conv_reference(x_nhwc, w_hwio, gamma, beta, *, stride, pad):
    y = jax.lax.conv_general_dilated(
        x_nhwc.astype(jnp.float32), w_hwio.astype(jnp.float32),
        (stride, stride), [(pad, pad), (pad, pad)],
        dimension_numbers=("NHWC", "HWIO", "NHWC"))
    mean = y.mean(axis=(0, 1, 2))
    var = ((y - mean) ** 2).mean(axis=(0, 1, 2))
    return jnp.maximum((y - mean) * jax.lax.rsqrt(var + BN_EPS) * gamma + beta, 0.0)


def _cbam_reference(x_nhwc, p):
    x = x_nhwc.astype(jnp.float32)
    w1 = p["w1"].astype(jnp.float32)
    w2 = p["w2"].astype(jnp.float32)

    def mlp(v):
        return jnp.maximum(v @ w1, 0.0) @ w2

    att = jax.nn.sigmoid(mlp(x.mean(axis=(1, 2))) + mlp(x.max(axis=(1, 2))))
    out = x * att[:, None, None, :]
    feat = jnp.stack([out.mean(axis=-1), out.max(axis=-1)], axis=-1)   # (N, H, W, 2)
    m = jax.lax.conv_general_dilated(
        feat, p["sw"].reshape(7, 7, 2, 1), (1, 1), [(3, 3), (3, 3)],
        dimension_numbers=("NHWC", "HWIO", "NHWC"))
    return out * jax.nn.sigmoid(m + p["sb"][0, 0])


def _rel_err(a, b):
    a = jnp.asarray(a, jnp.float32)
    b = jnp.asarray(b, jnp.float32)
    return float(jnp.linalg.norm(a - b) / (jnp.linalg.norm(b) + 1e-6))


if __name__ == "__main__":
    root = jax.random.PRNGKey(0)
    k_params, k_x, k_t1, k_t2, k_t3 = jax.random.split(root, 5)

    # --- unit check: fused BasicConv kernel (conv + batch-stat BN + ReLU) ------
    cin, cout, hh = 16, 32, 16
    xt = jax.random.normal(k_t1, (2, hh, hh, cin), jnp.float32).astype(jnp.bfloat16)
    wt = _uniform(k_t2, (3, 3, cin, cout), 1.0 / math.sqrt(cin * 9)).astype(jnp.bfloat16)
    gam = jnp.full((cout,), 1.2, jnp.float32)
    bet = jnp.full((cout,), 0.1, jnp.float32)
    for s in (1, 2):
        got = conv_bn_relu(xt, wt.reshape(9 * cin, cout), gam, bet, stride=s)
        ref = _basic_conv_reference(xt, wt, gam, bet, stride=s, pad=1)
        assert got.shape == ref.shape, (got.shape, ref.shape)
        err = _rel_err(got, ref)
        assert err < 3e-2, f"BasicConv stride={s} rel err {err}"

    # --- unit check: fused CBAM block -------------------------------------------
    cb_p = {"w1": _uniform(k_t3, (64, 4), 0.125).astype(jnp.bfloat16),
            "w2": _uniform(k_t2, (4, 64), 0.5).astype(jnp.bfloat16),
            "sw": _uniform(k_t1, (1, 98), 0.1),
            "sb": jnp.full((1, 1), 0.05, jnp.float32)}
    xc = jax.random.normal(k_t1, (2, 8, 8, 64), jnp.float32).astype(jnp.bfloat16)
    err = _rel_err(cbam(xc, cb_p), _cbam_reference(xc, cb_p))
    assert err < 3e-2, f"CBAM rel err {err}"

    # --- full SCNet forward (fc head implies 6-channel 64x64 input) ------------
    params = init_params(k_params)
    x = jax.random.normal(k_x, (2, 6, 64, 64), jnp.float32)
    logits = jax.block_until_ready(jax.jit(scnet_forward)(params, x))
    assert logits.shape == (2, 7), logits.shape
    assert bool(jnp.all(jnp.isfinite(logits)))
    print("KERNEL_OK")
</pallas_src>

<mosaic_0001>
module attributes {stable_mosaic.version = 11 : i64} {
  func.func @_conv_bn_relu_kernel(%arg0: i32, %arg1: memref<2x16x16x16xbf16, #tpu.memory_space<vmem>>, %arg2: memref<144x32xbf16, #tpu.memory_space<vmem>>, %arg3: memref<1x32xf32, #tpu.memory_space<vmem>>, %arg4: memref<1x32xf32, #tpu.memory_space<vmem>>, %arg5: memref<2x256x32xbf16, #tpu.memory_space<vmem>>, %arg6: memref<2x18x18x16xbf16, #tpu.memory_space<vmem>>, %arg7: memref<2x16x16x144xbf16, #tpu.memory_space<vmem>>) attributes {dimension_semantics = [#tpu.dimension_semantics<arbitrary>], iteration_bounds = array<i64: 1>, scalar_prefetch = 0 : i64, scratch_operands = 2 : i64, tpu.core_type = #tpu.core_type<tc>, window_params = [{pipeline_mode = #tpu.pipeline_mode<synchronous>, transform_indices = @transform_0, window_bounds = array<i64: 2, 16, 16, 16>}, {transform_indices = @transform_1, window_bounds = array<i64: 144, 32>}, {transform_indices = @transform_2, window_bounds = array<i64: 1, 32>}, {transform_indices = @transform_3, window_bounds = array<i64: 1, 32>}, {transform_indices = @transform_4, window_bounds = array<i64: 2, 256, 32>}]} {
    %c0_i32 = arith.constant 0 : i32
    %0 = arith.cmpi eq, %arg0, %c0_i32 : i32
    %1 = arith.extui %0 : i1 to i32
    %c0_i32_0 = arith.constant 0 : i32
    %2 = arith.cmpi ne, %1, %c0_i32_0 : i32
    scf.if %2 {
      %cst_20 = arith.constant 0.000000e+00 : bf16
      %37 = vector.broadcast %cst_20 : bf16 to vector<2x18x18x16xbf16>
      %c0_21 = arith.constant 0 : index
      %c0_22 = arith.constant 0 : index
      %c0_23 = arith.constant 0 : index
      %c0_24 = arith.constant 0 : index
      %38 = vector.load %arg6[%c0_21, %c0_22, %c0_23, %c0_24] : memref<2x18x18x16xbf16, #tpu.memory_space<vmem>>, vector<2x18x18x16xbf16>
      tpu.vector_store %arg6[%c0_21, %c0_22, %c0_23, %c0_24], %37 {strides = array<i32>} : memref<2x18x18x16xbf16, #tpu.memory_space<vmem>>, vector<2x18x18x16xbf16>,
      %c0_25 = arith.constant 0 : index
      %c0_26 = arith.constant 0 : index
      %c0_27 = arith.constant 0 : index
      %c0_28 = arith.constant 0 : index
      %39 = vector.load %arg1[%c0_25, %c0_26, %c0_27, %c0_28] : memref<2x16x16x16xbf16, #tpu.memory_space<vmem>>, vector<2x16x16x16xbf16>
      %c0_29 = arith.constant 0 : index
      %c1 = arith.constant 1 : index
      %c1_30 = arith.constant 1 : index
      %c0_31 = arith.constant 0 : index
      %40 = vector.load %arg6[%c0_29, %c1, %c1_30, %c0_31] : memref<2x18x18x16xbf16, #tpu.memory_space<vmem>>, vector<2x16x16x16xbf16>
      tpu.vector_store %arg6[%c0_29, %c1, %c1_30, %c0_31], %39 {strides = array<i32>} : memref<2x18x18x16xbf16, #tpu.memory_space<vmem>>, vector<2x16x16x16xbf16>,
      %c0_32 = arith.constant 0 : index
      %c0_33 = arith.constant 0 : index
      %c0_34 = arith.constant 0 : index
      %c0_35 = arith.constant 0 : index
      %41 = vector.load %arg6[%c0_32, %c0_33, %c0_34, %c0_35] : memref<2x18x18x16xbf16, #tpu.memory_space<vmem>>, vector<2x16x16x16xbf16>
      %c0_36 = arith.constant 0 : index
      %c0_37 = arith.constant 0 : index
      %c0_38 = arith.constant 0 : index
      %c0_39 = arith.constant 0 : index
      %42 = vector.load %arg7[%c0_36, %c0_37, %c0_38, %c0_39] : memref<2x16x16x144xbf16, #tpu.memory_space<vmem>>, vector<2x16x16x16xbf16>
      tpu.vector_store %arg7[%c0_36, %c0_37, %c0_38, %c0_39], %41 {strides = array<i32>} : memref<2x16x16x144xbf16, #tpu.memory_space<vmem>>, vector<2x16x16x16xbf16>,
      %c0_40 = arith.constant 0 : index
      %c0_41 = arith.constant 0 : index
      %c1_42 = arith.constant 1 : index
      %c0_43 = arith.constant 0 : index
      %43 = vector.load %arg6[%c0_40, %c0_41, %c1_42, %c0_43] : memref<2x18x18x16xbf16, #tpu.memory_space<vmem>>, vector<2x16x16x16xbf16>
      %c0_44 = arith.constant 0 : index
      %c0_45 = arith.constant 0 : index
      %c0_46 = arith.constant 0 : index
      %c16 = arith.constant 16 : index
      %44 = vector.load %arg7[%c0_44, %c0_45, %c0_46, %c16] : memref<2x16x16x144xbf16, #tpu.memory_space<vmem>>, vector<2x16x16x16xbf16>
      tpu.vector_store %arg7[%c0_44, %c0_45, %c0_46, %c16], %43 {strides = array<i32>} : memref<2x16x16x144xbf16, #tpu.memory_space<vmem>>, vector<2x16x16x16xbf16>,
      %c0_47 = arith.constant 0 : index
      %c0_48 = arith.constant 0 : index
      %c2 = arith.constant 2 : index
      %c0_49 = arith.constant 0 : index
      %45 = vector.load %arg6[%c0_47, %c0_48, %c2, %c0_49] : memref<2x18x18x16xbf16, #tpu.memory_space<vmem>>, vector<2x16x16x16xbf16>
      %c0_50 = arith.constant 0 : index
      %c0_51 = arith.constant 0 : index
      %c0_52 = arith.constant 0 : index
      %c32 = arith.constant 32 : index
      %46 = vector.load %arg7[%c0_50, %c0_51, %c0_52, %c32] : memref<2x16x16x144xbf16, #tpu.memory_space<vmem>>, vector<2x16x16x16xbf16>
      tpu.vector_store %arg7[%c0_50, %c0_51, %c0_52, %c32], %45 {strides = array<i32>} : memref<2x16x16x144xbf16, #tpu.memory_space<vmem>>, vector<2x16x16x16xbf16>,
      %c0_53 = arith.constant 0 : index
      %c1_54 = arith.constant 1 : index
      %c0_55 = arith.constant 0 : index
      %c0_56 = arith.constant 0 : index
      %47 = vector.load %arg6[%c0_53, %c1_54, %c0_55, %c0_56] : memref<2x18x18x16xbf16, #tpu.memory_space<vmem>>, vector<2x16x16x16xbf16>
      %c0_57 = arith.constant 0 : index
      %c0_58 = arith.constant 0 : index
      %c0_59 = arith.constant 0 : index
      %c48 = arith.constant 48 : index
      %48 = vector.load %arg7[%c0_57, %c0_58, %c0_59, %c48] : memref<2x16x16x144xbf16, #tpu.memory_space<vmem>>, vector<2x16x16x16xbf16>
      tpu.vector_store %arg7[%c0_57, %c0_58, %c0_59, %c48], %47 {strides = array<i32>} : memref<2x16x16x144xbf16, #tpu.memory_space<vmem>>, vector<2x16x16x16xbf16>,
      %c0_60 = arith.constant 0 : index
      %c1_61 = arith.constant 1 : index
      %c1_62 = arith.constant 1 : index
      %c0_63 = arith.constant 0 : index
      %49 = vector.load %arg6[%c0_60, %c1_61, %c1_62, %c0_63] : memref<2x18x18x16xbf16, #tpu.memory_space<vmem>>, vector<2x16x16x16xbf16>
      %c0_64 = arith.constant 0 : index
      %c0_65 = arith.constant 0 : index
      %c0_66 = arith.constant 0 : index
      %c64 = arith.constant 64 : index
      %50 = vector.load %arg7[%c0_64, %c0_65, %c0_66, %c64] : memref<2x16x16x144xbf16, #tpu.memory_space<vmem>>, vector<2x16x16x16xbf16>
      tpu.vector_store %arg7[%c0_64, %c0_65, %c0_66, %c64], %49 {strides = array<i32>} : memref<2x16x16x144xbf16, #tpu.memory_space<vmem>>, vector<2x16x16x16xbf16>,
      %c0_67 = arith.constant 0 : index
      %c1_68 = arith.constant 1 : index
      %c2_69 = arith.constant 2 : index
      %c0_70 = arith.constant 0 : index
      %51 = vector.load %arg6[%c0_67, %c1_68, %c2_69, %c0_70] : memref<2x18x18x16xbf16, #tpu.memory_space<vmem>>, vector<2x16x16x16xbf16>
      %c0_71 = arith.constant 0 : index
      %c0_72 = arith.constant 0 : index
      %c0_73 = arith.constant 0 : index
      %c80 = arith.constant 80 : index
      %52 = vector.load %arg7[%c0_71, %c0_72, %c0_73, %c80] : memref<2x16x16x144xbf16, #tpu.memory_space<vmem>>, vector<2x16x16x16xbf16>
      tpu.vector_store %arg7[%c0_71, %c0_72, %c0_73, %c80], %51 {strides = array<i32>} : memref<2x16x16x144xbf16, #tpu.memory_space<vmem>>, vector<2x16x16x16xbf16>,
      %c0_74 = arith.constant 0 : index
      %c2_75 = arith.constant 2 : index
      %c0_76 = arith.constant 0 : index
      %c0_77 = arith.constant 0 : index
      %53 = vector.load %arg6[%c0_74, %c2_75, %c0_76, %c0_77] : memref<2x18x18x16xbf16, #tpu.memory_space<vmem>>, vector<2x16x16x16xbf16>
      %c0_78 = arith.constant 0 : index
      %c0_79 = arith.constant 0 : index
      %c0_80 = arith.constant 0 : index
      %c96 = arith.constant 96 : index
      %54 = vector.load %arg7[%c0_78, %c0_79, %c0_80, %c96] : memref<2x16x16x144xbf16, #tpu.memory_space<vmem>>, vector<2x16x16x16xbf16>
      tpu.vector_store %arg7[%c0_78, %c0_79, %c0_80, %c96], %53 {strides = array<i32>} : memref<2x16x16x144xbf16, #tpu.memory_space<vmem>>, vector<2x16x16x16xbf16>,
      %c0_81 = arith.constant 0 : index
      %c2_82 = arith.constant 2 : index
      %c1_83 = arith.constant 1 : index
      %c0_84 = arith.constant 0 : index
      %55 = vector.load %arg6[%c0_81, %c2_82, %c1_83, %c0_84] : memref<2x18x18x16xbf16, #tpu.memory_space<vmem>>, vector<2x16x16x16xbf16>
      %c0_85 = arith.constant 0 : index
      %c0_86 = arith.constant 0 : index
      %c0_87 = arith.constant 0 : index
      %c112 = arith.constant 112 : index
      %56 = vector.load %arg7[%c0_85, %c0_86, %c0_87, %c112] : memref<2x16x16x144xbf16, #tpu.memory_space<vmem>>, vector<2x16x16x16xbf16>
      tpu.vector_store %arg7[%c0_85, %c0_86, %c0_87, %c112], %55 {strides = array<i32>} : memref<2x16x16x144xbf16, #tpu.memory_space<vmem>>, vector<2x16x16x16xbf16>,
      %c0_88 = arith.constant 0 : index
      %c2_89 = arith.constant 2 : index
      %c2_90 = arith.constant 2 : index
      %c0_91 = arith.constant 0 : index
      %57 = vector.load %arg6[%c0_88, %c2_89, %c2_90, %c0_91] : memref<2x18x18x16xbf16, #tpu.memory_space<vmem>>, vector<2x16x16x16xbf16>
      %c0_92 = arith.constant 0 : index
      %c0_93 = arith.constant 0 : index
      %c0_94 = arith.constant 0 : index
      %c128 = arith.constant 128 : index
      %58 = vector.load %arg7[%c0_92, %c0_93, %c0_94, %c128] : memref<2x16x16x144xbf16, #tpu.memory_space<vmem>>, vector<2x16x16x16xbf16>
      tpu.vector_store %arg7[%c0_92, %c0_93, %c0_94, %c128], %57 {strides = array<i32>} : memref<2x16x16x144xbf16, #tpu.memory_space<vmem>>, vector<2x16x16x16xbf16>,
    } else {
    }
    %c0 = arith.constant 0 : index
    %c0_1 = arith.constant 0 : index
    %c0_2 = arith.constant 0 : index
    %c0_3 = arith.constant 0 : index
    %3 = vector.load %arg7[%c0, %c0_1, %c0_2, %c0_3] : memref<2x16x16x144xbf16, #tpu.memory_space<vmem>>, vector<2x16x16x144xbf16>
    %4 = vector.shape_cast %3 : vector<2x16x16x144xbf16> to vector<512x144xbf16>
    %c0_4 = arith.constant 0 : index
    %c0_5 = arith.constant 0 : index
    %5 = vector.load %arg2[%c0_4, %c0_5] : memref<144x32xbf16, #tpu.memory_space<vmem>>, vector<144x32xbf16>
    %cst = arith.constant dense<0.000000e+00> : vector<512x32xf32>
    %6 = tpu.matmul %4, %5, %cst {dimension_numbers = #tpu.dot_dimension_numbers<[1], [0], [0], [1], [0, 0, 1, 1], [], []>} : vector<512x144xbf16>, vector<144x32xbf16>, vector<512x32xf32> -> vector<512x32xf32>
    %cst_6 = arith.constant dense<0.000000e+00> : vector<32xf32>
    %7 = vector.multi_reduction <add>, %6, %cst_6 [0] : vector<512x32xf32> to vector<32xf32>
    %8 = vector.shape_cast %7 : vector<32xf32> to vector<1x32xf32>
    %cst_7 = arith.constant 5.120000e+02 : f32
    %9 = vector.broadcast %cst_7 : f32 to vector<1x32xf32>
    %10 = arith.divf %8, %9 : vector<1x32xf32>
    %11 = arith.mulf %6, %6 : vector<512x32xf32>
    %cst_8 = arith.constant dense<0.000000e+00> : vector<32xf32>
    %12 = vector.multi_reduction <add>, %11, %cst_8 [0] : vector<512x32xf32> to vector<32xf32>
    %13 = vector.shape_cast %12 : vector<32xf32> to vector<1x32xf32>
    %cst_9 = arith.constant 5.120000e+02 : f32
    %14 = vector.broadcast %cst_9 : f32 to vector<1x32xf32>
    %15 = arith.divf %13, %14 : vector<1x32xf32>
    %16 = arith.mulf %10, %10 : vector<1x32xf32>
    %17 = arith.subf %15, %16 : vector<1x32xf32>
    %cst_10 = arith.constant 0.000000e+00 : f32
    %18 = vector.broadcast %cst_10 : f32 to vector<1x32xf32>
    %19 = arith.maximumf %17, %18 : vector<1x32xf32>
    %c0_11 = arith.constant 0 : index
    %c0_12 = arith.constant 0 : index
    %20 = vector.load %arg3[%c0_11, %c0_12] : memref<1x32xf32, #tpu.memory_space<vmem>>, vector<1x32xf32>
    %cst_13 = arith.constant 9.99999974E-6 : f32
    %21 = vector.broadcast %cst_13 : f32 to vector<1x32xf32>
    %22 = arith.addf %19, %21 : vector<1x32xf32>
    %23 = math.rsqrt %22 : vector<1x32xf32>
    %24 = arith.mulf %20, %23 : vector<1x32xf32>
    %c0_14 = arith.constant 0 : index
    %c0_15 = arith.constant 0 : index
    %25 = vector.load %arg4[%c0_14, %c0_15] : memref<1x32xf32, #tpu.memory_space<vmem>>, vector<1x32xf32>
    %26 = arith.mulf %10, %24 : vector<1x32xf32>
    %27 = arith.subf %25, %26 : vector<1x32xf32>
    %28 = vector.broadcast %24 : vector<1x32xf32> to vector<512x32xf32>
    %29 = arith.mulf %6, %28 : vector<512x32xf32>
    %30 = vector.broadcast %27 : vector<1x32xf32> to vector<512x32xf32>
    %31 = arith.addf %29, %30 : vector<512x32xf32>
    %cst_16 = arith.constant 0.000000e+00 : f32
    %32 = vector.broadcast %cst_16 : f32 to vector<512x32xf32>
    %33 = arith.maximumf %31, %32 : vector<512x32xf32>
    %34 = vector.shape_cast %33 : vector<512x32xf32> to vector<2x256x32xf32>
    %35 = arith.truncf %34 : vector<2x256x32xf32> to vector<2x256x32xbf16>
    %c0_17 = arith.constant 0 : index
    %c0_18 = arith.constant 0 : index
    %c0_19 = arith.constant 0 : index
    %36 = vector.load %arg5[%c0_17, %c0_18, %c0_19] : memref<2x256x32xbf16, #tpu.memory_space<vmem>>, vector<2x256x32xbf16>
    tpu.vector_store %arg5[%c0_17, %c0_18, %c0_19], %35 {strides = array<i32>} : memref<2x256x32xbf16, #tpu.memory_space<vmem>>, vector<2x256x32xbf16>,
    return
  }
  func.func @transform_0(%arg0: i32) -> (i32, i32, i32, i32) {
    %c0_i32 = arith.constant 0 : i32
    %c0_i32_0 = arith.constant 0 : i32
    %c0_i32_1 = arith.constant 0 : i32
    %c0_i32_2 = arith.constant 0 : i32
    %c0_i32_3 = arith.constant 0 : i32
    return %c0_i32, %c0_i32_0, %c0_i32_1, %c0_i32_2 : i32, i32, i32, i32
  }
  func.func @transform_1(%arg0: i32) -> (i32, i32) {
    %c0_i32 = arith.constant 0 : i32
    %c0_i32_0 = arith.constant 0 : i32
    return %c0_i32, %arg0 : i32, i32
  }
  func.func @transform_2(%arg0: i32) -> (i32, i32) {
    %c0_i32 = arith.constant 0 : i32
    %c0_i32_0 = arith.constant 0 : i32
    return %c0_i32, %arg0 : i32, i32
  }
  func.func @transform_3(%arg0: i32) -> (i32, i32) {
    %c0_i32 = arith.constant 0 : i32
    %c0_i32_0 = arith.constant 0 : i32
    return %c0_i32, %arg0 : i32, i32
  }
  func.func @transform_4(%arg0: i32) -> (i32, i32, i32) {
    %c0_i32 = arith.constant 0 : i32
    %c0_i32_0 = arith.constant 0 : i32
    %c0_i32_1 = arith.constant 0 : i32
    return %c0_i32, %c0_i32_0, %arg0 : i32, i32, i32
  }
}

</mosaic_0001>

<llo_original>
// kernel: tpu_custom_call.1
$region0: #{tpu_custom_call.1}
  #allocation0 [shape = 'u32[]', space=smem, size = 0x4, offset = 0x4, fixed_abs, tag = 'smem constant byte address 0x4 - core index']
  #allocation1 [shape = 'u32[72,128]{1,0:T(1,128)}', space=vmem, size = 0x9000, scoped, tag = 'internal scratch']
  #allocation2 [shape = 'bf16[2,18,18,16]{3,2,1,0:T(8,128)(2,1)}', space=vmem, size = 0x36000, scoped, tag = 'scratch operand']
  #allocation3 [shape = 'bf16[2,16,16,144]{3,2,1,0:T(8,128)(2,1)}', space=vmem, size = 0x40000, scoped, tag = 'scratch operand']
  %s0 = inlined_call_operand.hbm [shape: bf16[2,16,16,16], index: 0, kind: input, shape index: {}]
  %s1 = inlined_call_operand.vmem [shape: bf16[144,32], index: 1, kind: input, shape index: {}]
  %s2 = inlined_call_operand.vmem [shape: f32[1,32], index: 2, kind: input, shape index: {}]
  %s3 = inlined_call_operand.vmem [shape: f32[1,32], index: 3, kind: input, shape index: {}]
  %s4 = inlined_call_operand.vmem [shape: bf16[2,256,32], index: 4, kind: output, shape index: {}]
  %s5 = sld [smem:[#allocation0]]
  $region34: #{tpu_custom_call.1} parent=0
    _
  %s7 = ssub.s32 1, %s5
  %s8 = scalar_select 0, %s7, %s5
  $region1: #{tpu_custom_call.1} parent=0
    #allocation4 [shape = 'u8[131072]{0}', space=vmem, size = 0x20000, scoped, tag = 'input window, operand 0, single buffered']
    #allocation5 [shape = 's32[1]{0}', space=sflag, size = 0x4, scoped, tag = 'scoped memory for tpu_custom_call.1']
    %9 = vsyncpa [#allocation5], 0
    // Predicated region
    $region2: #{tpu_custom_call.1} parent=1 // pred_check
      _
    $region3: #{tpu_custom_call.1} parent=1 // pred_check_branch
      %11 = sbr.rel (0) target = $region5
    $region4: #{tpu_custom_call.1} parent=1 // pred_region
      %13 = vsyncadd [#allocation5], 0
      %s14 = sshll.u32 %s0, 4
      %s15 = int_to_ptr.hbm [resolvable:$true] %s14
      %s16 = sshll.u32 [#allocation4], 4
      %s17 = int_to_ptr.vmem [resolvable:$true] %s16
      %22 = dma.hbm_to_vmem [thread:$0]  %s15, 4096, %s17, [#allocation5], 64, 64, 4
    $region5: #{tpu_custom_call.1} parent=1 // pred_fallthru
      _
    // Predicated region
    $region6: #{tpu_custom_call.1} parent=1 // pred_check
      _
    $region7: #{tpu_custom_call.1} parent=1 // pred_check_branch
      %24 = sbr.rel (0) target = $region9
    $region8: #{tpu_custom_call.1} parent=1 // pred_region
      _
    $region9: #{tpu_custom_call.1} parent=1 // pred_fallthru
      _
    // Predicated region
    $region10: #{tpu_custom_call.1} parent=1 // pred_check
      _
    $region11: #{tpu_custom_call.1} parent=1 // pred_check_branch
      %26 = sbr.rel (0) target = $region13
    $region12: #{tpu_custom_call.1} parent=1 // pred_region
      _
    $region13: #{tpu_custom_call.1} parent=1 // pred_fallthru
      _
    // Predicated region
    $region14: #{tpu_custom_call.1} parent=1 // pred_check
      _
    $region15: #{tpu_custom_call.1} parent=1 // pred_check_branch
      %28 = sbr.rel (0) target = $region17
    $region16: #{tpu_custom_call.1} parent=1 // pred_region
      _
    $region17: #{tpu_custom_call.1} parent=1 // pred_fallthru
      _
    // Predicated region
    $region18: #{tpu_custom_call.1} parent=1 // pred_check
      _
    $region19: #{tpu_custom_call.1} parent=1 // pred_check_branch
      %30 = sbr.rel (0) target = $region21
    $region20: #{tpu_custom_call.1} parent=1 // pred_region
      %32 = dma.done [#allocation5], 4096
    $region21: #{tpu_custom_call.1} parent=1 // pred_fallthru
      _
    %p34 = scmp.eq.s32.totalorder 0, 0
    // Predicated region
    $region22: #{tpu_custom_call.1} parent=1 // pred_check
      %p35 = pneg %p34
    $region23: #{tpu_custom_call.1} parent=1 // pred_check_branch
      %37 = sbr.rel (%p35) target = $region25
    $region24: #{tpu_custom_call.1} parent=1 // pred_region
      %vm38 = vcmask 125952
      %39 = vst.msk [vmem:[#allocation2] sm:$0xf] %vm38, 0
      %40 = vst.msk [vmem:[#allocation2 + $0x4] sm:$0xf] %vm38, 0
      %vm41 = vcmask 122880
      %42 = vst.msk [vmem:[#allocation2 + $0x8] sm:$0x1] %vm41, 0
      %43 = vst.msk [vmem:[#allocation2 + $0xc] sm:$0xf] %vm38, 0
      %44 = vst.msk [vmem:[#allocation2 + $0x10] sm:$0xf] %vm38, 0
      %45 = vst.msk [vmem:[#allocation2 + $0x14] sm:$0x1] %vm41, 0
      %46 = vst.msk [vmem:[#allocation2 + $0x18] sm:$0xf] %vm38, 0
      %47 = vst.msk [vmem:[#allocation2 + $0x1c] sm:$0xf] %vm38, 0
      %48 = vst.msk [vmem:[#allocation2 + $0x20] sm:$0x1] %vm41, 0
      %49 = vst.msk [vmem:[#allocation2 + $0x24] sm:$0xf] %vm38, 0
      %50 = vst.msk [vmem:[#allocation2 + $0x28] sm:$0xf] %vm38, 0
      %51 = vst.msk [vmem:[#allocation2 + $0x2c] sm:$0x1] %vm41, 0
      %52 = vst.msk [vmem:[#allocation2 + $0x30] sm:$0xf] %vm38, 0
      %53 = vst.msk [vmem:[#allocation2 + $0x34] sm:$0xf] %vm38, 0
      %54 = vst.msk [vmem:[#allocation2 + $0x38] sm:$0x1] %vm41, 0
      %55 = vst.msk [vmem:[#allocation2 + $0x3c] sm:$0xf] %vm38, 0
      %56 = vst.msk [vmem:[#allocation2 + $0x40] sm:$0xf] %vm38, 0
      %57 = vst.msk [vmem:[#allocation2 + $0x44] sm:$0x1] %vm41, 0
      %58 = vst.msk [vmem:[#allocation2 + $0x48] sm:$0xf] %vm38, 0
      %59 = vst.msk [vmem:[#allocation2 + $0x4c] sm:$0xf] %vm38, 0
      %60 = vst.msk [vmem:[#allocation2 + $0x50] sm:$0x1] %vm41, 0
      %61 = vst.msk [vmem:[#allocation2 + $0x54] sm:$0xf] %vm38, 0
      %62 = vst.msk [vmem:[#allocation2 + $0x58] sm:$0xf] %vm38, 0
      %63 = vst.msk [vmem:[#allocation2 + $0x5c] sm:$0x1] %vm41, 0
      %64 = vst.msk [vmem:[#allocation2 + $0x60] sm:$0xf] %vm38, 0
      %65 = vst.msk [vmem:[#allocation2 + $0x64] sm:$0xf] %vm38, 0
      %66 = vst.msk [vmem:[#allocation2 + $0x68] sm:$0x1] %vm41, 0
      %67 = vst.msk [vmem:[#allocation2 + $0x6c] sm:$0xf] %vm38, 0
      %68 = vst.msk [vmem:[#allocation2 + $0x70] sm:$0xf] %vm38, 0
      %69 = vst.msk [vmem:[#allocation2 + $0x74] sm:$0x1] %vm41, 0
      %70 = vst.msk [vmem:[#allocation2 + $0x78] sm:$0xf] %vm38, 0
      %71 = vst.msk [vmem:[#allocation2 + $0x7c] sm:$0xf] %vm38, 0
      %72 = vst.msk [vmem:[#allocation2 + $0x80] sm:$0x1] %vm41, 0
      %73 = vst.msk [vmem:[#allocation2 + $0x84] sm:$0xf] %vm38, 0
      %74 = vst.msk [vmem:[#allocation2 + $0x88] sm:$0xf] %vm38, 0
      %75 = vst.msk [vmem:[#allocation2 + $0x8c] sm:$0x1] %vm41, 0
      %76 = vst.msk [vmem:[#allocation2 + $0x90] sm:$0xf] %vm38, 0
      %77 = vst.msk [vmem:[#allocation2 + $0x94] sm:$0xf] %vm38, 0
      %78 = vst.msk [vmem:[#allocation2 + $0x98] sm:$0x1] %vm41, 0
      %79 = vst.msk [vmem:[#allocation2 + $0x9c] sm:$0xf] %vm38, 0
      %80 = vst.msk [vmem:[#allocation2 + $0xa0] sm:$0xf] %vm38, 0
      %81 = vst.msk [vmem:[#allocation2 + $0xa4] sm:$0x1] %vm41, 0
      %82 = vst.msk [vmem:[#allocation2 + $0xa8] sm:$0xf] %vm38, 0
      %83 = vst.msk [vmem:[#allocation2 + $0xac] sm:$0xf] %vm38, 0
      %84 = vst.msk [vmem:[#allocation2 + $0xb0] sm:$0x1] %vm41, 0
      %85 = vst.msk [vmem:[#allocation2 + $0xb4] sm:$0xf] %vm38, 0
      %86 = vst.msk [vmem:[#allocation2 + $0xb8] sm:$0xf] %vm38, 0
      %87 = vst.msk [vmem:[#allocation2 + $0xbc] sm:$0x1] %vm41, 0
      %88 = vst.msk [vmem:[#allocation2 + $0xc0] sm:$0xf] %vm38, 0
      %89 = vst.msk [vmem:[#allocation2 + $0xc4] sm:$0xf] %vm38, 0
      %90 = vst.msk [vmem:[#allocation2 + $0xc8] sm:$0x1] %vm41, 0
      %91 = vst.msk [vmem:[#allocation2 + $0xcc] sm:$0xf] %vm38, 0
      %92 = vst.msk [vmem:[#allocation2 + $0xd0] sm:$0xf] %vm38, 0
      %93 = vst.msk [vmem:[#allocation2 + $0xd4] sm:$0x1] %vm41, 0
      %94 = vst.msk [vmem:[#allocation2 + $0xd8] sm:$0xf] %vm38, 0
      %95 = vst.msk [vmem:[#allocation2 + $0xdc] sm:$0xf] %vm38, 0
      %96 = vst.msk [vmem:[#allocation2 + $0xe0] sm:$0x1] %vm41, 0
      %97 = vst.msk [vmem:[#allocation2 + $0xe4] sm:$0xf] %vm38, 0
      %98 = vst.msk [vmem:[#allocation2 + $0xe8] sm:$0xf] %vm38, 0
      %99 = vst.msk [vmem:[#allocation2 + $0xec] sm:$0x1] %vm41, 0
      %100 = vst.msk [vmem:[#allocation2 + $0xf0] sm:$0xf] %vm38, 0
      %101 = vst.msk [vmem:[#allocation2 + $0xf4] sm:$0xf] %vm38, 0
      %102 = vst.msk [vmem:[#allocation2 + $0xf8] sm:$0x1] %vm41, 0
      %103 = vst.msk [vmem:[#allocation2 + $0xfc] sm:$0xf] %vm38, 0
      %104 = vst.msk [vmem:[#allocation2 + $0x100] sm:$0xf] %vm38, 0
      %105 = vst.msk [vmem:[#allocation2 + $0x104] sm:$0x1] %vm41, 0
      %106 = vst.msk [vmem:[#allocation2 + $0x108] sm:$0xf] %vm38, 0
      %107 = vst.msk [vmem:[#allocation2 + $0x10c] sm:$0xf] %vm38, 0
      %108 = vst.msk [vmem:[#allocation2 + $0x110] sm:$0x1] %vm41, 0
      %109 = vst.msk [vmem:[#allocation2 + $0x114] sm:$0xf] %vm38, 0
      %110 = vst.msk [vmem:[#allocation2 + $0x118] sm:$0xf] %vm38, 0
      %111 = vst.msk [vmem:[#allocation2 + $0x11c] sm:$0x1] %vm41, 0
      %112 = vst.msk [vmem:[#allocation2 + $0x120] sm:$0xf] %vm38, 0
      %113 = vst.msk [vmem:[#allocation2 + $0x124] sm:$0xf] %vm38, 0
      %114 = vst.msk [vmem:[#allocation2 + $0x128] sm:$0x1] %vm41, 0
      %115 = vst.msk [vmem:[#allocation2 + $0x12c] sm:$0xf] %vm38, 0
      %116 = vst.msk [vmem:[#allocation2 + $0x130] sm:$0xf] %vm38, 0
      %117 = vst.msk [vmem:[#allocation2 + $0x134] sm:$0x1] %vm41, 0
      %118 = vst.msk [vmem:[#allocation2 + $0x138] sm:$0xf] %vm38, 0
      %119 = vst.msk [vmem:[#allocation2 + $0x13c] sm:$0xf] %vm38, 0
      %120 = vst.msk [vmem:[#allocation2 + $0x140] sm:$0x1] %vm41, 0
      %121 = vst.msk [vmem:[#allocation2 + $0x144] sm:$0xf] %vm38, 0
      %122 = vst.msk [vmem:[#allocation2 + $0x148] sm:$0xf] %vm38, 0
      %123 = vst.msk [vmem:[#allocation2 + $0x14c] sm:$0x1] %vm41, 0
      %124 = vst.msk [vmem:[#allocation2 + $0x150] sm:$0xf] %vm38, 0
      %125 = vst.msk [vmem:[#allocation2 + $0x154] sm:$0xf] %vm38, 0
      %126 = vst.msk [vmem:[#allocation2 + $0x158] sm:$0x1] %vm41, 0
      %127 = vst.msk [vmem:[#allocation2 + $0x15c] sm:$0xf] %vm38, 0
      %128 = vst.msk [vmem:[#allocation2 + $0x160] sm:$0xf] %vm38, 0
      %129 = vst.msk [vmem:[#allocation2 + $0x164] sm:$0x1] %vm41, 0
      %130 = vst.msk [vmem:[#allocation2 + $0x168] sm:$0xf] %vm38, 0
      %131 = vst.msk [vmem:[#allocation2 + $0x16c] sm:$0xf] %vm38, 0
      %132 = vst.msk [vmem:[#allocation2 + $0x170] sm:$0x1] %vm41, 0
      %133 = vst.msk [vmem:[#allocation2 + $0x174] sm:$0xf] %vm38, 0
      %134 = vst.msk [vmem:[#allocation2 + $0x178] sm:$0xf] %vm38, 0
      %135 = vst.msk [vmem:[#allocation2 + $0x17c] sm:$0x1] %vm41, 0
      %136 = vst.msk [vmem:[#allocation2 + $0x180] sm:$0xf] %vm38, 0
      %137 = vst.msk [vmem:[#allocation2 + $0x184] sm:$0xf] %vm38, 0
      %138 = vst.msk [vmem:[#allocation2 + $0x188] sm:$0x1] %vm41, 0
      %139 = vst.msk [vmem:[#allocation2 + $0x18c] sm:$0xf] %vm38, 0
      %140 = vst.msk [vmem:[#allocation2 + $0x190] sm:$0xf] %vm38, 0
      %141 = vst.msk [vmem:[#allocation2 + $0x194] sm:$0x1] %vm41, 0
      %142 = vst.msk [vmem:[#allocation2 + $0x198] sm:$0xf] %vm38, 0
      %143 = vst.msk [vmem:[#allocation2 + $0x19c] sm:$0xf] %vm38, 0
      %144 = vst.msk [vmem:[#allocation2 + $0x1a0] sm:$0x1] %vm41, 0
      %145 = vst.msk [vmem:[#allocation2 + $0x1a4] sm:$0xf] %vm38, 0
      %146 = vst.msk [vmem:[#allocation2 + $0x1a8] sm:$0xf] %vm38, 0
      %147 = vst.msk [vmem:[#allocation2 + $0x1ac] sm:$0x1] %vm41, 0
      %v148 = vld [vmem:[#allocation4] sm:$0xf]
      %v149 = vld [vmem:[#allocation4 + $0x4] sm:$0xf]
      %v150 = vld [vmem:[#allocation4 + $0x8] sm:$0xf]
      %v151 = vld [vmem:[#allocation4 + $0xc] sm:$0xf]
      %v152 = vld [vmem:[#allocation4 + $0x10] sm:$0xf]
      %v153 = vld [vmem:[#allocation4 + $0x14] sm:$0xf]
      %v154 = vld [vmem:[#allocation4 + $0x18] sm:$0xf]
      %v155 = vld [vmem:[#allocation4 + $0x1c] sm:$0xf]
      %v156 = vld [vmem:[#allocation4 + $0x20] sm:$0xf]
      %v157 = vld [vmem:[#allocation4 + $0x24] sm:$0xf]
      %v158 = vld [vmem:[#allocation4 + $0x28] sm:$0xf]
      %v159 = vld [vmem:[#allocation4 + $0x2c] sm:$0xf]
      %v160 = vld [vmem:[#allocation4 + $0x30] sm:$0xf]
      %v161 = vld [vmem:[#allocation4 + $0x34] sm:$0xf]
      %v162 = vld [vmem:[#allocation4 + $0x38] sm:$0xf]
      %v163 = vld [vmem:[#allocation4 + $0x3c] sm:$0xf]
      %v164 = vld [vmem:[#allocation4 + $0x40] sm:$0xf]
      %v165 = vld [vmem:[#allocation4 + $0x44] sm:$0xf]
      %v166 = vld [vmem:[#allocation4 + $0x48] sm:$0xf]
      %v167 = vld [vmem:[#allocation4 + $0x4c] sm:$0xf]
      %v168 = vld [vmem:[#allocation4 + $0x50] sm:$0xf]
      %v169 = vld [vmem:[#allocation4 + $0x54] sm:$0xf]
      %v170 = vld [vmem:[#allocation4 + $0x58] sm:$0xf]
      %v171 = vld [vmem:[#allocation4 + $0x5c] sm:$0xf]
      %v172 = vld [vmem:[#allocation4 + $0x60] sm:$0xf]
      %v173 = vld [vmem:[#allocation4 + $0x64] sm:$0xf]
      %v174 = vld [vmem:[#allocation4 + $0x68] sm:$0xf]
      %v175 = vld [vmem:[#allocation4 + $0x6c] sm:$0xf]
      %v176 = vld [vmem:[#allocation4 + $0x70] sm:$0xf]
      %v177 = vld [vmem:[#allocation4 + $0x74] sm:$0xf]
      %v178 = vld [vmem:[#allocation4 + $0x78] sm:$0xf]
      %v179 = vld [vmem:[#allocation4 + $0x7c] sm:$0xf]
      %v180 = vld [vmem:[#allocation4 + $0x80] sm:$0xf]
      %v181 = vld [vmem:[#allocation4 + $0x84] sm:$0xf]
      %v182 = vld [vmem:[#allocation4 + $0x88] sm:$0xf]
      %v183 = vld [vmem:[#allocation4 + $0x8c] sm:$0xf]
      %v184 = vld [vmem:[#allocation4 + $0x90] sm:$0xf]
      %v185 = vld [vmem:[#allocation4 + $0x94] sm:$0xf]
      %v186 = vld [vmem:[#allocation4 + $0x98] sm:$0xf]
      %v187 = vld [vmem:[#allocation4 + $0x9c] sm:$0xf]
      %v188 = vld [vmem:[#allocation4 + $0xa0] sm:$0xf]
      %v189 = vld [vmem:[#allocation4 + $0xa4] sm:$0xf]
      %v190 = vld [vmem:[#allocation4 + $0xa8] sm:$0xf]
      %v191 = vld [vmem:[#allocation4 + $0xac] sm:$0xf]
      %v192 = vld [vmem:[#allocation4 + $0xb0] sm:$0xf]
      %v193 = vld [vmem:[#allocation4 + $0xb4] sm:$0xf]
      %v194 = vld [vmem:[#allocation4 + $0xb8] sm:$0xf]
      %v195 = vld [vmem:[#allocation4 + $0xbc] sm:$0xf]
      %v196 = vld [vmem:[#allocation4 + $0xc0] sm:$0xf]
      %v197 = vld [vmem:[#allocation4 + $0xc4] sm:$0xf]
      %v198 = vld [vmem:[#allocation4 + $0xc8] sm:$0xf]
      %v199 = vld [vmem:[#allocation4 + $0xcc] sm:$0xf]
      %v200 = vld [vmem:[#allocation4 + $0xd0] sm:$0xf]
      %v201 = vld [vmem:[#allocation4 + $0xd4] sm:$0xf]
      %v202 = vld [vmem:[#allocation4 + $0xd8] sm:$0xf]
      %v203 = vld [vmem:[#allocation4 + $0xdc] sm:$0xf]
      %v204 = vld [vmem:[#allocation4 + $0xe0] sm:$0xf]
      %v205 = vld [vmem:[#allocation4 + $0xe4] sm:$0xf]
      %v206 = vld [vmem:[#allocation4 + $0xe8] sm:$0xf]
      %v207 = vld [vmem:[#allocation4 + $0xec] sm:$0xf]
      %v208 = vld [vmem:[#allocation4 + $0xf0] sm:$0xf]
      %v209 = vld [vmem:[#allocation4 + $0xf4] sm:$0xf]
      %v210 = vld [vmem:[#allocation4 + $0xf8] sm:$0xf]
      %v211 = vld [vmem:[#allocation4 + $0xfc] sm:$0xf]
      %vm212 = vsmask.f32 256
      %vm213 = vsmask.f32 4368
      %vm214 = vmor %vm212, %vm213
      %v216 = vshrl.u32 %v148, 16
      %v218 = vrot.slane %v216, 7
      %v219 = vshll.u32 %v148, 16
      %v221 = vor.u32 %v218, %v219
      %v222 = vrot.slane %v218, 4
      %v224 = vshrl.u32 %v149, 16
      %v226 = vrot.slane %v224, 7
      %v227 = vshll.u32 %v149, 16
      %v229 = vor.u32 %v226, %v227
      %v230 = vsel %vm214, %v222, %v229
      %v231 = vrot.slane %v226, 4
      %v233 = vshrl.u32 %v150, 16
      %v235 = vrot.slane %v233, 7
      %v236 = vshll.u32 %v150, 16
      %v238 = vor.u32 %v235, %v236
      %v239 = vrot.slane %v235, 4
      %v241 = vshrl.u32 %v151, 16
      %v243 = vrot.slane %v241, 7
      %v244 = vshll.u32 %v151, 16
      %v246 = vor.u32 %v243, %v244
      %v247 = vsel %vm214, %v239, %v246
      %v248 = vrot.slane %v243, 4
      %v250 = vshrl.u32 %v152, 16
      %v252 = vrot.slane %v250, 7
      %v253 = vshll.u32 %v152, 16
      %v255 = vor.u32 %v252, %v253
      %v256 = vrot.slane %v252, 4
      %v258 = vshrl.u32 %v153, 16
      %v260 = vrot.slane %v258, 7
      %v261 = vshll.u32 %v153, 16
      %v263 = vor.u32 %v260, %v261
      %v264 = vsel %vm214, %v256, %v263
      %v265 = vrot.slane %v260, 4
      %v267 = vshrl.u32 %v154, 16
      %v269 = vrot.slane %v267, 7
      %v270 = vshll.u32 %v154, 16
      %v272 = vor.u32 %v269, %v270
      %v273 = vrot.slane %v269, 4
      %v275 = vshrl.u32 %v155, 16
      %v277 = vrot.slane %v275, 7
      %v278 = vshll.u32 %v155, 16
      %v280 = vor.u32 %v277, %v278
      %v281 = vsel %vm214, %v273, %v280
      %v282 = vrot.slane %v277, 4
      %v284 = vshrl.u32 %v156, 16
      %v286 = vrot.slane %v284, 7
      %v287 = vshll.u32 %v156, 16
      %v289 = vor.u32 %v286, %v287
      %v290 = vrot.slane %v286, 4
      %v292 = vshrl.u32 %v157, 16
      %v294 = vrot.slane %v292, 7
      %v295 = vshll.u32 %v157, 16
      %v297 = vor.u32 %v294, %v295
      %v298 = vsel %vm214, %v290, %v297
      %v299 = vrot.slane %v294, 4
      %v301 = vshrl.u32 %v158, 16
      %v303 = vrot.slane %v301, 7
      %v304 = vshll.u32 %v158, 16
      %v306 = vor.u32 %v303, %v304
      %v307 = vrot.slane %v303, 4
      %v309 = vshrl.u32 %v159, 16
      %v311 = vrot.slane %v309, 7
      %v312 = vshll.u32 %v159, 16
      %v314 = vor.u32 %v311, %v312
      %v315 = vsel %vm214, %v307, %v314
      %v316 = vrot.slane %v311, 4
      %v318 = vshrl.u32 %v160, 16
      %v320 = vrot.slane %v318, 7
      %v321 = vshll.u32 %v160, 16
      %v323 = vor.u32 %v320, %v321
      %v324 = vrot.slane %v320, 4
      %v326 = vshrl.u32 %v161, 16
      %v328 = vrot.slane %v326, 7
      %v329 = vshll.u32 %v161, 16
      %v331 = vor.u32 %v328, %v329
      %v332 = vsel %vm214, %v324, %v331
      %v333 = vrot.slane %v328, 4
      %v335 = vshrl.u32 %v162, 16
      %v337 = vrot.slane %v335, 7
      %v338 = vshll.u32 %v162, 16
      %v340 = vor.u32 %v337, %v338
      %v341 = vrot.slane %v337, 4
      %v343 = vshrl.u32 %v163, 16
      %v345 = vrot.slane %v343, 7
      %v346 = vshll.u32 %v163, 16
      %v348 = vor.u32 %v345, %v346
      %v349 = vsel %vm214, %v341, %v348
      %v350 = vrot.slane %v345, 4
      %v352 = vshrl.u32 %v164, 16
      %v354 = vrot.slane %v352, 7
      %v355 = vshll.u32 %v164, 16
      %v357 = vor.u32 %v354, %v355
      %v358 = vrot.slane %v354, 4
      %v360 = vshrl.u32 %v165, 16
      %v362 = vrot.slane %v360, 7
      %v363 = vshll.u32 %v165, 16
      %v365 = vor.u32 %v362, %v363
      %v366 = vsel %vm214, %v358, %v365
      %v367 = vrot.slane %v362, 4
      %v369 = vshrl.u32 %v166, 16
      %v371 = vrot.slane %v369, 7
      %v372 = vshll.u32 %v166, 16
      %v374 = vor.u32 %v371, %v372
      %v375 = vrot.slane %v371, 4
      %v377 = vshrl.u32 %v167, 16
      %v379 = vrot.slane %v377, 7
      %v380 = vshll.u32 %v167, 16
      %v382 = vor.u32 %v379, %v380
      %v383 = vsel %vm214, %v375, %v382
      %v384 = vrot.slane %v379, 4
      %v386 = vshrl.u32 %v168, 16
      %v388 = vrot.slane %v386, 7
      %v389 = vshll.u32 %v168, 16
      %v391 = vor.u32 %v388, %v389
      %v392 = vrot.slane %v388, 4
      %v394 = vshrl.u32 %v169, 16
      %v396 = vrot.slane %v394, 7
      %v397 = vshll.u32 %v169, 16
      %v399 = vor.u32 %v396, %v397
      %v400 = vsel %vm214, %v392, %v399
      %v401 = vrot.slane %v396, 4
      %v403 = vshrl.u32 %v170, 16
      %v405 = vrot.slane %v403, 7
      %v406 = vshll.u32 %v170, 16
      %v408 = vor.u32 %v405, %v406
      %v409 = vrot.slane %v405, 4
      %v411 = vshrl.u32 %v171, 16
      %v413 = vrot.slane %v411, 7
      %v414 = vshll.u32 %v171, 16
      %v416 = vor.u32 %v413, %v414
      %v417 = vsel %vm214, %v409, %v416
      %v418 = vrot.slane %v413, 4
      %v420 = vshrl.u32 %v172, 16
      %v422 = vrot.slane %v420, 7
      %v423 = vshll.u32 %v172, 16
      %v425 = vor.u32 %v422, %v423
      %v426 = vrot.slane %v422, 4
      %v428 = vshrl.u32 %v173, 16
      %v430 = vrot.slane %v428, 7
      %v431 = vshll.u32 %v173, 16
      %v433 = vor.u32 %v430, %v431
      %v434 = vsel %vm214, %v426, %v433
      %v435 = vrot.slane %v430, 4
      %v437 = vshrl.u32 %v174, 16
      %v439 = vrot.slane %v437, 7
      %v440 = vshll.u32 %v174, 16
      %v442 = vor.u32 %v439, %v440
      %v443 = vrot.slane %v439, 4
      %v445 = vshrl.u32 %v175, 16
      %v447 = vrot.slane %v445, 7
      %v448 = vshll.u32 %v175, 16
      %v450 = vor.u32 %v447, %v448
      %v451 = vsel %vm214, %v443, %v450
      %v452 = vrot.slane %v447, 4
      %v454 = vshrl.u32 %v176, 16
      %v456 = vrot.slane %v454, 7
      %v457 = vshll.u32 %v176, 16
      %v459 = vor.u32 %v456, %v457
      %v460 = vrot.slane %v456, 4
      %v462 = vshrl.u32 %v177, 16
      %v464 = vrot.slane %v462, 7
      %v465 = vshll.u32 %v177, 16
      %v467 = vor.u32 %v464, %v465
      %v468 = vsel %vm214, %v460, %v467
      %v469 = vrot.slane %v464, 4
      %v471 = vshrl.u32 %v178, 16
      %v473 = vrot.slane %v471, 7
      %v474 = vshll.u32 %v178, 16
      %v476 = vor.u32 %v473, %v474
      %v477 = vrot.slane %v473, 4
      %v479 = vshrl.u32 %v179, 16
      %v481 = vrot.slane %v479, 7
      %v482 = vshll.u32 %v179, 16
      %v484 = vor.u32 %v481, %v482
      %v485 = vsel %vm214, %v477, %v484
      %v486 = vrot.slane %v481, 4
      %v488 = vshrl.u32 %v180, 16
      %v490 = vrot.slane %v488, 7
      %v491 = vshll.u32 %v180, 16
      %v493 = vor.u32 %v490, %v491
      %v494 = vrot.slane %v490, 4
      %v496 = vshrl.u32 %v181, 16
      %v498 = vrot.slane %v496, 7
      %v499 = vshll.u32 %v181, 16
      %v501 = vor.u32 %v498, %v499
      %v502 = vsel %vm214, %v494, %v501
      %v503 = vrot.slane %v498, 4
      %v505 = vshrl.u32 %v182, 16
      %v507 = vrot.slane %v505, 7
      %v508 = vshll.u32 %v182, 16
      %v510 = vor.u32 %v507, %v508
      %v511 = vrot.slane %v507, 4
      %v513 = vshrl.u32 %v183, 16
      %v515 = vrot.slane %v513, 7
      %v516 = vshll.u32 %v183, 16
      %v518 = vor.u32 %v515, %v516
      %v519 = vsel %vm214, %v511, %v518
      %v520 = vrot.slane %v515, 4
      %v522 = vshrl.u32 %v184, 16
      %v524 = vrot.slane %v522, 7
      %v525 = vshll.u32 %v184, 16
      %v527 = vor.u32 %v524, %v525
      %v528 = vrot.slane %v524, 4
      %v530 = vshrl.u32 %v185, 16
      %v532 = vrot.slane %v530, 7
      %v533 = vshll.u32 %v185, 16
      %v535 = vor.u32 %v532, %v533
      %v536 = vsel %vm214, %v528, %v535
      %v537 = vrot.slane %v532, 4
      %v539 = vshrl.u32 %v186, 16
      %v541 = vrot.slane %v539, 7
      %v542 = vshll.u32 %v186, 16
      %v544 = vor.u32 %v541, %v542
      %v545 = vrot.slane %v541, 4
      %v547 = vshrl.u32 %v187, 16
      %v549 = vrot.slane %v547, 7
      %v550 = vshll.u32 %v187, 16
      %v552 = vor.u32 %v549, %v550
      %v553 = vsel %vm214, %v545, %v552
      %v554 = vrot.slane %v549, 4
      %v556 = vshrl.u32 %v188, 16
      %v558 = vrot.slane %v556, 7
      %v559 = vshll.u32 %v188, 16
      %v561 = vor.u32 %v558, %v559
      %v562 = vrot.slane %v558, 4
      %v564 = vshrl.u32 %v189, 16
      %v566 = vrot.slane %v564, 7
      %v567 = vshll.u32 %v189, 16
      %v569 = vor.u32 %v566, %v567
      %v570 = vsel %vm214, %v562, %v569
      %v571 = vrot.slane %v566, 4
      %v573 = vshrl.u32 %v190, 16
      %v575 = vrot.slane %v573, 7
      %v576 = vshll.u32 %v190, 16
      %v578 = vor.u32 %v575, %v576
      %v579 = vrot.slane %v575, 4
      %v581 = vshrl.u32 %v191, 16
      %v583 = vrot.slane %v581, 7
      %v584 = vshll.u32 %v191, 16
      %v586 = vor.u32 %v583, %v584
      %v587 = vsel %vm214, %v579, %v586
      %v588 = vrot.slane %v583, 4
      %v590 = vshrl.u32 %v192, 16
      %v592 = vrot.slane %v590, 7
      %v593 = vshll.u32 %v192, 16
      %v595 = vor.u32 %v592, %v593
      %v596 = vrot.slane %v592, 4
      %v598 = vshrl.u32 %v193, 16
      %v600 = vrot.slane %v598, 7
      %v601 = vshll.u32 %v193, 16
      %v603 = vor.u32 %v600, %v601
      %v604 = vsel %vm214, %v596, %v603
      %v605 = vrot.slane %v600, 4
      %v607 = vshrl.u32 %v194, 16
      %v609 = vrot.slane %v607, 7
      %v610 = vshll.u32 %v194, 16
      %v612 = vor.u32 %v609, %v610
      %v613 = vrot.slane %v609, 4
      %v615 = vshrl.u32 %v195, 16
      %v617 = vrot.slane %v615, 7
      %v618 = vshll.u32 %v195, 16
      %v620 = vor.u32 %v617, %v618
      %v621 = vsel %vm214, %v613, %v620
      %v622 = vrot.slane %v617, 4
      %v624 = vshrl.u32 %v196, 16
      %v626 = vrot.slane %v624, 7
      %v627 = vshll.u32 %v196, 16
      %v629 = vor.u32 %v626, %v627
      %v630 = vrot.slane %v626, 4
      %v632 = vshrl.u32 %v197, 16
      %v634 = vrot.slane %v632, 7
      %v635 = vshll.u32 %v197, 16
      %v637 = vor.u32 %v634, %v635
      %v638 = vsel %vm214, %v630, %v637
      %v639 = vrot.slane %v634, 4
      %v641 = vshrl.u32 %v198, 16
      %v643 = vrot.slane %v641, 7
      %v644 = vshll.u32 %v198, 16
      %v646 = vor.u32 %v643, %v644
      %v647 = vrot.slane %v643, 4
      %v649 = vshrl.u32 %v199, 16
      %v651 = vrot.slane %v649, 7
      %v652 = vshll.u32 %v199, 16
      %v654 = vor.u32 %v651, %v652
      %v655 = vsel %vm214, %v647, %v654
      %v656 = vrot.slane %v651, 4
      %v658 = vshrl.u32 %v200, 16
      %v660 = vrot.slane %v658, 7
      %v661 = vshll.u32 %v200, 16
      %v663 = vor.u32 %v660, %v661
      %v664 = vrot.slane %v660, 4
      %v666 = vshrl.u32 %v201, 16
      %v668 = vrot.slane %v666, 7
      %v669 = vshll.u32 %v201, 16
      %v671 = vor.u32 %v668, %v669
      %v672 = vsel %vm214, %v664, %v671
      %v673 = vrot.slane %v668, 4
      %v675 = vshrl.u32 %v202, 16
      %v677 = vrot.slane %v675, 7
      %v678 = vshll.u32 %v202, 16
      %v680 = vor.u32 %v677, %v678
      %v681 = vrot.slane %v677, 4
      %v683 = vshrl.u32 %v203, 16
      %v685 = vrot.slane %v683, 7
      %v686 = vshll.u32 %v203, 16
      %v688 = vor.u32 %v685, %v686
      %v689 = vsel %vm214, %v681, %v688
      %v690 = vrot.slane %v685, 4
      %v692 = vshrl.u32 %v204, 16
      %v694 = vrot.slane %v692, 7
      %v695 = vshll.u32 %v204, 16
      %v697 = vor.u32 %v694, %v695
      %v698 = vrot.slane %v694, 4
      %v700 = vshrl.u32 %v205, 16
      %v702 = vrot.slane %v700, 7
      %v703 = vshll.u32 %v205, 16
      %v705 = vor.u32 %v702, %v703
      %v706 = vsel %vm214, %v698, %v705
      %v707 = vrot.slane %v702, 4
      %v709 = vshrl.u32 %v206, 16
      %v711 = vrot.slane %v709, 7
      %v712 = vshll.u32 %v206, 16
      %v714 = vor.u32 %v711, %v712
      %v715 = vrot.slane %v711, 4
      %v717 = vshrl.u32 %v207, 16
      %v719 = vrot.slane %v717, 7
      %v720 = vshll.u32 %v207, 16
      %v722 = vor.u32 %v719, %v720
      %v723 = vsel %vm214, %v715, %v722
      %v724 = vrot.slane %v719, 4
      %v726 = vshrl.u32 %v208, 16
      %v728 = vrot.slane %v726, 7
      %v729 = vshll.u32 %v208, 16
      %v731 = vor.u32 %v728, %v729
      %v732 = vrot.slane %v728, 4
      %v734 = vshrl.u32 %v209, 16
      %v736 = vrot.slane %v734, 7
      %v737 = vshll.u32 %v209, 16
      %v739 = vor.u32 %v736, %v737
      %v740 = vsel %vm214, %v732, %v739
      %v741 = vrot.slane %v736, 4
      %v743 = vshrl.u32 %v210, 16
      %v745 = vrot.slane %v743, 7
      %v746 = vshll.u32 %v210, 16
      %v748 = vor.u32 %v745, %v746
      %v749 = vrot.slane %v745, 4
      %v751 = vshrl.u32 %v211, 16
      %v753 = vrot.slane %v751, 7
      %v754 = vshll.u32 %v211, 16
      %v756 = vor.u32 %v753, %v754
      %v757 = vsel %vm214, %v749, %v756
      %v758 = vrot.slane %v753, 4
      %s855 = scalar_lea.vmem [#allocation2], 12
      %vm856 = vcmask 125952
      %vm857 = vsmask.f32 7938
      %vm858 = vmand %vm856, %vm857
      %v859 = vld [vmem:[%s855] sm:$0xf]
      %v860 = vsel %vm858, %v221, %v859
      %861 = vst [vmem:[%s855] sm:$0xf] %v860
      %862 = vst.msk [vmem:[%s855 + $0x4] sm:$0xf] %vm38, %v230
      %vm863 = vcmask 122880
      %vm864 = vmand %vm863, %vm212
      %v865 = vld [vmem:[%s855 + $0x8] sm:$0x1]
      %v866 = vsel %vm864, %v231, %v865
      %867 = vst [vmem:[%s855 + $0x8] sm:$0x1] %v866
      %v868 = vld [vmem:[%s855 + $0xc] sm:$0xf]
      %v869 = vsel %vm858, %v238, %v868
      %870 = vst [vmem:[%s855 + $0xc] sm:$0xf] %v869
      %871 = vst.msk [vmem:[%s855 + $0x10] sm:$0xf] %vm38, %v247
      %v872 = vld [vmem:[%s855 + $0x14] sm:$0x1]
      %v873 = vsel %vm864, %v248, %v872
      %874 = vst [vmem:[%s855 + $0x14] sm:$0x1] %v873
      %v875 = vld [vmem:[%s855 + $0x18] sm:$0xf]
      %v876 = vsel %vm858, %v255, %v875
      %877 = vst [vmem:[%s855 + $0x18] sm:$0xf] %v876
      %878 = vst.msk [vmem:[%s855 + $0x1c] sm:$0xf] %vm38, %v264
      %v879 = vld [vmem:[%s855 + $0x20] sm:$0x1]
      %v880 = vsel %vm864, %v265, %v879
      %881 = vst [vmem:[%s855 + $0x20] sm:$0x1] %v880
      %v882 = vld [vmem:[%s855 + $0x24] sm:$0xf]
      %v883 = vsel %vm858, %v272, %v882
      %884 = vst [vmem:[%s855 + $0x24] sm:$0xf] %v883
      %885 = vst.msk [vmem:[%s855 + $0x28] sm:$0xf] %vm38, %v281
      %v886 = vld [vmem:[%s855 + $0x2c] sm:$0x1]
      %v887 = vsel %vm864, %v282, %v886
      %888 = vst [vmem:[%s855 + $0x2c] sm:$0x1] %v887
      %v889 = vld [vmem:[%s855 + $0x30] sm:$0xf]
      %v890 = vsel %vm858, %v289, %v889
      %891 = vst [vmem:[%s855 + $0x30] sm:$0xf] %v890
      %892 = vst.msk [vmem:[%s855 + $0x34] sm:$0xf] %vm38, %v298
      %v893 = vld [vmem:[%s855 + $0x38] sm:$0x1]
      %v894 = vsel %vm864, %v299, %v893
      %895 = vst [vmem:[%s855 + $0x38] sm:$0x1] %v894
      %v896 = vld [vmem:[%s855 + $0x3c] sm:$0xf]
      %v897 = vsel %vm858, %v306, %v896
      %898 = vst [vmem:[%s855 + $0x3c] sm:$0xf] %v897
      %899 = vst.msk [vmem:[%s855 + $0x40] sm:$0xf] %vm38, %v315
      %v900 = vld [vmem:[%s855 + $0x44] sm:$0x1]
      %v901 = vsel %vm864, %v316, %v900
      %902 = vst [vmem:[%s855 + $0x44] sm:$0x1] %v901
      %v903 = vld [vmem:[%s855 + $0x48] sm:$0xf]
      %v904 = vsel %vm858, %v323, %v903
      %905 = vst [vmem:[%s855 + $0x48] sm:$0xf] %v904
      %906 = vst.msk [vmem:[%s855 + $0x4c] sm:$0xf] %vm38, %v332
      %v907 = vld [vmem:[%s855 + $0x50] sm:$0x1]
      %v908 = vsel %vm864, %v333, %v907
      %909 = vst [vmem:[%s855 + $0x50] sm:$0x1] %v908
      %v910 = vld [vmem:[%s855 + $0x54] sm:$0xf]
      %v911 = vsel %vm858, %v340, %v910
      %912 = vst [vmem:[%s855 + $0x54] sm:$0xf] %v911
      %913 = vst.msk [vmem:[%s855 + $0x58] sm:$0xf] %vm38, %v349
      %v914 = vld [vmem:[%s855 + $0x5c] sm:$0x1]
      %v915 = vsel %vm864, %v350, %v914
      %916 = vst [vmem:[%s855 + $0x5c] sm:$0x1] %v915
      %v917 = vld [vmem:[%s855 + $0x60] sm:$0xf]
      %v918 = vsel %vm858, %v357, %v917
      %919 = vst [vmem:[%s855 + $0x60] sm:$0xf] %v918
      %920 = vst.msk [vmem:[%s855 + $0x64] sm:$0xf] %vm38, %v366
      %v921 = vld [vmem:[%s855 + $0x68] sm:$0x1]
      %v922 = vsel %vm864, %v367, %v921
      %923 = vst [vmem:[%s855 + $0x68] sm:$0x1] %v922
      %v924 = vld [vmem:[%s855 + $0x6c] sm:$0xf]
      %v925 = vsel %vm858, %v374, %v924
      %926 = vst [vmem:[%s855 + $0x6c] sm:$0xf] %v925
      %927 = vst.msk [vmem:[%s855 + $0x70] sm:$0xf] %vm38, %v383
      %v928 = vld [vmem:[%s855 + $0x74] sm:$0x1]
      %v929 = vsel %vm864, %v384, %v928
      %930 = vst [vmem:[%s855 + $0x74] sm:$0x1] %v929
      %v931 = vld [vmem:[%s855 + $0x78] sm:$0xf]
      %v932 = vsel %vm858, %v391, %v931
      %933 = vst [vmem:[%s855 + $0x78] sm:$0xf] %v932
      %934 = vst.msk [vmem:[%s855 + $0x7c] sm:$0xf] %vm38, %v400
      %v935 = vld [vmem:[%s855 + $0x80] sm:$0x1]
      %v936 = vsel %vm864, %v401, %v935
      %937 = vst [vmem:[%s855 + $0x80] sm:$0x1] %v936
      %v938 = vld [vmem:[%s855 + $0x84] sm:$0xf]
      %v939 = vsel %vm858, %v408, %v938
      %940 = vst [vmem:[%s855 + $0x84] sm:$0xf] %v939
      %941 = vst.msk [vmem:[%s855 + $0x88] sm:$0xf] %vm38, %v417
      %v942 = vld [vmem:[%s855 + $0x8c] sm:$0x1]
      %v943 = vsel %vm864, %v418, %v942
      %944 = vst [vmem:[%s855 + $0x8c] sm:$0x1] %v943
      %v945 = vld [vmem:[%s855 + $0x90] sm:$0xf]
      %v946 = vsel %vm858, %v425, %v945
      %947 = vst [vmem:[%s855 + $0x90] sm:$0xf] %v946
      %948 = vst.msk [vmem:[%s855 + $0x94] sm:$0xf] %vm38, %v434
      %v949 = vld [vmem:[%s855 + $0x98] sm:$0x1]
      %v950 = vsel %vm864, %v435, %v949
      %951 = vst [vmem:[%s855 + $0x98] sm:$0x1] %v950
      %v952 = vld [vmem:[%s855 + $0x9c] sm:$0xf]
      %v953 = vsel %vm858, %v442, %v952
      %954 = vst [vmem:[%s855 + $0x9c] sm:$0xf] %v953
      %955 = vst.msk [vmem:[%s855 + $0xa0] sm:$0xf] %vm38, %v451
      %v956 = vld [vmem:[%s855 + $0xa4] sm:$0x1]
      %v957 = vsel %vm864, %v452, %v956
      %958 = vst [vmem:[%s855 + $0xa4] sm:$0x1] %v957
      %v959 = vld [vmem:[%s855 + $0xa8] sm:$0xf]
      %v960 = vsel %vm858, %v459, %v959
      %961 = vst [vmem:[%s855 + $0xa8] sm:$0xf] %v960
      %962 = vst.msk [vmem:[%s855 + $0xac] sm:$0xf] %vm38, %v468
      %v963 = vld [vmem:[%s855 + $0xb0] sm:$0x1]
      %v964 = vsel %vm864, %v469, %v963
      %965 = vst [vmem:[%s855 + $0xb0] sm:$0x1] %v964
      %v966 = vld [vmem:[%s855 + $0xb4] sm:$0xf]
      %v967 = vsel %vm858, %v476, %v966
      %968 = vst [vmem:[%s855 + $0xb4] sm:$0xf] %v967
      %969 = vst.msk [vmem:[%s855 + $0xb8] sm:$0xf] %vm38, %v485
      %v970 = vld [vmem:[%s855 + $0xbc] sm:$0x1]
      %v971 = vsel %vm864, %v486, %v970
      %972 = vst [vmem:[%s855 + $0xbc] sm:$0x1] %v971
      %v973 = vld [vmem:[%s855 + $0xd8] sm:$0xf]
      %v974 = vsel %vm858, %v493, %v973
      %975 = vst [vmem:[%s855 + $0xd8] sm:$0xf] %v974
      %976 = vst.msk [vmem:[%s855 + $0xdc] sm:$0xf] %vm38, %v502
      %v977 = vld [vmem:[%s855 + $0xe0] sm:$0x1]
      %v978 = vsel %vm864, %v503, %v977
      %979 = vst [vmem:[%s855 + $0xe0] sm:$0x1] %v978
      %v980 = vld [vmem:[%s855 + $0xe4] sm:$0xf]
      %v981 = vsel %vm858, %v510, %v980
      %982 = vst [vmem:[%s855 + $0xe4] sm:$0xf] %v981
      %983 = vst.msk [vmem:[%s855 + $0xe8] sm:$0xf] %vm38, %v519
      %v984 = vld [vmem:[%s855 + $0xec] sm:$0x1]
      %v985 = vsel %vm864, %v520, %v984
      %986 = vst [vmem:[%s855 + $0xec] sm:$0x1] %v985
      %v987 = vld [vmem:[%s855 + $0xf0] sm:$0xf]
      %v988 = vsel %vm858, %v527, %v987
      %989 = vst [vmem:[%s855 + $0xf0] sm:$0xf] %v988
      %990 = vst.msk [vmem:[%s855 + $0xf4] sm:$0xf] %vm38, %v536
      %v991 = vld [vmem:[%s855 + $0xf8] sm:$0x1]
      %v992 = vsel %vm864, %v537, %v991
      %993 = vst [vmem:[%s855 + $0xf8] sm:$0x1] %v992
      %v994 = vld [vmem:[%s855 + $0xfc] sm:$0xf]
      %v995 = vsel %vm858, %v544, %v994
      %996 = vst [vmem:[%s855 + $0xfc] sm:$0xf] %v995
      %997 = vst.msk [vmem:[%s855 + $0x100] sm:$0xf] %vm38, %v553
      %v998 = vld [vmem:[%s855 + $0x104] sm:$0x1]
      %v999 = vsel %vm864, %v554, %v998
      %1000 = vst [vmem:[%s855 + $0x104] sm:$0x1] %v999
      %v1001 = vld [vmem:[%s855 + $0x108] sm:$0xf]
      %v1002 = vsel %vm858, %v561, %v1001
      %1003 = vst [vmem:[%s855 + $0x108] sm:$0xf] %v1002
      %1004 = vst.msk [vmem:[%s855 + $0x10c] sm:$0xf] %vm38, %v570
      %v1005 = vld [vmem:[%s855 + $0x110] sm:$0x1]
      %v1006 = vsel %vm864, %v571, %v1005
      %1007 = vst [vmem:[%s855 + $0x110] sm:$0x1] %v1006
      %v1008 = vld [vmem:[%s855 + $0x114] sm:$0xf]
      %v1009 = vsel %vm858, %v578, %v1008
      %1010 = vst [vmem:[%s855 + $0x114] sm:$0xf] %v1009
      %1011 = vst.msk [vmem:[%s855 + $0x118] sm:$0xf] %vm38, %v587
      %v1012 = vld [vmem:[%s855 + $0x11c] sm:$0x1]
      %v1013 = vsel %vm864, %v588, %v1012
      %1014 = vst [vmem:[%s855 + $0x11c] sm:$0x1] %v1013
      %v1015 = vld [vmem:[%s855 + $0x120] sm:$0xf]
      %v1016 = vsel %vm858, %v595, %v1015
      %1017 = vst [vmem:[%s855 + $0x120] sm:$0xf] %v1016
      %1018 = vst.msk [vmem:[%s855 + $0x124] sm:$0xf] %vm38, %v604
      %v1019 = vld [vmem:[%s855 + $0x128] sm:$0x1]
      %v1020 = vsel %vm864, %v605, %v1019
      %1021 = vst [vmem:[%s855 + $0x128] sm:$0x1] %v1020
      %v1022 = vld [vmem:[%s855 + $0x12c] sm:$0xf]
      %v1023 = vsel %vm858, %v612, %v1022
      %1024 = vst [vmem:[%s855 + $0x12c] sm:$0xf] %v1023
      %1025 = vst.msk [vmem:[%s855 + $0x130] sm:$0xf] %vm38, %v621
      %v1026 = vld [vmem:[%s855 + $0x134] sm:$0x1]
      %v1027 = vsel %vm864, %v622, %v1026
      %1028 = vst [vmem:[%s855 + $0x134] sm:$0x1] %v1027
      %v1029 = vld [vmem:[%s855 + $0x138] sm:$0xf]
      %v1030 = vsel %vm858, %v629, %v1029
      %1031 = vst [vmem:[%s855 + $0x138] sm:$0xf] %v1030
      %1032 = vst.msk [vmem:[%s855 + $0x13c] sm:$0xf] %vm38, %v638
      %v1033 = vld [vmem:[%s855 + $0x140] sm:$0x1]
      %v1034 = vsel %vm864, %v639, %v1033
      %1035 = vst [vmem:[%s855 + $0x140] sm:$0x1] %v1034
      %v1036 = vld [vmem:[%s855 + $0x144] sm:$0xf]
      %v1037 = vsel %vm858, %v646, %v1036
      %1038 = vst [vmem:[%s855 + $0x144] sm:$0xf] %v1037
      %1039 = vst.msk [vmem:[%s855 + $0x148] sm:$0xf] %vm38, %v655
      %v1040 = vld [vmem:[%s855 + $0x14c] sm:$0x1]
      %v1041 = vsel %vm864, %v656, %v1040
      %1042 = vst [vmem:[%s855 + $0x14c] sm:$0x1] %v1041
      %v1043 = vld [vmem:[%s855 + $0x150] sm:$0xf]
      %v1044 = vsel %vm858, %v663, %v1043
      %1045 = vst [vmem:[%s855 + $0x150] sm:$0xf] %v1044
      %1046 = vst.msk [vmem:[%s855 + $0x154] sm:$0xf] %vm38, %v672
      %v1047 = vld [vmem:[%s855 + $0x158] sm:$0x1]
      %v1048 = vsel %vm864, %v673, %v1047
      %1049 = vst [vmem:[%s855 + $0x158] sm:$0x1] %v1048
      %v1050 = vld [vmem:[%s855 + $0x15c] sm:$0xf]
      %v1051 = vsel %vm858, %v680, %v1050
      %1052 = vst [vmem:[%s855 + $0x15c] sm:$0xf] %v1051
      %1053 = vst.msk [vmem:[%s855 + $0x160] sm:$0xf] %vm38, %v689
      %v1054 = vld [vmem:[%s855 + $0x164] sm:$0x1]
      %v1055 = vsel %vm864, %v690, %v1054
      %1056 = vst [vmem:[%s855 + $0x164] sm:$0x1] %v1055
      %v1057 = vld [vmem:[%s855 + $0x168] sm:$0xf]
      %v1058 = vsel %vm858, %v697, %v1057
      %1059 = vst [vmem:[%s855 + $0x168] sm:$0xf] %v1058
      %1060 = vst.msk [vmem:[%s855 + $0x16c] sm:$0xf] %vm38, %v706
      %v1061 = vld [vmem:[%s855 + $0x170] sm:$0x1]
      %v1062 = vsel %vm864, %v707, %v1061
      %1063 = vst [vmem:[%s855 + $0x170] sm:$0x1] %v1062
      %v1064 = vld [vmem:[%s855 + $0x174] sm:$0xf]
      %v1065 = vsel %vm858, %v714, %v1064
      %1066 = vst [vmem:[%s855 + $0x174] sm:$0xf] %v1065
      %1067 = vst.msk [vmem:[%s855 + $0x178] sm:$0xf] %vm38, %v723
      %v1068 = vld [vmem:[%s855 + $0x17c] sm:$0x1]
      %v1069 = vsel %vm864, %v724, %v1068
      %1070 = vst [vmem:[%s855 + $0x17c] sm:$0x1] %v1069
      %v1071 = vld [vmem:[%s855 + $0x180] sm:$0xf]
      %v1072 = vsel %vm858, %v731, %v1071
      %1073 = vst [vmem:[%s855 + $0x180] sm:$0xf] %v1072
      %1074 = vst.msk [vmem:[%s855 + $0x184] sm:$0xf] %vm38, %v740
      %v1075 = vld [vmem:[%s855 + $0x188] sm:$0x1]
      %v1076 = vsel %vm864, %v741, %v1075
      %1077 = vst [vmem:[%s855 + $0x188] sm:$0x1] %v1076
      %v1078 = vld [vmem:[%s855 + $0x18c] sm:$0xf]
      %v1079 = vsel %vm858, %v748, %v1078
      %1080 = vst [vmem:[%s855 + $0x18c] sm:$0xf] %v1079
      %1081 = vst.msk [vmem:[%s855 + $0x190] sm:$0xf] %vm38, %v757
      %v1082 = vld [vmem:[%s855 + $0x194] sm:$0x1]
      %v1083 = vsel %vm864, %v758, %v1082
      %1084 = vst [vmem:[%s855 + $0x194] sm:$0x1] %v1083
      %v1085 = vld [vmem:[#allocation2] sm:$0xf]
      %v1086 = vld [vmem:[#allocation2 + $0x4] sm:$0xf]
      %v1087 = vld [vmem:[#allocation2 + $0xc] sm:$0xf]
      %v1088 = vld [vmem:[#allocation2 + $0x10] sm:$0xf]
      %v1089 = vld [vmem:[#allocation2 + $0x18] sm:$0xf]
      %v1090 = vld [vmem:[#allocation2 + $0x1c] sm:$0xf]
      %v1091 = vld [vmem:[#allocation2 + $0x24] sm:$0xf]
      %v1092 = vld [vmem:[#allocation2 + $0x28] sm:$0xf]
      %v1093 = vld [vmem:[#allocation2 + $0x30] sm:$0xf]
      %v1094 = vld [vmem:[#allocation2 + $0x34] sm:$0xf]
      %v1095 = vld [vmem:[#allocation2 + $0x3c] sm:$0xf]
      %v1096 = vld [vmem:[#allocation2 + $0x40] sm:$0xf]
      %v1097 = vld [vmem:[#allocation2 + $0x48] sm:$0xf]
      %v1098 = vld [vmem:[#allocation2 + $0x4c] sm:$0xf]
      %v1099 = vld [vmem:[#allocation2 + $0x54] sm:$0xf]
      %v1100 = vld [vmem:[#allocation2 + $0x58] sm:$0xf]
      %v1101 = vld [vmem:[#allocation2 + $0x60] sm:$0xf]
      %v1102 = vld [vmem:[#allocation2 + $0x64] sm:$0xf]
      %v1103 = vld [vmem:[#allocation2 + $0x6c] sm:$0xf]
      %v1104 = vld [vmem:[#allocation2 + $0x70] sm:$0xf]
      %v1105 = vld [vmem:[#allocation2 + $0x78] sm:$0xf]
      %v1106 = vld [vmem:[#allocation2 + $0x7c] sm:$0xf]
      %v1107 = vld [vmem:[#allocation2 + $0x84] sm:$0xf]
      %v1108 = vld [vmem:[#allocation2 + $0x88] sm:$0xf]
      %v1109 = vld [vmem:[#allocation2 + $0x90] sm:$0xf]
      %v1110 = vld [vmem:[#allocation2 + $0x94] sm:$0xf]
      %v1111 = vld [vmem:[#allocation2 + $0x9c] sm:$0xf]
      %v1112 = vld [vmem:[#allocation2 + $0xa0] sm:$0xf]
      %v1113 = vld [vmem:[#allocation2 + $0xa8] sm:$0xf]
      %v1114 = vld [vmem:[#allocation2 + $0xac] sm:$0xf]
      %v1115 = vld [vmem:[#allocation2 + $0xb4] sm:$0xf]
      %v1116 = vld [vmem:[#allocation2 + $0xb8] sm:$0xf]
      %v1117 = vld [vmem:[#allocation2 + $0xd8] sm:$0xf]
      %v1118 = vld [vmem:[#allocation2 + $0xdc] sm:$0xf]
      %v1119 = vld [vmem:[#allocation2 + $0xe4] sm:$0xf]
      %v1120 = vld [vmem:[#allocation2 + $0xe8] sm:$0xf]
      %v1121 = vld [vmem:[#allocation2 + $0xf0] sm:$0xf]
      %v1122 = vld [vmem:[#allocation2 + $0xf4] sm:$0xf]
      %v1123 = vld [vmem:[#allocation2 + $0xfc] sm:$0xf]
      %v1124 = vld [vmem:[#allocation2 + $0x100] sm:$0xf]
      %v1125 = vld [vmem:[#allocation2 + $0x108] sm:$0xf]
      %v1126 = vld [vmem:[#allocation2 + $0x10c] sm:$0xf]
      %v1127 = vld [vmem:[#allocation2 + $0x114] sm:$0xf]
      %v1128 = vld [vmem:[#allocation2 + $0x118] sm:$0xf]
      %v1129 = vld [vmem:[#allocation2 + $0x120] sm:$0xf]
      %v1130 = vld [vmem:[#allocation2 + $0x124] sm:$0xf]
      %v1131 = vld [vmem:[#allocation2 + $0x12c] sm:$0xf]
      %v1132 = vld [vmem:[#allocation2 + $0x130] sm:$0xf]
      %v1133 = vld [vmem:[#allocation2 + $0x138] sm:$0xf]
      %v1134 = vld [vmem:[#allocation2 + $0x13c] sm:$0xf]
      %v1135 = vld [vmem:[#allocation2 + $0x144] sm:$0xf]
      %v1136 = vld [vmem:[#allocation2 + $0x148] sm:$0xf]
      %v1137 = vld [vmem:[#allocation2 + $0x150] sm:$0xf]
      %v1138 = vld [vmem:[#allocation2 + $0x154] sm:$0xf]
      %v1139 = vld [vmem:[#allocation2 + $0x15c] sm:$0xf]
      %v1140 = vld [vmem:[#allocation2 + $0x160] sm:$0xf]
      %v1141 = vld [vmem:[#allocation2 + $0x168] sm:$0xf]
      %v1142 = vld [vmem:[#allocation2 + $0x16c] sm:$0xf]
      %v1143 = vld [vmem:[#allocation2 + $0x174] sm:$0xf]
      %v1144 = vld [vmem:[#allocation2 + $0x178] sm:$0xf]
      %v1145 = vld [vmem:[#allocation2 + $0x180] sm:$0xf]
      %v1146 = vld [vmem:[#allocation2 + $0x184] sm:$0xf]
      %v1147 = vld [vmem:[#allocation2 + $0x18c] sm:$0xf]
      %v1148 = vld [vmem:[#allocation2 + $0x190] sm:$0xf]
      %1149 = vst.msk [vmem:[#allocation3] sm:$0xf] %vm38, %v1085
      %1150 = vst.msk [vmem:[#allocation3 + $0x8] sm:$0xf] %vm38, %v1086
      %1151 = vst.msk [vmem:[#allocation3 + $0x10] sm:$0xf] %vm38, %v1087
      %1152 = vst.msk [vmem:[#allocation3 + $0x18] sm:$0xf] %vm38, %v1088
      %1153 = vst.msk [vmem:[#allocation3 + $0x20] sm:$0xf] %vm38, %v1089
      %1154 = vst.msk [vmem:[#allocation3 + $0x28] sm:$0xf] %vm38, %v1090
      %1155 = vst.msk [vmem:[#allocation3 + $0x30] sm:$0xf] %vm38, %v1091
      %1156 = vst.msk [vmem:[#allocation3 + $0x38] sm:$0xf] %vm38, %v1092
      %1157 = vst.msk [vmem:[#allocation3 + $0x40] sm:$0xf] %vm38, %v1093
      %1158 = vst.msk [vmem:[#allocation3 + $0x48] sm:$0xf] %vm38, %v1094
      %1159 = vst.msk [vmem:[#allocation3 + $0x50] sm:$0xf] %vm38, %v1095
      %1160 = vst.msk [vmem:[#allocation3 + $0x58] sm:$0xf] %vm38, %v1096
      %1161 = vst.msk [vmem:[#allocation3 + $0x60] sm:$0xf] %vm38, %v1097
      %1162 = vst.msk [vmem:[#allocation3 + $0x68] sm:$0xf] %vm38, %v1098
      %1163 = vst.msk [vmem:[#allocation3 + $0x70] sm:$0xf] %vm38, %v1099
      %1164 = vst.msk [vmem:[#allocation3 + $0x78] sm:$0xf] %vm38, %v1100
      %1165 = vst.msk [vmem:[#allocation3 + $0x80] sm:$0xf] %vm38, %v1101
      %1166 = vst.msk [vmem:[#allocation3 + $0x88] sm:$0xf] %vm38, %v1102
      %1167 = vst.msk [vmem:[#allocation3 + $0x90] sm:$0xf] %vm38, %v1103
      %1168 = vst.msk [vmem:[#allocation3 + $0x98] sm:$0xf] %vm38, %v1104
      %1169 = vst.msk [vmem:[#allocation3 + $0xa0] sm:$0xf] %vm38, %v1105
      %1170 = vst.msk [vmem:[#allocation3 + $0xa8] sm:$0xf] %vm38, %v1106
      %1171 = vst.msk [vmem:[#allocation3 + $0xb0] sm:$0xf] %vm38, %v1107
      %1172 = vst.msk [vmem:[#allocation3 + $0xb8] sm:$0xf] %vm38, %v1108
      %1173 = vst.msk [vmem:[#allocation3 + $0xc0] sm:$0xf] %vm38, %v1109
      %1174 = vst.msk [vmem:[#allocation3 + $0xc8] sm:$0xf] %vm38, %v1110
      %1175 = vst.msk [vmem:[#allocation3 + $0xd0] sm:$0xf] %vm38, %v1111
      %1176 = vst.msk [vmem:[#allocation3 + $0xd8] sm:$0xf] %vm38, %v1112
      %1177 = vst.msk [vmem:[#allocation3 + $0xe0] sm:$0xf] %vm38, %v1113
      %1178 = vst.msk [vmem:[#allocation3 + $0xe8] sm:$0xf] %vm38, %v1114
      %1179 = vst.msk [vmem:[#allocation3 + $0xf0] sm:$0xf] %vm38, %v1115
      %1180 = vst.msk [vmem:[#allocation3 + $0xf8] sm:$0xf] %vm38, %v1116
      %1181 = vst.msk [vmem:[#allocation3 + $0x100] sm:$0xf] %vm38, %v1117
      %1182 = vst.msk [vmem:[#allocation3 + $0x108] sm:$0xf] %vm38, %v1118
      %1183 = vst.msk [vmem:[#allocation3 + $0x110] sm:$0xf] %vm38, %v1119
      %1184 = vst.msk [vmem:[#allocation3 + $0x118] sm:$0xf] %vm38, %v1120
      %1185 = vst.msk [vmem:[#allocation3 + $0x120] sm:$0xf] %vm38, %v1121
      %1186 = vst.msk [vmem:[#allocation3 + $0x128] sm:$0xf] %vm38, %v1122
      %1187 = vst.msk [vmem:[#allocation3 + $0x130] sm:$0xf] %vm38, %v1123
      %1188 = vst.msk [vmem:[#allocation3 + $0x138] sm:$0xf] %vm38, %v1124
      %1189 = vst.msk [vmem:[#allocation3 + $0x140] sm:$0xf] %vm38, %v1125
      %1190 = vst.msk [vmem:[#allocation3 + $0x148] sm:$0xf] %vm38, %v1126
      %1191 = vst.msk [vmem:[#allocation3 + $0x150] sm:$0xf] %vm38, %v1127
      %1192 = vst.msk [vmem:[#allocation3 + $0x158] sm:$0xf] %vm38, %v1128
      %1193 = vst.msk [vmem:[#allocation3 + $0x160] sm:$0xf] %vm38, %v1129
      %1194 = vst.msk [vmem:[#allocation3 + $0x168] sm:$0xf] %vm38, %v1130
      %1195 = vst.msk [vmem:[#allocation3 + $0x170] sm:$0xf] %vm38, %v1131
      %1196 = vst.msk [vmem:[#allocation3 + $0x178] sm:$0xf] %vm38, %v1132
      %1197 = vst.msk [vmem:[#allocation3 + $0x180] sm:$0xf] %vm38, %v1133
      %1198 = vst.msk [vmem:[#allocation3 + $0x188] sm:$0xf] %vm38, %v1134
      %1199 = vst.msk [vmem:[#allocation3 + $0x190] sm:$0xf] %vm38, %v1135
      %1200 = vst.msk [vmem:[#allocation3 + $0x198] sm:$0xf] %vm38, %v1136
      %1201 = vst.msk [vmem:[#allocation3 + $0x1a0] sm:$0xf] %vm38, %v1137
      %1202 = vst.msk [vmem:[#allocation3 + $0x1a8] sm:$0xf] %vm38, %v1138
      %1203 = vst.msk [vmem:[#allocation3 + $0x1b0] sm:$0xf] %vm38, %v1139
      %1204 = vst.msk [vmem:[#allocation3 + $0x1b8] sm:$0xf] %vm38, %v1140
      %1205 = vst.msk [vmem:[#allocation3 + $0x1c0] sm:$0xf] %vm38, %v1141
      %1206 = vst.msk [vmem:[#allocation3 + $0x1c8] sm:$0xf] %vm38, %v1142
      %1207 = vst.msk [vmem:[#allocation3 + $0x1d0] sm:$0xf] %vm38, %v1143
      %1208 = vst.msk [vmem:[#allocation3 + $0x1d8] sm:$0xf] %vm38, %v1144
      %1209 = vst.msk [vmem:[#allocation3 + $0x1e0] sm:$0xf] %vm38, %v1145
      %1210 = vst.msk [vmem:[#allocation3 + $0x1e8] sm:$0xf] %vm38, %v1146
      %1211 = vst.msk [vmem:[#allocation3 + $0x1f0] sm:$0xf] %vm38, %v1147
      %1212 = vst.msk [vmem:[#allocation3 + $0x1f8] sm:$0xf] %vm38, %v1148
      %v1213 = vld [vmem:[#allocation2] sm:$0xf]
      %v1214 = vld [vmem:[#allocation2 + $0x4] sm:$0xf]
      %v1215 = vld [vmem:[#allocation2 + $0x8] sm:$0x1]
      %v1216 = vld [vmem:[#allocation2 + $0xc] sm:$0xf]
      %v1217 = vld [vmem:[#allocation2 + $0x10] sm:$0xf]
      %v1218 = vld [vmem:[#allocation2 + $0x14] sm:$0x1]
      %v1219 = vld [vmem:[#allocation2 + $0x18] sm:$0xf]
      %v1220 = vld [vmem:[#allocation2 + $0x1c] sm:$0xf]
      %v1221 = vld [vmem:[#allocation2 + $0x20] sm:$0x1]
      %v1222 = vld [vmem:[#allocation2 + $0x24] sm:$0xf]
      %v1223 = vld [vmem:[#allocation2 + $0x28] sm:$0xf]
      %v1224 = vld [vmem:[#allocation2 + $0x2c] sm:$0x1]
      %v1225 = vld [vmem:[#allocation2 + $0x30] sm:$0xf]
      %v1226 = vld [vmem:[#allocation2 + $0x34] sm:$0xf]
      %v1227 = vld [vmem:[#allocation2 + $0x38] sm:$0x1]
      %v1228 = vld [vmem:[#allocation2 + $0x3c] sm:$0xf]
      %v1229 = vld [vmem:[#allocation2 + $0x40] sm:$0xf]
      %v1230 = vld [vmem:[#allocation2 + $0x44] sm:$0x1]
      %v1231 = vld [vmem:[#allocation2 + $0x48] sm:$0xf]
      %v1232 = vld [vmem:[#allocation2 + $0x4c] sm:$0xf]
      %v1233 = vld [vmem:[#allocation2 + $0x50] sm:$0x1]
      %v1234 = vld [vmem:[#allocation2 + $0x54] sm:$0xf]
      %v1235 = vld [vmem:[#allocation2 + $0x58] sm:$0xf]
      %v1236 = vld [vmem:[#allocation2 + $0x5c] sm:$0x1]
      %v1237 = vld [vmem:[#allocation2 + $0x60] sm:$0xf]
      %v1238 = vld [vmem:[#allocation2 + $0x64] sm:$0xf]
      %v1239 = vld [vmem:[#allocation2 + $0x68] sm:$0x1]
      %v1240 = vld [vmem:[#allocation2 + $0x6c] sm:$0xf]
      %v1241 = vld [vmem:[#allocation2 + $0x70] sm:$0xf]
      %v1242 = vld [vmem:[#allocation2 + $0x74] sm:$0x1]
      %v1243 = vld [vmem:[#allocation2 + $0x78] sm:$0xf]
      %v1244 = vld [vmem:[#allocation2 + $0x7c] sm:$0xf]
      %v1245 = vld [vmem:[#allocation2 + $0x80] sm:$0x1]
      %v1246 = vld [vmem:[#allocation2 + $0x84] sm:$0xf]
      %v1247 = vld [vmem:[#allocation2 + $0x88] sm:$0xf]
      %v1248 = vld [vmem:[#allocation2 + $0x8c] sm:$0x1]
      %v1249 = vld [vmem:[#allocation2 + $0x90] sm:$0xf]
      %v1250 = vld [vmem:[#allocation2 + $0x94] sm:$0xf]
      %v1251 = vld [vmem:[#allocation2 + $0x98] sm:$0x1]
      %v1252 = vld [vmem:[#allocation2 + $0x9c] sm:$0xf]
      %v1253 = vld [vmem:[#allocation2 + $0xa0] sm:$0xf]
      %v1254 = vld [vmem:[#allocation2 + $0xa4] sm:$0x1]
      %v1255 = vld [vmem:[#allocation2 + $0xa8] sm:$0xf]
      %v1256 = vld [vmem:[#allocation2 + $0xac] sm:$0xf]
      %v1257 = vld [vmem:[#allocation2 + $0xb0] sm:$0x1]
      %v1258 = vld [vmem:[#allocation2 + $0xb4] sm:$0xf]
      %v1259 = vld [vmem:[#allocation2 + $0xb8] sm:$0xf]
      %v1260 = vld [vmem:[#allocation2 + $0xbc] sm:$0x1]
      %v1261 = vld [vmem:[#allocation2 + $0xd8] sm:$0xf]
      %v1262 = vld [vmem:[#allocation2 + $0xdc] sm:$0xf]
      %v1263 = vld [vmem:[#allocation2 + $0xe0] sm:$0x1]
      %v1264 = vld [vmem:[#allocation2 + $0xe4] sm:$0xf]
      %v1265 = vld [vmem:[#allocation2 + $0xe8] sm:$0xf]
      %v1266 = vld [vmem:[#allocation2 + $0xec] sm:$0x1]
      %v1267 = vld [vmem:[#allocation2 + $0xf0] sm:$0xf]
      %v1268 = vld [vmem:[#allocation2 + $0xf4] sm:$0xf]
      %v1269 = vld [vmem:[#allocation2 + $0xf8] sm:$0x1]
      %v1270 = vld [vmem:[#allocation2 + $0xfc] sm:$0xf]
      %v1271 = vld [vmem:[#allocation2 + $0x100] sm:$0xf]
      %v1272 = vld [vmem:[#allocation2 + $0x104] sm:$0x1]
      %v1273 = vld [vmem:[#allocation2 + $0x108] sm:$0xf]
      %v1274 = vld [vmem:[#allocation2 + $0x10c] sm:$0xf]
      %v1275 = vld [vmem:[#allocation2 + $0x110] sm:$0x1]
      %v1276 = vld [vmem:[#allocation2 + $0x114] sm:$0xf]
      %v1277 = vld [vmem:[#allocation2 + $0x118] sm:$0xf]
      %v1278 = vld [vmem:[#allocation2 + $0x11c] sm:$0x1]
      %v1279 = vld [vmem:[#allocation2 + $0x120] sm:$0xf]
      %v1280 = vld [vmem:[#allocation2 + $0x124] sm:$0xf]
      %v1281 = vld [vmem:[#allocation2 + $0x128] sm:$0x1]
      %v1282 = vld [vmem:[#allocation2 + $0x12c] sm:$0xf]
      %v1283 = vld [vmem:[#allocation2 + $0x130] sm:$0xf]
      %v1284 = vld [vmem:[#allocation2 + $0x134] sm:$0x1]
      %v1285 = vld [vmem:[#allocation2 + $0x138] sm:$0xf]
      %v1286 = vld [vmem:[#allocation2 + $0x13c] sm:$0xf]
      %v1287 = vld [vmem:[#allocation2 + $0x140] sm:$0x1]
      %v1288 = vld [vmem:[#allocation2 + $0x144] sm:$0xf]
      %v1289 = vld [vmem:[#allocation2 + $0x148] sm:$0xf]
      %v1290 = vld [vmem:[#allocation2 + $0x14c] sm:$0x1]
      %v1291 = vld [vmem:[#allocation2 + $0x150] sm:$0xf]
      %v1292 = vld [vmem:[#allocation2 + $0x154] sm:$0xf]
      %v1293 = vld [vmem:[#allocation2 + $0x158] sm:$0x1]
      %v1294 = vld [vmem:[#allocation2 + $0x15c] sm:$0xf]
      %v1295 = vld [vmem:[#allocation2 + $0x160] sm:$0xf]
      %v1296 = vld [vmem:[#allocation2 + $0x164] sm:$0x1]
      %v1297 = vld [vmem:[#allocation2 + $0x168] sm:$0xf]
      %v1298 = vld [vmem:[#allocation2 + $0x16c] sm:$0xf]
      %v1299 = vld [vmem:[#allocation2 + $0x170] sm:$0x1]
      %v1300 = vld [vmem:[#allocation2 + $0x174] sm:$0xf]
      %v1301 = vld [vmem:[#allocation2 + $0x178] sm:$0xf]
      %v1302 = vld [vmem:[#allocation2 + $0x17c] sm:$0x1]
      %v1303 = vld [vmem:[#allocation2 + $0x180] sm:$0xf]
      %v1304 = vld [vmem:[#allocation2 + $0x184] sm:$0xf]
      %v1305 = vld [vmem:[#allocation2 + $0x188] sm:$0x1]
      %v1306 = vld [vmem:[#allocation2 + $0x18c] sm:$0xf]
      %v1307 = vld [vmem:[#allocation2 + $0x190] sm:$0xf]
      %v1308 = vld [vmem:[#allocation2 + $0x194] sm:$0x1]
      %vm1309 = vsmask.f32 3328
      %vm1310 = vsmask.f32 7440
      %vm1311 = vmor %vm1309, %vm1310
      %v1313 = vshrl.u32 %v1213, 16
      %v1315 = vrot.slane %v1313, 4
      %v1316 = vshll.u32 %v1213, 16
      %v1318 = vrot.slane %v1316, 5
      %v1319 = vor.u32 %v1315, %v1318
      %v1320 = vrot.slane %v1319, 4
      %v1322 = vshll.u32 %v1214, 16
      %v1324 = vrot.slane %v1322, 5
      %v1325 = vsel %vm1311, %v1320, %v1324
      %v1326 = vshrl.u32 %v1214, 16
      %v1328 = vrot.slane %v1326, 4
      %v1329 = vor.u32 %v1328, %v1324
      %v1330 = vrot.slane %v1329, 4
      %v1332 = vshll.u32 %v1215, 16
      %v1334 = vrot.slane %v1332, 5
      %v1335 = vsel %vm1311, %v1330, %v1334
      %v1337 = vshrl.u32 %v1216, 16
      %v1339 = vrot.slane %v1337, 4
      %v1340 = vshll.u32 %v1216, 16
      %v1342 = vrot.slane %v1340, 5
      %v1343 = vor.u32 %v1339, %v1342
      %v1344 = vrot.slane %v1343, 4
      %v1346 = vshll.u32 %v1217, 16
      %v1348 = vrot.slane %v1346, 5
      %v1349 = vsel %vm1311, %v1344, %v1348
      %v1350 = vshrl.u32 %v1217, 16
      %v1352 = vrot.slane %v1350, 4
      %v1353 = vor.u32 %v1352, %v1348
      %v1354 = vrot.slane %v1353, 4
      %v1356 = vshll.u32 %v1218, 16
      %v1358 = vrot.slane %v1356, 5
      %v1359 = vsel %vm1311, %v1354, %v1358
      %v1361 = vshrl.u32 %v1219, 16
      %v1363 = vrot.slane %v1361, 4
      %v1364 = vshll.u32 %v1219, 16
      %v1366 = vrot.slane %v1364, 5
      %v1367 = vor.u32 %v1363, %v1366
      %v1368 = vrot.slane %v1367, 4
      %v1370 = vshll.u32 %v1220, 16
      %v1372 = vrot.slane %v1370, 5
      %v1373 = vsel %vm1311, %v1368, %v1372
      %v1374 = vshrl.u32 %v1220, 16
      %v1376 = vrot.slane %v1374, 4
      %v1377 = vor.u32 %v1376, %v1372
      %v1378 = vrot.slane %v1377, 4
      %v1380 = vshll.u32 %v1221, 16
      %v1382 = vrot.slane %v1380, 5
      %v1383 = vsel %vm1311, %v1378, %v1382
      %v1385 = vshrl.u32 %v1222, 16
      %v1387 = vrot.slane %v1385, 4
      %v1388 = vshll.u32 %v1222, 16
      %v1390 = vrot.slane %v1388, 5
      %v1391 = vor.u32 %v1387, %v1390
      %v1392 = vrot.slane %v1391, 4
      %v1394 = vshll.u32 %v1223, 16
      %v1396 = vrot.slane %v1394, 5
      %v1397 = vsel %vm1311, %v1392, %v1396
      %v1398 = vshrl.u32 %v1223, 16
      %v1400 = vrot.slane %v1398, 4
      %v1401 = vor.u32 %v1400, %v1396
      %v1402 = vrot.slane %v1401, 4
      %v1404 = vshll.u32 %v1224, 16
      %v1406 = vrot.slane %v1404, 5
      %v1407 = vsel %vm1311, %v1402, %v1406
      %v1409 = vshrl.u32 %v1225, 16
      %v1411 = vrot.slane %v1409, 4
      %v1412 = vshll.u32 %v1225, 16
      %v1414 = vrot.slane %v1412, 5
      %v1415 = vor.u32 %v1411, %v1414
      %v1416 = vrot.slane %v1415, 4
      %v1418 = vshll.u32 %v1226, 16
      %v1420 = vrot.slane %v1418, 5
      %v1421 = vsel %vm1311, %v1416, %v1420
      %v1422 = vshrl.u32 %v1226, 16
      %v1424 = vrot.slane %v1422, 4
      %v1425 = vor.u32 %v1424, %v1420
      %v1426 = vrot.slane %v1425, 4
      %v1428 = vshll.u32 %v1227, 16
      %v1430 = vrot.slane %v1428, 5
      %v1431 = vsel %vm1311, %v1426, %v1430
      %v1433 = vshrl.u32 %v1228, 16
      %v1435 = vrot.slane %v1433, 4
      %v1436 = vshll.u32 %v1228, 16
      %v1438 = vrot.slane %v1436, 5
      %v1439 = vor.u32 %v1435, %v1438
      %v1440 = vrot.slane %v1439, 4
      %v1442 = vshll.u32 %v1229, 16
      %v1444 = vrot.slane %v1442, 5
      %v1445 = vsel %vm1311, %v1440, %v1444
      %v1446 = vshrl.u32 %v1229, 16
      %v1448 = vrot.slane %v1446, 4
      %v1449 = vor.u32 %v1448, %v1444
      %v1450 = vrot.slane %v1449, 4
      %v1452 = vshll.u32 %v1230, 16
      %v1454 = vrot.slane %v1452, 5
      %v1455 = vsel %vm1311, %v1450, %v1454
      %v1457 = vshrl.u32 %v1231, 16
      %v1459 = vrot.slane %v1457, 4
      %v1460 = vshll.u32 %v1231, 16
      %v1462 = vrot.slane %v1460, 5
      %v1463 = vor.u32 %v1459, %v1462
      %v1464 = vrot.slane %v1463, 4
      %v1466 = vshll.u32 %v1232, 16
      %v1468 = vrot.slane %v1466, 5
      %v1469 = vsel %vm1311, %v1464, %v1468
      %v1470 = vshrl.u32 %v1232, 16
      %v1472 = vrot.slane %v1470, 4
      %v1473 = vor.u32 %v1472, %v1468
      %v1474 = vrot.slane %v1473, 4
      %v1476 = vshll.u32 %v1233, 16
      %v1478 = vrot.slane %v1476, 5
      %v1479 = vsel %vm1311, %v1474, %v1478
      %v1481 = vshrl.u32 %v1234, 16
      %v1483 = vrot.slane %v1481, 4
      %v1484 = vshll.u32 %v1234, 16
      %v1486 = vrot.slane %v1484, 5
      %v1487 = vor.u32 %v1483, %v1486
      %v1488 = vrot.slane %v1487, 4
      %v1490 = vshll.u32 %v1235, 16
      %v1492 = vrot.slane %v1490, 5
      %v1493 = vsel %vm1311, %v1488, %v1492
      %v1494 = vshrl.u32 %v1235, 16
      %v1496 = vrot.slane %v1494, 4
      %v1497 = vor.u32 %v1496, %v1492
      %v1498 = vrot.slane %v1497, 4
      %v1500 = vshll.u32 %v1236, 16
      %v1502 = vrot.slane %v1500, 5
      %v1503 = vsel %vm1311, %v1498, %v1502
      %v1505 = vshrl.u32 %v1237, 16
      %v1507 = vrot.slane %v1505, 4
      %v1508 = vshll.u32 %v1237, 16
      %v1510 = vrot.slane %v1508, 5
      %v1511 = vor.u32 %v1507, %v1510
      %v1512 = vrot.slane %v1511, 4
      %v1514 = vshll.u32 %v1238, 16
      %v1516 = vrot.slane %v1514, 5
      %v1517 = vsel %vm1311, %v1512, %v1516
      %v1518 = vshrl.u32 %v1238, 16
      %v1520 = vrot.slane %v1518, 4
      %v1521 = vor.u32 %v1520, %v1516
      %v1522 = vrot.slane %v1521, 4
      %v1524 = vshll.u32 %v1239, 16
      %v1526 = vrot.slane %v1524, 5
      %v1527 = vsel %vm1311, %v1522, %v1526
      %v1529 = vshrl.u32 %v1240, 16
      %v1531 = vrot.slane %v1529, 4
      %v1532 = vshll.u32 %v1240, 16
      %v1534 = vrot.slane %v1532, 5
      %v1535 = vor.u32 %v1531, %v1534
      %v1536 = vrot.slane %v1535, 4
      %v1538 = vshll.u32 %v1241, 16
      %v1540 = vrot.slane %v1538, 5
      %v1541 = vsel %vm1311, %v1536, %v1540
      %v1542 = vshrl.u32 %v1241, 16
      %v1544 = vrot.slane %v1542, 4
      %v1545 = vor.u32 %v1544, %v1540
      %v1546 = vrot.slane %v1545, 4
      %v1548 = vshll.u32 %v1242, 16
      %v1550 = vrot.slane %v1548, 5
      %v1551 = vsel %vm1311, %v1546, %v1550
      %v1553 = vshrl.u32 %v1243, 16
      %v1555 = vrot.slane %v1553, 4
      %v1556 = vshll.u32 %v1243, 16
      %v1558 = vrot.slane %v1556, 5
      %v1559 = vor.u32 %v1555, %v1558
      %v1560 = vrot.slane %v1559, 4
      %v1562 = vshll.u32 %v1244, 16
      %v1564 = vrot.slane %v1562, 5
      %v1565 = vsel %vm1311, %v1560, %v1564
      %v1566 = vshrl.u32 %v1244, 16
      %v1568 = vrot.slane %v1566, 4
      %v1569 = vor.u32 %v1568, %v1564
      %v1570 = vrot.slane %v1569, 4
      %v1572 = vshll.u32 %v1245, 16
      %v1574 = vrot.slane %v1572, 5
      %v1575 = vsel %vm1311, %v1570, %v1574
      %v1577 = vshrl.u32 %v1246, 16
      %v1579 = vrot.slane %v1577, 4
      %v1580 = vshll.u32 %v1246, 16
      %v1582 = vrot.slane %v1580, 5
      %v1583 = vor.u32 %v1579, %v1582
      %v1584 = vrot.slane %v1583, 4
      %v1586 = vshll.u32 %v1247, 16
      %v1588 = vrot.slane %v1586, 5
      %v1589 = vsel %vm1311, %v1584, %v1588
      %v1590 = vshrl.u32 %v1247, 16
      %v1592 = vrot.slane %v1590, 4
      %v1593 = vor.u32 %v1592, %v1588
      %v1594 = vrot.slane %v1593, 4
      %v1596 = vshll.u32 %v1248, 16
      %v1598 = vrot.slane %v1596, 5
      %v1599 = vsel %vm1311, %v1594, %v1598
      %v1601 = vshrl.u32 %v1249, 16
      %v1603 = vrot.slane %v1601, 4
      %v1604 = vshll.u32 %v1249, 16
      %v1606 = vrot.slane %v1604, 5
      %v1607 = vor.u32 %v1603, %v1606
      %v1608 = vrot.slane %v1607, 4
      %v1610 = vshll.u32 %v1250, 16
      %v1612 = vrot.slane %v1610, 5
      %v1613 = vsel %vm1311, %v1608, %v1612
      %v1614 = vshrl.u32 %v1250, 16
      %v1616 = vrot.slane %v1614, 4
      %v1617 = vor.u32 %v1616, %v1612
      %v1618 = vrot.slane %v1617, 4
      %v1620 = vshll.u32 %v1251, 16
      %v1622 = vrot.slane %v1620, 5
      %v1623 = vsel %vm1311, %v1618, %v1622
      %v1625 = vshrl.u32 %v1252, 16
      %v1627 = vrot.slane %v1625, 4
      %v1628 = vshll.u32 %v1252, 16
      %v1630 = vrot.slane %v1628, 5
      %v1631 = vor.u32 %v1627, %v1630
      %v1632 = vrot.slane %v1631, 4
      %v1634 = vshll.u32 %v1253, 16
      %v1636 = vrot.slane %v1634, 5
      %v1637 = vsel %vm1311, %v1632, %v1636
      %v1638 = vshrl.u32 %v1253, 16
      %v1640 = vrot.slane %v1638, 4
      %v1641 = vor.u32 %v1640, %v1636
      %v1642 = vrot.slane %v1641, 4
      %v1644 = vshll.u32 %v1254, 16
      %v1646 = vrot.slane %v1644, 5
      %v1647 = vsel %vm1311, %v1642, %v1646
      %v1649 = vshrl.u32 %v1255, 16
      %v1651 = vrot.slane %v1649, 4
      %v1652 = vshll.u32 %v1255, 16
      %v1654 = vrot.slane %v1652, 5
      %v1655 = vor.u32 %v1651, %v1654
      %v1656 = vrot.slane %v1655, 4
      %v1658 = vshll.u32 %v1256, 16
      %v1660 = vrot.slane %v1658, 5
      %v1661 = vsel %vm1311, %v1656, %v1660
      %v1662 = vshrl.u32 %v1256, 16
      %v1664 = vrot.slane %v1662, 4
      %v1665 = vor.u32 %v1664, %v1660
      %v1666 = vrot.slane %v1665, 4
      %v1668 = vshll.u32 %v1257, 16
      %v1670 = vrot.slane %v1668, 5
      %v1671 = vsel %vm1311, %v1666, %v1670
      %v1673 = vshrl.u32 %v1258, 16
      %v1675 = vrot.slane %v1673, 4
      %v1676 = vshll.u32 %v1258, 16
      %v1678 = vrot.slane %v1676, 5
      %v1679 = vor.u32 %v1675, %v1678
      %v1680 = vrot.slane %v1679, 4
      %v1682 = vshll.u32 %v1259, 16
      %v1684 = vrot.slane %v1682, 5
      %v1685 = vsel %vm1311, %v1680, %v1684
      %v1686 = vshrl.u32 %v1259, 16
      %v1688 = vrot.slane %v1686, 4
      %v1689 = vor.u32 %v1688, %v1684
      %v1690 = vrot.slane %v1689, 4
      %v1692 = vshll.u32 %v1260, 16
      %v1694 = vrot.slane %v1692, 5
      %v1695 = vsel %vm1311, %v1690, %v1694
      %v1697 = vshrl.u32 %v1261, 16
      %v1699 = vrot.slane %v1697, 4
      %v1700 = vshll.u32 %v1261, 16
      %v1702 = vrot.slane %v1700, 5
      %v1703 = vor.u32 %v1699, %v1702
      %v1704 = vrot.slane %v1703, 4
      %v1706 = vshll.u32 %v1262, 16
      %v1708 = vrot.slane %v1706, 5
      %v1709 = vsel %vm1311, %v1704, %v1708
      %v1710 = vshrl.u32 %v1262, 16
      %v1712 = vrot.slane %v1710, 4
      %v1713 = vor.u32 %v1712, %v1708
      %v1714 = vrot.slane %v1713, 4
      %v1716 = vshll.u32 %v1263, 16
      %v1718 = vrot.slane %v1716, 5
      %v1719 = vsel %vm1311, %v1714, %v1718
      %v1721 = vshrl.u32 %v1264, 16
      %v1723 = vrot.slane %v1721, 4
      %v1724 = vshll.u32 %v1264, 16
      %v1726 = vrot.slane %v1724, 5
      %v1727 = vor.u32 %v1723, %v1726
      %v1728 = vrot.slane %v1727, 4
      %v1730 = vshll.u32 %v1265, 16
      %v1732 = vrot.slane %v1730, 5
      %v1733 = vsel %vm1311, %v1728, %v1732
      %v1734 = vshrl.u32 %v1265, 16
      %v1736 = vrot.slane %v1734, 4
      %v1737 = vor.u32 %v1736, %v1732
      %v1738 = vrot.slane %v1737, 4
      %v1740 = vshll.u32 %v1266, 16
      %v1742 = vrot.slane %v1740, 5
      %v1743 = vsel %vm1311, %v1738, %v1742
      %v1745 = vshrl.u32 %v1267, 16
      %v1747 = vrot.slane %v1745, 4
      %v1748 = vshll.u32 %v1267, 16
      %v1750 = vrot.slane %v1748, 5
      %v1751 = vor.u32 %v1747, %v1750
      %v1752 = vrot.slane %v1751, 4
      %v1754 = vshll.u32 %v1268, 16
      %v1756 = vrot.slane %v1754, 5
      %v1757 = vsel %vm1311, %v1752, %v1756
      %v1758 = vshrl.u32 %v1268, 16
      %v1760 = vrot.slane %v1758, 4
      %v1761 = vor.u32 %v1760, %v1756
      %v1762 = vrot.slane %v1761, 4
      %v1764 = vshll.u32 %v1269, 16
      %v1766 = vrot.slane %v1764, 5
      %v1767 = vsel %vm1311, %v1762, %v1766
      %v1769 = vshrl.u32 %v1270, 16
      %v1771 = vrot.slane %v1769, 4
      %v1772 = vshll.u32 %v1270, 16
      %v1774 = vrot.slane %v1772, 5
      %v1775 = vor.u32 %v1771, %v1774
      %v1776 = vrot.slane %v1775, 4
      %v1778 = vshll.u32 %v1271, 16
      %v1780 = vrot.slane %v1778, 5
      %v1781 = vsel %vm1311, %v1776, %v1780
      %v1782 = vshrl.u32 %v1271, 16
      %v1784 = vrot.slane %v1782, 4
      %v1785 = vor.u32 %v1784, %v1780
      %v1786 = vrot.slane %v1785, 4
      %v1788 = vshll.u32 %v1272, 16
      %v1790 = vrot.slane %v1788, 5
      %v1791 = vsel %vm1311, %v1786, %v1790
      %v1793 = vshrl.u32 %v1273, 16
      %v1795 = vrot.slane %v1793, 4
      %v1796 = vshll.u32 %v1273, 16
      %v1798 = vrot.slane %v1796, 5
      %v1799 = vor.u32 %v1795, %v1798
      %v1800 = vrot.slane %v1799, 4
      %v1802 = vshll.u32 %v1274, 16
      %v1804 = vrot.slane %v1802, 5
      %v1805 = vsel %vm1311, %v1800, %v1804
      %v1806 = vshrl.u32 %v1274, 16
      %v1808 = vrot.slane %v1806, 4
      %v1809 = vor.u32 %v1808, %v1804
      %v1810 = vrot.slane %v1809, 4
      %v1812 = vshll.u32 %v1275, 16
      %v1814 = vrot.slane %v1812, 5
      %v1815 = vsel %vm1311, %v1810, %v1814
      %v1817 = vshrl.u32 %v1276, 16
      %v1819 = vrot.slane %v1817, 4
      %v1820 = vshll.u32 %v1276, 16
      %v1822 = vrot.slane %v1820, 5
      %v1823 = vor.u32 %v1819, %v1822
      %v1824 = vrot.slane %v1823, 4
      %v1826 = vshll.u32 %v1277, 16
      %v1828 = vrot.slane %v1826, 5
      %v1829 = vsel %vm1311, %v1824, %v1828
      %v1830 = vshrl.u32 %v1277, 16
      %v1832 = vrot.slane %v1830, 4
      %v1833 = vor.u32 %v1832, %v1828
      %v1834 = vrot.slane %v1833, 4
      %v1836 = vshll.u32 %v1278, 16
      %v1838 = vrot.slane %v1836, 5
      %v1839 = vsel %vm1311, %v1834, %v1838
      %v1841 = vshrl.u32 %v1279, 16
      %v1843 = vrot.slane %v1841, 4
      %v1844 = vshll.u32 %v1279, 16
      %v1846 = vrot.slane %v1844, 5
      %v1847 = vor.u32 %v1843, %v1846
      %v1848 = vrot.slane %v1847, 4
      %v1850 = vshll.u32 %v1280, 16
      %v1852 = vrot.slane %v1850, 5
      %v1853 = vsel %vm1311, %v1848, %v1852
      %v1854 = vshrl.u32 %v1280, 16
      %v1856 = vrot.slane %v1854, 4
      %v1857 = vor.u32 %v1856, %v1852
      %v1858 = vrot.slane %v1857, 4
      %v1860 = vshll.u32 %v1281, 16
      %v1862 = vrot.slane %v1860, 5
      %v1863 = vsel %vm1311, %v1858, %v1862
      %v1865 = vshrl.u32 %v1282, 16
      %v1867 = vrot.slane %v1865, 4
      %v1868 = vshll.u32 %v1282, 16
      %v1870 = vrot.slane %v1868, 5
      %v1871 = vor.u32 %v1867, %v1870
      %v1872 = vrot.slane %v1871, 4
      %v1874 = vshll.u32 %v1283, 16
      %v1876 = vrot.slane %v1874, 5
      %v1877 = vsel %vm1311, %v1872, %v1876
      %v1878 = vshrl.u32 %v1283, 16
      %v1880 = vrot.slane %v1878, 4
      %v1881 = vor.u32 %v1880, %v1876
      %v1882 = vrot.slane %v1881, 4
      %v1884 = vshll.u32 %v1284, 16
      %v1886 = vrot.slane %v1884, 5
      %v1887 = vsel %vm1311, %v1882, %v1886
      %v1889 = vshrl.u32 %v1285, 16
      %v1891 = vrot.slane %v1889, 4
      %v1892 = vshll.u32 %v1285, 16
      %v1894 = vrot.slane %v1892, 5
      %v1895 = vor.u32 %v1891, %v1894
      %v1896 = vrot.slane %v1895, 4
      %v1898 = vshll.u32 %v1286, 16
      %v1900 = vrot.slane %v1898, 5
      %v1901 = vsel %vm1311, %v1896, %v1900
      %v1902 = vshrl.u32 %v1286, 16
      %v1904 = vrot.slane %v1902, 4
      %v1905 = vor.u32 %v1904, %v1900
      %v1906 = vrot.slane %v1905, 4
      %v1908 = vshll.u32 %v1287, 16
      %v1910 = vrot.slane %v1908, 5
      %v1911 = vsel %vm1311, %v1906, %v1910
      %v1913 = vshrl.u32 %v1288, 16
      %v1915 = vrot.slane %v1913, 4
      %v1916 = vshll.u32 %v1288, 16
      %v1918 = vrot.slane %v1916, 5
      %v1919 = vor.u32 %v1915, %v1918
      %v1920 = vrot.slane %v1919, 4
      %v1922 = vshll.u32 %v1289, 16
      %v1924 = vrot.slane %v1922, 5
      %v1925 = vsel %vm1311, %v1920, %v1924
      %v1926 = vshrl.u32 %v1289, 16
      %v1928 = vrot.slane %v1926, 4
      %v1929 = vor.u32 %v1928, %v1924
      %v1930 = vrot.slane %v1929, 4
      %v1932 = vshll.u32 %v1290, 16
      %v1934 = vrot.slane %v1932, 5
      %v1935 = vsel %vm1311, %v1930, %v1934
      %v1937 = vshrl.u32 %v1291, 16
      %v1939 = vrot.slane %v1937, 4
      %v1940 = vshll.u32 %v1291, 16
      %v1942 = vrot.slane %v1940, 5
      %v1943 = vor.u32 %v1939, %v1942
      %v1944 = vrot.slane %v1943, 4
      %v1946 = vshll.u32 %v1292, 16
      %v1948 = vrot.slane %v1946, 5
      %v1949 = vsel %vm1311, %v1944, %v1948
      %v1950 = vshrl.u32 %v1292, 16
      %v1952 = vrot.slane %v1950, 4
      %v1953 = vor.u32 %v1952, %v1948
      %v1954 = vrot.slane %v1953, 4
      %v1956 = vshll.u32 %v1293, 16
      %v1958 = vrot.slane %v1956, 5
      %v1959 = vsel %vm1311, %v1954, %v1958
      %v1961 = vshrl.u32 %v1294, 16
      %v1963 = vrot.slane %v1961, 4
      %v1964 = vshll.u32 %v1294, 16
      %v1966 = vrot.slane %v1964, 5
      %v1967 = vor.u32 %v1963, %v1966
      %v1968 = vrot.slane %v1967, 4
      %v1970 = vshll.u32 %v1295, 16
      %v1972 = vrot.slane %v1970, 5
      %v1973 = vsel %vm1311, %v1968, %v1972
      %v1974 = vshrl.u32 %v1295, 16
      %v1976 = vrot.slane %v1974, 4
      %v1977 = vor.u32 %v1976, %v1972
      %v1978 = vrot.slane %v1977, 4
      %v1980 = vshll.u32 %v1296, 16
      %v1982 = vrot.slane %v1980, 5
      %v1983 = vsel %vm1311, %v1978, %v1982
      %v1985 = vshrl.u32 %v1297, 16
      %v1987 = vrot.slane %v1985, 4
      %v1988 = vshll.u32 %v1297, 16
      %v1990 = vrot.slane %v1988, 5
      %v1991 = vor.u32 %v1987, %v1990
      %v1992 = vrot.slane %v1991, 4
      %v1994 = vshll.u32 %v1298, 16
      %v1996 = vrot.slane %v1994, 5
      %v1997 = vsel %vm1311, %v1992, %v1996
      %v1998 = vshrl.u32 %v1298, 16
      %v2000 = vrot.slane %v1998, 4
      %v2001 = vor.u32 %v2000, %v1996
      %v2002 = vrot.slane %v2001, 4
      %v2004 = vshll.u32 %v1299, 16
      %v2006 = vrot.slane %v2004, 5
      %v2007 = vsel %vm1311, %v2002, %v2006
      %v2009 = vshrl.u32 %v1300, 16
      %v2011 = vrot.slane %v2009, 4
      %v2012 = vshll.u32 %v1300, 16
      %v2014 = vrot.slane %v2012, 5
      %v2015 = vor.u32 %v2011, %v2014
      %v2016 = vrot.slane %v2015, 4
      %v2018 = vshll.u32 %v1301, 16
      %v2020 = vrot.slane %v2018, 5
      %v2021 = vsel %vm1311, %v2016, %v2020
      %v2022 = vshrl.u32 %v1301, 16
      %v2024 = vrot.slane %v2022, 4
      %v2025 = vor.u32 %v2024, %v2020
      %v2026 = vrot.slane %v2025, 4
      %v2028 = vshll.u32 %v1302, 16
      %v2030 = vrot.slane %v2028, 5
      %v2031 = vsel %vm1311, %v2026, %v2030
      %v2033 = vshrl.u32 %v1303, 16
      %v2035 = vrot.slane %v2033, 4
      %v2036 = vshll.u32 %v1303, 16
      %v2038 = vrot.slane %v2036, 5
      %v2039 = vor.u32 %v2035, %v2038
      %v2040 = vrot.slane %v2039, 4
      %v2042 = vshll.u32 %v1304, 16
      %v2044 = vrot.slane %v2042, 5
      %v2045 = vsel %vm1311, %v2040, %v2044
      %v2046 = vshrl.u32 %v1304, 16
      %v2048 = vrot.slane %v2046, 4
      %v2049 = vor.u32 %v2048, %v2044
      %v2050 = vrot.slane %v2049, 4
      %v2052 = vshll.u32 %v1305, 16
      %v2054 = vrot.slane %v2052, 5
      %v2055 = vsel %vm1311, %v2050, %v2054
      %v2057 = vshrl.u32 %v1306, 16
      %v2059 = vrot.slane %v2057, 4
      %v2060 = vshll.u32 %v1306, 16
      %v2062 = vrot.slane %v2060, 5
      %v2063 = vor.u32 %v2059, %v2062
      %v2064 = vrot.slane %v2063, 4
      %v2066 = vshll.u32 %v1307, 16
      %v2068 = vrot.slane %v2066, 5
      %v2069 = vsel %vm1311, %v2064, %v2068
      %v2070 = vshrl.u32 %v1307, 16
      %v2072 = vrot.slane %v2070, 4
      %v2073 = vor.u32 %v2072, %v2068
      %v2074 = vrot.slane %v2073, 4
      %v2076 = vshll.u32 %v1308, 16
      %v2078 = vrot.slane %v2076, 5
      %v2079 = vsel %vm1311, %v2074, %v2078
      %2080 = vrot.lane.b32.xlu0 %v1325, 16
      %v2081 = vpop.permute.xlu0 %2080
      %2082 = vrot.lane.b32.xlu0 %v1335, 16
      %v2083 = vpop.permute.xlu0 %2082
      %2084 = vrot.lane.b32.xlu0 %v1349, 16
      %v2085 = vpop.permute.xlu0 %2084
      %2086 = vrot.lane.b32.xlu0 %v1359, 16
      %v2087 = vpop.permute.xlu0 %2086
      %2088 = vrot.lane.b32.xlu0 %v1373, 16
      %v2089 = vpop.permute.xlu0 %2088
      %2090 = vrot.lane.b32.xlu0 %v1383, 16
      %v2091 = vpop.permute.xlu0 %2090
      %2092 = vrot.lane.b32.xlu0 %v1397, 16
      %v2093 = vpop.permute.xlu0 %2092
      %2094 = vrot.lane.b32.xlu0 %v1407, 16
      %v2095 = vpop.permute.xlu0 %2094
      %2096 = vrot.lane.b32.xlu0 %v1421, 16
      %v2097 = vpop.permute.xlu0 %2096
      %2098 = vrot.lane.b32.xlu0 %v1431, 16
      %v2099 = vpop.permute.xlu0 %2098
      %2100 = vrot.lane.b32.xlu0 %v1445, 16
      %v2101 = vpop.permute.xlu0 %2100
      %2102 = vrot.lane.b32.xlu0 %v1455, 16
      %v2103 = vpop.permute.xlu0 %2102
      %2104 = vrot.lane.b32.xlu0 %v1469, 16
      %v2105 = vpop.permute.xlu0 %2104
      %2106 = vrot.lane.b32.xlu0 %v1479, 16
      %v2107 = vpop.permute.xlu0 %2106
      %2108 = vrot.lane.b32.xlu0 %v1493, 16
      %v2109 = vpop.permute.xlu0 %2108
      %2110 = vrot.lane.b32.xlu0 %v1503, 16
      %v2111 = vpop.permute.xlu0 %2110
      %2112 = vrot.lane.b32.xlu0 %v1517, 16
      %v2113 = vpop.permute.xlu0 %2112
      %2114 = vrot.lane.b32.xlu0 %v1527, 16
      %v2115 = vpop.permute.xlu0 %2114
      %2116 = vrot.lane.b32.xlu0 %v1541, 16
      %v2117 = vpop.permute.xlu0 %2116
      %2118 = vrot.lane.b32.xlu0 %v1551, 16
      %v2119 = vpop.permute.xlu0 %2118
      %2120 = vrot.lane.b32.xlu0 %v1565, 16
      %v2121 = vpop.permute.xlu0 %2120
      %2122 = vrot.lane.b32.xlu0 %v1575, 16
      %v2123 = vpop.permute.xlu0 %2122
      %2124 = vrot.lane.b32.xlu0 %v1589, 16
      %v2125 = vpop.permute.xlu0 %2124
      %2126 = vrot.lane.b32.xlu0 %v1599, 16
      %v2127 = vpop.permute.xlu0 %2126
      %2128 = vrot.lane.b32.xlu0 %v1613, 16
      %v2129 = vpop.permute.xlu0 %2128
      %2130 = vrot.lane.b32.xlu0 %v1623, 16
      %v2131 = vpop.permute.xlu0 %2130
      %2132 = vrot.lane.b32.xlu0 %v1637, 16
      %v2133 = vpop.permute.xlu0 %2132
      %2134 = vrot.lane.b32.xlu0 %v1647, 16
      %v2135 = vpop.permute.xlu0 %2134
      %2136 = vrot.lane.b32.xlu0 %v1661, 16
      %v2137 = vpop.permute.xlu0 %2136
      %2138 = vrot.lane.b32.xlu0 %v1671, 16
      %v2139 = vpop.permute.xlu0 %2138
      %2140 = vrot.lane.b32.xlu0 %v1685, 16
      %v2141 = vpop.permute.xlu0 %2140
      %2142 = vrot.lane.b32.xlu0 %v1695, 16
      %v2143 = vpop.permute.xlu0 %2142
      %2144 = vrot.lane.b32.xlu0 %v1709, 16
      %v2145 = vpop.permute.xlu0 %2144
      %2146 = vrot.lane.b32.xlu0 %v1719, 16
      %v2147 = vpop.permute.xlu0 %2146
      %2148 = vrot.lane.b32.xlu0 %v1733, 16
      %v2149 = vpop.permute.xlu0 %2148
      %2150 = vrot.lane.b32.xlu0 %v1743, 16
      %v2151 = vpop.permute.xlu0 %2150
      %2152 = vrot.lane.b32.xlu0 %v1757, 16
      %v2153 = vpop.permute.xlu0 %2152
      %2154 = vrot.lane.b32.xlu0 %v1767, 16
      %v2155 = vpop.permute.xlu0 %2154
      %2156 = vrot.lane.b32.xlu0 %v1781, 16
      %v2157 = vpop.permute.xlu0 %2156
      %2158 = vrot.lane.b32.xlu0 %v1791, 16
      %v2159 = vpop.permute.xlu0 %2158
      %2160 = vrot.lane.b32.xlu0 %v1805, 16
      %v2161 = vpop.permute.xlu0 %2160
      %2162 = vrot.lane.b32.xlu0 %v1815, 16
      %v2163 = vpop.permute.xlu0 %2162
      %2164 = vrot.lane.b32.xlu0 %v1829, 16
      %v2165 = vpop.permute.xlu0 %2164
      %2166 = vrot.lane.b32.xlu0 %v1839, 16
      %v2167 = vpop.permute.xlu0 %2166
      %2168 = vrot.lane.b32.xlu0 %v1853, 16
      %v2169 = vpop.permute.xlu0 %2168
      %2170 = vrot.lane.b32.xlu0 %v1863, 16
      %v2171 = vpop.permute.xlu0 %2170
      %2172 = vrot.lane.b32.xlu0 %v1877, 16
      %v2173 = vpop.permute.xlu0 %2172
      %2174 = vrot.lane.b32.xlu0 %v1887, 16
      %v2175 = vpop.permute.xlu0 %2174
      %2176 = vrot.lane.b32.xlu0 %v1901, 16
      %v2177 = vpop.permute.xlu0 %2176
      %2178 = vrot.lane.b32.xlu0 %v1911, 16
      %v2179 = vpop.permute.xlu0 %2178
      %2180 = vrot.lane.b32.xlu0 %v1925, 16
      %v2181 = vpop.permute.xlu0 %2180
      %2182 = vrot.lane.b32.xlu0 %v1935, 16
      %v2183 = vpop.permute.xlu0 %2182
      %2184 = vrot.lane.b32.xlu0 %v1949, 16
      %v2185 = vpop.permute.xlu0 %2184
      %2186 = vrot.lane.b32.xlu0 %v1959, 16
      %v2187 = vpop.permute.xlu0 %2186
      %2188 = vrot.lane.b32.xlu0 %v1973, 16
      %v2189 = vpop.permute.xlu0 %2188
      %2190 = vrot.lane.b32.xlu0 %v1983, 16
      %v2191 = vpop.permute.xlu0 %2190
      %2192 = vrot.lane.b32.xlu0 %v1997, 16
      %v2193 = vpop.permute.xlu0 %2192
      %2194 = vrot.lane.b32.xlu0 %v2007, 16
      %v2195 = vpop.permute.xlu0 %2194
      %2196 = vrot.lane.b32.xlu0 %v2021, 16
      %v2197 = vpop.permute.xlu0 %2196
      %2198 = vrot.lane.b32.xlu0 %v2031, 16
      %v2199 = vpop.permute.xlu0 %2198
      %2200 = vrot.lane.b32.xlu0 %v2045, 16
      %v2201 = vpop.permute.xlu0 %2200
      %2202 = vrot.lane.b32.xlu0 %v2055, 16
      %v2203 = vpop.permute.xlu0 %2202
      %2204 = vrot.lane.b32.xlu0 %v2069, 16
      %v2205 = vpop.permute.xlu0 %2204
      %2206 = vrot.lane.b32.xlu0 %v2079, 16
      %v2207 = vpop.permute.xlu0 %2206
      %vm2272 = vcmask 257152
      %2273 = vst.msk [vmem:[#allocation3] sm:$0xf] %vm2272, %v2081
      %2274 = vst.msk [vmem:[#allocation3 + $0x8] sm:$0xf] %vm2272, %v2083
      %2275 = vst.msk [vmem:[#allocation3 + $0x10] sm:$0xf] %vm2272, %v2085
      %2276 = vst.msk [vmem:[#allocation3 + $0x18] sm:$0xf] %vm2272, %v2087
      %2277 = vst.msk [vmem:[#allocation3 + $0x20] sm:$0xf] %vm2272, %v2089
      %2278 = vst.msk [vmem:[#allocation3 + $0x28] sm:$0xf] %vm2272, %v2091
      %2279 = vst.msk [vmem:[#allocation3 + $0x30] sm:$0xf] %vm2272, %v2093
      %2280 = vst.msk [vmem:[#allocation3 + $0x38] sm:$0xf] %vm2272, %v2095
      %2281 = vst.msk [vmem:[#allocation3 + $0x40] sm:$0xf] %vm2272, %v2097
      %2282 = vst.msk [vmem:[#allocation3 + $0x48] sm:$0xf] %vm2272, %v2099
      %2283 = vst.msk [vmem:[#allocation3 + $0x50] sm:$0xf] %vm2272, %v2101
      %2284 = vst.msk [vmem:[#allocation3 + $0x58] sm:$0xf] %vm2272, %v2103
      %2285 = vst.msk [vmem:[#allocation3 + $0x60] sm:$0xf] %vm2272, %v2105
      %2286 = vst.msk [vmem:[#allocation3 + $0x68] sm:$0xf] %vm2272, %v2107
      %2287 = vst.msk [vmem:[#allocation3 + $0x70] sm:$0xf] %vm2272, %v2109
      %2288 = vst.msk [vmem:[#allocation3 + $0x78] sm:$0xf] %vm2272, %v2111
      %2289 = vst.msk [vmem:[#allocation3 + $0x80] sm:$0xf] %vm2272, %v2113
      %2290 = vst.msk [vmem:[#allocation3 + $0x88] sm:$0xf] %vm2272, %v2115
      %2291 = vst.msk [vmem:[#allocation3 + $0x90] sm:$0xf] %vm2272, %v2117
      %2292 = vst.msk [vmem:[#allocation3 + $0x98] sm:$0xf] %vm2272, %v2119
      %2293 = vst.msk [vmem:[#allocation3 + $0xa0] sm:$0xf] %vm2272, %v2121
      %2294 = vst.msk [vmem:[#allocation3 + $0xa8] sm:$0xf] %vm2272, %v2123
      %2295 = vst.msk [vmem:[#allocation3 + $0xb0] sm:$0xf] %vm2272, %v2125
      %2296 = vst.msk [vmem:[#allocation3 + $0xb8] sm:$0xf] %vm2272, %v2127
      %2297 = vst.msk [vmem:[#allocation3 + $0xc0] sm:$0xf] %vm2272, %v2129
      %2298 = vst.msk [vmem:[#allocation3 + $0xc8] sm:$0xf] %vm2272, %v2131
      %2299 = vst.msk [vmem:[#allocation3 + $0xd0] sm:$0xf] %vm2272, %v2133
      %2300 = vst.msk [vmem:[#allocation3 + $0xd8] sm:$0xf] %vm2272, %v2135
      %2301 = vst.msk [vmem:[#allocation3 + $0xe0] sm:$0xf] %vm2272, %v2137
      %2302 = vst.msk [vmem:[#allocation3 + $0xe8] sm:$0xf] %vm2272, %v2139
      %2303 = vst.msk [vmem:[#allocation3 + $0xf0] sm:$0xf] %vm2272, %v2141
      %2304 = vst.msk [vmem:[#allocation3 + $0xf8] sm:$0xf] %vm2272, %v2143
      %2305 = vst.msk [vmem:[#allocation3 + $0x100] sm:$0xf] %vm2272, %v2145
      %2306 = vst.msk [vmem:[#allocation3 + $0x108] sm:$0xf] %vm2272, %v2147
      %2307 = vst.msk [vmem:[#allocation3 + $0x110] sm:$0xf] %vm2272, %v2149
      %2308 = vst.msk [vmem:[#allocation3 + $0x118] sm:$0xf] %vm2272, %v2151
      %2309 = vst.msk [vmem:[#allocation3 + $0x120] sm:$0xf] %vm2272, %v2153
      %2310 = vst.msk [vmem:[#allocation3 + $0x128] sm:$0xf] %vm2272, %v2155
      %2311 = vst.msk [vmem:[#allocation3 + $0x130] sm:$0xf] %vm2272, %v2157
      %2312 = vst.msk [vmem:[#allocation3 + $0x138] sm:$0xf] %vm2272, %v2159
      %2313 = vst.msk [vmem:[#allocation3 + $0x140] sm:$0xf] %vm2272, %v2161
      %2314 = vst.msk [vmem:[#allocation3 + $0x148] sm:$0xf] %vm2272, %v2163
      %2315 = vst.msk [vmem:[#allocation3 + $0x150] sm:$0xf] %vm2272, %v2165
      %2316 = vst.msk [vmem:[#allocation3 + $0x158] sm:$0xf] %vm2272, %v2167
      %2317 = vst.msk [vmem:[#allocation3 + $0x160] sm:$0xf] %vm2272, %v2169
      %2318 = vst.msk [vmem:[#allocation3 + $0x168] sm:$0xf] %vm2272, %v2171
      %2319 = vst.msk [vmem:[#allocation3 + $0x170] sm:$0xf] %vm2272, %v2173
      %2320 = vst.msk [vmem:[#allocation3 + $0x178] sm:$0xf] %vm2272, %v2175
      %2321 = vst.msk [vmem:[#allocation3 + $0x180] sm:$0xf] %vm2272, %v2177
      %2322 = vst.msk [vmem:[#allocation3 + $0x188] sm:$0xf] %vm2272, %v2179
      %2323 = vst.msk [vmem:[#allocation3 + $0x190] sm:$0xf] %vm2272, %v2181
      %2324 = vst.msk [vmem:[#allocation3 + $0x198] sm:$0xf] %vm2272, %v2183
      %2325 = vst.msk [vmem:[#allocation3 + $0x1a0] sm:$0xf] %vm2272, %v2185
      %2326 = vst.msk [vmem:[#allocation3 + $0x1a8] sm:$0xf] %vm2272, %v2187
      %2327 = vst.msk [vmem:[#allocation3 + $0x1b0] sm:$0xf] %vm2272, %v2189
      %2328 = vst.msk [vmem:[#allocation3 + $0x1b8] sm:$0xf] %vm2272, %v2191
      %2329 = vst.msk [vmem:[#allocation3 + $0x1c0] sm:$0xf] %vm2272, %v2193
      %2330 = vst.msk [vmem:[#allocation3 + $0x1c8] sm:$0xf] %vm2272, %v2195
      %2331 = vst.msk [vmem:[#allocation3 + $0x1d0] sm:$0xf] %vm2272, %v2197
      %2332 = vst.msk [vmem:[#allocation3 + $0x1d8] sm:$0xf] %vm2272, %v2199
      %2333 = vst.msk [vmem:[#allocation3 + $0x1e0] sm:$0xf] %vm2272, %v2201
      %2334 = vst.msk [vmem:[#allocation3 + $0x1e8] sm:$0xf] %vm2272, %v2203
      %2335 = vst.msk [vmem:[#allocation3 + $0x1f0] sm:$0xf] %vm2272, %v2205
      %2336 = vst.msk [vmem:[#allocation3 + $0x1f8] sm:$0xf] %vm2272, %v2207
      %v2337 = vld [vmem:[#allocation2] sm:$0xe]
      %v2338 = vld [vmem:[#allocation2 + $0x4] sm:$0xf]
      %v2339 = vld [vmem:[#allocation2 + $0x8] sm:$0x1]
      %v2340 = vld [vmem:[#allocation2 + $0xc] sm:$0xe]
      %v2341 = vld [vmem:[#allocation2 + $0x10] sm:$0xf]
      %v2342 = vld [vmem:[#allocation2 + $0x14] sm:$0x1]
      %v2343 = vld [vmem:[#allocation2 + $0x18] sm:$0xe]
      %v2344 = vld [vmem:[#allocation2 + $0x1c] sm:$0xf]
      %v2345 = vld [vmem:[#allocation2 + $0x20] sm:$0x1]
      %v2346 = vld [vmem:[#allocation2 + $0x24] sm:$0xe]
      %v2347 = vld [vmem:[#allocation2 + $0x28] sm:$0xf]
      %v2348 = vld [vmem:[#allocation2 + $0x2c] sm:$0x1]
      %v2349 = vld [vmem:[#allocation2 + $0x30] sm:$0xe]
      %v2350 = vld [vmem:[#allocation2 + $0x34] sm:$0xf]
      %v2351 = vld [vmem:[#allocation2 + $0x38] sm:$0x1]
      %v2352 = vld [vmem:[#allocation2 + $0x3c] sm:$0xe]
      %v2353 = vld [vmem:[#allocation2 + $0x40] sm:$0xf]
      %v2354 = vld [vmem:[#allocation2 + $0x44] sm:$0x1]
      %v2355 = vld [vmem:[#allocation2 + $0x48] sm:$0xe]
      %v2356 = vld [vmem:[#allocation2 + $0x4c] sm:$0xf]
      %v2357 = vld [vmem:[#allocation2 + $0x50] sm:$0x1]
      %v2358 = vld [vmem:[#allocation2 + $0x54] sm:$0xe]
      %v2359 = vld [vmem:[#allocation2 + $0x58] sm:$0xf]
      %v2360 = vld [vmem:[#allocation2 + $0x5c] sm:$0x1]
      %v2361 = vld [vmem:[#allocation2 + $0x60] sm:$0xe]
      %v2362 = vld [vmem:[#allocation2 + $0x64] sm:$0xf]
      %v2363 = vld [vmem:[#allocation2 + $0x68] sm:$0x1]
      %v2364 = vld [vmem:[#allocation2 + $0x6c] sm:$0xe]
      %v2365 = vld [vmem:[#allocation2 + $0x70] sm:$0xf]
      %v2366 = vld [vmem:[#allocation2 + $0x74] sm:$0x1]
      %v2367 = vld [vmem:[#allocation2 + $0x78] sm:$0xe]
      %v2368 = vld [vmem:[#allocation2 + $0x7c] sm:$0xf]
      %v2369 = vld [vmem:[#allocation2 + $0x80] sm:$0x1]
      %v2370 = vld [vmem:[#allocation2 + $0x84] sm:$0xe]
      %v2371 = vld [vmem:[#allocation2 + $0x88] sm:$0xf]
      %v2372 = vld [vmem:[#allocation2 + $0x8c] sm:$0x1]
      %v2373 = vld [vmem:[#allocation2 + $0x90] sm:$0xe]
      %v2374 = vld [vmem:[#allocation2 + $0x94] sm:$0xf]
      %v2375 = vld [vmem:[#allocation2 + $0x98] sm:$0x1]
      %v2376 = vld [vmem:[#allocation2 + $0x9c] sm:$0xe]
      %v2377 = vld [vmem:[#allocation2 + $0xa0] sm:$0xf]
      %v2378 = vld [vmem:[#allocation2 + $0xa4] sm:$0x1]
      %v2379 = vld [vmem:[#allocation2 + $0xa8] sm:$0xe]
      %v2380 = vld [vmem:[#allocation2 + $0xac] sm:$0xf]
      %v2381 = vld [vmem:[#allocation2 + $0xb0] sm:$0x1]
      %v2382 = vld [vmem:[#allocation2 + $0xb4] sm:$0xe]
      %v2383 = vld [vmem:[#allocation2 + $0xb8] sm:$0xf]
      %v2384 = vld [vmem:[#allocation2 + $0xbc] sm:$0x1]
      %v2385 = vld [vmem:[#allocation2 + $0xd8] sm:$0xe]
      %v2386 = vld [vmem:[#allocation2 + $0xdc] sm:$0xf]
      %v2387 = vld [vmem:[#allocation2 + $0xe0] sm:$0x1]
      %v2388 = vld [vmem:[#allocation2 + $0xe4] sm:$0xe]
      %v2389 = vld [vmem:[#allocation2 + $0xe8] sm:$0xf]
      %v2390 = vld [vmem:[#allocation2 + $0xec] sm:$0x1]
      %v2391 = vld [vmem:[#allocation2 + $0xf0] sm:$0xe]
      %v2392 = vld [vmem:[#allocation2 + $0xf4] sm:$0xf]
      %v2393 = vld [vmem:[#allocation2 + $0xf8] sm:$0x1]
      %v2394 = vld [vmem:[#allocation2 + $0xfc] sm:$0xe]
      %v2395 = vld [vmem:[#allocation2 + $0x100] sm:$0xf]
      %v2396 = vld [vmem:[#allocation2 + $0x104] sm:$0x1]
      %v2397 = vld [vmem:[#allocation2 + $0x108] sm:$0xe]
      %v2398 = vld [vmem:[#allocation2 + $0x10c] sm:$0xf]
      %v2399 = vld [vmem:[#allocation2 + $0x110] sm:$0x1]
      %v2400 = vld [vmem:[#allocation2 + $0x114] sm:$0xe]
      %v2401 = vld [vmem:[#allocation2 + $0x118] sm:$0xf]
      %v2402 = vld [vmem:[#allocation2 + $0x11c] sm:$0x1]
      %v2403 = vld [vmem:[#allocation2 + $0x120] sm:$0xe]
      %v2404 = vld [vmem:[#allocation2 + $0x124] sm:$0xf]
      %v2405 = vld [vmem:[#allocation2 + $0x128] sm:$0x1]
      %v2406 = vld [vmem:[#allocation2 + $0x12c] sm:$0xe]
      %v2407 = vld [vmem:[#allocation2 + $0x130] sm:$0xf]
      %v2408 = vld [vmem:[#allocation2 + $0x134] sm:$0x1]
      %v2409 = vld [vmem:[#allocation2 + $0x138] sm:$0xe]
      %v2410 = vld [vmem:[#allocation2 + $0x13c] sm:$0xf]
      %v2411 = vld [vmem:[#allocation2 + $0x140] sm:$0x1]
      %v2412 = vld [vmem:[#allocation2 + $0x144] sm:$0xe]
      %v2413 = vld [vmem:[#allocation2 + $0x148] sm:$0xf]
      %v2414 = vld [vmem:[#allocation2 + $0x14c] sm:$0x1]
      %v2415 = vld [vmem:[#allocation2 + $0x150] sm:$0xe]
      %v2416 = vld [vmem:[#allocation2 + $0x154] sm:$0xf]
      %v2417 = vld [vmem:[#allocation2 + $0x158] sm:$0x1]
      %v2418 = vld [vmem:[#allocation2 + $0x15c] sm:$0xe]
      %v2419 = vld [vmem:[#allocation2 + $0x160] sm:$0xf]
      %v2420 = vld [vmem:[#allocation2 + $0x164] sm:$0x1]
      %v2421 = vld [vmem:[#allocation2 + $0x168] sm:$0xe]
      %v2422 = vld [vmem:[#allocation2 + $0x16c] sm:$0xf]
      %v2423 = vld [vmem:[#allocation2 + $0x170] sm:$0x1]
      %v2424 = vld [vmem:[#allocation2 + $0x174] sm:$0xe]
      %v2425 = vld [vmem:[#allocation2 + $0x178] sm:$0xf]
      %v2426 = vld [vmem:[#allocation2 + $0x17c] sm:$0x1]
      %v2427 = vld [vmem:[#allocation2 + $0x180] sm:$0xe]
      %v2428 = vld [vmem:[#allocation2 + $0x184] sm:$0xf]
      %v2429 = vld [vmem:[#allocation2 + $0x188] sm:$0x1]
      %v2430 = vld [vmem:[#allocation2 + $0x18c] sm:$0xe]
      %v2431 = vld [vmem:[#allocation2 + $0x190] sm:$0xf]
      %v2432 = vld [vmem:[#allocation2 + $0x194] sm:$0x1]
      %vm2529 = vcmask 1042432
      %vm2530 = vcmask 1046532
      %vm2531 = vmor %vm2529, %vm2530
      %v2532 = vrot.slane %v2337, 5
      %v2533 = vrot.slane %v2532, 4
      %v2534 = vrot.slane %v2338, 5
      %v2535 = vsel %vm2531, %v2533, %v2534
      %v2536 = vrot.slane %v2534, 4
      %v2537 = vrot.slane %v2339, 5
      %v2538 = vsel %vm2531, %v2536, %v2537
      %v2539 = vrot.slane %v2340, 5
      %v2540 = vrot.slane %v2539, 4
      %v2541 = vrot.slane %v2341, 5
      %v2542 = vsel %vm2531, %v2540, %v2541
      %v2543 = vrot.slane %v2541, 4
      %v2544 = vrot.slane %v2342, 5
      %v2545 = vsel %vm2531, %v2543, %v2544
      %v2546 = vrot.slane %v2343, 5
      %v2547 = vrot.slane %v2546, 4
      %v2548 = vrot.slane %v2344, 5
      %v2549 = vsel %vm2531, %v2547, %v2548
      %v2550 = vrot.slane %v2548, 4
      %v2551 = vrot.slane %v2345, 5
      %v2552 = vsel %vm2531, %v2550, %v2551
      %v2553 = vrot.slane %v2346, 5
      %v2554 = vrot.slane %v2553, 4
      %v2555 = vrot.slane %v2347, 5
      %v2556 = vsel %vm2531, %v2554, %v2555
      %v2557 = vrot.slane %v2555, 4
      %v2558 = vrot.slane %v2348, 5
      %v2559 = vsel %vm2531, %v2557, %v2558
      %v2560 = vrot.slane %v2349, 5
      %v2561 = vrot.slane %v2560, 4
      %v2562 = vrot.slane %v2350, 5
      %v2563 = vsel %vm2531, %v2561, %v2562
      %v2564 = vrot.slane %v2562, 4
      %v2565 = vrot.slane %v2351, 5
      %v2566 = vsel %vm2531, %v2564, %v2565
      %v2567 = vrot.slane %v2352, 5
      %v2568 = vrot.slane %v2567, 4
      %v2569 = vrot.slane %v2353, 5
      %v2570 = vsel %vm2531, %v2568, %v2569
      %v2571 = vrot.slane %v2569, 4
      %v2572 = vrot.slane %v2354, 5
      %v2573 = vsel %vm2531, %v2571, %v2572
      %v2574 = vrot.slane %v2355, 5
      %v2575 = vrot.slane %v2574, 4
      %v2576 = vrot.slane %v2356, 5
      %v2577 = vsel %vm2531, %v2575, %v2576
      %v2578 = vrot.slane %v2576, 4
      %v2579 = vrot.slane %v2357, 5
      %v2580 = vsel %vm2531, %v2578, %v2579
      %v2581 = vrot.slane %v2358, 5
      %v2582 = vrot.slane %v2581, 4
      %v2583 = vrot.slane %v2359, 5
      %v2584 = vsel %vm2531, %v2582, %v2583
      %v2585 = vrot.slane %v2583, 4
      %v2586 = vrot.slane %v2360, 5
      %v2587 = vsel %vm2531, %v2585, %v2586
      %v2588 = vrot.slane %v2361, 5
      %v2589 = vrot.slane %v2588, 4
      %v2590 = vrot.slane %v2362, 5
      %v2591 = vsel %vm2531, %v2589, %v2590
      %v2592 = vrot.slane %v2590, 4
      %v2593 = vrot.slane %v2363, 5
      %v2594 = vsel %vm2531, %v2592, %v2593
      %v2595 = vrot.slane %v2364, 5
      %v2596 = vrot.slane %v2595, 4
      %v2597 = vrot.slane %v2365, 5
      %v2598 = vsel %vm2531, %v2596, %v2597
      %v2599 = vrot.slane %v2597, 4
      %v2600 = vrot.slane %v2366, 5
      %v2601 = vsel %vm2531, %v2599, %v2600
      %v2602 = vrot.slane %v2367, 5
      %v2603 = vrot.slane %v2602, 4
      %v2604 = vrot.slane %v2368, 5
      %v2605 = vsel %vm2531, %v2603, %v2604
      %v2606 = vrot.slane %v2604, 4
      %v2607 = vrot.slane %v2369, 5
      %v2608 = vsel %vm2531, %v2606, %v2607
      %v2609 = vrot.slane %v2370, 5
      %v2610 = vrot.slane %v2609, 4
      %v2611 = vrot.slane %v2371, 5
      %v2612 = vsel %vm2531, %v2610, %v2611
      %v2613 = vrot.slane %v2611, 4
      %v2614 = vrot.slane %v2372, 5
      %v2615 = vsel %vm2531, %v2613, %v2614
      %v2616 = vrot.slane %v2373, 5
      %v2617 = vrot.slane %v2616, 4
      %v2618 = vrot.slane %v2374, 5
      %v2619 = vsel %vm2531, %v2617, %v2618
      %v2620 = vrot.slane %v2618, 4
      %v2621 = vrot.slane %v2375, 5
      %v2622 = vsel %vm2531, %v2620, %v2621
      %v2623 = vrot.slane %v2376, 5
      %v2624 = vrot.slane %v2623, 4
      %v2625 = vrot.slane %v2377, 5
      %v2626 = vsel %vm2531, %v2624, %v2625
      %v2627 = vrot.slane %v2625, 4
      %v2628 = vrot.slane %v2378, 5
      %v2629 = vsel %vm2531, %v2627, %v2628
      %v2630 = vrot.slane %v2379, 5
      %v2631 = vrot.slane %v2630, 4
      %v2632 = vrot.slane %v2380, 5
      %v2633 = vsel %vm2531, %v2631, %v2632
      %v2634 = vrot.slane %v2632, 4
      %v2635 = vrot.slane %v2381, 5
      %v2636 = vsel %vm2531, %v2634, %v2635
      %v2637 = vrot.slane %v2382, 5
      %v2638 = vrot.slane %v2637, 4
      %v2639 = vrot.slane %v2383, 5
      %v2640 = vsel %vm2531, %v2638, %v2639
      %v2641 = vrot.slane %v2639, 4
      %v2642 = vrot.slane %v2384, 5
      %v2643 = vsel %vm2531, %v2641, %v2642
      %v2644 = vrot.slane %v2385, 5
      %v2645 = vrot.slane %v2644, 4
      %v2646 = vrot.slane %v2386, 5
      %v2647 = vsel %vm2531, %v2645, %v2646
      %v2648 = vrot.slane %v2646, 4
      %v2649 = vrot.slane %v2387, 5
      %v2650 = vsel %vm2531, %v2648, %v2649
      %v2651 = vrot.slane %v2388, 5
      %v2652 = vrot.slane %v2651, 4
      %v2653 = vrot.slane %v2389, 5
      %v2654 = vsel %vm2531, %v2652, %v2653
      %v2655 = vrot.slane %v2653, 4
      %v2656 = vrot.slane %v2390, 5
      %v2657 = vsel %vm2531, %v2655, %v2656
      %v2658 = vrot.slane %v2391, 5
      %v2659 = vrot.slane %v2658, 4
      %v2660 = vrot.slane %v2392, 5
      %v2661 = vsel %vm2531, %v2659, %v2660
      %v2662 = vrot.slane %v2660, 4
      %v2663 = vrot.slane %v2393, 5
      %v2664 = vsel %vm2531, %v2662, %v2663
      %v2665 = vrot.slane %v2394, 5
      %v2666 = vrot.slane %v2665, 4
      %v2667 = vrot.slane %v2395, 5
      %v2668 = vsel %vm2531, %v2666, %v2667
      %v2669 = vrot.slane %v2667, 4
      %v2670 = vrot.slane %v2396, 5
      %v2671 = vsel %vm2531, %v2669, %v2670
      %v2672 = vrot.slane %v2397, 5
      %v2673 = vrot.slane %v2672, 4
      %v2674 = vrot.slane %v2398, 5
      %v2675 = vsel %vm2531, %v2673, %v2674
      %v2676 = vrot.slane %v2674, 4
      %v2677 = vrot.slane %v2399, 5
      %v2678 = vsel %vm2531, %v2676, %v2677
      %v2679 = vrot.slane %v2400, 5
      %v2680 = vrot.slane %v2679, 4
      %v2681 = vrot.slane %v2401, 5
      %v2682 = vsel %vm2531, %v2680, %v2681
      %v2683 = vrot.slane %v2681, 4
      %v2684 = vrot.slane %v2402, 5
      %v2685 = vsel %vm2531, %v2683, %v2684
      %v2686 = vrot.slane %v2403, 5
      %v2687 = vrot.slane %v2686, 4
      %v2688 = vrot.slane %v2404, 5
      %v2689 = vsel %vm2531, %v2687, %v2688
      %v2690 = vrot.slane %v2688, 4
      %v2691 = vrot.slane %v2405, 5
      %v2692 = vsel %vm2531, %v2690, %v2691
      %v2693 = vrot.slane %v2406, 5
      %v2694 = vrot.slane %v2693, 4
      %v2695 = vrot.slane %v2407, 5
      %v2696 = vsel %vm2531, %v2694, %v2695
      %v2697 = vrot.slane %v2695, 4
      %v2698 = vrot.slane %v2408, 5
      %v2699 = vsel %vm2531, %v2697, %v2698
      %v2700 = vrot.slane %v2409, 5
      %v2701 = vrot.slane %v2700, 4
      %v2702 = vrot.slane %v2410, 5
      %v2703 = vsel %vm2531, %v2701, %v2702
      %v2704 = vrot.slane %v2702, 4
      %v2705 = vrot.slane %v2411, 5
      %v2706 = vsel %vm2531, %v2704, %v2705
      %v2707 = vrot.slane %v2412, 5
      %v2708 = vrot.slane %v2707, 4
      %v2709 = vrot.slane %v2413, 5
      %v2710 = vsel %vm2531, %v2708, %v2709
      %v2711 = vrot.slane %v2709, 4
      %v2712 = vrot.slane %v2414, 5
      %v2713 = vsel %vm2531, %v2711, %v2712
      %v2714 = vrot.slane %v2415, 5
      %v2715 = vrot.slane %v2714, 4
      %v2716 = vrot.slane %v2416, 5
      %v2717 = vsel %vm2531, %v2715, %v2716
      %v2718 = vrot.slane %v2716, 4
      %v2719 = vrot.slane %v2417, 5
      %v2720 = vsel %vm2531, %v2718, %v2719
      %v2721 = vrot.slane %v2418, 5
      %v2722 = vrot.slane %v2721, 4
      %v2723 = vrot.slane %v2419, 5
      %v2724 = vsel %vm2531, %v2722, %v2723
      %v2725 = vrot.slane %v2723, 4
      %v2726 = vrot.slane %v2420, 5
      %v2727 = vsel %vm2531, %v2725, %v2726
      %v2728 = vrot.slane %v2421, 5
      %v2729 = vrot.slane %v2728, 4
      %v2730 = vrot.slane %v2422, 5
      %v2731 = vsel %vm2531, %v2729, %v2730
      %v2732 = vrot.slane %v2730, 4
      %v2733 = vrot.slane %v2423, 5
      %v2734 = vsel %vm2531, %v2732, %v2733
      %v2735 = vrot.slane %v2424, 5
      %v2736 = vrot.slane %v2735, 4
      %v2737 = vrot.slane %v2425, 5
      %v2738 = vsel %vm2531, %v2736, %v2737
      %v2739 = vrot.slane %v2737, 4
      %v2740 = vrot.slane %v2426, 5
      %v2741 = vsel %vm2531, %v2739, %v2740
      %v2742 = vrot.slane %v2427, 5
      %v2743 = vrot.slane %v2742, 4
      %v2744 = vrot.slane %v2428, 5
      %v2745 = vsel %vm2531, %v2743, %v2744
      %v2746 = vrot.slane %v2744, 4
      %v2747 = vrot.slane %v2429, 5
      %v2748 = vsel %vm2531, %v2746, %v2747
      %v2749 = vrot.slane %v2430, 5
      %v2750 = vrot.slane %v2749, 4
      %v2751 = vrot.slane %v2431, 5
      %v2752 = vsel %vm2531, %v2750, %v2751
      %v2753 = vrot.slane %v2751, 4
      %v2754 = vrot.slane %v2432, 5
      %v2755 = vsel %vm2531, %v2753, %v2754
      %2756 = vrot.lane.b32.xlu0 %v2535, 32
      %v2757 = vpop.permute.xlu0 %2756
      %2758 = vrot.lane.b32.xlu0 %v2538, 32
      %v2759 = vpop.permute.xlu0 %2758
      %2760 = vrot.lane.b32.xlu0 %v2542, 32
      %v2761 = vpop.permute.xlu0 %2760
      %2762 = vrot.lane.b32.xlu0 %v2545, 32
      %v2763 = vpop.permute.xlu0 %2762
      %2764 = vrot.lane.b32.xlu0 %v2549, 32
      %v2765 = vpop.permute.xlu0 %2764
      %2766 = vrot.lane.b32.xlu0 %v2552, 32
      %v2767 = vpop.permute.xlu0 %2766
      %2768 = vrot.lane.b32.xlu0 %v2556, 32
      %v2769 = vpop.permute.xlu0 %2768
      %2770 = vrot.lane.b32.xlu0 %v2559, 32
      %v2771 = vpop.permute.xlu0 %2770
      %2772 = vrot.lane.b32.xlu0 %v2563, 32
      %v2773 = vpop.permute.xlu0 %2772
      %2774 = vrot.lane.b32.xlu0 %v2566, 32
      %v2775 = vpop.permute.xlu0 %2774
      %2776 = vrot.lane.b32.xlu0 %v2570, 32
      %v2777 = vpop.permute.xlu0 %2776
      %2778 = vrot.lane.b32.xlu0 %v2573, 32
      %v2779 = vpop.permute.xlu0 %2778
      %2780 = vrot.lane.b32.xlu0 %v2577, 32
      %v2781 = vpop.permute.xlu0 %2780
      %2782 = vrot.lane.b32.xlu0 %v2580, 32
      %v2783 = vpop.permute.xlu0 %2782
      %2784 = vrot.lane.b32.xlu0 %v2584, 32
      %v2785 = vpop.permute.xlu0 %2784
      %2786 = vrot.lane.b32.xlu0 %v2587, 32
      %v2787 = vpop.permute.xlu0 %2786
      %2788 = vrot.lane.b32.xlu0 %v2591, 32
      %v2789 = vpop.permute.xlu0 %2788
      %2790 = vrot.lane.b32.xlu0 %v2594, 32
      %v2791 = vpop.permute.xlu0 %2790
      %2792 = vrot.lane.b32.xlu0 %v2598, 32
      %v2793 = vpop.permute.xlu0 %2792
      %2794 = vrot.lane.b32.xlu0 %v2601, 32
      %v2795 = vpop.permute.xlu0 %2794
      %2796 = vrot.lane.b32.xlu0 %v2605, 32
      %v2797 = vpop.permute.xlu0 %2796
      %2798 = vrot.lane.b32.xlu0 %v2608, 32
      %v2799 = vpop.permute.xlu0 %2798
      %2800 = vrot.lane.b32.xlu0 %v2612, 32
      %v2801 = vpop.permute.xlu0 %2800
      %2802 = vrot.lane.b32.xlu0 %v2615, 32
      %v2803 = vpop.permute.xlu0 %2802
      %2804 = vrot.lane.b32.xlu0 %v2619, 32
      %v2805 = vpop.permute.xlu0 %2804
      %2806 = vrot.lane.b32.xlu0 %v2622, 32
      %v2807 = vpop.permute.xlu0 %2806
      %2808 = vrot.lane.b32.xlu0 %v2626, 32
      %v2809 = vpop.permute.xlu0 %2808
      %2810 = vrot.lane.b32.xlu0 %v2629, 32
      %v2811 = vpop.permute.xlu0 %2810
      %2812 = vrot.lane.b32.xlu0 %v2633, 32
      %v2813 = vpop.permute.xlu0 %2812
      %2814 = vrot.lane.b32.xlu0 %v2636, 32
      %v2815 = vpop.permute.xlu0 %2814
      %2816 = vrot.lane.b32.xlu0 %v2640, 32
      %v2817 = vpop.permute.xlu0 %2816
      %2818 = vrot.lane.b32.xlu0 %v2643, 32
      %v2819 = vpop.permute.xlu0 %2818
      %2820 = vrot.lane.b32.xlu0 %v2647, 32
      %v2821 = vpop.permute.xlu0 %2820
      %2822 = vrot.lane.b32.xlu0 %v2650, 32
      %v2823 = vpop.permute.xlu0 %2822
      %2824 = vrot.lane.b32.xlu0 %v2654, 32
      %v2825 = vpop.permute.xlu0 %2824
      %2826 = vrot.lane.b32.xlu0 %v2657, 32
      %v2827 = vpop.permute.xlu0 %2826
      %2828 = vrot.lane.b32.xlu0 %v2661, 32
      %v2829 = vpop.permute.xlu0 %2828
      %2830 = vrot.lane.b32.xlu0 %v2664, 32
      %v2831 = vpop.permute.xlu0 %2830
      %2832 = vrot.lane.b32.xlu0 %v2668, 32
      %v2833 = vpop.permute.xlu0 %2832
      %2834 = vrot.lane.b32.xlu0 %v2671, 32
      %v2835 = vpop.permute.xlu0 %2834
      %2836 = vrot.lane.b32.xlu0 %v2675, 32
      %v2837 = vpop.permute.xlu0 %2836
      %2838 = vrot.lane.b32.xlu0 %v2678, 32
      %v2839 = vpop.permute.xlu0 %2838
      %2840 = vrot.lane.b32.xlu0 %v2682, 32
      %v2841 = vpop.permute.xlu0 %2840
      %2842 = vrot.lane.b32.xlu0 %v2685, 32
      %v2843 = vpop.permute.xlu0 %2842
      %2844 = vrot.lane.b32.xlu0 %v2689, 32
      %v2845 = vpop.permute.xlu0 %2844
      %2846 = vrot.lane.b32.xlu0 %v2692, 32
      %v2847 = vpop.permute.xlu0 %2846
      %2848 = vrot.lane.b32.xlu0 %v2696, 32
      %v2849 = vpop.permute.xlu0 %2848
      %2850 = vrot.lane.b32.xlu0 %v2699, 32
      %v2851 = vpop.permute.xlu0 %2850
      %2852 = vrot.lane.b32.xlu0 %v2703, 32
      %v2853 = vpop.permute.xlu0 %2852
      %2854 = vrot.lane.b32.xlu0 %v2706, 32
      %v2855 = vpop.permute.xlu0 %2854
      %2856 = vrot.lane.b32.xlu0 %v2710, 32
      %v2857 = vpop.permute.xlu0 %2856
      %2858 = vrot.lane.b32.xlu0 %v2713, 32
      %v2859 = vpop.permute.xlu0 %2858
      %2860 = vrot.lane.b32.xlu0 %v2717, 32
      %v2861 = vpop.permute.xlu0 %2860
      %2862 = vrot.lane.b32.xlu0 %v2720, 32
      %v2863 = vpop.permute.xlu0 %2862
      %2864 = vrot.lane.b32.xlu0 %v2724, 32
      %v2865 = vpop.permute.xlu0 %2864
      %2866 = vrot.lane.b32.xlu0 %v2727, 32
      %v2867 = vpop.permute.xlu0 %2866
      %2868 = vrot.lane.b32.xlu0 %v2731, 32
      %v2869 = vpop.permute.xlu0 %2868
      %2870 = vrot.lane.b32.xlu0 %v2734, 32
      %v2871 = vpop.permute.xlu0 %2870
      %2872 = vrot.lane.b32.xlu0 %v2738, 32
      %v2873 = vpop.permute.xlu0 %2872
      %2874 = vrot.lane.b32.xlu0 %v2741, 32
      %v2875 = vpop.permute.xlu0 %2874
      %2876 = vrot.lane.b32.xlu0 %v2745, 32
      %v2877 = vpop.permute.xlu0 %2876
      %2878 = vrot.lane.b32.xlu0 %v2748, 32
      %v2879 = vpop.permute.xlu0 %2878
      %2880 = vrot.lane.b32.xlu0 %v2752, 32
      %v2881 = vpop.permute.xlu0 %2880
      %2882 = vrot.lane.b32.xlu0 %v2755, 32
      %v2883 = vpop.permute.xlu0 %2882
      %vm2948 = vcmask 388352
      %2949 = vst.msk [vmem:[#allocation3] sm:$0xf] %vm2948, %v2757
      %2950 = vst.msk [vmem:[#allocation3 + $0x8] sm:$0xf] %vm2948, %v2759
      %2951 = vst.msk [vmem:[#allocation3 + $0x10] sm:$0xf] %vm2948, %v2761
      %2952 = vst.msk [vmem:[#allocation3 + $0x18] sm:$0xf] %vm2948, %v2763
      %2953 = vst.msk [vmem:[#allocation3 + $0x20] sm:$0xf] %vm2948, %v2765
      %2954 = vst.msk [vmem:[#allocation3 + $0x28] sm:$0xf] %vm2948, %v2767
      %2955 = vst.msk [vmem:[#allocation3 + $0x30] sm:$0xf] %vm2948, %v2769
      %2956 = vst.msk [vmem:[#allocation3 + $0x38] sm:$0xf] %vm2948, %v2771
      %2957 = vst.msk [vmem:[#allocation3 + $0x40] sm:$0xf] %vm2948, %v2773
      %2958 = vst.msk [vmem:[#allocation3 + $0x48] sm:$0xf] %vm2948, %v2775
      %2959 = vst.msk [vmem:[#allocation3 + $0x50] sm:$0xf] %vm2948, %v2777
      %2960 = vst.msk [vmem:[#allocation3 + $0x58] sm:$0xf] %vm2948, %v2779
      %2961 = vst.msk [vmem:[#allocation3 + $0x60] sm:$0xf] %vm2948, %v2781
      %2962 = vst.msk [vmem:[#allocation3 + $0x68] sm:$0xf] %vm2948, %v2783
      %2963 = vst.msk [vmem:[#allocation3 + $0x70] sm:$0xf] %vm2948, %v2785
      %2964 = vst.msk [vmem:[#allocation3 + $0x78] sm:$0xf] %vm2948, %v2787
      %2965 = vst.msk [vmem:[#allocation3 + $0x80] sm:$0xf] %vm2948, %v2789
      %2966 = vst.msk [vmem:[#allocation3 + $0x88] sm:$0xf] %vm2948, %v2791
      %2967 = vst.msk [vmem:[#allocation3 + $0x90] sm:$0xf] %vm2948, %v2793
      %2968 = vst.msk [vmem:[#allocation3 + $0x98] sm:$0xf] %vm2948, %v2795
      %2969 = vst.msk [vmem:[#allocation3 + $0xa0] sm:$0xf] %vm2948, %v2797
      %2970 = vst.msk [vmem:[#allocation3 + $0xa8] sm:$0xf] %vm2948, %v2799
      %2971 = vst.msk [vmem:[#allocation3 + $0xb0] sm:$0xf] %vm2948, %v2801
      %2972 = vst.msk [vmem:[#allocation3 + $0xb8] sm:$0xf] %vm2948, %v2803
      %2973 = vst.msk [vmem:[#allocation3 + $0xc0] sm:$0xf] %vm2948, %v2805
      %2974 = vst.msk [vmem:[#allocation3 + $0xc8] sm:$0xf] %vm2948, %v2807
      %2975 = vst.msk [vmem:[#allocation3 + $0xd0] sm:$0xf] %vm2948, %v2809
      %2976 = vst.msk [vmem:[#allocation3 + $0xd8] sm:$0xf] %vm2948, %v2811
      %2977 = vst.msk [vmem:[#allocation3 + $0xe0] sm:$0xf] %vm2948, %v2813
      %2978 = vst.msk [vmem:[#allocation3 + $0xe8] sm:$0xf] %vm2948, %v2815
      %2979 = vst.msk [vmem:[#allocation3 + $0xf0] sm:$0xf] %vm2948, %v2817
      %2980 = vst.msk [vmem:[#allocation3 + $0xf8] sm:$0xf] %vm2948, %v2819
      %2981 = vst.msk [vmem:[#allocation3 + $0x100] sm:$0xf] %vm2948, %v2821
      %2982 = vst.msk [vmem:[#allocation3 + $0x108] sm:$0xf] %vm2948, %v2823
      %2983 = vst.msk [vmem:[#allocation3 + $0x110] sm:$0xf] %vm2948, %v2825
      %2984 = vst.msk [vmem:[#allocation3 + $0x118] sm:$0xf] %vm2948, %v2827
      %2985 = vst.msk [vmem:[#allocation3 + $0x120] sm:$0xf] %vm2948, %v2829
      %2986 = vst.msk [vmem:[#allocation3 + $0x128] sm:$0xf] %vm2948, %v2831
      %2987 = vst.msk [vmem:[#allocation3 + $0x130] sm:$0xf] %vm2948, %v2833
      %2988 = vst.msk [vmem:[#allocation3 + $0x138] sm:$0xf] %vm2948, %v2835
      %2989 = vst.msk [vmem:[#allocation3 + $0x140] sm:$0xf] %vm2948, %v2837
      %2990 = vst.msk [vmem:[#allocation3 + $0x148] sm:$0xf] %vm2948, %v2839
      %2991 = vst.msk [vmem:[#allocation3 + $0x150] sm:$0xf] %vm2948, %v2841
      %2992 = vst.msk [vmem:[#allocation3 + $0x158] sm:$0xf] %vm2948, %v2843
      %2993 = vst.msk [vmem:[#allocation3 + $0x160] sm:$0xf] %vm2948, %v2845
      %2994 = vst.msk [vmem:[#allocation3 + $0x168] sm:$0xf] %vm2948, %v2847
      %2995 = vst.msk [vmem:[#allocation3 + $0x170] sm:$0xf] %vm2948, %v2849
      %2996 = vst.msk [vmem:[#allocation3 + $0x178] sm:$0xf] %vm2948, %v2851
      %2997 = vst.msk [vmem:[#allocation3 + $0x180] sm:$0xf] %vm2948, %v2853
      %2998 = vst.msk [vmem:[#allocation3 + $0x188] sm:$0xf] %vm2948, %v2855
      %2999 = vst.msk [vmem:[#allocation3 + $0x190] sm:$0xf] %vm2948, %v2857
      %3000 = vst.msk [vmem:[#allocation3 + $0x198] sm:$0xf] %vm2948, %v2859
      %3001 = vst.msk [vmem:[#allocation3 + $0x1a0] sm:$0xf] %vm2948, %v2861
      %3002 = vst.msk [vmem:[#allocation3 + $0x1a8] sm:$0xf] %vm2948, %v2863
      %3003 = vst.msk [vmem:[#allocation3 + $0x1b0] sm:$0xf] %vm2948, %v2865
      %3004 = vst.msk [vmem:[#allocation3 + $0x1b8] sm:$0xf] %vm2948, %v2867
      %3005 = vst.msk [vmem:[#allocation3 + $0x1c0] sm:$0xf] %vm2948, %v2869
      %3006 = vst.msk [vmem:[#allocation3 + $0x1c8] sm:$0xf] %vm2948, %v2871
      %3007 = vst.msk [vmem:[#allocation3 + $0x1d0] sm:$0xf] %vm2948, %v2873
      %3008 = vst.msk [vmem:[#allocation3 + $0x1d8] sm:$0xf] %vm2948, %v2875
      %3009 = vst.msk [vmem:[#allocation3 + $0x1e0] sm:$0xf] %vm2948, %v2877
      %3010 = vst.msk [vmem:[#allocation3 + $0x1e8] sm:$0xf] %vm2948, %v2879
      %3011 = vst.msk [vmem:[#allocation3 + $0x1f0] sm:$0xf] %vm2948, %v2881
      %3012 = vst.msk [vmem:[#allocation3 + $0x1f8] sm:$0xf] %vm2948, %v2883
      %v3013 = vld [vmem:[%s855] sm:$0xf]
      %v3014 = vld [vmem:[%s855 + $0x4] sm:$0xf]
      %v3015 = vld [vmem:[%s855 + $0xc] sm:$0xf]
      %v3016 = vld [vmem:[%s855 + $0x10] sm:$0xf]
      %v3017 = vld [vmem:[%s855 + $0x18] sm:$0xf]
      %v3018 = vld [vmem:[%s855 + $0x1c] sm:$0xf]
      %v3019 = vld [vmem:[%s855 + $0x24] sm:$0xf]
      %v3020 = vld [vmem:[%s855 + $0x28] sm:$0xf]
      %v3021 = vld [vmem:[%s855 + $0x30] sm:$0xf]
      %v3022 = vld [vmem:[%s855 + $0x34] sm:$0xf]
      %v3023 = vld [vmem:[%s855 + $0x3c] sm:$0xf]
      %v3024 = vld [vmem:[%s855 + $0x40] sm:$0xf]
      %v3025 = vld [vmem:[%s855 + $0x48] sm:$0xf]
      %v3026 = vld [vmem:[%s855 + $0x4c] sm:$0xf]
      %v3027 = vld [vmem:[%s855 + $0x54] sm:$0xf]
      %v3028 = vld [vmem:[%s855 + $0x58] sm:$0xf]
      %v3029 = vld [vmem:[%s855 + $0x60] sm:$0xf]
      %v3030 = vld [vmem:[%s855 + $0x64] sm:$0xf]
      %v3031 = vld [vmem:[%s855 + $0x6c] sm:$0xf]
      %v3032 = vld [vmem:[%s855 + $0x70] sm:$0xf]
      %v3033 = vld [vmem:[%s855 + $0x78] sm:$0xf]
      %v3034 = vld [vmem:[%s855 + $0x7c] sm:$0xf]
      %v3035 = vld [vmem:[%s855 + $0x84] sm:$0xf]
      %v3036 = vld [vmem:[%s855 + $0x88] sm:$0xf]
      %v3037 = vld [vmem:[%s855 + $0x90] sm:$0xf]
      %v3038 = vld [vmem:[%s855 + $0x94] sm:$0xf]
      %v3039 = vld [vmem:[%s855 + $0x9c] sm:$0xf]
      %v3040 = vld [vmem:[%s855 + $0xa0] sm:$0xf]
      %v3041 = vld [vmem:[%s855 + $0xa8] sm:$0xf]
      %v3042 = vld [vmem:[%s855 + $0xac] sm:$0xf]
      %v3043 = vld [vmem:[%s855 + $0xb4] sm:$0xf]
      %v3044 = vld [vmem:[%s855 + $0xb8] sm:$0xf]
      %v3045 = vld [vmem:[%s855 + $0xd8] sm:$0xf]
      %v3046 = vld [vmem:[%s855 + $0xdc] sm:$0xf]
      %v3047 = vld [vmem:[%s855 + $0xe4] sm:$0xf]
      %v3048 = vld [vmem:[%s855 + $0xe8] sm:$0xf]
      %v3049 = vld [vmem:[%s855 + $0xf0] sm:$0xf]
      %v3050 = vld [vmem:[%s855 + $0xf4] sm:$0xf]
      %v3051 = vld [vmem:[%s855 + $0xfc] sm:$0xf]
      %v3052 = vld [vmem:[%s855 + $0x100] sm:$0xf]
      %v3053 = vld [vmem:[%s855 + $0x108] sm:$0xf]
      %v3054 = vld [vmem:[%s855 + $0x10c] sm:$0xf]
      %v3055 = vld [vmem:[%s855 + $0x114] sm:$0xf]
      %v3056 = vld [vmem:[%s855 + $0x118] sm:$0xf]
      %v3057 = vld [vmem:[%s855 + $0x120] sm:$0xf]
      %v3058 = vld [vmem:[%s855 + $0x124] sm:$0xf]
      %v3059 = vld [vmem:[%s855 + $0x12c] sm:$0xf]
      %v3060 = vld [vmem:[%s855 + $0x130] sm:$0xf]
      %v3061 = vld [vmem:[%s855 + $0x138] sm:$0xf]
      %v3062 = vld [vmem:[%s855 + $0x13c] sm:$0xf]
      %v3063 = vld [vmem:[%s855 + $0x144] sm:$0xf]
      %v3064 = vld [vmem:[%s855 + $0x148] sm:$0xf]
      %v3065 = vld [vmem:[%s855 + $0x150] sm:$0xf]
      %v3066 = vld [vmem:[%s855 + $0x154] sm:$0xf]
      %v3067 = vld [vmem:[%s855 + $0x15c] sm:$0xf]
      %v3068 = vld [vmem:[%s855 + $0x160] sm:$0xf]
      %v3069 = vld [vmem:[%s855 + $0x168] sm:$0xf]
      %v3070 = vld [vmem:[%s855 + $0x16c] sm:$0xf]
      %v3071 = vld [vmem:[%s855 + $0x174] sm:$0xf]
      %v3072 = vld [vmem:[%s855 + $0x178] sm:$0xf]
      %v3073 = vld [vmem:[%s855 + $0x180] sm:$0xf]
      %v3074 = vld [vmem:[%s855 + $0x184] sm:$0xf]
      %v3075 = vld [vmem:[%s855 + $0x18c] sm:$0xf]
      %v3076 = vld [vmem:[%s855 + $0x190] sm:$0xf]
      %3141 = vrot.lane.b32.xlu0 %v3013, 48
      %v3142 = vpop.permute.xlu0 %3141
      %3143 = vrot.lane.b32.xlu0 %v3014, 48
      %v3144 = vpop.permute.xlu0 %3143
      %3145 = vrot.lane.b32.xlu0 %v3015, 48
      %v3146 = vpop.permute.xlu0 %3145
      %3147 = vrot.lane.b32.xlu0 %v3016, 48
      %v3148 = vpop.permute.xlu0 %3147
      %3149 = vrot.lane.b32.xlu0 %v3017, 48
      %v3150 = vpop.permute.xlu0 %3149
      %3151 = vrot.lane.b32.xlu0 %v3018, 48
      %v3152 = vpop.permute.xlu0 %3151
      %3153 = vrot.lane.b32.xlu0 %v3019, 48
      %v3154 = vpop.permute.xlu0 %3153
      %3155 = vrot.lane.b32.xlu0 %v3020, 48
      %v3156 = vpop.permute.xlu0 %3155
      %3157 = vrot.lane.b32.xlu0 %v3021, 48
      %v3158 = vpop.permute.xlu0 %3157
      %3159 = vrot.lane.b32.xlu0 %v3022, 48
      %v3160 = vpop.permute.xlu0 %3159
      %3161 = vrot.lane.b32.xlu0 %v3023, 48
      %v3162 = vpop.permute.xlu0 %3161
      %3163 = vrot.lane.b32.xlu0 %v3024, 48
      %v3164 = vpop.permute.xlu0 %3163
      %3165 = vrot.lane.b32.xlu0 %v3025, 48
      %v3166 = vpop.permute.xlu0 %3165
      %3167 = vrot.lane.b32.xlu0 %v3026, 48
      %v3168 = vpop.permute.xlu0 %3167
      %3169 = vrot.lane.b32.xlu0 %v3027, 48
      %v3170 = vpop.permute.xlu0 %3169
      %3171 = vrot.lane.b32.xlu0 %v3028, 48
      %v3172 = vpop.permute.xlu0 %3171
      %3173 = vrot.lane.b32.xlu0 %v3029, 48
      %v3174 = vpop.permute.xlu0 %3173
      %3175 = vrot.lane.b32.xlu0 %v3030, 48
      %v3176 = vpop.permute.xlu0 %3175
      %3177 = vrot.lane.b32.xlu0 %v3031, 48
      %v3178 = vpop.permute.xlu0 %3177
      %3179 = vrot.lane.b32.xlu0 %v3032, 48
      %v3180 = vpop.permute.xlu0 %3179
      %3181 = vrot.lane.b32.xlu0 %v3033, 48
      %v3182 = vpop.permute.xlu0 %3181
      %3183 = vrot.lane.b32.xlu0 %v3034, 48
      %v3184 = vpop.permute.xlu0 %3183
      %3185 = vrot.lane.b32.xlu0 %v3035, 48
      %v3186 = vpop.permute.xlu0 %3185
      %3187 = vrot.lane.b32.xlu0 %v3036, 48
      %v3188 = vpop.permute.xlu0 %3187
      %3189 = vrot.lane.b32.xlu0 %v3037, 48
      %v3190 = vpop.permute.xlu0 %3189
      %3191 = vrot.lane.b32.xlu0 %v3038, 48
      %v3192 = vpop.permute.xlu0 %3191
      %3193 = vrot.lane.b32.xlu0 %v3039, 48
      %v3194 = vpop.permute.xlu0 %3193
      %3195 = vrot.lane.b32.xlu0 %v3040, 48
      %v3196 = vpop.permute.xlu0 %3195
      %3197 = vrot.lane.b32.xlu0 %v3041, 48
      %v3198 = vpop.permute.xlu0 %3197
      %3199 = vrot.lane.b32.xlu0 %v3042, 48
      %v3200 = vpop.permute.xlu0 %3199
      %3201 = vrot.lane.b32.xlu0 %v3043, 48
      %v3202 = vpop.permute.xlu0 %3201
      %3203 = vrot.lane.b32.xlu0 %v3044, 48
      %v3204 = vpop.permute.xlu0 %3203
      %3205 = vrot.lane.b32.xlu0 %v3045, 48
      %v3206 = vpop.permute.xlu0 %3205
      %3207 = vrot.lane.b32.xlu0 %v3046, 48
      %v3208 = vpop.permute.xlu0 %3207
      %3209 = vrot.lane.b32.xlu0 %v3047, 48
      %v3210 = vpop.permute.xlu0 %3209
      %3211 = vrot.lane.b32.xlu0 %v3048, 48
      %v3212 = vpop.permute.xlu0 %3211
      %3213 = vrot.lane.b32.xlu0 %v3049, 48
      %v3214 = vpop.permute.xlu0 %3213
      %3215 = vrot.lane.b32.xlu0 %v3050, 48
      %v3216 = vpop.permute.xlu0 %3215
      %3217 = vrot.lane.b32.xlu0 %v3051, 48
      %v3218 = vpop.permute.xlu0 %3217
      %3219 = vrot.lane.b32.xlu0 %v3052, 48
      %v3220 = vpop.permute.xlu0 %3219
      %3221 = vrot.lane.b32.xlu0 %v3053, 48
      %v3222 = vpop.permute.xlu0 %3221
      %3223 = vrot.lane.b32.xlu0 %v3054, 48
      %v3224 = vpop.permute.xlu0 %3223
      %3225 = vrot.lane.b32.xlu0 %v3055, 48
      %v3226 = vpop.permute.xlu0 %3225
      %3227 = vrot.lane.b32.xlu0 %v3056, 48
      %v3228 = vpop.permute.xlu0 %3227
      %3229 = vrot.lane.b32.xlu0 %v3057, 48
      %v3230 = vpop.permute.xlu0 %3229
      %3231 = vrot.lane.b32.xlu0 %v3058, 48
      %v3232 = vpop.permute.xlu0 %3231
      %3233 = vrot.lane.b32.xlu0 %v3059, 48
      %v3234 = vpop.permute.xlu0 %3233
      %3235 = vrot.lane.b32.xlu0 %v3060, 48
      %v3236 = vpop.permute.xlu0 %3235
      %3237 = vrot.lane.b32.xlu0 %v3061, 48
      %v3238 = vpop.permute.xlu0 %3237
      %3239 = vrot.lane.b32.xlu0 %v3062, 48
      %v3240 = vpop.permute.xlu0 %3239
      %3241 = vrot.lane.b32.xlu0 %v3063, 48
      %v3242 = vpop.permute.xlu0 %3241
      %3243 = vrot.lane.b32.xlu0 %v3064, 48
      %v3244 = vpop.permute.xlu0 %3243
      %3245 = vrot.lane.b32.xlu0 %v3065, 48
      %v3246 = vpop.permute.xlu0 %3245
      %3247 = vrot.lane.b32.xlu0 %v3066, 48
      %v3248 = vpop.permute.xlu0 %3247
      %3249 = vrot.lane.b32.xlu0 %v3067, 48
      %v3250 = vpop.permute.xlu0 %3249
      %3251 = vrot.lane.b32.xlu0 %v3068, 48
      %v3252 = vpop.permute.xlu0 %3251
      %3253 = vrot.lane.b32.xlu0 %v3069, 48
      %v3254 = vpop.permute.xlu0 %3253
      %3255 = vrot.lane.b32.xlu0 %v3070, 48
      %v3256 = vpop.permute.xlu0 %3255
      %3257 = vrot.lane.b32.xlu0 %v3071, 48
      %v3258 = vpop.permute.xlu0 %3257
      %3259 = vrot.lane.b32.xlu0 %v3072, 48
      %v3260 = vpop.permute.xlu0 %3259
      %3261 = vrot.lane.b32.xlu0 %v3073, 48
      %v3262 = vpop.permute.xlu0 %3261
      %3263 = vrot.lane.b32.xlu0 %v3074, 48
      %v3264 = vpop.permute.xlu0 %3263
      %3265 = vrot.lane.b32.xlu0 %v3075, 48
      %v3266 = vpop.permute.xlu0 %3265
      %3267 = vrot.lane.b32.xlu0 %v3076, 48
      %v3268 = vpop.permute.xlu0 %3267
      %vm3333 = vcmask 519552
      %3334 = vst.msk [vmem:[#allocation3] sm:$0xf] %vm3333, %v3142
      %3335 = vst.msk [vmem:[#allocation3 + $0x8] sm:$0xf] %vm3333, %v3144
      %3336 = vst.msk [vmem:[#allocation3 + $0x10] sm:$0xf] %vm3333, %v3146
      %3337 = vst.msk [vmem:[#allocation3 + $0x18] sm:$0xf] %vm3333, %v3148
      %3338 = vst.msk [vmem:[#allocation3 + $0x20] sm:$0xf] %vm3333, %v3150
      %3339 = vst.msk [vmem:[#allocation3 + $0x28] sm:$0xf] %vm3333, %v3152
      %3340 = vst.msk [vmem:[#allocation3 + $0x30] sm:$0xf] %vm3333, %v3154
      %3341 = vst.msk [vmem:[#allocation3 + $0x38] sm:$0xf] %vm3333, %v3156
      %3342 = vst.msk [vmem:[#allocation3 + $0x40] sm:$0xf] %vm3333, %v3158
      %3343 = vst.msk [vmem:[#allocation3 + $0x48] sm:$0xf] %vm3333, %v3160
      %3344 = vst.msk [vmem:[#allocation3 + $0x50] sm:$0xf] %vm3333, %v3162
      %3345 = vst.msk [vmem:[#allocation3 + $0x58] sm:$0xf] %vm3333, %v3164
      %3346 = vst.msk [vmem:[#allocation3 + $0x60] sm:$0xf] %vm3333, %v3166
      %3347 = vst.msk [vmem:[#allocation3 + $0x68] sm:$0xf] %vm3333, %v3168
      %3348 = vst.msk [vmem:[#allocation3 + $0x70] sm:$0xf] %vm3333, %v3170
      %3349 = vst.msk [vmem:[#allocation3 + $0x78] sm:$0xf] %vm3333, %v3172
      %3350 = vst.msk [vmem:[#allocation3 + $0x80] sm:$0xf] %vm3333, %v3174
      %3351 = vst.msk [vmem:[#allocation3 + $0x88] sm:$0xf] %vm3333, %v3176
      %3352 = vst.msk [vmem:[#allocation3 + $0x90] sm:$0xf] %vm3333, %v3178
      %3353 = vst.msk [vmem:[#allocation3 + $0x98] sm:$0xf] %vm3333, %v3180
      %3354 = vst.msk [vmem:[#allocation3 + $0xa0] sm:$0xf] %vm3333, %v3182
      %3355 = vst.msk [vmem:[#allocation3 + $0xa8] sm:$0xf] %vm3333, %v3184
      %3356 = vst.msk [vmem:[#allocation3 + $0xb0] sm:$0xf] %vm3333, %v3186
      %3357 = vst.msk [vmem:[#allocation3 + $0xb8] sm:$0xf] %vm3333, %v3188
      %3358 = vst.msk [vmem:[#allocation3 + $0xc0] sm:$0xf] %vm3333, %v3190
      %3359 = vst.msk [vmem:[#allocation3 + $0xc8] sm:$0xf] %vm3333, %v3192
      %3360 = vst.msk [vmem:[#allocation3 + $0xd0] sm:$0xf] %vm3333, %v3194
      %3361 = vst.msk [vmem:[#allocation3 + $0xd8] sm:$0xf] %vm3333, %v3196
      %3362 = vst.msk [vmem:[#allocation3 + $0xe0] sm:$0xf] %vm3333, %v3198
      %3363 = vst.msk [vmem:[#allocation3 + $0xe8] sm:$0xf] %vm3333, %v3200
      %3364 = vst.msk [vmem:[#allocation3 + $0xf0] sm:$0xf] %vm3333, %v3202
      %3365 = vst.msk [vmem:[#allocation3 + $0xf8] sm:$0xf] %vm3333, %v3204
      %3366 = vst.msk [vmem:[#allocation3 + $0x100] sm:$0xf] %vm3333, %v3206
      %3367 = vst.msk [vmem:[#allocation3 + $0x108] sm:$0xf] %vm3333, %v3208
      %3368 = vst.msk [vmem:[#allocation3 + $0x110] sm:$0xf] %vm3333, %v3210
      %3369 = vst.msk [vmem:[#allocation3 + $0x118] sm:$0xf] %vm3333, %v3212
      %3370 = vst.msk [vmem:[#allocation3 + $0x120] sm:$0xf] %vm3333, %v3214
      %3371 = vst.msk [vmem:[#allocation3 + $0x128] sm:$0xf] %vm3333, %v3216
      %3372 = vst.msk [vmem:[#allocation3 + $0x130] sm:$0xf] %vm3333, %v3218
      %3373 = vst.msk [vmem:[#allocation3 + $0x138] sm:$0xf] %vm3333, %v3220
      %3374 = vst.msk [vmem:[#allocation3 + $0x140] sm:$0xf] %vm3333, %v3222
      %3375 = vst.msk [vmem:[#allocation3 + $0x148] sm:$0xf] %vm3333, %v3224
      %3376 = vst.msk [vmem:[#allocation3 + $0x150] sm:$0xf] %vm3333, %v3226
      %3377 = vst.msk [vmem:[#allocation3 + $0x158] sm:$0xf] %vm3333, %v3228
      %3378 = vst.msk [vmem:[#allocation3 + $0x160] sm:$0xf] %vm3333, %v3230
      %3379 = vst.msk [vmem:[#allocation3 + $0x168] sm:$0xf] %vm3333, %v3232
      %3380 = vst.msk [vmem:[#allocation3 + $0x170] sm:$0xf] %vm3333, %v3234
      %3381 = vst.msk [vmem:[#allocation3 + $0x178] sm:$0xf] %vm3333, %v3236
      %3382 = vst.msk [vmem:[#allocation3 + $0x180] sm:$0xf] %vm3333, %v3238
      %3383 = vst.msk [vmem:[#allocation3 + $0x188] sm:$0xf] %vm3333, %v3240
      %3384 = vst.msk [vmem:[#allocation3 + $0x190] sm:$0xf] %vm3333, %v3242
      %3385 = vst.msk [vmem:[#allocation3 + $0x198] sm:$0xf] %vm3333, %v3244
      %3386 = vst.msk [vmem:[#allocation3 + $0x1a0] sm:$0xf] %vm3333, %v3246
      %3387 = vst.msk [vmem:[#allocation3 + $0x1a8] sm:$0xf] %vm3333, %v3248
      %3388 = vst.msk [vmem:[#allocation3 + $0x1b0] sm:$0xf] %vm3333, %v3250
      %3389 = vst.msk [vmem:[#allocation3 + $0x1b8] sm:$0xf] %vm3333, %v3252
      %3390 = vst.msk [vmem:[#allocation3 + $0x1c0] sm:$0xf] %vm3333, %v3254
      %3391 = vst.msk [vmem:[#allocation3 + $0x1c8] sm:$0xf] %vm3333, %v3256
      %3392 = vst.msk [vmem:[#allocation3 + $0x1d0] sm:$0xf] %vm3333, %v3258
      %3393 = vst.msk [vmem:[#allocation3 + $0x1d8] sm:$0xf] %vm3333, %v3260
      %3394 = vst.msk [vmem:[#allocation3 + $0x1e0] sm:$0xf] %vm3333, %v3262
      %3395 = vst.msk [vmem:[#allocation3 + $0x1e8] sm:$0xf] %vm3333, %v3264
      %3396 = vst.msk [vmem:[#allocation3 + $0x1f0] sm:$0xf] %vm3333, %v3266
      %3397 = vst.msk [vmem:[#allocation3 + $0x1f8] sm:$0xf] %vm3333, %v3268
      %v3398 = vld [vmem:[%s855] sm:$0xf]
      %v3399 = vld [vmem:[%s855 + $0x4] sm:$0xf]
      %v3400 = vld [vmem:[%s855 + $0x8] sm:$0x1]
      %v3401 = vld [vmem:[%s855 + $0xc] sm:$0xf]
      %v3402 = vld [vmem:[%s855 + $0x10] sm:$0xf]
      %v3403 = vld [vmem:[%s855 + $0x14] sm:$0x1]
      %v3404 = vld [vmem:[%s855 + $0x18] sm:$0xf]
      %v3405 = vld [vmem:[%s855 + $0x1c] sm:$0xf]
      %v3406 = vld [vmem:[%s855 + $0x20] sm:$0x1]
      %v3407 = vld [vmem:[%s855 + $0x24] sm:$0xf]
      %v3408 = vld [vmem:[%s855 + $0x28] sm:$0xf]
      %v3409 = vld [vmem:[%s855 + $0x2c] sm:$0x1]
      %v3410 = vld [vmem:[%s855 + $0x30] sm:$0xf]
      %v3411 = vld [vmem:[%s855 + $0x34] sm:$0xf]
      %v3412 = vld [vmem:[%s855 + $0x38] sm:$0x1]
      %v3413 = vld [vmem:[%s855 + $0x3c] sm:$0xf]
      %v3414 = vld [vmem:[%s855 + $0x40] sm:$0xf]
      %v3415 = vld [vmem:[%s855 + $0x44] sm:$0x1]
      %v3416 = vld [vmem:[%s855 + $0x48] sm:$0xf]
      %v3417 = vld [vmem:[%s855 + $0x4c] sm:$0xf]
      %v3418 = vld [vmem:[%s855 + $0x50] sm:$0x1]
      %v3419 = vld [vmem:[%s855 + $0x54] sm:$0xf]
      %v3420 = vld [vmem:[%s855 + $0x58] sm:$0xf]
      %v3421 = vld [vmem:[%s855 + $0x5c] sm:$0x1]
      %v3422 = vld [vmem:[%s855 + $0x60] sm:$0xf]
      %v3423 = vld [vmem:[%s855 + $0x64] sm:$0xf]
      %v3424 = vld [vmem:[%s855 + $0x68] sm:$0x1]
      %v3425 = vld [vmem:[%s855 + $0x6c] sm:$0xf]
      %v3426 = vld [vmem:[%s855 + $0x70] sm:$0xf]
      %v3427 = vld [vmem:[%s855 + $0x74] sm:$0x1]
      %v3428 = vld [vmem:[%s855 + $0x78] sm:$0xf]
      %v3429 = vld [vmem:[%s855 + $0x7c] sm:$0xf]
      %v3430 = vld [vmem:[%s855 + $0x80] sm:$0x1]
      %v3431 = vld [vmem:[%s855 + $0x84] sm:$0xf]
      %v3432 = vld [vmem:[%s855 + $0x88] sm:$0xf]
      %v3433 = vld [vmem:[%s855 + $0x8c] sm:$0x1]
      %v3434 = vld [vmem:[%s855 + $0x90] sm:$0xf]
      %v3435 = vld [vmem:[%s855 + $0x94] sm:$0xf]
      %v3436 = vld [vmem:[%s855 + $0x98] sm:$0x1]
      %v3437 = vld [vmem:[%s855 + $0x9c] sm:$0xf]
      %v3438 = vld [vmem:[%s855 + $0xa0] sm:$0xf]
      %v3439 = vld [vmem:[%s855 + $0xa4] sm:$0x1]
      %v3440 = vld [vmem:[%s855 + $0xa8] sm:$0xf]
      %v3441 = vld [vmem:[%s855 + $0xac] sm:$0xf]
      %v3442 = vld [vmem:[%s855 + $0xb0] sm:$0x1]
      %v3443 = vld [vmem:[%s855 + $0xb4] sm:$0xf]
      %v3444 = vld [vmem:[%s855 + $0xb8] sm:$0xf]
      %v3445 = vld [vmem:[%s855 + $0xbc] sm:$0x1]
      %v3446 = vld [vmem:[%s855 + $0xd8] sm:$0xf]
      %v3447 = vld [vmem:[%s855 + $0xdc] sm:$0xf]
      %v3448 = vld [vmem:[%s855 + $0xe0] sm:$0x1]
      %v3449 = vld [vmem:[%s855 + $0xe4] sm:$0xf]
      %v3450 = vld [vmem:[%s855 + $0xe8] sm:$0xf]
      %v3451 = vld [vmem:[%s855 + $0xec] sm:$0x1]
      %v3452 = vld [vmem:[%s855 + $0xf0] sm:$0xf]
      %v3453 = vld [vmem:[%s855 + $0xf4] sm:$0xf]
      %v3454 = vld [vmem:[%s855 + $0xf8] sm:$0x1]
      %v3455 = vld [vmem:[%s855 + $0xfc] sm:$0xf]
      %v3456 = vld [vmem:[%s855 + $0x100] sm:$0xf]
      %v3457 = vld [vmem:[%s855 + $0x104] sm:$0x1]
      %v3458 = vld [vmem:[%s855 + $0x108] sm:$0xf]
      %v3459 = vld [vmem:[%s855 + $0x10c] sm:$0xf]
      %v3460 = vld [vmem:[%s855 + $0x110] sm:$0x1]
      %v3461 = vld [vmem:[%s855 + $0x114] sm:$0xf]
      %v3462 = vld [vmem:[%s855 + $0x118] sm:$0xf]
      %v3463 = vld [vmem:[%s855 + $0x11c] sm:$0x1]
      %v3464 = vld [vmem:[%s855 + $0x120] sm:$0xf]
      %v3465 = vld [vmem:[%s855 + $0x124] sm:$0xf]
      %v3466 = vld [vmem:[%s855 + $0x128] sm:$0x1]
      %v3467 = vld [vmem:[%s855 + $0x12c] sm:$0xf]
      %v3468 = vld [vmem:[%s855 + $0x130] sm:$0xf]
      %v3469 = vld [vmem:[%s855 + $0x134] sm:$0x1]
      %v3470 = vld [vmem:[%s855 + $0x138] sm:$0xf]
      %v3471 = vld [vmem:[%s855 + $0x13c] sm:$0xf]
      %v3472 = vld [vmem:[%s855 + $0x140] sm:$0x1]
      %v3473 = vld [vmem:[%s855 + $0x144] sm:$0xf]
      %v3474 = vld [vmem:[%s855 + $0x148] sm:$0xf]
      %v3475 = vld [vmem:[%s855 + $0x14c] sm:$0x1]
      %v3476 = vld [vmem:[%s855 + $0x150] sm:$0xf]
      %v3477 = vld [vmem:[%s855 + $0x154] sm:$0xf]
      %v3478 = vld [vmem:[%s855 + $0x158] sm:$0x1]
      %v3479 = vld [vmem:[%s855 + $0x15c] sm:$0xf]
      %v3480 = vld [vmem:[%s855 + $0x160] sm:$0xf]
      %v3481 = vld [vmem:[%s855 + $0x164] sm:$0x1]
      %v3482 = vld [vmem:[%s855 + $0x168] sm:$0xf]
      %v3483 = vld [vmem:[%s855 + $0x16c] sm:$0xf]
      %v3484 = vld [vmem:[%s855 + $0x170] sm:$0x1]
      %v3485 = vld [vmem:[%s855 + $0x174] sm:$0xf]
      %v3486 = vld [vmem:[%s855 + $0x178] sm:$0xf]
      %v3487 = vld [vmem:[%s855 + $0x17c] sm:$0x1]
      %v3488 = vld [vmem:[%s855 + $0x180] sm:$0xf]
      %v3489 = vld [vmem:[%s855 + $0x184] sm:$0xf]
      %v3490 = vld [vmem:[%s855 + $0x188] sm:$0x1]
      %v3491 = vld [vmem:[%s855 + $0x18c] sm:$0xf]
      %v3492 = vld [vmem:[%s855 + $0x190] sm:$0xf]
      %v3493 = vld [vmem:[%s855 + $0x194] sm:$0x1]
      %v3495 = vshrl.u32 %v3398, 16
      %v3497 = vrot.slane %v3495, 4
      %v3498 = vshll.u32 %v3398, 16
      %v3500 = vrot.slane %v3498, 5
      %v3501 = vor.u32 %v3497, %v3500
      %v3502 = vrot.slane %v3501, 4
      %v3504 = vshll.u32 %v3399, 16
      %v3506 = vrot.slane %v3504, 5
      %v3507 = vsel %vm1311, %v3502, %v3506
      %v3508 = vshrl.u32 %v3399, 16
      %v3510 = vrot.slane %v3508, 4
      %v3511 = vor.u32 %v3510, %v3506
      %v3512 = vrot.slane %v3511, 4
      %v3514 = vshll.u32 %v3400, 16
      %v3516 = vrot.slane %v3514, 5
      %v3517 = vsel %vm1311, %v3512, %v3516
      %v3519 = vshrl.u32 %v3401, 16
      %v3521 = vrot.slane %v3519, 4
      %v3522 = vshll.u32 %v3401, 16
      %v3524 = vrot.slane %v3522, 5
      %v3525 = vor.u32 %v3521, %v3524
      %v3526 = vrot.slane %v3525, 4
      %v3528 = vshll.u32 %v3402, 16
      %v3530 = vrot.slane %v3528, 5
      %v3531 = vsel %vm1311, %v3526, %v3530
      %v3532 = vshrl.u32 %v3402, 16
      %v3534 = vrot.slane %v3532, 4
      %v3535 = vor.u32 %v3534, %v3530
      %v3536 = vrot.slane %v3535, 4
      %v3538 = vshll.u32 %v3403, 16
      %v3540 = vrot.slane %v3538, 5
      %v3541 = vsel %vm1311, %v3536, %v3540
      %v3543 = vshrl.u32 %v3404, 16
      %v3545 = vrot.slane %v3543, 4
      %v3546 = vshll.u32 %v3404, 16
      %v3548 = vrot.slane %v3546, 5
      %v3549 = vor.u32 %v3545, %v3548
      %v3550 = vrot.slane %v3549, 4
      %v3552 = vshll.u32 %v3405, 16
      %v3554 = vrot.slane %v3552, 5
      %v3555 = vsel %vm1311, %v3550, %v3554
      %v3556 = vshrl.u32 %v3405, 16
      %v3558 = vrot.slane %v3556, 4
      %v3559 = vor.u32 %v3558, %v3554
      %v3560 = vrot.slane %v3559, 4
      %v3562 = vshll.u32 %v3406, 16
      %v3564 = vrot.slane %v3562, 5
      %v3565 = vsel %vm1311, %v3560, %v3564
      %v3567 = vshrl.u32 %v3407, 16
      %v3569 = vrot.slane %v3567, 4
      %v3570 = vshll.u32 %v3407, 16
      %v3572 = vrot.slane %v3570, 5
      %v3573 = vor.u32 %v3569, %v3572
      %v3574 = vrot.slane %v3573, 4
      %v3576 = vshll.u32 %v3408, 16
      %v3578 = vrot.slane %v3576, 5
      %v3579 = vsel %vm1311, %v3574, %v3578
      %v3580 = vshrl.u32 %v3408, 16
      %v3582 = vrot.slane %v3580, 4
      %v3583 = vor.u32 %v3582, %v3578
      %v3584 = vrot.slane %v3583, 4
      %v3586 = vshll.u32 %v3409, 16
      %v3588 = vrot.slane %v3586, 5
      %v3589 = vsel %vm1311, %v3584, %v3588
      %v3591 = vshrl.u32 %v3410, 16
      %v3593 = vrot.slane %v3591, 4
      %v3594 = vshll.u32 %v3410, 16
      %v3596 = vrot.slane %v3594, 5
      %v3597 = vor.u32 %v3593, %v3596
      %v3598 = vrot.slane %v3597, 4
      %v3600 = vshll.u32 %v3411, 16
      %v3602 = vrot.slane %v3600, 5
      %v3603 = vsel %vm1311, %v3598, %v3602
      %v3604 = vshrl.u32 %v3411, 16
      %v3606 = vrot.slane %v3604, 4
      %v3607 = vor.u32 %v3606, %v3602
      %v3608 = vrot.slane %v3607, 4
      %v3610 = vshll.u32 %v3412, 16
      %v3612 = vrot.slane %v3610, 5
      %v3613 = vsel %vm1311, %v3608, %v3612
      %v3615 = vshrl.u32 %v3413, 16
      %v3617 = vrot.slane %v3615, 4
      %v3618 = vshll.u32 %v3413, 16
      %v3620 = vrot.slane %v3618, 5
      %v3621 = vor.u32 %v3617, %v3620
      %v3622 = vrot.slane %v3621, 4
      %v3624 = vshll.u32 %v3414, 16
      %v3626 = vrot.slane %v3624, 5
      %v3627 = vsel %vm1311, %v3622, %v3626
      %v3628 = vshrl.u32 %v3414, 16
      %v3630 = vrot.slane %v3628, 4
      %v3631 = vor.u32 %v3630, %v3626
      %v3632 = vrot.slane %v3631, 4
      %v3634 = vshll.u32 %v3415, 16
      %v3636 = vrot.slane %v3634, 5
      %v3637 = vsel %vm1311, %v3632, %v3636
      %v3639 = vshrl.u32 %v3416, 16
      %v3641 = vrot.slane %v3639, 4
      %v3642 = vshll.u32 %v3416, 16
      %v3644 = vrot.slane %v3642, 5
      %v3645 = vor.u32 %v3641, %v3644
      %v3646 = vrot.slane %v3645, 4
      %v3648 = vshll.u32 %v3417, 16
      %v3650 = vrot.slane %v3648, 5
      %v3651 = vsel %vm1311, %v3646, %v3650
      %v3652 = vshrl.u32 %v3417, 16
      %v3654 = vrot.slane %v3652, 4
      %v3655 = vor.u32 %v3654, %v3650
      %v3656 = vrot.slane %v3655, 4
      %v3658 = vshll.u32 %v3418, 16
      %v3660 = vrot.slane %v3658, 5
      %v3661 = vsel %vm1311, %v3656, %v3660
      %v3663 = vshrl.u32 %v3419, 16
      %v3665 = vrot.slane %v3663, 4
      %v3666 = vshll.u32 %v3419, 16
      %v3668 = vrot.slane %v3666, 5
      %v3669 = vor.u32 %v3665, %v3668
      %v3670 = vrot.slane %v3669, 4
      %v3672 = vshll.u32 %v3420, 16
      %v3674 = vrot.slane %v3672, 5
      %v3675 = vsel %vm1311, %v3670, %v3674
      %v3676 = vshrl.u32 %v3420, 16
      %v3678 = vrot.slane %v3676, 4
      %v3679 = vor.u32 %v3678, %v3674
      %v3680 = vrot.slane %v3679, 4
      %v3682 = vshll.u32 %v3421, 16
      %v3684 = vrot.slane %v3682, 5
      %v3685 = vsel %vm1311, %v3680, %v3684
      %v3687 = vshrl.u32 %v3422, 16
      %v3689 = vrot.slane %v3687, 4
      %v3690 = vshll.u32 %v3422, 16
      %v3692 = vrot.slane %v3690, 5
      %v3693 = vor.u32 %v3689, %v3692
      %v3694 = vrot.slane %v3693, 4
      %v3696 = vshll.u32 %v3423, 16
      %v3698 = vrot.slane %v3696, 5
      %v3699 = vsel %vm1311, %v3694, %v3698
      %v3700 = vshrl.u32 %v3423, 16
      %v3702 = vrot.slane %v3700, 4
      %v3703 = vor.u32 %v3702, %v3698
      %v3704 = vrot.slane %v3703, 4
      %v3706 = vshll.u32 %v3424, 16
      %v3708 = vrot.slane %v3706, 5
      %v3709 = vsel %vm1311, %v3704, %v3708
      %v3711 = vshrl.u32 %v3425, 16
      %v3713 = vrot.slane %v3711, 4
      %v3714 = vshll.u32 %v3425, 16
      %v3716 = vrot.slane %v3714, 5
      %v3717 = vor.u32 %v3713, %v3716
      %v3718 = vrot.slane %v3717, 4
      %v3720 = vshll.u32 %v3426, 16
      %v3722 = vrot.slane %v3720, 5
      %v3723 = vsel %vm1311, %v3718, %v3722
      %v3724 = vshrl.u32 %v3426, 16
      %v3726 = vrot.slane %v3724, 4
      %v3727 = vor.u32 %v3726, %v3722
      %v3728 = vrot.slane %v3727, 4
      %v3730 = vshll.u32 %v3427, 16
      %v3732 = vrot.slane %v3730, 5
      %v3733 = vsel %vm1311, %v3728, %v3732
      %v3735 = vshrl.u32 %v3428, 16
      %v3737 = vrot.slane %v3735, 4
      %v3738 = vshll.u32 %v3428, 16
      %v3740 = vrot.slane %v3738, 5
      %v3741 = vor.u32 %v3737, %v3740
      %v3742 = vrot.slane %v3741, 4
      %v3744 = vshll.u32 %v3429, 16
      %v3746 = vrot.slane %v3744, 5
      %v3747 = vsel %vm1311, %v3742, %v3746
      %v3748 = vshrl.u32 %v3429, 16
      %v3750 = vrot.slane %v3748, 4
      %v3751 = vor.u32 %v3750, %v3746
      %v3752 = vrot.slane %v3751, 4
      %v3754 = vshll.u32 %v3430, 16
      %v3756 = vrot.slane %v3754, 5
      %v3757 = vsel %vm1311, %v3752, %v3756
      %v3759 = vshrl.u32 %v3431, 16
      %v3761 = vrot.slane %v3759, 4
      %v3762 = vshll.u32 %v3431, 16
      %v3764 = vrot.slane %v3762, 5
      %v3765 = vor.u32 %v3761, %v3764
      %v3766 = vrot.slane %v3765, 4
      %v3768 = vshll.u32 %v3432, 16
      %v3770 = vrot.slane %v3768, 5
      %v3771 = vsel %vm1311, %v3766, %v3770
      %v3772 = vshrl.u32 %v3432, 16
      %v3774 = vrot.slane %v3772, 4
      %v3775 = vor.u32 %v3774, %v3770
      %v3776 = vrot.slane %v3775, 4
      %v3778 = vshll.u32 %v3433, 16
      %v3780 = vrot.slane %v3778, 5
      %v3781 = vsel %vm1311, %v3776, %v3780
      %v3783 = vshrl.u32 %v3434, 16
      %v3785 = vrot.slane %v3783, 4
      %v3786 = vshll.u32 %v3434, 16
      %v3788 = vrot.slane %v3786, 5
      %v3789 = vor.u32 %v3785, %v3788
      %v3790 = vrot.slane %v3789, 4
      %v3792 = vshll.u32 %v3435, 16
      %v3794 = vrot.slane %v3792, 5
      %v3795 = vsel %vm1311, %v3790, %v3794
      %v3796 = vshrl.u32 %v3435, 16
      %v3798 = vrot.slane %v3796, 4
      %v3799 = vor.u32 %v3798, %v3794
      %v3800 = vrot.slane %v3799, 4
      %v3802 = vshll.u32 %v3436, 16
      %v3804 = vrot.slane %v3802, 5
      %v3805 = vsel %vm1311, %v3800, %v3804
      %v3807 = vshrl.u32 %v3437, 16
      %v3809 = vrot.slane %v3807, 4
      %v3810 = vshll.u32 %v3437, 16
      %v3812 = vrot.slane %v3810, 5
      %v3813 = vor.u32 %v3809, %v3812
      %v3814 = vrot.slane %v3813, 4
      %v3816 = vshll.u32 %v3438, 16
      %v3818 = vrot.slane %v3816, 5
      %v3819 = vsel %vm1311, %v3814, %v3818
      %v3820 = vshrl.u32 %v3438, 16
      %v3822 = vrot.slane %v3820, 4
      %v3823 = vor.u32 %v3822, %v3818
      %v3824 = vrot.slane %v3823, 4
      %v3826 = vshll.u32 %v3439, 16
      %v3828 = vrot.slane %v3826, 5
      %v3829 = vsel %vm1311, %v3824, %v3828
      %v3831 = vshrl.u32 %v3440, 16
      %v3833 = vrot.slane %v3831, 4
      %v3834 = vshll.u32 %v3440, 16
      %v3836 = vrot.slane %v3834, 5
      %v3837 = vor.u32 %v3833, %v3836
      %v3838 = vrot.slane %v3837, 4
      %v3840 = vshll.u32 %v3441, 16
      %v3842 = vrot.slane %v3840, 5
      %v3843 = vsel %vm1311, %v3838, %v3842
      %v3844 = vshrl.u32 %v3441, 16
      %v3846 = vrot.slane %v3844, 4
      %v3847 = vor.u32 %v3846, %v3842
      %v3848 = vrot.slane %v3847, 4
      %v3850 = vshll.u32 %v3442, 16
      %v3852 = vrot.slane %v3850, 5
      %v3853 = vsel %vm1311, %v3848, %v3852
      %v3855 = vshrl.u32 %v3443, 16
      %v3857 = vrot.slane %v3855, 4
      %v3858 = vshll.u32 %v3443, 16
      %v3860 = vrot.slane %v3858, 5
      %v3861 = vor.u32 %v3857, %v3860
      %v3862 = vrot.slane %v3861, 4
      %v3864 = vshll.u32 %v3444, 16
      %v3866 = vrot.slane %v3864, 5
      %v3867 = vsel %vm1311, %v3862, %v3866
      %v3868 = vshrl.u32 %v3444, 16
      %v3870 = vrot.slane %v3868, 4
      %v3871 = vor.u32 %v3870, %v3866
      %v3872 = vrot.slane %v3871, 4
      %v3874 = vshll.u32 %v3445, 16
      %v3876 = vrot.slane %v3874, 5
      %v3877 = vsel %vm1311, %v3872, %v3876
      %v3879 = vshrl.u32 %v3446, 16
      %v3881 = vrot.slane %v3879, 4
      %v3882 = vshll.u32 %v3446, 16
      %v3884 = vrot.slane %v3882, 5
      %v3885 = vor.u32 %v3881, %v3884
      %v3886 = vrot.slane %v3885, 4
      %v3888 = vshll.u32 %v3447, 16
      %v3890 = vrot.slane %v3888, 5
      %v3891 = vsel %vm1311, %v3886, %v3890
      %v3892 = vshrl.u32 %v3447, 16
      %v3894 = vrot.slane %v3892, 4
      %v3895 = vor.u32 %v3894, %v3890
      %v3896 = vrot.slane %v3895, 4
      %v3898 = vshll.u32 %v3448, 16
      %v3900 = vrot.slane %v3898, 5
      %v3901 = vsel %vm1311, %v3896, %v3900
      %v3903 = vshrl.u32 %v3449, 16
      %v3905 = vrot.slane %v3903, 4
      %v3906 = vshll.u32 %v3449, 16
      %v3908 = vrot.slane %v3906, 5
      %v3909 = vor.u32 %v3905, %v3908
      %v3910 = vrot.slane %v3909, 4
      %v3912 = vshll.u32 %v3450, 16
      %v3914 = vrot.slane %v3912, 5
      %v3915 = vsel %vm1311, %v3910, %v3914
      %v3916 = vshrl.u32 %v3450, 16
      %v3918 = vrot.slane %v3916, 4
      %v3919 = vor.u32 %v3918, %v3914
      %v3920 = vrot.slane %v3919, 4
      %v3922 = vshll.u32 %v3451, 16
      %v3924 = vrot.slane %v3922, 5
      %v3925 = vsel %vm1311, %v3920, %v3924
      %v3927 = vshrl.u32 %v3452, 16
      %v3929 = vrot.slane %v3927, 4
      %v3930 = vshll.u32 %v3452, 16
      %v3932 = vrot.slane %v3930, 5
      %v3933 = vor.u32 %v3929, %v3932
      %v3934 = vrot.slane %v3933, 4
      %v3936 = vshll.u32 %v3453, 16
      %v3938 = vrot.slane %v3936, 5
      %v3939 = vsel %vm1311, %v3934, %v3938
      %v3940 = vshrl.u32 %v3453, 16
      %v3942 = vrot.slane %v3940, 4
      %v3943 = vor.u32 %v3942, %v3938
      %v3944 = vrot.slane %v3943, 4
      %v3946 = vshll.u32 %v3454, 16
      %v3948 = vrot.slane %v3946, 5
      %v3949 = vsel %vm1311, %v3944, %v3948
      %v3951 = vshrl.u32 %v3455, 16
      %v3953 = vrot.slane %v3951, 4
      %v3954 = vshll.u32 %v3455, 16
      %v3956 = vrot.slane %v3954, 5
      %v3957 = vor.u32 %v3953, %v3956
      %v3958 = vrot.slane %v3957, 4
      %v3960 = vshll.u32 %v3456, 16
      %v3962 = vrot.slane %v3960, 5
      %v3963 = vsel %vm1311, %v3958, %v3962
      %v3964 = vshrl.u32 %v3456, 16
      %v3966 = vrot.slane %v3964, 4
      %v3967 = vor.u32 %v3966, %v3962
      %v3968 = vrot.slane %v3967, 4
      %v3970 = vshll.u32 %v3457, 16
      %v3972 = vrot.slane %v3970, 5
      %v3973 = vsel %vm1311, %v3968, %v3972
      %v3975 = vshrl.u32 %v3458, 16
      %v3977 = vrot.slane %v3975, 4
      %v3978 = vshll.u32 %v3458, 16
      %v3980 = vrot.slane %v3978, 5
      %v3981 = vor.u32 %v3977, %v3980
      %v3982 = vrot.slane %v3981, 4
      %v3984 = vshll.u32 %v3459, 16
      %v3986 = vrot.slane %v3984, 5
      %v3987 = vsel %vm1311, %v3982, %v3986
      %v3988 = vshrl.u32 %v3459, 16
      %v3990 = vrot.slane %v3988, 4
      %v3991 = vor.u32 %v3990, %v3986
      %v3992 = vrot.slane %v3991, 4
      %v3994 = vshll.u32 %v3460, 16
      %v3996 = vrot.slane %v3994, 5
      %v3997 = vsel %vm1311, %v3992, %v3996
      %v3999 = vshrl.u32 %v3461, 16
      %v4001 = vrot.slane %v3999, 4
      %v4002 = vshll.u32 %v3461, 16
      %v4004 = vrot.slane %v4002, 5
      %v4005 = vor.u32 %v4001, %v4004
      %v4006 = vrot.slane %v4005, 4
      %v4008 = vshll.u32 %v3462, 16
      %v4010 = vrot.slane %v4008, 5
      %v4011 = vsel %vm1311, %v4006, %v4010
      %v4012 = vshrl.u32 %v3462, 16
      %v4014 = vrot.slane %v4012, 4
      %v4015 = vor.u32 %v4014, %v4010
      %v4016 = vrot.slane %v4015, 4
      %v4018 = vshll.u32 %v3463, 16
      %v4020 = vrot.slane %v4018, 5
      %v4021 = vsel %vm1311, %v4016, %v4020
      %v4023 = vshrl.u32 %v3464, 16
      %v4025 = vrot.slane %v4023, 4
      %v4026 = vshll.u32 %v3464, 16
      %v4028 = vrot.slane %v4026, 5
      %v4029 = vor.u32 %v4025, %v4028
      %v4030 = vrot.slane %v4029, 4
      %v4032 = vshll.u32 %v3465, 16
      %v4034 = vrot.slane %v4032, 5
      %v4035 = vsel %vm1311, %v4030, %v4034
      %v4036 = vshrl.u32 %v3465, 16
      %v4038 = vrot.slane %v4036, 4
      %v4039 = vor.u32 %v4038, %v4034
      %v4040 = vrot.slane %v4039, 4
      %v4042 = vshll.u32 %v3466, 16
      %v4044 = vrot.slane %v4042, 5
      %v4045 = vsel %vm1311, %v4040, %v4044
      %v4047 = vshrl.u32 %v3467, 16
      %v4049 = vrot.slane %v4047, 4
      %v4050 = vshll.u32 %v3467, 16
      %v4052 = vrot.slane %v4050, 5
      %v4053 = vor.u32 %v4049, %v4052
      %v4054 = vrot.slane %v4053, 4
      %v4056 = vshll.u32 %v3468, 16
      %v4058 = vrot.slane %v4056, 5
      %v4059 = vsel %vm1311, %v4054, %v4058
      %v4060 = vshrl.u32 %v3468, 16
      %v4062 = vrot.slane %v4060, 4
      %v4063 = vor.u32 %v4062, %v4058
      %v4064 = vrot.slane %v4063, 4
      %v4066 = vshll.u32 %v3469, 16
      %v4068 = vrot.slane %v4066, 5
      %v4069 = vsel %vm1311, %v4064, %v4068
      %v4071 = vshrl.u32 %v3470, 16
      %v4073 = vrot.slane %v4071, 4
      %v4074 = vshll.u32 %v3470, 16
      %v4076 = vrot.slane %v4074, 5
      %v4077 = vor.u32 %v4073, %v4076
      %v4078 = vrot.slane %v4077, 4
      %v4080 = vshll.u32 %v3471, 16
      %v4082 = vrot.slane %v4080, 5
      %v4083 = vsel %vm1311, %v4078, %v4082
      %v4084 = vshrl.u32 %v3471, 16
      %v4086 = vrot.slane %v4084, 4
      %v4087 = vor.u32 %v4086, %v4082
      %v4088 = vrot.slane %v4087, 4
      %v4090 = vshll.u32 %v3472, 16
      %v4092 = vrot.slane %v4090, 5
      %v4093 = vsel %vm1311, %v4088, %v4092
      %v4095 = vshrl.u32 %v3473, 16
      %v4097 = vrot.slane %v4095, 4
      %v4098 = vshll.u32 %v3473, 16
      %v4100 = vrot.slane %v4098, 5
      %v4101 = vor.u32 %v4097, %v4100
      %v4102 = vrot.slane %v4101, 4
      %v4104 = vshll.u32 %v3474, 16
      %v4106 = vrot.slane %v4104, 5
      %v4107 = vsel %vm1311, %v4102, %v4106
      %v4108 = vshrl.u32 %v3474, 16
      %v4110 = vrot.slane %v4108, 4
      %v4111 = vor.u32 %v4110, %v4106
      %v4112 = vrot.slane %v4111, 4
      %v4114 = vshll.u32 %v3475, 16
      %v4116 = vrot.slane %v4114, 5
      %v4117 = vsel %vm1311, %v4112, %v4116
      %v4119 = vshrl.u32 %v3476, 16
      %v4121 = vrot.slane %v4119, 4
      %v4122 = vshll.u32 %v3476, 16
      %v4124 = vrot.slane %v4122, 5
      %v4125 = vor.u32 %v4121, %v4124
      %v4126 = vrot.slane %v4125, 4
      %v4128 = vshll.u32 %v3477, 16
      %v4130 = vrot.slane %v4128, 5
      %v4131 = vsel %vm1311, %v4126, %v4130
      %v4132 = vshrl.u32 %v3477, 16
      %v4134 = vrot.slane %v4132, 4
      %v4135 = vor.u32 %v4134, %v4130
      %v4136 = vrot.slane %v4135, 4
      %v4138 = vshll.u32 %v3478, 16
      %v4140 = vrot.slane %v4138, 5
      %v4141 = vsel %vm1311, %v4136, %v4140
      %v4143 = vshrl.u32 %v3479, 16
      %v4145 = vrot.slane %v4143, 4
      %v4146 = vshll.u32 %v3479, 16
      %v4148 = vrot.slane %v4146, 5
      %v4149 = vor.u32 %v4145, %v4148
      %v4150 = vrot.slane %v4149, 4
      %v4152 = vshll.u32 %v3480, 16
      %v4154 = vrot.slane %v4152, 5
      %v4155 = vsel %vm1311, %v4150, %v4154
      %v4156 = vshrl.u32 %v3480, 16
      %v4158 = vrot.slane %v4156, 4
      %v4159 = vor.u32 %v4158, %v4154
      %v4160 = vrot.slane %v4159, 4
      %v4162 = vshll.u32 %v3481, 16
      %v4164 = vrot.slane %v4162, 5
      %v4165 = vsel %vm1311, %v4160, %v4164
      %v4167 = vshrl.u32 %v3482, 16
      %v4169 = vrot.slane %v4167, 4
      %v4170 = vshll.u32 %v3482, 16
      %v4172 = vrot.slane %v4170, 5
      %v4173 = vor.u32 %v4169, %v4172
      %v4174 = vrot.slane %v4173, 4
      %v4176 = vshll.u32 %v3483, 16
      %v4178 = vrot.slane %v4176, 5
      %v4179 = vsel %vm1311, %v4174, %v4178
      %v4180 = vshrl.u32 %v3483, 16
      %v4182 = vrot.slane %v4180, 4
      %v4183 = vor.u32 %v4182, %v4178
      %v4184 = vrot.slane %v4183, 4
      %v4186 = vshll.u32 %v3484, 16
      %v4188 = vrot.slane %v4186, 5
      %v4189 = vsel %vm1311, %v4184, %v4188
      %v4191 = vshrl.u32 %v3485, 16
      %v4193 = vrot.slane %v4191, 4
      %v4194 = vshll.u32 %v3485, 16
      %v4196 = vrot.slane %v4194, 5
      %v4197 = vor.u32 %v4193, %v4196
      %v4198 = vrot.slane %v4197, 4
      %v4200 = vshll.u32 %v3486, 16
      %v4202 = vrot.slane %v4200, 5
      %v4203 = vsel %vm1311, %v4198, %v4202
      %v4204 = vshrl.u32 %v3486, 16
      %v4206 = vrot.slane %v4204, 4
      %v4207 = vor.u32 %v4206, %v4202
      %v4208 = vrot.slane %v4207, 4
      %v4210 = vshll.u32 %v3487, 16
      %v4212 = vrot.slane %v4210, 5
      %v4213 = vsel %vm1311, %v4208, %v4212
      %v4215 = vshrl.u32 %v3488, 16
      %v4217 = vrot.slane %v4215, 4
      %v4218 = vshll.u32 %v3488, 16
      %v4220 = vrot.slane %v4218, 5
      %v4221 = vor.u32 %v4217, %v4220
      %v4222 = vrot.slane %v4221, 4
      %v4224 = vshll.u32 %v3489, 16
      %v4226 = vrot.slane %v4224, 5
      %v4227 = vsel %vm1311, %v4222, %v4226
      %v4228 = vshrl.u32 %v3489, 16
      %v4230 = vrot.slane %v4228, 4
      %v4231 = vor.u32 %v4230, %v4226
      %v4232 = vrot.slane %v4231, 4
      %v4234 = vshll.u32 %v3490, 16
      %v4236 = vrot.slane %v4234, 5
      %v4237 = vsel %vm1311, %v4232, %v4236
      %v4239 = vshrl.u32 %v3491, 16
      %v4241 = vrot.slane %v4239, 4
      %v4242 = vshll.u32 %v3491, 16
      %v4244 = vrot.slane %v4242, 5
      %v4245 = vor.u32 %v4241, %v4244
      %v4246 = vrot.slane %v4245, 4
      %v4248 = vshll.u32 %v3492, 16
      %v4250 = vrot.slane %v4248, 5
      %v4251 = vsel %vm1311, %v4246, %v4250
      %v4252 = vshrl.u32 %v3492, 16
      %v4254 = vrot.slane %v4252, 4
      %v4255 = vor.u32 %v4254, %v4250
      %v4256 = vrot.slane %v4255, 4
      %v4258 = vshll.u32 %v3493, 16
      %v4260 = vrot.slane %v4258, 5
      %v4261 = vsel %vm1311, %v4256, %v4260
      %4262 = vrot.lane.b32.xlu0 %v3507, 64
      %v4263 = vpop.permute.xlu0 %4262
      %4264 = vrot.lane.b32.xlu0 %v3517, 64
      %v4265 = vpop.permute.xlu0 %4264
      %4266 = vrot.lane.b32.xlu0 %v3531, 64
      %v4267 = vpop.permute.xlu0 %4266
      %4268 = vrot.lane.b32.xlu0 %v3541, 64
      %v4269 = vpop.permute.xlu0 %4268
      %4270 = vrot.lane.b32.xlu0 %v3555, 64
      %v4271 = vpop.permute.xlu0 %4270
      %4272 = vrot.lane.b32.xlu0 %v3565, 64
      %v4273 = vpop.permute.xlu0 %4272
      %4274 = vrot.lane.b32.xlu0 %v3579, 64
      %v4275 = vpop.permute.xlu0 %4274
      %4276 = vrot.lane.b32.xlu0 %v3589, 64
      %v4277 = vpop.permute.xlu0 %4276
      %4278 = vrot.lane.b32.xlu0 %v3603, 64
      %v4279 = vpop.permute.xlu0 %4278
      %4280 = vrot.lane.b32.xlu0 %v3613, 64
      %v4281 = vpop.permute.xlu0 %4280
      %4282 = vrot.lane.b32.xlu0 %v3627, 64
      %v4283 = vpop.permute.xlu0 %4282
      %4284 = vrot.lane.b32.xlu0 %v3637, 64
      %v4285 = vpop.permute.xlu0 %4284
      %4286 = vrot.lane.b32.xlu0 %v3651, 64
      %v4287 = vpop.permute.xlu0 %4286
      %4288 = vrot.lane.b32.xlu0 %v3661, 64
      %v4289 = vpop.permute.xlu0 %4288
      %4290 = vrot.lane.b32.xlu0 %v3675, 64
      %v4291 = vpop.permute.xlu0 %4290
      %4292 = vrot.lane.b32.xlu0 %v3685, 64
      %v4293 = vpop.permute.xlu0 %4292
      %4294 = vrot.lane.b32.xlu0 %v3699, 64
      %v4295 = vpop.permute.xlu0 %4294
      %4296 = vrot.lane.b32.xlu0 %v3709, 64
      %v4297 = vpop.permute.xlu0 %4296
      %4298 = vrot.lane.b32.xlu0 %v3723, 64
      %v4299 = vpop.permute.xlu0 %4298
      %4300 = vrot.lane.b32.xlu0 %v3733, 64
      %v4301 = vpop.permute.xlu0 %4300
      %4302 = vrot.lane.b32.xlu0 %v3747, 64
      %v4303 = vpop.permute.xlu0 %4302
      %4304 = vrot.lane.b32.xlu0 %v3757, 64
      %v4305 = vpop.permute.xlu0 %4304
      %4306 = vrot.lane.b32.xlu0 %v3771, 64
      %v4307 = vpop.permute.xlu0 %4306
      %4308 = vrot.lane.b32.xlu0 %v3781, 64
      %v4309 = vpop.permute.xlu0 %4308
      %4310 = vrot.lane.b32.xlu0 %v3795, 64
      %v4311 = vpop.permute.xlu0 %4310
      %4312 = vrot.lane.b32.xlu0 %v3805, 64
      %v4313 = vpop.permute.xlu0 %4312
      %4314 = vrot.lane.b32.xlu0 %v3819, 64
      %v4315 = vpop.permute.xlu0 %4314
      %4316 = vrot.lane.b32.xlu0 %v3829, 64
      %v4317 = vpop.permute.xlu0 %4316
      %4318 = vrot.lane.b32.xlu0 %v3843, 64
      %v4319 = vpop.permute.xlu0 %4318
      %4320 = vrot.lane.b32.xlu0 %v3853, 64
      %v4321 = vpop.permute.xlu0 %4320
      %4322 = vrot.lane.b32.xlu0 %v3867, 64
      %v4323 = vpop.permute.xlu0 %4322
      %4324 = vrot.lane.b32.xlu0 %v3877, 64
      %v4325 = vpop.permute.xlu0 %4324
      %4326 = vrot.lane.b32.xlu0 %v3891, 64
      %v4327 = vpop.permute.xlu0 %4326
      %4328 = vrot.lane.b32.xlu0 %v3901, 64
      %v4329 = vpop.permute.xlu0 %4328
      %4330 = vrot.lane.b32.xlu0 %v3915, 64
      %v4331 = vpop.permute.xlu0 %4330
      %4332 = vrot.lane.b32.xlu0 %v3925, 64
      %v4333 = vpop.permute.xlu0 %4332
      %4334 = vrot.lane.b32.xlu0 %v3939, 64
      %v4335 = vpop.permute.xlu0 %4334
      %4336 = vrot.lane.b32.xlu0 %v3949, 64
      %v4337 = vpop.permute.xlu0 %4336
      %4338 = vrot.lane.b32.xlu0 %v3963, 64
      %v4339 = vpop.permute.xlu0 %4338
      %4340 = vrot.lane.b32.xlu0 %v3973, 64
      %v4341 = vpop.permute.xlu0 %4340
      %4342 = vrot.lane.b32.xlu0 %v3987, 64
      %v4343 = vpop.permute.xlu0 %4342
      %4344 = vrot.lane.b32.xlu0 %v3997, 64
      %v4345 = vpop.permute.xlu0 %4344
      %4346 = vrot.lane.b32.xlu0 %v4011, 64
      %v4347 = vpop.permute.xlu0 %4346
      %4348 = vrot.lane.b32.xlu0 %v4021, 64
      %v4349 = vpop.permute.xlu0 %4348
      %4350 = vrot.lane.b32.xlu0 %v4035, 64
      %v4351 = vpop.permute.xlu0 %4350
      %4352 = vrot.lane.b32.xlu0 %v4045, 64
      %v4353 = vpop.permute.xlu0 %4352
      %4354 = vrot.lane.b32.xlu0 %v4059, 64
      %v4355 = vpop.permute.xlu0 %4354
      %4356 = vrot.lane.b32.xlu0 %v4069, 64
      %v4357 = vpop.permute.xlu0 %4356
      %4358 = vrot.lane.b32.xlu0 %v4083, 64
      %v4359 = vpop.permute.xlu0 %4358
      %4360 = vrot.lane.b32.xlu0 %v4093, 64
      %v4361 = vpop.permute.xlu0 %4360
      %4362 = vrot.lane.b32.xlu0 %v4107, 64
      %v4363 = vpop.permute.xlu0 %4362
      %4364 = vrot.lane.b32.xlu0 %v4117, 64
      %v4365 = vpop.permute.xlu0 %4364
      %4366 = vrot.lane.b32.xlu0 %v4131, 64
      %v4367 = vpop.permute.xlu0 %4366
      %4368 = vrot.lane.b32.xlu0 %v4141, 64
      %v4369 = vpop.permute.xlu0 %4368
      %4370 = vrot.lane.b32.xlu0 %v4155, 64
      %v4371 = vpop.permute.xlu0 %4370
      %4372 = vrot.lane.b32.xlu0 %v4165, 64
      %v4373 = vpop.permute.xlu0 %4372
      %4374 = vrot.lane.b32.xlu0 %v4179, 64
      %v4375 = vpop.permute.xlu0 %4374
      %4376 = vrot.lane.b32.xlu0 %v4189, 64
      %v4377 = vpop.permute.xlu0 %4376
      %4378 = vrot.lane.b32.xlu0 %v4203, 64
      %v4379 = vpop.permute.xlu0 %4378
      %4380 = vrot.lane.b32.xlu0 %v4213, 64
      %v4381 = vpop.permute.xlu0 %4380
      %4382 = vrot.lane.b32.xlu0 %v4227, 64
      %v4383 = vpop.permute.xlu0 %4382
      %4384 = vrot.lane.b32.xlu0 %v4237, 64
      %v4385 = vpop.permute.xlu0 %4384
      %4386 = vrot.lane.b32.xlu0 %v4251, 64
      %v4387 = vpop.permute.xlu0 %4386
      %4388 = vrot.lane.b32.xlu0 %v4261, 64
      %v4389 = vpop.permute.xlu0 %4388
      %vm4454 = vcmask 650752
      %4455 = vst.msk [vmem:[#allocation3] sm:$0xf] %vm4454, %v4263
      %4456 = vst.msk [vmem:[#allocation3 + $0x8] sm:$0xf] %vm4454, %v4265
      %4457 = vst.msk [vmem:[#allocation3 + $0x10] sm:$0xf] %vm4454, %v4267
      %4458 = vst.msk [vmem:[#allocation3 + $0x18] sm:$0xf] %vm4454, %v4269
      %4459 = vst.msk [vmem:[#allocation3 + $0x20] sm:$0xf] %vm4454, %v4271
      %4460 = vst.msk [vmem:[#allocation3 + $0x28] sm:$0xf] %vm4454, %v4273
      %4461 = vst.msk [vmem:[#allocation3 + $0x30] sm:$0xf] %vm4454, %v4275
      %4462 = vst.msk [vmem:[#allocation3 + $0x38] sm:$0xf] %vm4454, %v4277
      %4463 = vst.msk [vmem:[#allocation3 + $0x40] sm:$0xf] %vm4454, %v4279
      %4464 = vst.msk [vmem:[#allocation3 + $0x48] sm:$0xf] %vm4454, %v4281
      %4465 = vst.msk [vmem:[#allocation3 + $0x50] sm:$0xf] %vm4454, %v4283
      %4466 = vst.msk [vmem:[#allocation3 + $0x58] sm:$0xf] %vm4454, %v4285
      %4467 = vst.msk [vmem:[#allocation3 + $0x60] sm:$0xf] %vm4454, %v4287
      %4468 = vst.msk [vmem:[#allocation3 + $0x68] sm:$0xf] %vm4454, %v4289
      %4469 = vst.msk [vmem:[#allocation3 + $0x70] sm:$0xf] %vm4454, %v4291
      %4470 = vst.msk [vmem:[#allocation3 + $0x78] sm:$0xf] %vm4454, %v4293
      %4471 = vst.msk [vmem:[#allocation3 + $0x80] sm:$0xf] %vm4454, %v4295
      %4472 = vst.msk [vmem:[#allocation3 + $0x88] sm:$0xf] %vm4454, %v4297
      %4473 = vst.msk [vmem:[#allocation3 + $0x90] sm:$0xf] %vm4454, %v4299
      %4474 = vst.msk [vmem:[#allocation3 + $0x98] sm:$0xf] %vm4454, %v4301
      %4475 = vst.msk [vmem:[#allocation3 + $0xa0] sm:$0xf] %vm4454, %v4303
      %4476 = vst.msk [vmem:[#allocation3 + $0xa8] sm:$0xf] %vm4454, %v4305
      %4477 = vst.msk [vmem:[#allocation3 + $0xb0] sm:$0xf] %vm4454, %v4307
      %4478 = vst.msk [vmem:[#allocation3 + $0xb8] sm:$0xf] %vm4454, %v4309
      %4479 = vst.msk [vmem:[#allocation3 + $0xc0] sm:$0xf] %vm4454, %v4311
      %4480 = vst.msk [vmem:[#allocation3 + $0xc8] sm:$0xf] %vm4454, %v4313
      %4481 = vst.msk [vmem:[#allocation3 + $0xd0] sm:$0xf] %vm4454, %v4315
      %4482 = vst.msk [vmem:[#allocation3 + $0xd8] sm:$0xf] %vm4454, %v4317
      %4483 = vst.msk [vmem:[#allocation3 + $0xe0] sm:$0xf] %vm4454, %v4319
      %4484 = vst.msk [vmem:[#allocation3 + $0xe8] sm:$0xf] %vm4454, %v4321
      %4485 = vst.msk [vmem:[#allocation3 + $0xf0] sm:$0xf] %vm4454, %v4323
      %4486 = vst.msk [vmem:[#allocation3 + $0xf8] sm:$0xf] %vm4454, %v4325
      %4487 = vst.msk [vmem:[#allocation3 + $0x100] sm:$0xf] %vm4454, %v4327
      %4488 = vst.msk [vmem:[#allocation3 + $0x108] sm:$0xf] %vm4454, %v4329
      %4489 = vst.msk [vmem:[#allocation3 + $0x110] sm:$0xf] %vm4454, %v4331
      %4490 = vst.msk [vmem:[#allocation3 + $0x118] sm:$0xf] %vm4454, %v4333
      %4491 = vst.msk [vmem:[#allocation3 + $0x120] sm:$0xf] %vm4454, %v4335
      %4492 = vst.msk [vmem:[#allocation3 + $0x128] sm:$0xf] %vm4454, %v4337
      %4493 = vst.msk [vmem:[#allocation3 + $0x130] sm:$0xf] %vm4454, %v4339
      %4494 = vst.msk [vmem:[#allocation3 + $0x138] sm:$0xf] %vm4454, %v4341
      %4495 = vst.msk [vmem:[#allocation3 + $0x140] sm:$0xf] %vm4454, %v4343
      %4496 = vst.msk [vmem:[#allocation3 + $0x148] sm:$0xf] %vm4454, %v4345
      %4497 = vst.msk [vmem:[#allocation3 + $0x150] sm:$0xf] %vm4454, %v4347
      %4498 = vst.msk [vmem:[#allocation3 + $0x158] sm:$0xf] %vm4454, %v4349
      %4499 = vst.msk [vmem:[#allocation3 + $0x160] sm:$0xf] %vm4454, %v4351
      %4500 = vst.msk [vmem:[#allocation3 + $0x168] sm:$0xf] %vm4454, %v4353
      %4501 = vst.msk [vmem:[#allocation3 + $0x170] sm:$0xf] %vm4454, %v4355
      %4502 = vst.msk [vmem:[#allocation3 + $0x178] sm:$0xf] %vm4454, %v4357
      %4503 = vst.msk [vmem:[#allocation3 + $0x180] sm:$0xf] %vm4454, %v4359
      %4504 = vst.msk [vmem:[#allocation3 + $0x188] sm:$0xf] %vm4454, %v4361
      %4505 = vst.msk [vmem:[#allocation3 + $0x190] sm:$0xf] %vm4454, %v4363
      %4506 = vst.msk [vmem:[#allocation3 + $0x198] sm:$0xf] %vm4454, %v4365
      %4507 = vst.msk [vmem:[#allocation3 + $0x1a0] sm:$0xf] %vm4454, %v4367
      %4508 = vst.msk [vmem:[#allocation3 + $0x1a8] sm:$0xf] %vm4454, %v4369
      %4509 = vst.msk [vmem:[#allocation3 + $0x1b0] sm:$0xf] %vm4454, %v4371
      %4510 = vst.msk [vmem:[#allocation3 + $0x1b8] sm:$0xf] %vm4454, %v4373
      %4511 = vst.msk [vmem:[#allocation3 + $0x1c0] sm:$0xf] %vm4454, %v4375
      %4512 = vst.msk [vmem:[#allocation3 + $0x1c8] sm:$0xf] %vm4454, %v4377
      %4513 = vst.msk [vmem:[#allocation3 + $0x1d0] sm:$0xf] %vm4454, %v4379
      %4514 = vst.msk [vmem:[#allocation3 + $0x1d8] sm:$0xf] %vm4454, %v4381
      %4515 = vst.msk [vmem:[#allocation3 + $0x1e0] sm:$0xf] %vm4454, %v4383
      %4516 = vst.msk [vmem:[#allocation3 + $0x1e8] sm:$0xf] %vm4454, %v4385
      %4517 = vst.msk [vmem:[#allocation3 + $0x1f0] sm:$0xf] %vm4454, %v4387
      %4518 = vst.msk [vmem:[#allocation3 + $0x1f8] sm:$0xf] %vm4454, %v4389
      %v4519 = vld [vmem:[%s855] sm:$0xe]
      %v4520 = vld [vmem:[%s855 + $0x4] sm:$0xf]
      %v4521 = vld [vmem:[%s855 + $0x8] sm:$0x1]
      %v4522 = vld [vmem:[%s855 + $0xc] sm:$0xe]
      %v4523 = vld [vmem:[%s855 + $0x10] sm:$0xf]
      %v4524 = vld [vmem:[%s855 + $0x14] sm:$0x1]
      %v4525 = vld [vmem:[%s855 + $0x18] sm:$0xe]
      %v4526 = vld [vmem:[%s855 + $0x1c] sm:$0xf]
      %v4527 = vld [vmem:[%s855 + $0x20] sm:$0x1]
      %v4528 = vld [vmem:[%s855 + $0x24] sm:$0xe]
      %v4529 = vld [vmem:[%s855 + $0x28] sm:$0xf]
      %v4530 = vld [vmem:[%s855 + $0x2c] sm:$0x1]
      %v4531 = vld [vmem:[%s855 + $0x30] sm:$0xe]
      %v4532 = vld [vmem:[%s855 + $0x34] sm:$0xf]
      %v4533 = vld [vmem:[%s855 + $0x38] sm:$0x1]
      %v4534 = vld [vmem:[%s855 + $0x3c] sm:$0xe]
      %v4535 = vld [vmem:[%s855 + $0x40] sm:$0xf]
      %v4536 = vld [vmem:[%s855 + $0x44] sm:$0x1]
      %v4537 = vld [vmem:[%s855 + $0x48] sm:$0xe]
      %v4538 = vld [vmem:[%s855 + $0x4c] sm:$0xf]
      %v4539 = vld [vmem:[%s855 + $0x50] sm:$0x1]
      %v4540 = vld [vmem:[%s855 + $0x54] sm:$0xe]
      %v4541 = vld [vmem:[%s855 + $0x58] sm:$0xf]
      %v4542 = vld [vmem:[%s855 + $0x5c] sm:$0x1]
      %v4543 = vld [vmem:[%s855 + $0x60] sm:$0xe]
      %v4544 = vld [vmem:[%s855 + $0x64] sm:$0xf]
      %v4545 = vld [vmem:[%s855 + $0x68] sm:$0x1]
      %v4546 = vld [vmem:[%s855 + $0x6c] sm:$0xe]
      %v4547 = vld [vmem:[%s855 + $0x70] sm:$0xf]
      %v4548 = vld [vmem:[%s855 + $0x74] sm:$0x1]
      %v4549 = vld [vmem:[%s855 + $0x78] sm:$0xe]
      %v4550 = vld [vmem:[%s855 + $0x7c] sm:$0xf]
      %v4551 = vld [vmem:[%s855 + $0x80] sm:$0x1]
      %v4552 = vld [vmem:[%s855 + $0x84] sm:$0xe]
      %v4553 = vld [vmem:[%s855 + $0x88] sm:$0xf]
      %v4554 = vld [vmem:[%s855 + $0x8c] sm:$0x1]
      %v4555 = vld [vmem:[%s855 + $0x90] sm:$0xe]
      %v4556 = vld [vmem:[%s855 + $0x94] sm:$0xf]
      %v4557 = vld [vmem:[%s855 + $0x98] sm:$0x1]
      %v4558 = vld [vmem:[%s855 + $0x9c] sm:$0xe]
      %v4559 = vld [vmem:[%s855 + $0xa0] sm:$0xf]
      %v4560 = vld [vmem:[%s855 + $0xa4] sm:$0x1]
      %v4561 = vld [vmem:[%s855 + $0xa8] sm:$0xe]
      %v4562 = vld [vmem:[%s855 + $0xac] sm:$0xf]
      %v4563 = vld [vmem:[%s855 + $0xb0] sm:$0x1]
      %v4564 = vld [vmem:[%s855 + $0xb4] sm:$0xe]
      %v4565 = vld [vmem:[%s855 + $0xb8] sm:$0xf]
      %v4566 = vld [vmem:[%s855 + $0xbc] sm:$0x1]
      %v4567 = vld [vmem:[%s855 + $0xd8] sm:$0xe]
      %v4568 = vld [vmem:[%s855 + $0xdc] sm:$0xf]
      %v4569 = vld [vmem:[%s855 + $0xe0] sm:$0x1]
      %v4570 = vld [vmem:[%s855 + $0xe4] sm:$0xe]
      %v4571 = vld [vmem:[%s855 + $0xe8] sm:$0xf]
      %v4572 = vld [vmem:[%s855 + $0xec] sm:$0x1]
      %v4573 = vld [vmem:[%s855 + $0xf0] sm:$0xe]
      %v4574 = vld [vmem:[%s855 + $0xf4] sm:$0xf]
      %v4575 = vld [vmem:[%s855 + $0xf8] sm:$0x1]
      %v4576 = vld [vmem:[%s855 + $0xfc] sm:$0xe]
      %v4577 = vld [vmem:[%s855 + $0x100] sm:$0xf]
      %v4578 = vld [vmem:[%s855 + $0x104] sm:$0x1]
      %v4579 = vld [vmem:[%s855 + $0x108] sm:$0xe]
      %v4580 = vld [vmem:[%s855 + $0x10c] sm:$0xf]
      %v4581 = vld [vmem:[%s855 + $0x110] sm:$0x1]
      %v4582 = vld [vmem:[%s855 + $0x114] sm:$0xe]
      %v4583 = vld [vmem:[%s855 + $0x118] sm:$0xf]
      %v4584 = vld [vmem:[%s855 + $0x11c] sm:$0x1]
      %v4585 = vld [vmem:[%s855 + $0x120] sm:$0xe]
      %v4586 = vld [vmem:[%s855 + $0x124] sm:$0xf]
      %v4587 = vld [vmem:[%s855 + $0x128] sm:$0x1]
      %v4588 = vld [vmem:[%s855 + $0x12c] sm:$0xe]
      %v4589 = vld [vmem:[%s855 + $0x130] sm:$0xf]
      %v4590 = vld [vmem:[%s855 + $0x134] sm:$0x1]
      %v4591 = vld [vmem:[%s855 + $0x138] sm:$0xe]
      %v4592 = vld [vmem:[%s855 + $0x13c] sm:$0xf]
      %v4593 = vld [vmem:[%s855 + $0x140] sm:$0x1]
      %v4594 = vld [vmem:[%s855 + $0x144] sm:$0xe]
      %v4595 = vld [vmem:[%s855 + $0x148] sm:$0xf]
      %v4596 = vld [vmem:[%s855 + $0x14c] sm:$0x1]
      %v4597 = vld [vmem:[%s855 + $0x150] sm:$0xe]
      %v4598 = vld [vmem:[%s855 + $0x154] sm:$0xf]
      %v4599 = vld [vmem:[%s855 + $0x158] sm:$0x1]
      %v4600 = vld [vmem:[%s855 + $0x15c] sm:$0xe]
      %v4601 = vld [vmem:[%s855 + $0x160] sm:$0xf]
      %v4602 = vld [vmem:[%s855 + $0x164] sm:$0x1]
      %v4603 = vld [vmem:[%s855 + $0x168] sm:$0xe]
      %v4604 = vld [vmem:[%s855 + $0x16c] sm:$0xf]
      %v4605 = vld [vmem:[%s855 + $0x170] sm:$0x1]
      %v4606 = vld [vmem:[%s855 + $0x174] sm:$0xe]
      %v4607 = vld [vmem:[%s855 + $0x178] sm:$0xf]
      %v4608 = vld [vmem:[%s855 + $0x17c] sm:$0x1]
      %v4609 = vld [vmem:[%s855 + $0x180] sm:$0xe]
      %v4610 = vld [vmem:[%s855 + $0x184] sm:$0xf]
      %v4611 = vld [vmem:[%s855 + $0x188] sm:$0x1]
      %v4612 = vld [vmem:[%s855 + $0x18c] sm:$0xe]
      %v4613 = vld [vmem:[%s855 + $0x190] sm:$0xf]
      %v4614 = vld [vmem:[%s855 + $0x194] sm:$0x1]
      %v4711 = vrot.slane %v4519, 5
      %v4712 = vrot.slane %v4711, 4
      %v4713 = vrot.slane %v4520, 5
      %v4714 = vsel %vm2531, %v4712, %v4713
      %v4715 = vrot.slane %v4713, 4
      %v4716 = vrot.slane %v4521, 5
      %v4717 = vsel %vm2531, %v4715, %v4716
      %v4718 = vrot.slane %v4522, 5
      %v4719 = vrot.slane %v4718, 4
      %v4720 = vrot.slane %v4523, 5
      %v4721 = vsel %vm2531, %v4719, %v4720
      %v4722 = vrot.slane %v4720, 4
      %v4723 = vrot.slane %v4524, 5
      %v4724 = vsel %vm2531, %v4722, %v4723
      %v4725 = vrot.slane %v4525, 5
      %v4726 = vrot.slane %v4725, 4
      %v4727 = vrot.slane %v4526, 5
      %v4728 = vsel %vm2531, %v4726, %v4727
      %v4729 = vrot.slane %v4727, 4
      %v4730 = vrot.slane %v4527, 5
      %v4731 = vsel %vm2531, %v4729, %v4730
      %v4732 = vrot.slane %v4528, 5
      %v4733 = vrot.slane %v4732, 4
      %v4734 = vrot.slane %v4529, 5
      %v4735 = vsel %vm2531, %v4733, %v4734
      %v4736 = vrot.slane %v4734, 4
      %v4737 = vrot.slane %v4530, 5
      %v4738 = vsel %vm2531, %v4736, %v4737
      %v4739 = vrot.slane %v4531, 5
      %v4740 = vrot.slane %v4739, 4
      %v4741 = vrot.slane %v4532, 5
      %v4742 = vsel %vm2531, %v4740, %v4741
      %v4743 = vrot.slane %v4741, 4
      %v4744 = vrot.slane %v4533, 5
      %v4745 = vsel %vm2531, %v4743, %v4744
      %v4746 = vrot.slane %v4534, 5
      %v4747 = vrot.slane %v4746, 4
      %v4748 = vrot.slane %v4535, 5
      %v4749 = vsel %vm2531, %v4747, %v4748
      %v4750 = vrot.slane %v4748, 4
      %v4751 = vrot.slane %v4536, 5
      %v4752 = vsel %vm2531, %v4750, %v4751
      %v4753 = vrot.slane %v4537, 5
      %v4754 = vrot.slane %v4753, 4
      %v4755 = vrot.slane %v4538, 5
      %v4756 = vsel %vm2531, %v4754, %v4755
      %v4757 = vrot.slane %v4755, 4
      %v4758 = vrot.slane %v4539, 5
      %v4759 = vsel %vm2531, %v4757, %v4758
      %v4760 = vrot.slane %v4540, 5
      %v4761 = vrot.slane %v4760, 4
      %v4762 = vrot.slane %v4541, 5
      %v4763 = vsel %vm2531, %v4761, %v4762
      %v4764 = vrot.slane %v4762, 4
      %v4765 = vrot.slane %v4542, 5
      %v4766 = vsel %vm2531, %v4764, %v4765
      %v4767 = vrot.slane %v4543, 5
      %v4768 = vrot.slane %v4767, 4
      %v4769 = vrot.slane %v4544, 5
      %v4770 = vsel %vm2531, %v4768, %v4769
      %v4771 = vrot.slane %v4769, 4
      %v4772 = vrot.slane %v4545, 5
      %v4773 = vsel %vm2531, %v4771, %v4772
      %v4774 = vrot.slane %v4546, 5
      %v4775 = vrot.slane %v4774, 4
      %v4776 = vrot.slane %v4547, 5
      %v4777 = vsel %vm2531, %v4775, %v4776
      %v4778 = vrot.slane %v4776, 4
      %v4779 = vrot.slane %v4548, 5
      %v4780 = vsel %vm2531, %v4778, %v4779
      %v4781 = vrot.slane %v4549, 5
      %v4782 = vrot.slane %v4781, 4
      %v4783 = vrot.slane %v4550, 5
      %v4784 = vsel %vm2531, %v4782, %v4783
      %v4785 = vrot.slane %v4783, 4
      %v4786 = vrot.slane %v4551, 5
      %v4787 = vsel %vm2531, %v4785, %v4786
      %v4788 = vrot.slane %v4552, 5
      %v4789 = vrot.slane %v4788, 4
      %v4790 = vrot.slane %v4553, 5
      %v4791 = vsel %vm2531, %v4789, %v4790
      %v4792 = vrot.slane %v4790, 4
      %v4793 = vrot.slane %v4554, 5
      %v4794 = vsel %vm2531, %v4792, %v4793
      %v4795 = vrot.slane %v4555, 5
      %v4796 = vrot.slane %v4795, 4
      %v4797 = vrot.slane %v4556, 5
      %v4798 = vsel %vm2531, %v4796, %v4797
      %v4799 = vrot.slane %v4797, 4
      %v4800 = vrot.slane %v4557, 5
      %v4801 = vsel %vm2531, %v4799, %v4800
      %v4802 = vrot.slane %v4558, 5
      %v4803 = vrot.slane %v4802, 4
      %v4804 = vrot.slane %v4559, 5
      %v4805 = vsel %vm2531, %v4803, %v4804
      %v4806 = vrot.slane %v4804, 4
      %v4807 = vrot.slane %v4560, 5
      %v4808 = vsel %vm2531, %v4806, %v4807
      %v4809 = vrot.slane %v4561, 5
      %v4810 = vrot.slane %v4809, 4
      %v4811 = vrot.slane %v4562, 5
      %v4812 = vsel %vm2531, %v4810, %v4811
      %v4813 = vrot.slane %v4811, 4
      %v4814 = vrot.slane %v4563, 5
      %v4815 = vsel %vm2531, %v4813, %v4814
      %v4816 = vrot.slane %v4564, 5
      %v4817 = vrot.slane %v4816, 4
      %v4818 = vrot.slane %v4565, 5
      %v4819 = vsel %vm2531, %v4817, %v4818
      %v4820 = vrot.slane %v4818, 4
      %v4821 = vrot.slane %v4566, 5
      %v4822 = vsel %vm2531, %v4820, %v4821
      %v4823 = vrot.slane %v4567, 5
      %v4824 = vrot.slane %v4823, 4
      %v4825 = vrot.slane %v4568, 5
      %v4826 = vsel %vm2531, %v4824, %v4825
      %v4827 = vrot.slane %v4825, 4
      %v4828 = vrot.slane %v4569, 5
      %v4829 = vsel %vm2531, %v4827, %v4828
      %v4830 = vrot.slane %v4570, 5
      %v4831 = vrot.slane %v4830, 4
      %v4832 = vrot.slane %v4571, 5
      %v4833 = vsel %vm2531, %v4831, %v4832
      %v4834 = vrot.slane %v4832, 4
      %v4835 = vrot.slane %v4572, 5
      %v4836 = vsel %vm2531, %v4834, %v4835
      %v4837 = vrot.slane %v4573, 5
      %v4838 = vrot.slane %v4837, 4
      %v4839 = vrot.slane %v4574, 5
      %v4840 = vsel %vm2531, %v4838, %v4839
      %v4841 = vrot.slane %v4839, 4
      %v4842 = vrot.slane %v4575, 5
      %v4843 = vsel %vm2531, %v4841, %v4842
      %v4844 = vrot.slane %v4576, 5
      %v4845 = vrot.slane %v4844, 4
      %v4846 = vrot.slane %v4577, 5
      %v4847 = vsel %vm2531, %v4845, %v4846
      %v4848 = vrot.slane %v4846, 4
      %v4849 = vrot.slane %v4578, 5
      %v4850 = vsel %vm2531, %v4848, %v4849
      %v4851 = vrot.slane %v4579, 5
      %v4852 = vrot.slane %v4851, 4
      %v4853 = vrot.slane %v4580, 5
      %v4854 = vsel %vm2531, %v4852, %v4853
      %v4855 = vrot.slane %v4853, 4
      %v4856 = vrot.slane %v4581, 5
      %v4857 = vsel %vm2531, %v4855, %v4856
      %v4858 = vrot.slane %v4582, 5
      %v4859 = vrot.slane %v4858, 4
      %v4860 = vrot.slane %v4583, 5
      %v4861 = vsel %vm2531, %v4859, %v4860
      %v4862 = vrot.slane %v4860, 4
      %v4863 = vrot.slane %v4584, 5
      %v4864 = vsel %vm2531, %v4862, %v4863
      %v4865 = vrot.slane %v4585, 5
      %v4866 = vrot.slane %v4865, 4
      %v4867 = vrot.slane %v4586, 5
      %v4868 = vsel %vm2531, %v4866, %v4867
      %v4869 = vrot.slane %v4867, 4
      %v4870 = vrot.slane %v4587, 5
      %v4871 = vsel %vm2531, %v4869, %v4870
      %v4872 = vrot.slane %v4588, 5
      %v4873 = vrot.slane %v4872, 4
      %v4874 = vrot.slane %v4589, 5
      %v4875 = vsel %vm2531, %v4873, %v4874
      %v4876 = vrot.slane %v4874, 4
      %v4877 = vrot.slane %v4590, 5
      %v4878 = vsel %vm2531, %v4876, %v4877
      %v4879 = vrot.slane %v4591, 5
      %v4880 = vrot.slane %v4879, 4
      %v4881 = vrot.slane %v4592, 5
      %v4882 = vsel %vm2531, %v4880, %v4881
      %v4883 = vrot.slane %v4881, 4
      %v4884 = vrot.slane %v4593, 5
      %v4885 = vsel %vm2531, %v4883, %v4884
      %v4886 = vrot.slane %v4594, 5
      %v4887 = vrot.slane %v4886, 4
      %v4888 = vrot.slane %v4595, 5
      %v4889 = vsel %vm2531, %v4887, %v4888
      %v4890 = vrot.slane %v4888, 4
      %v4891 = vrot.slane %v4596, 5
      %v4892 = vsel %vm2531, %v4890, %v4891
      %v4893 = vrot.slane %v4597, 5
      %v4894 = vrot.slane %v4893, 4
      %v4895 = vrot.slane %v4598, 5
      %v4896 = vsel %vm2531, %v4894, %v4895
      %v4897 = vrot.slane %v4895, 4
      %v4898 = vrot.slane %v4599, 5
      %v4899 = vsel %vm2531, %v4897, %v4898
      %v4900 = vrot.slane %v4600, 5
      %v4901 = vrot.slane %v4900, 4
      %v4902 = vrot.slane %v4601, 5
      %v4903 = vsel %vm2531, %v4901, %v4902
      %v4904 = vrot.slane %v4902, 4
      %v4905 = vrot.slane %v4602, 5
      %v4906 = vsel %vm2531, %v4904, %v4905
      %v4907 = vrot.slane %v4603, 5
      %v4908 = vrot.slane %v4907, 4
      %v4909 = vrot.slane %v4604, 5
      %v4910 = vsel %vm2531, %v4908, %v4909
      %v4911 = vrot.slane %v4909, 4
      %v4912 = vrot.slane %v4605, 5
      %v4913 = vsel %vm2531, %v4911, %v4912
      %v4914 = vrot.slane %v4606, 5
      %v4915 = vrot.slane %v4914, 4
      %v4916 = vrot.slane %v4607, 5
      %v4917 = vsel %vm2531, %v4915, %v4916
      %v4918 = vrot.slane %v4916, 4
      %v4919 = vrot.slane %v4608, 5
      %v4920 = vsel %vm2531, %v4918, %v4919
      %v4921 = vrot.slane %v4609, 5
      %v4922 = vrot.slane %v4921, 4
      %v4923 = vrot.slane %v4610, 5
      %v4924 = vsel %vm2531, %v4922, %v4923
      %v4925 = vrot.slane %v4923, 4
      %v4926 = vrot.slane %v4611, 5
      %v4927 = vsel %vm2531, %v4925, %v4926
      %v4928 = vrot.slane %v4612, 5
      %v4929 = vrot.slane %v4928, 4
      %v4930 = vrot.slane %v4613, 5
      %v4931 = vsel %vm2531, %v4929, %v4930
      %v4932 = vrot.slane %v4930, 4
      %v4933 = vrot.slane %v4614, 5
      %v4934 = vsel %vm2531, %v4932, %v4933
      %4935 = vrot.lane.b32.xlu0 %v4714, 80
      %v4936 = vpop.permute.xlu0 %4935
      %4937 = vrot.lane.b32.xlu0 %v4717, 80
      %v4938 = vpop.permute.xlu0 %4937
      %4939 = vrot.lane.b32.xlu0 %v4721, 80
      %v4940 = vpop.permute.xlu0 %4939
      %4941 = vrot.lane.b32.xlu0 %v4724, 80
      %v4942 = vpop.permute.xlu0 %4941
      %4943 = vrot.lane.b32.xlu0 %v4728, 80
      %v4944 = vpop.permute.xlu0 %4943
      %4945 = vrot.lane.b32.xlu0 %v4731, 80
      %v4946 = vpop.permute.xlu0 %4945
      %4947 = vrot.lane.b32.xlu0 %v4735, 80
      %v4948 = vpop.permute.xlu0 %4947
      %4949 = vrot.lane.b32.xlu0 %v4738, 80
      %v4950 = vpop.permute.xlu0 %4949
      %4951 = vrot.lane.b32.xlu0 %v4742, 80
      %v4952 = vpop.permute.xlu0 %4951
      %4953 = vrot.lane.b32.xlu0 %v4745, 80
      %v4954 = vpop.permute.xlu0 %4953
      %4955 = vrot.lane.b32.xlu0 %v4749, 80
      %v4956 = vpop.permute.xlu0 %4955
      %4957 = vrot.lane.b32.xlu0 %v4752, 80
      %v4958 = vpop.permute.xlu0 %4957
      %4959 = vrot.lane.b32.xlu0 %v4756, 80
      %v4960 = vpop.permute.xlu0 %4959
      %4961 = vrot.lane.b32.xlu0 %v4759, 80
      %v4962 = vpop.permute.xlu0 %4961
      %4963 = vrot.lane.b32.xlu0 %v4763, 80
      %v4964 = vpop.permute.xlu0 %4963
      %4965 = vrot.lane.b32.xlu0 %v4766, 80
      %v4966 = vpop.permute.xlu0 %4965
      %4967 = vrot.lane.b32.xlu0 %v4770, 80
      %v4968 = vpop.permute.xlu0 %4967
      %4969 = vrot.lane.b32.xlu0 %v4773, 80
      %v4970 = vpop.permute.xlu0 %4969
      %4971 = vrot.lane.b32.xlu0 %v4777, 80
      %v4972 = vpop.permute.xlu0 %4971
      %4973 = vrot.lane.b32.xlu0 %v4780, 80
      %v4974 = vpop.permute.xlu0 %4973
      %4975 = vrot.lane.b32.xlu0 %v4784, 80
      %v4976 = vpop.permute.xlu0 %4975
      %4977 = vrot.lane.b32.xlu0 %v4787, 80
      %v4978 = vpop.permute.xlu0 %4977
      %4979 = vrot.lane.b32.xlu0 %v4791, 80
      %v4980 = vpop.permute.xlu0 %4979
      %4981 = vrot.lane.b32.xlu0 %v4794, 80
      %v4982 = vpop.permute.xlu0 %4981
      %4983 = vrot.lane.b32.xlu0 %v4798, 80
      %v4984 = vpop.permute.xlu0 %4983
      %4985 = vrot.lane.b32.xlu0 %v4801, 80
      %v4986 = vpop.permute.xlu0 %4985
      %4987 = vrot.lane.b32.xlu0 %v4805, 80
      %v4988 = vpop.permute.xlu0 %4987
      %4989 = vrot.lane.b32.xlu0 %v4808, 80
      %v4990 = vpop.permute.xlu0 %4989
      %4991 = vrot.lane.b32.xlu0 %v4812, 80
      %v4992 = vpop.permute.xlu0 %4991
      %4993 = vrot.lane.b32.xlu0 %v4815, 80
      %v4994 = vpop.permute.xlu0 %4993
      %4995 = vrot.lane.b32.xlu0 %v4819, 80
      %v4996 = vpop.permute.xlu0 %4995
      %4997 = vrot.lane.b32.xlu0 %v4822, 80
      %v4998 = vpop.permute.xlu0 %4997
      %4999 = vrot.lane.b32.xlu0 %v4826, 80
      %v5000 = vpop.permute.xlu0 %4999
      %5001 = vrot.lane.b32.xlu0 %v4829, 80
      %v5002 = vpop.permute.xlu0 %5001
      %5003 = vrot.lane.b32.xlu0 %v4833, 80
      %v5004 = vpop.permute.xlu0 %5003
      %5005 = vrot.lane.b32.xlu0 %v4836, 80
      %v5006 = vpop.permute.xlu0 %5005
      %5007 = vrot.lane.b32.xlu0 %v4840, 80
      %v5008 = vpop.permute.xlu0 %5007
      %5009 = vrot.lane.b32.xlu0 %v4843, 80
      %v5010 = vpop.permute.xlu0 %5009
      %5011 = vrot.lane.b32.xlu0 %v4847, 80
      %v5012 = vpop.permute.xlu0 %5011
      %5013 = vrot.lane.b32.xlu0 %v4850, 80
      %v5014 = vpop.permute.xlu0 %5013
      %5015 = vrot.lane.b32.xlu0 %v4854, 80
      %v5016 = vpop.permute.xlu0 %5015
      %5017 = vrot.lane.b32.xlu0 %v4857, 80
      %v5018 = vpop.permute.xlu0 %5017
      %5019 = vrot.lane.b32.xlu0 %v4861, 80
      %v5020 = vpop.permute.xlu0 %5019
      %5021 = vrot.lane.b32.xlu0 %v4864, 80
      %v5022 = vpop.permute.xlu0 %5021
      %5023 = vrot.lane.b32.xlu0 %v4868, 80
      %v5024 = vpop.permute.xlu0 %5023
      %5025 = vrot.lane.b32.xlu0 %v4871, 80
      %v5026 = vpop.permute.xlu0 %5025
      %5027 = vrot.lane.b32.xlu0 %v4875, 80
      %v5028 = vpop.permute.xlu0 %5027
      %5029 = vrot.lane.b32.xlu0 %v4878, 80
      %v5030 = vpop.permute.xlu0 %5029
      %5031 = vrot.lane.b32.xlu0 %v4882, 80
      %v5032 = vpop.permute.xlu0 %5031
      %5033 = vrot.lane.b32.xlu0 %v4885, 80
      %v5034 = vpop.permute.xlu0 %5033
      %5035 = vrot.lane.b32.xlu0 %v4889, 80
      %v5036 = vpop.permute.xlu0 %5035
      %5037 = vrot.lane.b32.xlu0 %v4892, 80
      %v5038 = vpop.permute.xlu0 %5037
      %5039 = vrot.lane.b32.xlu0 %v4896, 80
      %v5040 = vpop.permute.xlu0 %5039
      %5041 = vrot.lane.b32.xlu0 %v4899, 80
      %v5042 = vpop.permute.xlu0 %5041
      %5043 = vrot.lane.b32.xlu0 %v4903, 80
      %v5044 = vpop.permute.xlu0 %5043
      %5045 = vrot.lane.b32.xlu0 %v4906, 80
      %v5046 = vpop.permute.xlu0 %5045
      %5047 = vrot.lane.b32.xlu0 %v4910, 80
      %v5048 = vpop.permute.xlu0 %5047
      %5049 = vrot.lane.b32.xlu0 %v4913, 80
      %v5050 = vpop.permute.xlu0 %5049
      %5051 = vrot.lane.b32.xlu0 %v4917, 80
      %v5052 = vpop.permute.xlu0 %5051
      %5053 = vrot.lane.b32.xlu0 %v4920, 80
      %v5054 = vpop.permute.xlu0 %5053
      %5055 = vrot.lane.b32.xlu0 %v4924, 80
      %v5056 = vpop.permute.xlu0 %5055
      %5057 = vrot.lane.b32.xlu0 %v4927, 80
      %v5058 = vpop.permute.xlu0 %5057
      %5059 = vrot.lane.b32.xlu0 %v4931, 80
      %v5060 = vpop.permute.xlu0 %5059
      %5061 = vrot.lane.b32.xlu0 %v4934, 80
      %v5062 = vpop.permute.xlu0 %5061
      %vm5127 = vcmask 781952
      %5128 = vst.msk [vmem:[#allocation3] sm:$0xf] %vm5127, %v4936
      %5129 = vst.msk [vmem:[#allocation3 + $0x8] sm:$0xf] %vm5127, %v4938
      %5130 = vst.msk [vmem:[#allocation3 + $0x10] sm:$0xf] %vm5127, %v4940
      %5131 = vst.msk [vmem:[#allocation3 + $0x18] sm:$0xf] %vm5127, %v4942
      %5132 = vst.msk [vmem:[#allocation3 + $0x20] sm:$0xf] %vm5127, %v4944
      %5133 = vst.msk [vmem:[#allocation3 + $0x28] sm:$0xf] %vm5127, %v4946
      %5134 = vst.msk [vmem:[#allocation3 + $0x30] sm:$0xf] %vm5127, %v4948
      %5135 = vst.msk [vmem:[#allocation3 + $0x38] sm:$0xf] %vm5127, %v4950
      %5136 = vst.msk [vmem:[#allocation3 + $0x40] sm:$0xf] %vm5127, %v4952
      %5137 = vst.msk [vmem:[#allocation3 + $0x48] sm:$0xf] %vm5127, %v4954
      %5138 = vst.msk [vmem:[#allocation3 + $0x50] sm:$0xf] %vm5127, %v4956
      %5139 = vst.msk [vmem:[#allocation3 + $0x58] sm:$0xf] %vm5127, %v4958
      %5140 = vst.msk [vmem:[#allocation3 + $0x60] sm:$0xf] %vm5127, %v4960
      %5141 = vst.msk [vmem:[#allocation3 + $0x68] sm:$0xf] %vm5127, %v4962
      %5142 = vst.msk [vmem:[#allocation3 + $0x70] sm:$0xf] %vm5127, %v4964
      %5143 = vst.msk [vmem:[#allocation3 + $0x78] sm:$0xf] %vm5127, %v4966
      %5144 = vst.msk [vmem:[#allocation3 + $0x80] sm:$0xf] %vm5127, %v4968
      %5145 = vst.msk [vmem:[#allocation3 + $0x88] sm:$0xf] %vm5127, %v4970
      %5146 = vst.msk [vmem:[#allocation3 + $0x90] sm:$0xf] %vm5127, %v4972
      %5147 = vst.msk [vmem:[#allocation3 + $0x98] sm:$0xf] %vm5127, %v4974
      %5148 = vst.msk [vmem:[#allocation3 + $0xa0] sm:$0xf] %vm5127, %v4976
      %5149 = vst.msk [vmem:[#allocation3 + $0xa8] sm:$0xf] %vm5127, %v4978
      %5150 = vst.msk [vmem:[#allocation3 + $0xb0] sm:$0xf] %vm5127, %v4980
      %5151 = vst.msk [vmem:[#allocation3 + $0xb8] sm:$0xf] %vm5127, %v4982
      %5152 = vst.msk [vmem:[#allocation3 + $0xc0] sm:$0xf] %vm5127, %v4984
      %5153 = vst.msk [vmem:[#allocation3 + $0xc8] sm:$0xf] %vm5127, %v4986
      %5154 = vst.msk [vmem:[#allocation3 + $0xd0] sm:$0xf] %vm5127, %v4988
      %5155 = vst.msk [vmem:[#allocation3 + $0xd8] sm:$0xf] %vm5127, %v4990
      %5156 = vst.msk [vmem:[#allocation3 + $0xe0] sm:$0xf] %vm5127, %v4992
      %5157 = vst.msk [vmem:[#allocation3 + $0xe8] sm:$0xf] %vm5127, %v4994
      %5158 = vst.msk [vmem:[#allocation3 + $0xf0] sm:$0xf] %vm5127, %v4996
      %5159 = vst.msk [vmem:[#allocation3 + $0xf8] sm:$0xf] %vm5127, %v4998
      %5160 = vst.msk [vmem:[#allocation3 + $0x100] sm:$0xf] %vm5127, %v5000
      %5161 = vst.msk [vmem:[#allocation3 + $0x108] sm:$0xf] %vm5127, %v5002
      %5162 = vst.msk [vmem:[#allocation3 + $0x110] sm:$0xf] %vm5127, %v5004
      %5163 = vst.msk [vmem:[#allocation3 + $0x118] sm:$0xf] %vm5127, %v5006
      %5164 = vst.msk [vmem:[#allocation3 + $0x120] sm:$0xf] %vm5127, %v5008
      %5165 = vst.msk [vmem:[#allocation3 + $0x128] sm:$0xf] %vm5127, %v5010
      %5166 = vst.msk [vmem:[#allocation3 + $0x130] sm:$0xf] %vm5127, %v5012
      %5167 = vst.msk [vmem:[#allocation3 + $0x138] sm:$0xf] %vm5127, %v5014
      %5168 = vst.msk [vmem:[#allocation3 + $0x140] sm:$0xf] %vm5127, %v5016
      %5169 = vst.msk [vmem:[#allocation3 + $0x148] sm:$0xf] %vm5127, %v5018
      %5170 = vst.msk [vmem:[#allocation3 + $0x150] sm:$0xf] %vm5127, %v5020
      %5171 = vst.msk [vmem:[#allocation3 + $0x158] sm:$0xf] %vm5127, %v5022
      %5172 = vst.msk [vmem:[#allocation3 + $0x160] sm:$0xf] %vm5127, %v5024
      %5173 = vst.msk [vmem:[#allocation3 + $0x168] sm:$0xf] %vm5127, %v5026
      %5174 = vst.msk [vmem:[#allocation3 + $0x170] sm:$0xf] %vm5127, %v5028
      %5175 = vst.msk [vmem:[#allocation3 + $0x178] sm:$0xf] %vm5127, %v5030
      %5176 = vst.msk [vmem:[#allocation3 + $0x180] sm:$0xf] %vm5127, %v5032
      %5177 = vst.msk [vmem:[#allocation3 + $0x188] sm:$0xf] %vm5127, %v5034
      %5178 = vst.msk [vmem:[#allocation3 + $0x190] sm:$0xf] %vm5127, %v5036
      %5179 = vst.msk [vmem:[#allocation3 + $0x198] sm:$0xf] %vm5127, %v5038
      %5180 = vst.msk [vmem:[#allocation3 + $0x1a0] sm:$0xf] %vm5127, %v5040
      %5181 = vst.msk [vmem:[#allocation3 + $0x1a8] sm:$0xf] %vm5127, %v5042
      %5182 = vst.msk [vmem:[#allocation3 + $0x1b0] sm:$0xf] %vm5127, %v5044
      %5183 = vst.msk [vmem:[#allocation3 + $0x1b8] sm:$0xf] %vm5127, %v5046
      %5184 = vst.msk [vmem:[#allocation3 + $0x1c0] sm:$0xf] %vm5127, %v5048
      %5185 = vst.msk [vmem:[#allocation3 + $0x1c8] sm:$0xf] %vm5127, %v5050
      %5186 = vst.msk [vmem:[#allocation3 + $0x1d0] sm:$0xf] %vm5127, %v5052
      %5187 = vst.msk [vmem:[#allocation3 + $0x1d8] sm:$0xf] %vm5127, %v5054
      %5188 = vst.msk [vmem:[#allocation3 + $0x1e0] sm:$0xf] %vm5127, %v5056
      %5189 = vst.msk [vmem:[#allocation3 + $0x1e8] sm:$0xf] %vm5127, %v5058
      %5190 = vst.msk [vmem:[#allocation3 + $0x1f0] sm:$0xf] %vm5127, %v5060
      %5191 = vst.msk [vmem:[#allocation3 + $0x1f8] sm:$0xf] %vm5127, %v5062
      %s5192 = scalar_lea.vmem [#allocation2], 24
      %v5193 = vld [vmem:[%s5192] sm:$0xf]
      %v5194 = vld [vmem:[%s5192 + $0x4] sm:$0xf]
      %v5195 = vld [vmem:[%s5192 + $0xc] sm:$0xf]
      %v5196 = vld [vmem:[%s5192 + $0x10] sm:$0xf]
      %v5197 = vld [vmem:[%s5192 + $0x18] sm:$0xf]
      %v5198 = vld [vmem:[%s5192 + $0x1c] sm:$0xf]
      %v5199 = vld [vmem:[%s5192 + $0x24] sm:$0xf]
      %v5200 = vld [vmem:[%s5192 + $0x28] sm:$0xf]
      %v5201 = vld [vmem:[%s5192 + $0x30] sm:$0xf]
      %v5202 = vld [vmem:[%s5192 + $0x34] sm:$0xf]
      %v5203 = vld [vmem:[%s5192 + $0x3c] sm:$0xf]
      %v5204 = vld [vmem:[%s5192 + $0x40] sm:$0xf]
      %v5205 = vld [vmem:[%s5192 + $0x48] sm:$0xf]
      %v5206 = vld [vmem:[%s5192 + $0x4c] sm:$0xf]
      %v5207 = vld [vmem:[%s5192 + $0x54] sm:$0xf]
      %v5208 = vld [vmem:[%s5192 + $0x58] sm:$0xf]
      %v5209 = vld [vmem:[%s5192 + $0x60] sm:$0xf]
      %v5210 = vld [vmem:[%s5192 + $0x64] sm:$0xf]
      %v5211 = vld [vmem:[%s5192 + $0x6c] sm:$0xf]
      %v5212 = vld [vmem:[%s5192 + $0x70] sm:$0xf]
      %v5213 = vld [vmem:[%s5192 + $0x78] sm:$0xf]
      %v5214 = vld [vmem:[%s5192 + $0x7c] sm:$0xf]
      %v5215 = vld [vmem:[%s5192 + $0x84] sm:$0xf]
      %v5216 = vld [vmem:[%s5192 + $0x88] sm:$0xf]
      %v5217 = vld [vmem:[%s5192 + $0x90] sm:$0xf]
      %v5218 = vld [vmem:[%s5192 + $0x94] sm:$0xf]
      %v5219 = vld [vmem:[%s5192 + $0x9c] sm:$0xf]
      %v5220 = vld [vmem:[%s5192 + $0xa0] sm:$0xf]
      %v5221 = vld [vmem:[%s5192 + $0xa8] sm:$0xf]
      %v5222 = vld [vmem:[%s5192 + $0xac] sm:$0xf]
      %v5223 = vld [vmem:[%s5192 + $0xb4] sm:$0xf]
      %v5224 = vld [vmem:[%s5192 + $0xb8] sm:$0xf]
      %v5225 = vld [vmem:[%s5192 + $0xd8] sm:$0xf]
      %v5226 = vld [vmem:[%s5192 + $0xdc] sm:$0xf]
      %v5227 = vld [vmem:[%s5192 + $0xe4] sm:$0xf]
      %v5228 = vld [vmem:[%s5192 + $0xe8] sm:$0xf]
      %v5229 = vld [vmem:[%s5192 + $0xf0] sm:$0xf]
      %v5230 = vld [vmem:[%s5192 + $0xf4] sm:$0xf]
      %v5231 = vld [vmem:[%s5192 + $0xfc] sm:$0xf]
      %v5232 = vld [vmem:[%s5192 + $0x100] sm:$0xf]
      %v5233 = vld [vmem:[%s5192 + $0x108] sm:$0xf]
      %v5234 = vld [vmem:[%s5192 + $0x10c] sm:$0xf]
      %v5235 = vld [vmem:[%s5192 + $0x114] sm:$0xf]
      %v5236 = vld [vmem:[%s5192 + $0x118] sm:$0xf]
      %v5237 = vld [vmem:[%s5192 + $0x120] sm:$0xf]
      %v5238 = vld [vmem:[%s5192 + $0x124] sm:$0xf]
      %v5239 = vld [vmem:[%s5192 + $0x12c] sm:$0xf]
      %v5240 = vld [vmem:[%s5192 + $0x130] sm:$0xf]
      %v5241 = vld [vmem:[%s5192 + $0x138] sm:$0xf]
      %v5242 = vld [vmem:[%s5192 + $0x13c] sm:$0xf]
      %v5243 = vld [vmem:[%s5192 + $0x144] sm:$0xf]
      %v5244 = vld [vmem:[%s5192 + $0x148] sm:$0xf]
      %v5245 = vld [vmem:[%s5192 + $0x150] sm:$0xf]
      %v5246 = vld [vmem:[%s5192 + $0x154] sm:$0xf]
      %v5247 = vld [vmem:[%s5192 + $0x15c] sm:$0xf]
      %v5248 = vld [vmem:[%s5192 + $0x160] sm:$0xf]
      %v5249 = vld [vmem:[%s5192 + $0x168] sm:$0xf]
      %v5250 = vld [vmem:[%s5192 + $0x16c] sm:$0xf]
      %v5251 = vld [vmem:[%s5192 + $0x174] sm:$0xf]
      %v5252 = vld [vmem:[%s5192 + $0x178] sm:$0xf]
      %v5253 = vld [vmem:[%s5192 + $0x180] sm:$0xf]
      %v5254 = vld [vmem:[%s5192 + $0x184] sm:$0xf]
      %v5255 = vld [vmem:[%s5192 + $0x18c] sm:$0xf]
      %v5256 = vld [vmem:[%s5192 + $0x190] sm:$0xf]
      %5321 = vrot.lane.b32.xlu0 %v5193, 96
      %v5322 = vpop.permute.xlu0 %5321
      %5323 = vrot.lane.b32.xlu0 %v5194, 96
      %v5324 = vpop.permute.xlu0 %5323
      %5325 = vrot.lane.b32.xlu0 %v5195, 96
      %v5326 = vpop.permute.xlu0 %5325
      %5327 = vrot.lane.b32.xlu0 %v5196, 96
      %v5328 = vpop.permute.xlu0 %5327
      %5329 = vrot.lane.b32.xlu0 %v5197, 96
      %v5330 = vpop.permute.xlu0 %5329
      %5331 = vrot.lane.b32.xlu0 %v5198, 96
      %v5332 = vpop.permute.xlu0 %5331
      %5333 = vrot.lane.b32.xlu0 %v5199, 96
      %v5334 = vpop.permute.xlu0 %5333
      %5335 = vrot.lane.b32.xlu0 %v5200, 96
      %v5336 = vpop.permute.xlu0 %5335
      %5337 = vrot.lane.b32.xlu0 %v5201, 96
      %v5338 = vpop.permute.xlu0 %5337
      %5339 = vrot.lane.b32.xlu0 %v5202, 96
      %v5340 = vpop.permute.xlu0 %5339
      %5341 = vrot.lane.b32.xlu0 %v5203, 96
      %v5342 = vpop.permute.xlu0 %5341
      %5343 = vrot.lane.b32.xlu0 %v5204, 96
      %v5344 = vpop.permute.xlu0 %5343
      %5345 = vrot.lane.b32.xlu0 %v5205, 96
      %v5346 = vpop.permute.xlu0 %5345
      %5347 = vrot.lane.b32.xlu0 %v5206, 96
      %v5348 = vpop.permute.xlu0 %5347
      %5349 = vrot.lane.b32.xlu0 %v5207, 96
      %v5350 = vpop.permute.xlu0 %5349
      %5351 = vrot.lane.b32.xlu0 %v5208, 96
      %v5352 = vpop.permute.xlu0 %5351
      %5353 = vrot.lane.b32.xlu0 %v5209, 96
      %v5354 = vpop.permute.xlu0 %5353
      %5355 = vrot.lane.b32.xlu0 %v5210, 96
      %v5356 = vpop.permute.xlu0 %5355
      %5357 = vrot.lane.b32.xlu0 %v5211, 96
      %v5358 = vpop.permute.xlu0 %5357
      %5359 = vrot.lane.b32.xlu0 %v5212, 96
      %v5360 = vpop.permute.xlu0 %5359
      %5361 = vrot.lane.b32.xlu0 %v5213, 96
      %v5362 = vpop.permute.xlu0 %5361
      %5363 = vrot.lane.b32.xlu0 %v5214, 96
      %v5364 = vpop.permute.xlu0 %5363
      %5365 = vrot.lane.b32.xlu0 %v5215, 96
      %v5366 = vpop.permute.xlu0 %5365
      %5367 = vrot.lane.b32.xlu0 %v5216, 96
      %v5368 = vpop.permute.xlu0 %5367
      %5369 = vrot.lane.b32.xlu0 %v5217, 96
      %v5370 = vpop.permute.xlu0 %5369
      %5371 = vrot.lane.b32.xlu0 %v5218, 96
      %v5372 = vpop.permute.xlu0 %5371
      %5373 = vrot.lane.b32.xlu0 %v5219, 96
      %v5374 = vpop.permute.xlu0 %5373
      %5375 = vrot.lane.b32.xlu0 %v5220, 96
      %v5376 = vpop.permute.xlu0 %5375
      %5377 = vrot.lane.b32.xlu0 %v5221, 96
      %v5378 = vpop.permute.xlu0 %5377
      %5379 = vrot.lane.b32.xlu0 %v5222, 96
      %v5380 = vpop.permute.xlu0 %5379
      %5381 = vrot.lane.b32.xlu0 %v5223, 96
      %v5382 = vpop.permute.xlu0 %5381
      %5383 = vrot.lane.b32.xlu0 %v5224, 96
      %v5384 = vpop.permute.xlu0 %5383
      %5385 = vrot.lane.b32.xlu0 %v5225, 96
      %v5386 = vpop.permute.xlu0 %5385
      %5387 = vrot.lane.b32.xlu0 %v5226, 96
      %v5388 = vpop.permute.xlu0 %5387
      %5389 = vrot.lane.b32.xlu0 %v5227, 96
      %v5390 = vpop.permute.xlu0 %5389
      %5391 = vrot.lane.b32.xlu0 %v5228, 96
      %v5392 = vpop.permute.xlu0 %5391
      %5393 = vrot.lane.b32.xlu0 %v5229, 96
      %v5394 = vpop.permute.xlu0 %5393
      %5395 = vrot.lane.b32.xlu0 %v5230, 96
      %v5396 = vpop.permute.xlu0 %5395
      %5397 = vrot.lane.b32.xlu0 %v5231, 96
      %v5398 = vpop.permute.xlu0 %5397
      %5399 = vrot.lane.b32.xlu0 %v5232, 96
      %v5400 = vpop.permute.xlu0 %5399
      %5401 = vrot.lane.b32.xlu0 %v5233, 96
      %v5402 = vpop.permute.xlu0 %5401
      %5403 = vrot.lane.b32.xlu0 %v5234, 96
      %v5404 = vpop.permute.xlu0 %5403
      %5405 = vrot.lane.b32.xlu0 %v5235, 96
      %v5406 = vpop.permute.xlu0 %5405
      %5407 = vrot.lane.b32.xlu0 %v5236, 96
      %v5408 = vpop.permute.xlu0 %5407
      %5409 = vrot.lane.b32.xlu0 %v5237, 96
      %v5410 = vpop.permute.xlu0 %5409
      %5411 = vrot.lane.b32.xlu0 %v5238, 96
      %v5412 = vpop.permute.xlu0 %5411
      %5413 = vrot.lane.b32.xlu0 %v5239, 96
      %v5414 = vpop.permute.xlu0 %5413
      %5415 = vrot.lane.b32.xlu0 %v5240, 96
      %v5416 = vpop.permute.xlu0 %5415
      %5417 = vrot.lane.b32.xlu0 %v5241, 96
      %v5418 = vpop.permute.xlu0 %5417
      %5419 = vrot.lane.b32.xlu0 %v5242, 96
      %v5420 = vpop.permute.xlu0 %5419
      %5421 = vrot.lane.b32.xlu0 %v5243, 96
      %v5422 = vpop.permute.xlu0 %5421
      %5423 = vrot.lane.b32.xlu0 %v5244, 96
      %v5424 = vpop.permute.xlu0 %5423
      %5425 = vrot.lane.b32.xlu0 %v5245, 96
      %v5426 = vpop.permute.xlu0 %5425
      %5427 = vrot.lane.b32.xlu0 %v5246, 96
      %v5428 = vpop.permute.xlu0 %5427
      %5429 = vrot.lane.b32.xlu0 %v5247, 96
      %v5430 = vpop.permute.xlu0 %5429
      %5431 = vrot.lane.b32.xlu0 %v5248, 96
      %v5432 = vpop.permute.xlu0 %5431
      %5433 = vrot.lane.b32.xlu0 %v5249, 96
      %v5434 = vpop.permute.xlu0 %5433
      %5435 = vrot.lane.b32.xlu0 %v5250, 96
      %v5436 = vpop.permute.xlu0 %5435
      %5437 = vrot.lane.b32.xlu0 %v5251, 96
      %v5438 = vpop.permute.xlu0 %5437
      %5439 = vrot.lane.b32.xlu0 %v5252, 96
      %v5440 = vpop.permute.xlu0 %5439
      %5441 = vrot.lane.b32.xlu0 %v5253, 96
      %v5442 = vpop.permute.xlu0 %5441
      %5443 = vrot.lane.b32.xlu0 %v5254, 96
      %v5444 = vpop.permute.xlu0 %5443
      %5445 = vrot.lane.b32.xlu0 %v5255, 96
      %v5446 = vpop.permute.xlu0 %5445
      %5447 = vrot.lane.b32.xlu0 %v5256, 96
      %v5448 = vpop.permute.xlu0 %5447
      %vm5513 = vcmask 913152
      %5514 = vst.msk [vmem:[#allocation3] sm:$0xf] %vm5513, %v5322
      %5515 = vst.msk [vmem:[#allocation3 + $0x8] sm:$0xf] %vm5513, %v5324
      %5516 = vst.msk [vmem:[#allocation3 + $0x10] sm:$0xf] %vm5513, %v5326
      %5517 = vst.msk [vmem:[#allocation3 + $0x18] sm:$0xf] %vm5513, %v5328
      %5518 = vst.msk [vmem:[#allocation3 + $0x20] sm:$0xf] %vm5513, %v5330
      %5519 = vst.msk [vmem:[#allocation3 + $0x28] sm:$0xf] %vm5513, %v5332
      %5520 = vst.msk [vmem:[#allocation3 + $0x30] sm:$0xf] %vm5513, %v5334
      %5521 = vst.msk [vmem:[#allocation3 + $0x38] sm:$0xf] %vm5513, %v5336
      %5522 = vst.msk [vmem:[#allocation3 + $0x40] sm:$0xf] %vm5513, %v5338
      %5523 = vst.msk [vmem:[#allocation3 + $0x48] sm:$0xf] %vm5513, %v5340
      %5524 = vst.msk [vmem:[#allocation3 + $0x50] sm:$0xf] %vm5513, %v5342
      %5525 = vst.msk [vmem:[#allocation3 + $0x58] sm:$0xf] %vm5513, %v5344
      %5526 = vst.msk [vmem:[#allocation3 + $0x60] sm:$0xf] %vm5513, %v5346
      %5527 = vst.msk [vmem:[#allocation3 + $0x68] sm:$0xf] %vm5513, %v5348
      %5528 = vst.msk [vmem:[#allocation3 + $0x70] sm:$0xf] %vm5513, %v5350
      %5529 = vst.msk [vmem:[#allocation3 + $0x78] sm:$0xf] %vm5513, %v5352
      %5530 = vst.msk [vmem:[#allocation3 + $0x80] sm:$0xf] %vm5513, %v5354
      %5531 = vst.msk [vmem:[#allocation3 + $0x88] sm:$0xf] %vm5513, %v5356
      %5532 = vst.msk [vmem:[#allocation3 + $0x90] sm:$0xf] %vm5513, %v5358
      %5533 = vst.msk [vmem:[#allocation3 + $0x98] sm:$0xf] %vm5513, %v5360
      %5534 = vst.msk [vmem:[#allocation3 + $0xa0] sm:$0xf] %vm5513, %v5362
      %5535 = vst.msk [vmem:[#allocation3 + $0xa8] sm:$0xf] %vm5513, %v5364
      %5536 = vst.msk [vmem:[#allocation3 + $0xb0] sm:$0xf] %vm5513, %v5366
      %5537 = vst.msk [vmem:[#allocation3 + $0xb8] sm:$0xf] %vm5513, %v5368
      %5538 = vst.msk [vmem:[#allocation3 + $0xc0] sm:$0xf] %vm5513, %v5370
      %5539 = vst.msk [vmem:[#allocation3 + $0xc8] sm:$0xf] %vm5513, %v5372
      %5540 = vst.msk [vmem:[#allocation3 + $0xd0] sm:$0xf] %vm5513, %v5374
      %5541 = vst.msk [vmem:[#allocation3 + $0xd8] sm:$0xf] %vm5513, %v5376
      %5542 = vst.msk [vmem:[#allocation3 + $0xe0] sm:$0xf] %vm5513, %v5378
      %5543 = vst.msk [vmem:[#allocation3 + $0xe8] sm:$0xf] %vm5513, %v5380
      %5544 = vst.msk [vmem:[#allocation3 + $0xf0] sm:$0xf] %vm5513, %v5382
      %5545 = vst.msk [vmem:[#allocation3 + $0xf8] sm:$0xf] %vm5513, %v5384
      %5546 = vst.msk [vmem:[#allocation3 + $0x100] sm:$0xf] %vm5513, %v5386
      %5547 = vst.msk [vmem:[#allocation3 + $0x108] sm:$0xf] %vm5513, %v5388
      %5548 = vst.msk [vmem:[#allocation3 + $0x110] sm:$0xf] %vm5513, %v5390
      %5549 = vst.msk [vmem:[#allocation3 + $0x118] sm:$0xf] %vm5513, %v5392
      %5550 = vst.msk [vmem:[#allocation3 + $0x120] sm:$0xf] %vm5513, %v5394
      %5551 = vst.msk [vmem:[#allocation3 + $0x128] sm:$0xf] %vm5513, %v5396
      %5552 = vst.msk [vmem:[#allocation3 + $0x130] sm:$0xf] %vm5513, %v5398
      %5553 = vst.msk [vmem:[#allocation3 + $0x138] sm:$0xf] %vm5513, %v5400
      %5554 = vst.msk [vmem:[#allocation3 + $0x140] sm:$0xf] %vm5513, %v5402
      %5555 = vst.msk [vmem:[#allocation3 + $0x148] sm:$0xf] %vm5513, %v5404
      %5556 = vst.msk [vmem:[#allocation3 + $0x150] sm:$0xf] %vm5513, %v5406
      %5557 = vst.msk [vmem:[#allocation3 + $0x158] sm:$0xf] %vm5513, %v5408
      %5558 = vst.msk [vmem:[#allocation3 + $0x160] sm:$0xf] %vm5513, %v5410
      %5559 = vst.msk [vmem:[#allocation3 + $0x168] sm:$0xf] %vm5513, %v5412
      %5560 = vst.msk [vmem:[#allocation3 + $0x170] sm:$0xf] %vm5513, %v5414
      %5561 = vst.msk [vmem:[#allocation3 + $0x178] sm:$0xf] %vm5513, %v5416
      %5562 = vst.msk [vmem:[#allocation3 + $0x180] sm:$0xf] %vm5513, %v5418
      %5563 = vst.msk [vmem:[#allocation3 + $0x188] sm:$0xf] %vm5513, %v5420
      %5564 = vst.msk [vmem:[#allocation3 + $0x190] sm:$0xf] %vm5513, %v5422
      %5565 = vst.msk [vmem:[#allocation3 + $0x198] sm:$0xf] %vm5513, %v5424
      %5566 = vst.msk [vmem:[#allocation3 + $0x1a0] sm:$0xf] %vm5513, %v5426
      %5567 = vst.msk [vmem:[#allocation3 + $0x1a8] sm:$0xf] %vm5513, %v5428
      %5568 = vst.msk [vmem:[#allocation3 + $0x1b0] sm:$0xf] %vm5513, %v5430
      %5569 = vst.msk [vmem:[#allocation3 + $0x1b8] sm:$0xf] %vm5513, %v5432
      %5570 = vst.msk [vmem:[#allocation3 + $0x1c0] sm:$0xf] %vm5513, %v5434
      %5571 = vst.msk [vmem:[#allocation3 + $0x1c8] sm:$0xf] %vm5513, %v5436
      %5572 = vst.msk [vmem:[#allocation3 + $0x1d0] sm:$0xf] %vm5513, %v5438
      %5573 = vst.msk [vmem:[#allocation3 + $0x1d8] sm:$0xf] %vm5513, %v5440
      %5574 = vst.msk [vmem:[#allocation3 + $0x1e0] sm:$0xf] %vm5513, %v5442
      %5575 = vst.msk [vmem:[#allocation3 + $0x1e8] sm:$0xf] %vm5513, %v5444
      %5576 = vst.msk [vmem:[#allocation3 + $0x1f0] sm:$0xf] %vm5513, %v5446
      %5577 = vst.msk [vmem:[#allocation3 + $0x1f8] sm:$0xf] %vm5513, %v5448
      %v5578 = vld [vmem:[%s5192] sm:$0xf]
      %v5579 = vld [vmem:[%s5192 + $0x4] sm:$0xf]
      %v5580 = vld [vmem:[%s5192 + $0x8] sm:$0x1]
      %v5581 = vld [vmem:[%s5192 + $0xc] sm:$0xf]
      %v5582 = vld [vmem:[%s5192 + $0x10] sm:$0xf]
      %v5583 = vld [vmem:[%s5192 + $0x14] sm:$0x1]
      %v5584 = vld [vmem:[%s5192 + $0x18] sm:$0xf]
      %v5585 = vld [vmem:[%s5192 + $0x1c] sm:$0xf]
      %v5586 = vld [vmem:[%s5192 + $0x20] sm:$0x1]
      %v5587 = vld [vmem:[%s5192 + $0x24] sm:$0xf]
      %v5588 = vld [vmem:[%s5192 + $0x28] sm:$0xf]
      %v5589 = vld [vmem:[%s5192 + $0x2c] sm:$0x1]
      %v5590 = vld [vmem:[%s5192 + $0x30] sm:$0xf]
      %v5591 = vld [vmem:[%s5192 + $0x34] sm:$0xf]
      %v5592 = vld [vmem:[%s5192 + $0x38] sm:$0x1]
      %v5593 = vld [vmem:[%s5192 + $0x3c] sm:$0xf]
      %v5594 = vld [vmem:[%s5192 + $0x40] sm:$0xf]
      %v5595 = vld [vmem:[%s5192 + $0x44] sm:$0x1]
      %v5596 = vld [vmem:[%s5192 + $0x48] sm:$0xf]
      %v5597 = vld [vmem:[%s5192 + $0x4c] sm:$0xf]
      %v5598 = vld [vmem:[%s5192 + $0x50] sm:$0x1]
      %v5599 = vld [vmem:[%s5192 + $0x54] sm:$0xf]
      %v5600 = vld [vmem:[%s5192 + $0x58] sm:$0xf]
      %v5601 = vld [vmem:[%s5192 + $0x5c] sm:$0x1]
      %v5602 = vld [vmem:[%s5192 + $0x60] sm:$0xf]
      %v5603 = vld [vmem:[%s5192 + $0x64] sm:$0xf]
      %v5604 = vld [vmem:[%s5192 + $0x68] sm:$0x1]
      %v5605 = vld [vmem:[%s5192 + $0x6c] sm:$0xf]
      %v5606 = vld [vmem:[%s5192 + $0x70] sm:$0xf]
      %v5607 = vld [vmem:[%s5192 + $0x74] sm:$0x1]
      %v5608 = vld [vmem:[%s5192 + $0x78] sm:$0xf]
      %v5609 = vld [vmem:[%s5192 + $0x7c] sm:$0xf]
      %v5610 = vld [vmem:[%s5192 + $0x80] sm:$0x1]
      %v5611 = vld [vmem:[%s5192 + $0x84] sm:$0xf]
      %v5612 = vld [vmem:[%s5192 + $0x88] sm:$0xf]
      %v5613 = vld [vmem:[%s5192 + $0x8c] sm:$0x1]
      %v5614 = vld [vmem:[%s5192 + $0x90] sm:$0xf]
      %v5615 = vld [vmem:[%s5192 + $0x94] sm:$0xf]
      %v5616 = vld [vmem:[%s5192 + $0x98] sm:$0x1]
      %v5617 = vld [vmem:[%s5192 + $0x9c] sm:$0xf]
      %v5618 = vld [vmem:[%s5192 + $0xa0] sm:$0xf]
      %v5619 = vld [vmem:[%s5192 + $0xa4] sm:$0x1]
      %v5620 = vld [vmem:[%s5192 + $0xa8] sm:$0xf]
      %v5621 = vld [vmem:[%s5192 + $0xac] sm:$0xf]
      %v5622 = vld [vmem:[%s5192 + $0xb0] sm:$0x1]
      %v5623 = vld [vmem:[%s5192 + $0xb4] sm:$0xf]
      %v5624 = vld [vmem:[%s5192 + $0xb8] sm:$0xf]
      %v5625 = vld [vmem:[%s5192 + $0xbc] sm:$0x1]
      %v5626 = vld [vmem:[%s5192 + $0xd8] sm:$0xf]
      %v5627 = vld [vmem:[%s5192 + $0xdc] sm:$0xf]
      %v5628 = vld [vmem:[%s5192 + $0xe0] sm:$0x1]
      %v5629 = vld [vmem:[%s5192 + $0xe4] sm:$0xf]
      %v5630 = vld [vmem:[%s5192 + $0xe8] sm:$0xf]
      %v5631 = vld [vmem:[%s5192 + $0xec] sm:$0x1]
      %v5632 = vld [vmem:[%s5192 + $0xf0] sm:$0xf]
      %v5633 = vld [vmem:[%s5192 + $0xf4] sm:$0xf]
      %v5634 = vld [vmem:[%s5192 + $0xf8] sm:$0x1]
      %v5635 = vld [vmem:[%s5192 + $0xfc] sm:$0xf]
      %v5636 = vld [vmem:[%s5192 + $0x100] sm:$0xf]
      %v5637 = vld [vmem:[%s5192 + $0x104] sm:$0x1]
      %v5638 = vld [vmem:[%s5192 + $0x108] sm:$0xf]
      %v5639 = vld [vmem:[%s5192 + $0x10c] sm:$0xf]
      %v5640 = vld [vmem:[%s5192 + $0x110] sm:$0x1]
      %v5641 = vld [vmem:[%s5192 + $0x114] sm:$0xf]
      %v5642 = vld [vmem:[%s5192 + $0x118] sm:$0xf]
      %v5643 = vld [vmem:[%s5192 + $0x11c] sm:$0x1]
      %v5644 = vld [vmem:[%s5192 + $0x120] sm:$0xf]
      %v5645 = vld [vmem:[%s5192 + $0x124] sm:$0xf]
      %v5646 = vld [vmem:[%s5192 + $0x128] sm:$0x1]
      %v5647 = vld [vmem:[%s5192 + $0x12c] sm:$0xf]
      %v5648 = vld [vmem:[%s5192 + $0x130] sm:$0xf]
      %v5649 = vld [vmem:[%s5192 + $0x134] sm:$0x1]
      %v5650 = vld [vmem:[%s5192 + $0x138] sm:$0xf]
      %v5651 = vld [vmem:[%s5192 + $0x13c] sm:$0xf]
      %v5652 = vld [vmem:[%s5192 + $0x140] sm:$0x1]
      %v5653 = vld [vmem:[%s5192 + $0x144] sm:$0xf]
      %v5654 = vld [vmem:[%s5192 + $0x148] sm:$0xf]
      %v5655 = vld [vmem:[%s5192 + $0x14c] sm:$0x1]
      %v5656 = vld [vmem:[%s5192 + $0x150] sm:$0xf]
      %v5657 = vld [vmem:[%s5192 + $0x154] sm:$0xf]
      %v5658 = vld [vmem:[%s5192 + $0x158] sm:$0x1]
      %v5659 = vld [vmem:[%s5192 + $0x15c] sm:$0xf]
      %v5660 = vld [vmem:[%s5192 + $0x160] sm:$0xf]
      %v5661 = vld [vmem:[%s5192 + $0x164] sm:$0x1]
      %v5662 = vld [vmem:[%s5192 + $0x168] sm:$0xf]
      %v5663 = vld [vmem:[%s5192 + $0x16c] sm:$0xf]
      %v5664 = vld [vmem:[%s5192 + $0x170] sm:$0x1]
      %v5665 = vld [vmem:[%s5192 + $0x174] sm:$0xf]
      %v5666 = vld [vmem:[%s5192 + $0x178] sm:$0xf]
      %v5667 = vld [vmem:[%s5192 + $0x17c] sm:$0x1]
      %v5668 = vld [vmem:[%s5192 + $0x180] sm:$0xf]
      %v5669 = vld [vmem:[%s5192 + $0x184] sm:$0xf]
      %v5670 = vld [vmem:[%s5192 + $0x188] sm:$0x1]
      %v5671 = vld [vmem:[%s5192 + $0x18c] sm:$0xf]
      %v5672 = vld [vmem:[%s5192 + $0x190] sm:$0xf]
      %v5673 = vld [vmem:[%s5192 + $0x194] sm:$0x1]
      %v5675 = vshrl.u32 %v5578, 16
      %v5677 = vrot.slane %v5675, 4
      %v5678 = vshll.u32 %v5578, 16
      %v5680 = vrot.slane %v5678, 5
      %v5681 = vor.u32 %v5677, %v5680
      %v5682 = vrot.slane %v5681, 4
      %v5684 = vshll.u32 %v5579, 16
      %v5686 = vrot.slane %v5684, 5
      %v5687 = vsel %vm1311, %v5682, %v5686
      %v5688 = vshrl.u32 %v5579, 16
      %v5690 = vrot.slane %v5688, 4
      %v5691 = vor.u32 %v5690, %v5686
      %v5692 = vrot.slane %v5691, 4
      %v5694 = vshll.u32 %v5580, 16
      %v5696 = vrot.slane %v5694, 5
      %v5697 = vsel %vm1311, %v5692, %v5696
      %v5699 = vshrl.u32 %v5581, 16
      %v5701 = vrot.slane %v5699, 4
      %v5702 = vshll.u32 %v5581, 16
      %v5704 = vrot.slane %v5702, 5
      %v5705 = vor.u32 %v5701, %v5704
      %v5706 = vrot.slane %v5705, 4
      %v5708 = vshll.u32 %v5582, 16
      %v5710 = vrot.slane %v5708, 5
      %v5711 = vsel %vm1311, %v5706, %v5710
      %v5712 = vshrl.u32 %v5582, 16
      %v5714 = vrot.slane %v5712, 4
      %v5715 = vor.u32 %v5714, %v5710
      %v5716 = vrot.slane %v5715, 4
      %v5718 = vshll.u32 %v5583, 16
      %v5720 = vrot.slane %v5718, 5
      %v5721 = vsel %vm1311, %v5716, %v5720
      %v5723 = vshrl.u32 %v5584, 16
      %v5725 = vrot.slane %v5723, 4
      %v5726 = vshll.u32 %v5584, 16
      %v5728 = vrot.slane %v5726, 5
      %v5729 = vor.u32 %v5725, %v5728
      %v5730 = vrot.slane %v5729, 4
      %v5732 = vshll.u32 %v5585, 16
      %v5734 = vrot.slane %v5732, 5
      %v5735 = vsel %vm1311, %v5730, %v5734
      %v5736 = vshrl.u32 %v5585, 16
      %v5738 = vrot.slane %v5736, 4
      %v5739 = vor.u32 %v5738, %v5734
      %v5740 = vrot.slane %v5739, 4
      %v5742 = vshll.u32 %v5586, 16
      %v5744 = vrot.slane %v5742, 5
      %v5745 = vsel %vm1311, %v5740, %v5744
      %v5747 = vshrl.u32 %v5587, 16
      %v5749 = vrot.slane %v5747, 4
      %v5750 = vshll.u32 %v5587, 16
      %v5752 = vrot.slane %v5750, 5
      %v5753 = vor.u32 %v5749, %v5752
      %v5754 = vrot.slane %v5753, 4
      %v5756 = vshll.u32 %v5588, 16
      %v5758 = vrot.slane %v5756, 5
      %v5759 = vsel %vm1311, %v5754, %v5758
      %v5760 = vshrl.u32 %v5588, 16
      %v5762 = vrot.slane %v5760, 4
      %v5763 = vor.u32 %v5762, %v5758
      %v5764 = vrot.slane %v5763, 4
      %v5766 = vshll.u32 %v5589, 16
      %v5768 = vrot.slane %v5766, 5
      %v5769 = vsel %vm1311, %v5764, %v5768
      %v5771 = vshrl.u32 %v5590, 16
      %v5773 = vrot.slane %v5771, 4
      %v5774 = vshll.u32 %v5590, 16
      %v5776 = vrot.slane %v5774, 5
      %v5777 = vor.u32 %v5773, %v5776
      %v5778 = vrot.slane %v5777, 4
      %v5780 = vshll.u32 %v5591, 16
      %v5782 = vrot.slane %v5780, 5
      %v5783 = vsel %vm1311, %v5778, %v5782
      %v5784 = vshrl.u32 %v5591, 16
      %v5786 = vrot.slane %v5784, 4
      %v5787 = vor.u32 %v5786, %v5782
      %v5788 = vrot.slane %v5787, 4
      %v5790 = vshll.u32 %v5592, 16
      %v5792 = vrot.slane %v5790, 5
      %v5793 = vsel %vm1311, %v5788, %v5792
      %v5795 = vshrl.u32 %v5593, 16
      %v5797 = vrot.slane %v5795, 4
      %v5798 = vshll.u32 %v5593, 16
      %v5800 = vrot.slane %v5798, 5
      %v5801 = vor.u32 %v5797, %v5800
      %v5802 = vrot.slane %v5801, 4
      %v5804 = vshll.u32 %v5594, 16
      %v5806 = vrot.slane %v5804, 5
      %v5807 = vsel %vm1311, %v5802, %v5806
      %v5808 = vshrl.u32 %v5594, 16
      %v5810 = vrot.slane %v5808, 4
      %v5811 = vor.u32 %v5810, %v5806
      %v5812 = vrot.slane %v5811, 4
      %v5814 = vshll.u32 %v5595, 16
      %v5816 = vrot.slane %v5814, 5
      %v5817 = vsel %vm1311, %v5812, %v5816
      %v5819 = vshrl.u32 %v5596, 16
      %v5821 = vrot.slane %v5819, 4
      %v5822 = vshll.u32 %v5596, 16
      %v5824 = vrot.slane %v5822, 5
      %v5825 = vor.u32 %v5821, %v5824
      %v5826 = vrot.slane %v5825, 4
      %v5828 = vshll.u32 %v5597, 16
      %v5830 = vrot.slane %v5828, 5
      %v5831 = vsel %vm1311, %v5826, %v5830
      %v5832 = vshrl.u32 %v5597, 16
      %v5834 = vrot.slane %v5832, 4
      %v5835 = vor.u32 %v5834, %v5830
      %v5836 = vrot.slane %v5835, 4
      %v5838 = vshll.u32 %v5598, 16
      %v5840 = vrot.slane %v5838, 5
      %v5841 = vsel %vm1311, %v5836, %v5840
      %v5843 = vshrl.u32 %v5599, 16
      %v5845 = vrot.slane %v5843, 4
      %v5846 = vshll.u32 %v5599, 16
      %v5848 = vrot.slane %v5846, 5
      %v5849 = vor.u32 %v5845, %v5848
      %v5850 = vrot.slane %v5849, 4
      %v5852 = vshll.u32 %v5600, 16
      %v5854 = vrot.slane %v5852, 5
      %v5855 = vsel %vm1311, %v5850, %v5854
      %v5856 = vshrl.u32 %v5600, 16
      %v5858 = vrot.slane %v5856, 4
      %v5859 = vor.u32 %v5858, %v5854
      %v5860 = vrot.slane %v5859, 4
      %v5862 = vshll.u32 %v5601, 16
      %v5864 = vrot.slane %v5862, 5
      %v5865 = vsel %vm1311, %v5860, %v5864
      %v5867 = vshrl.u32 %v5602, 16
      %v5869 = vrot.slane %v5867, 4
      %v5870 = vshll.u32 %v5602, 16
      %v5872 = vrot.slane %v5870, 5
      %v5873 = vor.u32 %v5869, %v5872
      %v5874 = vrot.slane %v5873, 4
      %v5876 = vshll.u32 %v5603, 16
      %v5878 = vrot.slane %v5876, 5
      %v5879 = vsel %vm1311, %v5874, %v5878
      %v5880 = vshrl.u32 %v5603, 16
      %v5882 = vrot.slane %v5880, 4
      %v5883 = vor.u32 %v5882, %v5878
      %v5884 = vrot.slane %v5883, 4
      %v5886 = vshll.u32 %v5604, 16
      %v5888 = vrot.slane %v5886, 5
      %v5889 = vsel %vm1311, %v5884, %v5888
      %v5891 = vshrl.u32 %v5605, 16
      %v5893 = vrot.slane %v5891, 4
      %v5894 = vshll.u32 %v5605, 16
      %v5896 = vrot.slane %v5894, 5
      %v5897 = vor.u32 %v5893, %v5896
      %v5898 = vrot.slane %v5897, 4
      %v5900 = vshll.u32 %v5606, 16
      %v5902 = vrot.slane %v5900, 5
      %v5903 = vsel %vm1311, %v5898, %v5902
      %v5904 = vshrl.u32 %v5606, 16
      %v5906 = vrot.slane %v5904, 4
      %v5907 = vor.u32 %v5906, %v5902
      %v5908 = vrot.slane %v5907, 4
      %v5910 = vshll.u32 %v5607, 16
      %v5912 = vrot.slane %v5910, 5
      %v5913 = vsel %vm1311, %v5908, %v5912
      %v5915 = vshrl.u32 %v5608, 16
      %v5917 = vrot.slane %v5915, 4
      %v5918 = vshll.u32 %v5608, 16
      %v5920 = vrot.slane %v5918, 5
      %v5921 = vor.u32 %v5917, %v5920
      %v5922 = vrot.slane %v5921, 4
      %v5924 = vshll.u32 %v5609, 16
      %v5926 = vrot.slane %v5924, 5
      %v5927 = vsel %vm1311, %v5922, %v5926
      %v5928 = vshrl.u32 %v5609, 16
      %v5930 = vrot.slane %v5928, 4
      %v5931 = vor.u32 %v5930, %v5926
      %v5932 = vrot.slane %v5931, 4
      %v5934 = vshll.u32 %v5610, 16
      %v5936 = vrot.slane %v5934, 5
      %v5937 = vsel %vm1311, %v5932, %v5936
      %v5939 = vshrl.u32 %v5611, 16
      %v5941 = vrot.slane %v5939, 4
      %v5942 = vshll.u32 %v5611, 16
      %v5944 = vrot.slane %v5942, 5
      %v5945 = vor.u32 %v5941, %v5944
      %v5946 = vrot.slane %v5945, 4
      %v5948 = vshll.u32 %v5612, 16
      %v5950 = vrot.slane %v5948, 5
      %v5951 = vsel %vm1311, %v5946, %v5950
      %v5952 = vshrl.u32 %v5612, 16
      %v5954 = vrot.slane %v5952, 4
      %v5955 = vor.u32 %v5954, %v5950
      %v5956 = vrot.slane %v5955, 4
      %v5958 = vshll.u32 %v5613, 16
      %v5960 = vrot.slane %v5958, 5
      %v5961 = vsel %vm1311, %v5956, %v5960
      %v5963 = vshrl.u32 %v5614, 16
      %v5965 = vrot.slane %v5963, 4
      %v5966 = vshll.u32 %v5614, 16
      %v5968 = vrot.slane %v5966, 5
      %v5969 = vor.u32 %v5965, %v5968
      %v5970 = vrot.slane %v5969, 4
      %v5972 = vshll.u32 %v5615, 16
      %v5974 = vrot.slane %v5972, 5
      %v5975 = vsel %vm1311, %v5970, %v5974
      %v5976 = vshrl.u32 %v5615, 16
      %v5978 = vrot.slane %v5976, 4
      %v5979 = vor.u32 %v5978, %v5974
      %v5980 = vrot.slane %v5979, 4
      %v5982 = vshll.u32 %v5616, 16
      %v5984 = vrot.slane %v5982, 5
      %v5985 = vsel %vm1311, %v5980, %v5984
      %v5987 = vshrl.u32 %v5617, 16
      %v5989 = vrot.slane %v5987, 4
      %v5990 = vshll.u32 %v5617, 16
      %v5992 = vrot.slane %v5990, 5
      %v5993 = vor.u32 %v5989, %v5992
      %v5994 = vrot.slane %v5993, 4
      %v5996 = vshll.u32 %v5618, 16
      %v5998 = vrot.slane %v5996, 5
      %v5999 = vsel %vm1311, %v5994, %v5998
      %v6000 = vshrl.u32 %v5618, 16
      %v6002 = vrot.slane %v6000, 4
      %v6003 = vor.u32 %v6002, %v5998
      %v6004 = vrot.slane %v6003, 4
      %v6006 = vshll.u32 %v5619, 16
      %v6008 = vrot.slane %v6006, 5
      %v6009 = vsel %vm1311, %v6004, %v6008
      %v6011 = vshrl.u32 %v5620, 16
      %v6013 = vrot.slane %v6011, 4
      %v6014 = vshll.u32 %v5620, 16
      %v6016 = vrot.slane %v6014, 5
      %v6017 = vor.u32 %v6013, %v6016
      %v6018 = vrot.slane %v6017, 4
      %v6020 = vshll.u32 %v5621, 16
      %v6022 = vrot.slane %v6020, 5
      %v6023 = vsel %vm1311, %v6018, %v6022
      %v6024 = vshrl.u32 %v5621, 16
      %v6026 = vrot.slane %v6024, 4
      %v6027 = vor.u32 %v6026, %v6022
      %v6028 = vrot.slane %v6027, 4
      %v6030 = vshll.u32 %v5622, 16
      %v6032 = vrot.slane %v6030, 5
      %v6033 = vsel %vm1311, %v6028, %v6032
      %v6035 = vshrl.u32 %v5623, 16
      %v6037 = vrot.slane %v6035, 4
      %v6038 = vshll.u32 %v5623, 16
      %v6040 = vrot.slane %v6038, 5
      %v6041 = vor.u32 %v6037, %v6040
      %v6042 = vrot.slane %v6041, 4
      %v6044 = vshll.u32 %v5624, 16
      %v6046 = vrot.slane %v6044, 5
      %v6047 = vsel %vm1311, %v6042, %v6046
      %v6048 = vshrl.u32 %v5624, 16
      %v6050 = vrot.slane %v6048, 4
      %v6051 = vor.u32 %v6050, %v6046
      %v6052 = vrot.slane %v6051, 4
      %v6054 = vshll.u32 %v5625, 16
      %v6056 = vrot.slane %v6054, 5
      %v6057 = vsel %vm1311, %v6052, %v6056
      %v6059 = vshrl.u32 %v5626, 16
      %v6061 = vrot.slane %v6059, 4
      %v6062 = vshll.u32 %v5626, 16
      %v6064 = vrot.slane %v6062, 5
      %v6065 = vor.u32 %v6061, %v6064
      %v6066 = vrot.slane %v6065, 4
      %v6068 = vshll.u32 %v5627, 16
      %v6070 = vrot.slane %v6068, 5
      %v6071 = vsel %vm1311, %v6066, %v6070
      %v6072 = vshrl.u32 %v5627, 16
      %v6074 = vrot.slane %v6072, 4
      %v6075 = vor.u32 %v6074, %v6070
      %v6076 = vrot.slane %v6075, 4
      %v6078 = vshll.u32 %v5628, 16
      %v6080 = vrot.slane %v6078, 5
      %v6081 = vsel %vm1311, %v6076, %v6080
      %v6083 = vshrl.u32 %v5629, 16
      %v6085 = vrot.slane %v6083, 4
      %v6086 = vshll.u32 %v5629, 16
      %v6088 = vrot.slane %v6086, 5
      %v6089 = vor.u32 %v6085, %v6088
      %v6090 = vrot.slane %v6089, 4
      %v6092 = vshll.u32 %v5630, 16
      %v6094 = vrot.slane %v6092, 5
      %v6095 = vsel %vm1311, %v6090, %v6094
      %v6096 = vshrl.u32 %v5630, 16
      %v6098 = vrot.slane %v6096, 4
      %v6099 = vor.u32 %v6098, %v6094
      %v6100 = vrot.slane %v6099, 4
      %v6102 = vshll.u32 %v5631, 16
      %v6104 = vrot.slane %v6102, 5
      %v6105 = vsel %vm1311, %v6100, %v6104
      %v6107 = vshrl.u32 %v5632, 16
      %v6109 = vrot.slane %v6107, 4
      %v6110 = vshll.u32 %v5632, 16
      %v6112 = vrot.slane %v6110, 5
      %v6113 = vor.u32 %v6109, %v6112
      %v6114 = vrot.slane %v6113, 4
      %v6116 = vshll.u32 %v5633, 16
      %v6118 = vrot.slane %v6116, 5
      %v6119 = vsel %vm1311, %v6114, %v6118
      %v6120 = vshrl.u32 %v5633, 16
      %v6122 = vrot.slane %v6120, 4
      %v6123 = vor.u32 %v6122, %v6118
      %v6124 = vrot.slane %v6123, 4
      %v6126 = vshll.u32 %v5634, 16
      %v6128 = vrot.slane %v6126, 5
      %v6129 = vsel %vm1311, %v6124, %v6128
      %v6131 = vshrl.u32 %v5635, 16
      %v6133 = vrot.slane %v6131, 4
      %v6134 = vshll.u32 %v5635, 16
      %v6136 = vrot.slane %v6134, 5
      %v6137 = vor.u32 %v6133, %v6136
      %v6138 = vrot.slane %v6137, 4
      %v6140 = vshll.u32 %v5636, 16
      %v6142 = vrot.slane %v6140, 5
      %v6143 = vsel %vm1311, %v6138, %v6142
      %v6144 = vshrl.u32 %v5636, 16
      %v6146 = vrot.slane %v6144, 4
      %v6147 = vor.u32 %v6146, %v6142
      %v6148 = vrot.slane %v6147, 4
      %v6150 = vshll.u32 %v5637, 16
      %v6152 = vrot.slane %v6150, 5
      %v6153 = vsel %vm1311, %v6148, %v6152
      %v6155 = vshrl.u32 %v5638, 16
      %v6157 = vrot.slane %v6155, 4
      %v6158 = vshll.u32 %v5638, 16
      %v6160 = vrot.slane %v6158, 5
      %v6161 = vor.u32 %v6157, %v6160
      %v6162 = vrot.slane %v6161, 4
      %v6164 = vshll.u32 %v5639, 16
      %v6166 = vrot.slane %v6164, 5
      %v6167 = vsel %vm1311, %v6162, %v6166
      %v6168 = vshrl.u32 %v5639, 16
      %v6170 = vrot.slane %v6168, 4
      %v6171 = vor.u32 %v6170, %v6166
      %v6172 = vrot.slane %v6171, 4
      %v6174 = vshll.u32 %v5640, 16
      %v6176 = vrot.slane %v6174, 5
      %v6177 = vsel %vm1311, %v6172, %v6176
      %v6179 = vshrl.u32 %v5641, 16
      %v6181 = vrot.slane %v6179, 4
      %v6182 = vshll.u32 %v5641, 16
      %v6184 = vrot.slane %v6182, 5
      %v6185 = vor.u32 %v6181, %v6184
      %v6186 = vrot.slane %v6185, 4
      %v6188 = vshll.u32 %v5642, 16
      %v6190 = vrot.slane %v6188, 5
      %v6191 = vsel %vm1311, %v6186, %v6190
      %v6192 = vshrl.u32 %v5642, 16
      %v6194 = vrot.slane %v6192, 4
      %v6195 = vor.u32 %v6194, %v6190
      %v6196 = vrot.slane %v6195, 4
      %v6198 = vshll.u32 %v5643, 16
      %v6200 = vrot.slane %v6198, 5
      %v6201 = vsel %vm1311, %v6196, %v6200
      %v6203 = vshrl.u32 %v5644, 16
      %v6205 = vrot.slane %v6203, 4
      %v6206 = vshll.u32 %v5644, 16
      %v6208 = vrot.slane %v6206, 5
      %v6209 = vor.u32 %v6205, %v6208
      %v6210 = vrot.slane %v6209, 4
      %v6212 = vshll.u32 %v5645, 16
      %v6214 = vrot.slane %v6212, 5
      %v6215 = vsel %vm1311, %v6210, %v6214
      %v6216 = vshrl.u32 %v5645, 16
      %v6218 = vrot.slane %v6216, 4
      %v6219 = vor.u32 %v6218, %v6214
      %v6220 = vrot.slane %v6219, 4
      %v6222 = vshll.u32 %v5646, 16
      %v6224 = vrot.slane %v6222, 5
      %v6225 = vsel %vm1311, %v6220, %v6224
      %v6227 = vshrl.u32 %v5647, 16
      %v6229 = vrot.slane %v6227, 4
      %v6230 = vshll.u32 %v5647, 16
      %v6232 = vrot.slane %v6230, 5
      %v6233 = vor.u32 %v6229, %v6232
      %v6234 = vrot.slane %v6233, 4
      %v6236 = vshll.u32 %v5648, 16
      %v6238 = vrot.slane %v6236, 5
      %v6239 = vsel %vm1311, %v6234, %v6238
      %v6240 = vshrl.u32 %v5648, 16
      %v6242 = vrot.slane %v6240, 4
      %v6243 = vor.u32 %v6242, %v6238
      %v6244 = vrot.slane %v6243, 4
      %v6246 = vshll.u32 %v5649, 16
      %v6248 = vrot.slane %v6246, 5
      %v6249 = vsel %vm1311, %v6244, %v6248
      %v6251 = vshrl.u32 %v5650, 16
      %v6253 = vrot.slane %v6251, 4
      %v6254 = vshll.u32 %v5650, 16
      %v6256 = vrot.slane %v6254, 5
      %v6257 = vor.u32 %v6253, %v6256
      %v6258 = vrot.slane %v6257, 4
      %v6260 = vshll.u32 %v5651, 16
      %v6262 = vrot.slane %v6260, 5
      %v6263 = vsel %vm1311, %v6258, %v6262
      %v6264 = vshrl.u32 %v5651, 16
      %v6266 = vrot.slane %v6264, 4
      %v6267 = vor.u32 %v6266, %v6262
      %v6268 = vrot.slane %v6267, 4
      %v6270 = vshll.u32 %v5652, 16
      %v6272 = vrot.slane %v6270, 5
      %v6273 = vsel %vm1311, %v6268, %v6272
      %v6275 = vshrl.u32 %v5653, 16
      %v6277 = vrot.slane %v6275, 4
      %v6278 = vshll.u32 %v5653, 16
      %v6280 = vrot.slane %v6278, 5
      %v6281 = vor.u32 %v6277, %v6280
      %v6282 = vrot.slane %v6281, 4
      %v6284 = vshll.u32 %v5654, 16
      %v6286 = vrot.slane %v6284, 5
      %v6287 = vsel %vm1311, %v6282, %v6286
      %v6288 = vshrl.u32 %v5654, 16
      %v6290 = vrot.slane %v6288, 4
      %v6291 = vor.u32 %v6290, %v6286
      %v6292 = vrot.slane %v6291, 4
      %v6294 = vshll.u32 %v5655, 16
      %v6296 = vrot.slane %v6294, 5
      %v6297 = vsel %vm1311, %v6292, %v6296
      %v6299 = vshrl.u32 %v5656, 16
      %v6301 = vrot.slane %v6299, 4
      %v6302 = vshll.u32 %v5656, 16
      %v6304 = vrot.slane %v6302, 5
      %v6305 = vor.u32 %v6301, %v6304
      %v6306 = vrot.slane %v6305, 4
      %v6308 = vshll.u32 %v5657, 16
      %v6310 = vrot.slane %v6308, 5
      %v6311 = vsel %vm1311, %v6306, %v6310
      %v6312 = vshrl.u32 %v5657, 16
      %v6314 = vrot.slane %v6312, 4
      %v6315 = vor.u32 %v6314, %v6310
      %v6316 = vrot.slane %v6315, 4
      %v6318 = vshll.u32 %v5658, 16
      %v6320 = vrot.slane %v6318, 5
      %v6321 = vsel %vm1311, %v6316, %v6320
      %v6323 = vshrl.u32 %v5659, 16
      %v6325 = vrot.slane %v6323, 4
      %v6326 = vshll.u32 %v5659, 16
      %v6328 = vrot.slane %v6326, 5
      %v6329 = vor.u32 %v6325, %v6328
      %v6330 = vrot.slane %v6329, 4
      %v6332 = vshll.u32 %v5660, 16
      %v6334 = vrot.slane %v6332, 5
      %v6335 = vsel %vm1311, %v6330, %v6334
      %v6336 = vshrl.u32 %v5660, 16
      %v6338 = vrot.slane %v6336, 4
      %v6339 = vor.u32 %v6338, %v6334
      %v6340 = vrot.slane %v6339, 4
      %v6342 = vshll.u32 %v5661, 16
      %v6344 = vrot.slane %v6342, 5
      %v6345 = vsel %vm1311, %v6340, %v6344
      %v6347 = vshrl.u32 %v5662, 16
      %v6349 = vrot.slane %v6347, 4
      %v6350 = vshll.u32 %v5662, 16
      %v6352 = vrot.slane %v6350, 5
      %v6353 = vor.u32 %v6349, %v6352
      %v6354 = vrot.slane %v6353, 4
      %v6356 = vshll.u32 %v5663, 16
      %v6358 = vrot.slane %v6356, 5
      %v6359 = vsel %vm1311, %v6354, %v6358
      %v6360 = vshrl.u32 %v5663, 16
      %v6362 = vrot.slane %v6360, 4
      %v6363 = vor.u32 %v6362, %v6358
      %v6364 = vrot.slane %v6363, 4
      %v6366 = vshll.u32 %v5664, 16
      %v6368 = vrot.slane %v6366, 5
      %v6369 = vsel %vm1311, %v6364, %v6368
      %v6371 = vshrl.u32 %v5665, 16
      %v6373 = vrot.slane %v6371, 4
      %v6374 = vshll.u32 %v5665, 16
      %v6376 = vrot.slane %v6374, 5
      %v6377 = vor.u32 %v6373, %v6376
      %v6378 = vrot.slane %v6377, 4
      %v6380 = vshll.u32 %v5666, 16
      %v6382 = vrot.slane %v6380, 5
      %v6383 = vsel %vm1311, %v6378, %v6382
      %v6384 = vshrl.u32 %v5666, 16
      %v6386 = vrot.slane %v6384, 4
      %v6387 = vor.u32 %v6386, %v6382
      %v6388 = vrot.slane %v6387, 4
      %v6390 = vshll.u32 %v5667, 16
      %v6392 = vrot.slane %v6390, 5
      %v6393 = vsel %vm1311, %v6388, %v6392
      %v6395 = vshrl.u32 %v5668, 16
      %v6397 = vrot.slane %v6395, 4
      %v6398 = vshll.u32 %v5668, 16
      %v6400 = vrot.slane %v6398, 5
      %v6401 = vor.u32 %v6397, %v6400
      %v6402 = vrot.slane %v6401, 4
      %v6404 = vshll.u32 %v5669, 16
      %v6406 = vrot.slane %v6404, 5
      %v6407 = vsel %vm1311, %v6402, %v6406
      %v6408 = vshrl.u32 %v5669, 16
      %v6410 = vrot.slane %v6408, 4
      %v6411 = vor.u32 %v6410, %v6406
      %v6412 = vrot.slane %v6411, 4
      %v6414 = vshll.u32 %v5670, 16
      %v6416 = vrot.slane %v6414, 5
      %v6417 = vsel %vm1311, %v6412, %v6416
      %v6419 = vshrl.u32 %v5671, 16
      %v6421 = vrot.slane %v6419, 4
      %v6422 = vshll.u32 %v5671, 16
      %v6424 = vrot.slane %v6422, 5
      %v6425 = vor.u32 %v6421, %v6424
      %v6426 = vrot.slane %v6425, 4
      %v6428 = vshll.u32 %v5672, 16
      %v6430 = vrot.slane %v6428, 5
      %v6431 = vsel %vm1311, %v6426, %v6430
      %v6432 = vshrl.u32 %v5672, 16
      %v6434 = vrot.slane %v6432, 4
      %v6435 = vor.u32 %v6434, %v6430
      %v6436 = vrot.slane %v6435, 4
      %v6438 = vshll.u32 %v5673, 16
      %v6440 = vrot.slane %v6438, 5
      %v6441 = vsel %vm1311, %v6436, %v6440
      %6442 = vrot.lane.b32.xlu0 %v5687, 112
      %v6443 = vpop.permute.xlu0 %6442
      %6444 = vrot.lane.b32.xlu0 %v5697, 112
      %v6445 = vpop.permute.xlu0 %6444
      %6446 = vrot.lane.b32.xlu0 %v5711, 112
      %v6447 = vpop.permute.xlu0 %6446
      %6448 = vrot.lane.b32.xlu0 %v5721, 112
      %v6449 = vpop.permute.xlu0 %6448
      %6450 = vrot.lane.b32.xlu0 %v5735, 112
      %v6451 = vpop.permute.xlu0 %6450
      %6452 = vrot.lane.b32.xlu0 %v5745, 112
      %v6453 = vpop.permute.xlu0 %6452
      %6454 = vrot.lane.b32.xlu0 %v5759, 112
      %v6455 = vpop.permute.xlu0 %6454
      %6456 = vrot.lane.b32.xlu0 %v5769, 112
      %v6457 = vpop.permute.xlu0 %6456
      %6458 = vrot.lane.b32.xlu0 %v5783, 112
      %v6459 = vpop.permute.xlu0 %6458
      %6460 = vrot.lane.b32.xlu0 %v5793, 112
      %v6461 = vpop.permute.xlu0 %6460
      %6462 = vrot.lane.b32.xlu0 %v5807, 112
      %v6463 = vpop.permute.xlu0 %6462
      %6464 = vrot.lane.b32.xlu0 %v5817, 112
      %v6465 = vpop.permute.xlu0 %6464
      %6466 = vrot.lane.b32.xlu0 %v5831, 112
      %v6467 = vpop.permute.xlu0 %6466
      %6468 = vrot.lane.b32.xlu0 %v5841, 112
      %v6469 = vpop.permute.xlu0 %6468
      %6470 = vrot.lane.b32.xlu0 %v5855, 112
      %v6471 = vpop.permute.xlu0 %6470
      %6472 = vrot.lane.b32.xlu0 %v5865, 112
      %v6473 = vpop.permute.xlu0 %6472
      %6474 = vrot.lane.b32.xlu0 %v5879, 112
      %v6475 = vpop.permute.xlu0 %6474
      %6476 = vrot.lane.b32.xlu0 %v5889, 112
      %v6477 = vpop.permute.xlu0 %6476
      %6478 = vrot.lane.b32.xlu0 %v5903, 112
      %v6479 = vpop.permute.xlu0 %6478
      %6480 = vrot.lane.b32.xlu0 %v5913, 112
      %v6481 = vpop.permute.xlu0 %6480
      %6482 = vrot.lane.b32.xlu0 %v5927, 112
      %v6483 = vpop.permute.xlu0 %6482
      %6484 = vrot.lane.b32.xlu0 %v5937, 112
      %v6485 = vpop.permute.xlu0 %6484
      %6486 = vrot.lane.b32.xlu0 %v5951, 112
      %v6487 = vpop.permute.xlu0 %6486
      %6488 = vrot.lane.b32.xlu0 %v5961, 112
      %v6489 = vpop.permute.xlu0 %6488
      %6490 = vrot.lane.b32.xlu0 %v5975, 112
      %v6491 = vpop.permute.xlu0 %6490
      %6492 = vrot.lane.b32.xlu0 %v5985, 112
      %v6493 = vpop.permute.xlu0 %6492
      %6494 = vrot.lane.b32.xlu0 %v5999, 112
      %v6495 = vpop.permute.xlu0 %6494
      %6496 = vrot.lane.b32.xlu0 %v6009, 112
      %v6497 = vpop.permute.xlu0 %6496
      %6498 = vrot.lane.b32.xlu0 %v6023, 112
      %v6499 = vpop.permute.xlu0 %6498
      %6500 = vrot.lane.b32.xlu0 %v6033, 112
      %v6501 = vpop.permute.xlu0 %6500
      %6502 = vrot.lane.b32.xlu0 %v6047, 112
      %v6503 = vpop.permute.xlu0 %6502
      %6504 = vrot.lane.b32.xlu0 %v6057, 112
      %v6505 = vpop.permute.xlu0 %6504
      %6506 = vrot.lane.b32.xlu0 %v6071, 112
      %v6507 = vpop.permute.xlu0 %6506
      %6508 = vrot.lane.b32.xlu0 %v6081, 112
      %v6509 = vpop.permute.xlu0 %6508
      %6510 = vrot.lane.b32.xlu0 %v6095, 112
      %v6511 = vpop.permute.xlu0 %6510
      %6512 = vrot.lane.b32.xlu0 %v6105, 112
      %v6513 = vpop.permute.xlu0 %6512
      %6514 = vrot.lane.b32.xlu0 %v6119, 112
      %v6515 = vpop.permute.xlu0 %6514
      %6516 = vrot.lane.b32.xlu0 %v6129, 112
      %v6517 = vpop.permute.xlu0 %6516
      %6518 = vrot.lane.b32.xlu0 %v6143, 112
      %v6519 = vpop.permute.xlu0 %6518
      %6520 = vrot.lane.b32.xlu0 %v6153, 112
      %v6521 = vpop.permute.xlu0 %6520
      %6522 = vrot.lane.b32.xlu0 %v6167, 112
      %v6523 = vpop.permute.xlu0 %6522
      %6524 = vrot.lane.b32.xlu0 %v6177, 112
      %v6525 = vpop.permute.xlu0 %6524
      %6526 = vrot.lane.b32.xlu0 %v6191, 112
      %v6527 = vpop.permute.xlu0 %6526
      %6528 = vrot.lane.b32.xlu0 %v6201, 112
      %v6529 = vpop.permute.xlu0 %6528
      %6530 = vrot.lane.b32.xlu0 %v6215, 112
      %v6531 = vpop.permute.xlu0 %6530
      %6532 = vrot.lane.b32.xlu0 %v6225, 112
      %v6533 = vpop.permute.xlu0 %6532
      %6534 = vrot.lane.b32.xlu0 %v6239, 112
      %v6535 = vpop.permute.xlu0 %6534
      %6536 = vrot.lane.b32.xlu0 %v6249, 112
      %v6537 = vpop.permute.xlu0 %6536
      %6538 = vrot.lane.b32.xlu0 %v6263, 112
      %v6539 = vpop.permute.xlu0 %6538
      %6540 = vrot.lane.b32.xlu0 %v6273, 112
      %v6541 = vpop.permute.xlu0 %6540
      %6542 = vrot.lane.b32.xlu0 %v6287, 112
      %v6543 = vpop.permute.xlu0 %6542
      %6544 = vrot.lane.b32.xlu0 %v6297, 112
      %v6545 = vpop.permute.xlu0 %6544
      %6546 = vrot.lane.b32.xlu0 %v6311, 112
      %v6547 = vpop.permute.xlu0 %6546
      %6548 = vrot.lane.b32.xlu0 %v6321, 112
      %v6549 = vpop.permute.xlu0 %6548
      %6550 = vrot.lane.b32.xlu0 %v6335, 112
      %v6551 = vpop.permute.xlu0 %6550
      %6552 = vrot.lane.b32.xlu0 %v6345, 112
      %v6553 = vpop.permute.xlu0 %6552
      %6554 = vrot.lane.b32.xlu0 %v6359, 112
      %v6555 = vpop.permute.xlu0 %6554
      %6556 = vrot.lane.b32.xlu0 %v6369, 112
      %v6557 = vpop.permute.xlu0 %6556
      %6558 = vrot.lane.b32.xlu0 %v6383, 112
      %v6559 = vpop.permute.xlu0 %6558
      %6560 = vrot.lane.b32.xlu0 %v6393, 112
      %v6561 = vpop.permute.xlu0 %6560
      %6562 = vrot.lane.b32.xlu0 %v6407, 112
      %v6563 = vpop.permute.xlu0 %6562
      %6564 = vrot.lane.b32.xlu0 %v6417, 112
      %v6565 = vpop.permute.xlu0 %6564
      %6566 = vrot.lane.b32.xlu0 %v6431, 112
      %v6567 = vpop.permute.xlu0 %6566
      %6568 = vrot.lane.b32.xlu0 %v6441, 112
      %v6569 = vpop.permute.xlu0 %6568
      %vm6634 = vcmask 1044352
      %6635 = vst.msk [vmem:[#allocation3] sm:$0xf] %vm6634, %v6443
      %6636 = vst.msk [vmem:[#allocation3 + $0x8] sm:$0xf] %vm6634, %v6445
      %6637 = vst.msk [vmem:[#allocation3 + $0x10] sm:$0xf] %vm6634, %v6447
      %6638 = vst.msk [vmem:[#allocation3 + $0x18] sm:$0xf] %vm6634, %v6449
      %6639 = vst.msk [vmem:[#allocation3 + $0x20] sm:$0xf] %vm6634, %v6451
      %6640 = vst.msk [vmem:[#allocation3 + $0x28] sm:$0xf] %vm6634, %v6453
      %6641 = vst.msk [vmem:[#allocation3 + $0x30] sm:$0xf] %vm6634, %v6455
      %6642 = vst.msk [vmem:[#allocation3 + $0x38] sm:$0xf] %vm6634, %v6457
      %6643 = vst.msk [vmem:[#allocation3 + $0x40] sm:$0xf] %vm6634, %v6459
      %6644 = vst.msk [vmem:[#allocation3 + $0x48] sm:$0xf] %vm6634, %v6461
      %6645 = vst.msk [vmem:[#allocation3 + $0x50] sm:$0xf] %vm6634, %v6463
      %6646 = vst.msk [vmem:[#allocation3 + $0x58] sm:$0xf] %vm6634, %v6465
      %6647 = vst.msk [vmem:[#allocation3 + $0x60] sm:$0xf] %vm6634, %v6467
      %6648 = vst.msk [vmem:[#allocation3 + $0x68] sm:$0xf] %vm6634, %v6469
      %6649 = vst.msk [vmem:[#allocation3 + $0x70] sm:$0xf] %vm6634, %v6471
      %6650 = vst.msk [vmem:[#allocation3 + $0x78] sm:$0xf] %vm6634, %v6473
      %6651 = vst.msk [vmem:[#allocation3 + $0x80] sm:$0xf] %vm6634, %v6475
      %6652 = vst.msk [vmem:[#allocation3 + $0x88] sm:$0xf] %vm6634, %v6477
      %6653 = vst.msk [vmem:[#allocation3 + $0x90] sm:$0xf] %vm6634, %v6479
      %6654 = vst.msk [vmem:[#allocation3 + $0x98] sm:$0xf] %vm6634, %v6481
      %6655 = vst.msk [vmem:[#allocation3 + $0xa0] sm:$0xf] %vm6634, %v6483
      %6656 = vst.msk [vmem:[#allocation3 + $0xa8] sm:$0xf] %vm6634, %v6485
      %6657 = vst.msk [vmem:[#allocation3 + $0xb0] sm:$0xf] %vm6634, %v6487
      %6658 = vst.msk [vmem:[#allocation3 + $0xb8] sm:$0xf] %vm6634, %v6489
      %6659 = vst.msk [vmem:[#allocation3 + $0xc0] sm:$0xf] %vm6634, %v6491
      %6660 = vst.msk [vmem:[#allocation3 + $0xc8] sm:$0xf] %vm6634, %v6493
      %6661 = vst.msk [vmem:[#allocation3 + $0xd0] sm:$0xf] %vm6634, %v6495
      %6662 = vst.msk [vmem:[#allocation3 + $0xd8] sm:$0xf] %vm6634, %v6497
      %6663 = vst.msk [vmem:[#allocation3 + $0xe0] sm:$0xf] %vm6634, %v6499
      %6664 = vst.msk [vmem:[#allocation3 + $0xe8] sm:$0xf] %vm6634, %v6501
      %6665 = vst.msk [vmem:[#allocation3 + $0xf0] sm:$0xf] %vm6634, %v6503
      %6666 = vst.msk [vmem:[#allocation3 + $0xf8] sm:$0xf] %vm6634, %v6505
      %6667 = vst.msk [vmem:[#allocation3 + $0x100] sm:$0xf] %vm6634, %v6507
      %6668 = vst.msk [vmem:[#allocation3 + $0x108] sm:$0xf] %vm6634, %v6509
      %6669 = vst.msk [vmem:[#allocation3 + $0x110] sm:$0xf] %vm6634, %v6511
      %6670 = vst.msk [vmem:[#allocation3 + $0x118] sm:$0xf] %vm6634, %v6513
      %6671 = vst.msk [vmem:[#allocation3 + $0x120] sm:$0xf] %vm6634, %v6515
      %6672 = vst.msk [vmem:[#allocation3 + $0x128] sm:$0xf] %vm6634, %v6517
      %6673 = vst.msk [vmem:[#allocation3 + $0x130] sm:$0xf] %vm6634, %v6519
      %6674 = vst.msk [vmem:[#allocation3 + $0x138] sm:$0xf] %vm6634, %v6521
      %6675 = vst.msk [vmem:[#allocation3 + $0x140] sm:$0xf] %vm6634, %v6523
      %6676 = vst.msk [vmem:[#allocation3 + $0x148] sm:$0xf] %vm6634, %v6525
      %6677 = vst.msk [vmem:[#allocation3 + $0x150] sm:$0xf] %vm6634, %v6527
      %6678 = vst.msk [vmem:[#allocation3 + $0x158] sm:$0xf] %vm6634, %v6529
      %6679 = vst.msk [vmem:[#allocation3 + $0x160] sm:$0xf] %vm6634, %v6531
      %6680 = vst.msk [vmem:[#allocation3 + $0x168] sm:$0xf] %vm6634, %v6533
      %6681 = vst.msk [vmem:[#allocation3 + $0x170] sm:$0xf] %vm6634, %v6535
      %6682 = vst.msk [vmem:[#allocation3 + $0x178] sm:$0xf] %vm6634, %v6537
      %6683 = vst.msk [vmem:[#allocation3 + $0x180] sm:$0xf] %vm6634, %v6539
      %6684 = vst.msk [vmem:[#allocation3 + $0x188] sm:$0xf] %vm6634, %v6541
      %6685 = vst.msk [vmem:[#allocation3 + $0x190] sm:$0xf] %vm6634, %v6543
      %6686 = vst.msk [vmem:[#allocation3 + $0x198] sm:$0xf] %vm6634, %v6545
      %6687 = vst.msk [vmem:[#allocation3 + $0x1a0] sm:$0xf] %vm6634, %v6547
      %6688 = vst.msk [vmem:[#allocation3 + $0x1a8] sm:$0xf] %vm6634, %v6549
      %6689 = vst.msk [vmem:[#allocation3 + $0x1b0] sm:$0xf] %vm6634, %v6551
      %6690 = vst.msk [vmem:[#allocation3 + $0x1b8] sm:$0xf] %vm6634, %v6553
      %6691 = vst.msk [vmem:[#allocation3 + $0x1c0] sm:$0xf] %vm6634, %v6555
      %6692 = vst.msk [vmem:[#allocation3 + $0x1c8] sm:$0xf] %vm6634, %v6557
      %6693 = vst.msk [vmem:[#allocation3 + $0x1d0] sm:$0xf] %vm6634, %v6559
      %6694 = vst.msk [vmem:[#allocation3 + $0x1d8] sm:$0xf] %vm6634, %v6561
      %6695 = vst.msk [vmem:[#allocation3 + $0x1e0] sm:$0xf] %vm6634, %v6563
      %6696 = vst.msk [vmem:[#allocation3 + $0x1e8] sm:$0xf] %vm6634, %v6565
      %6697 = vst.msk [vmem:[#allocation3 + $0x1f0] sm:$0xf] %vm6634, %v6567
      %6698 = vst.msk [vmem:[#allocation3 + $0x1f8] sm:$0xf] %vm6634, %v6569
      %v6699 = vld [vmem:[%s5192] sm:$0xe]
      %v6700 = vld [vmem:[%s5192 + $0x4] sm:$0xf]
      %v6701 = vld [vmem:[%s5192 + $0x8] sm:$0x1]
      %v6702 = vld [vmem:[%s5192 + $0xc] sm:$0xe]
      %v6703 = vld [vmem:[%s5192 + $0x10] sm:$0xf]
      %v6704 = vld [vmem:[%s5192 + $0x14] sm:$0x1]
      %v6705 = vld [vmem:[%s5192 + $0x18] sm:$0xe]
      %v6706 = vld [vmem:[%s5192 + $0x1c] sm:$0xf]
      %v6707 = vld [vmem:[%s5192 + $0x20] sm:$0x1]
      %v6708 = vld [vmem:[%s5192 + $0x24] sm:$0xe]
      %v6709 = vld [vmem:[%s5192 + $0x28] sm:$0xf]
      %v6710 = vld [vmem:[%s5192 + $0x2c] sm:$0x1]
      %v6711 = vld [vmem:[%s5192 + $0x30] sm:$0xe]
      %v6712 = vld [vmem:[%s5192 + $0x34] sm:$0xf]
      %v6713 = vld [vmem:[%s5192 + $0x38] sm:$0x1]
      %v6714 = vld [vmem:[%s5192 + $0x3c] sm:$0xe]
      %v6715 = vld [vmem:[%s5192 + $0x40] sm:$0xf]
      %v6716 = vld [vmem:[%s5192 + $0x44] sm:$0x1]
      %v6717 = vld [vmem:[%s5192 + $0x48] sm:$0xe]
      %v6718 = vld [vmem:[%s5192 + $0x4c] sm:$0xf]
      %v6719 = vld [vmem:[%s5192 + $0x50] sm:$0x1]
      %v6720 = vld [vmem:[%s5192 + $0x54] sm:$0xe]
      %v6721 = vld [vmem:[%s5192 + $0x58] sm:$0xf]
      %v6722 = vld [vmem:[%s5192 + $0x5c] sm:$0x1]
      %v6723 = vld [vmem:[%s5192 + $0x60] sm:$0xe]
      %v6724 = vld [vmem:[%s5192 + $0x64] sm:$0xf]
      %v6725 = vld [vmem:[%s5192 + $0x68] sm:$0x1]
      %v6726 = vld [vmem:[%s5192 + $0x6c] sm:$0xe]
      %v6727 = vld [vmem:[%s5192 + $0x70] sm:$0xf]
      %v6728 = vld [vmem:[%s5192 + $0x74] sm:$0x1]
      %v6729 = vld [vmem:[%s5192 + $0x78] sm:$0xe]
      %v6730 = vld [vmem:[%s5192 + $0x7c] sm:$0xf]
      %v6731 = vld [vmem:[%s5192 + $0x80] sm:$0x1]
      %v6732 = vld [vmem:[%s5192 + $0x84] sm:$0xe]
      %v6733 = vld [vmem:[%s5192 + $0x88] sm:$0xf]
      %v6734 = vld [vmem:[%s5192 + $0x8c] sm:$0x1]
      %v6735 = vld [vmem:[%s5192 + $0x90] sm:$0xe]
      %v6736 = vld [vmem:[%s5192 + $0x94] sm:$0xf]
      %v6737 = vld [vmem:[%s5192 + $0x98] sm:$0x1]
      %v6738 = vld [vmem:[%s5192 + $0x9c] sm:$0xe]
      %v6739 = vld [vmem:[%s5192 + $0xa0] sm:$0xf]
      %v6740 = vld [vmem:[%s5192 + $0xa4] sm:$0x1]
      %v6741 = vld [vmem:[%s5192 + $0xa8] sm:$0xe]
      %v6742 = vld [vmem:[%s5192 + $0xac] sm:$0xf]
      %v6743 = vld [vmem:[%s5192 + $0xb0] sm:$0x1]
      %v6744 = vld [vmem:[%s5192 + $0xb4] sm:$0xe]
      %v6745 = vld [vmem:[%s5192 + $0xb8] sm:$0xf]
      %v6746 = vld [vmem:[%s5192 + $0xbc] sm:$0x1]
      %v6747 = vld [vmem:[%s5192 + $0xd8] sm:$0xe]
      %v6748 = vld [vmem:[%s5192 + $0xdc] sm:$0xf]
      %v6749 = vld [vmem:[%s5192 + $0xe0] sm:$0x1]
      %v6750 = vld [vmem:[%s5192 + $0xe4] sm:$0xe]
      %v6751 = vld [vmem:[%s5192 + $0xe8] sm:$0xf]
      %v6752 = vld [vmem:[%s5192 + $0xec] sm:$0x1]
      %v6753 = vld [vmem:[%s5192 + $0xf0] sm:$0xe]
      %v6754 = vld [vmem:[%s5192 + $0xf4] sm:$0xf]
      %v6755 = vld [vmem:[%s5192 + $0xf8] sm:$0x1]
      %v6756 = vld [vmem:[%s5192 + $0xfc] sm:$0xe]
      %v6757 = vld [vmem:[%s5192 + $0x100] sm:$0xf]
      %v6758 = vld [vmem:[%s5192 + $0x104] sm:$0x1]
      %v6759 = vld [vmem:[%s5192 + $0x108] sm:$0xe]
      %v6760 = vld [vmem:[%s5192 + $0x10c] sm:$0xf]
      %v6761 = vld [vmem:[%s5192 + $0x110] sm:$0x1]
      %v6762 = vld [vmem:[%s5192 + $0x114] sm:$0xe]
      %v6763 = vld [vmem:[%s5192 + $0x118] sm:$0xf]
      %v6764 = vld [vmem:[%s5192 + $0x11c] sm:$0x1]
      %v6765 = vld [vmem:[%s5192 + $0x120] sm:$0xe]
      %v6766 = vld [vmem:[%s5192 + $0x124] sm:$0xf]
      %v6767 = vld [vmem:[%s5192 + $0x128] sm:$0x1]
      %v6768 = vld [vmem:[%s5192 + $0x12c] sm:$0xe]
      %v6769 = vld [vmem:[%s5192 + $0x130] sm:$0xf]
      %v6770 = vld [vmem:[%s5192 + $0x134] sm:$0x1]
      %v6771 = vld [vmem:[%s5192 + $0x138] sm:$0xe]
      %v6772 = vld [vmem:[%s5192 + $0x13c] sm:$0xf]
      %v6773 = vld [vmem:[%s5192 + $0x140] sm:$0x1]
      %v6774 = vld [vmem:[%s5192 + $0x144] sm:$0xe]
      %v6775 = vld [vmem:[%s5192 + $0x148] sm:$0xf]
      %v6776 = vld [vmem:[%s5192 + $0x14c] sm:$0x1]
      %v6777 = vld [vmem:[%s5192 + $0x150] sm:$0xe]
      %v6778 = vld [vmem:[%s5192 + $0x154] sm:$0xf]
      %v6779 = vld [vmem:[%s5192 + $0x158] sm:$0x1]
      %v6780 = vld [vmem:[%s5192 + $0x15c] sm:$0xe]
      %v6781 = vld [vmem:[%s5192 + $0x160] sm:$0xf]
      %v6782 = vld [vmem:[%s5192 + $0x164] sm:$0x1]
      %v6783 = vld [vmem:[%s5192 + $0x168] sm:$0xe]
      %v6784 = vld [vmem:[%s5192 + $0x16c] sm:$0xf]
      %v6785 = vld [vmem:[%s5192 + $0x170] sm:$0x1]
      %v6786 = vld [vmem:[%s5192 + $0x174] sm:$0xe]
      %v6787 = vld [vmem:[%s5192 + $0x178] sm:$0xf]
      %v6788 = vld [vmem:[%s5192 + $0x17c] sm:$0x1]
      %v6789 = vld [vmem:[%s5192 + $0x180] sm:$0xe]
      %v6790 = vld [vmem:[%s5192 + $0x184] sm:$0xf]
      %v6791 = vld [vmem:[%s5192 + $0x188] sm:$0x1]
      %v6792 = vld [vmem:[%s5192 + $0x18c] sm:$0xe]
      %v6793 = vld [vmem:[%s5192 + $0x190] sm:$0xf]
      %v6794 = vld [vmem:[%s5192 + $0x194] sm:$0x1]
      %v6891 = vrot.slane %v6699, 5
      %v6892 = vrot.slane %v6891, 4
      %v6893 = vrot.slane %v6700, 5
      %v6894 = vsel %vm2531, %v6892, %v6893
      %v6895 = vrot.slane %v6893, 4
      %v6896 = vrot.slane %v6701, 5
      %v6897 = vsel %vm2531, %v6895, %v6896
      %v6898 = vrot.slane %v6702, 5
      %v6899 = vrot.slane %v6898, 4
      %v6900 = vrot.slane %v6703, 5
      %v6901 = vsel %vm2531, %v6899, %v6900
      %v6902 = vrot.slane %v6900, 4
      %v6903 = vrot.slane %v6704, 5
      %v6904 = vsel %vm2531, %v6902, %v6903
      %v6905 = vrot.slane %v6705, 5
      %v6906 = vrot.slane %v6905, 4
      %v6907 = vrot.slane %v6706, 5
      %v6908 = vsel %vm2531, %v6906, %v6907
      %v6909 = vrot.slane %v6907, 4
      %v6910 = vrot.slane %v6707, 5
      %v6911 = vsel %vm2531, %v6909, %v6910
      %v6912 = vrot.slane %v6708, 5
      %v6913 = vrot.slane %v6912, 4
      %v6914 = vrot.slane %v6709, 5
      %v6915 = vsel %vm2531, %v6913, %v6914
      %v6916 = vrot.slane %v6914, 4
      %v6917 = vrot.slane %v6710, 5
      %v6918 = vsel %vm2531, %v6916, %v6917
      %v6919 = vrot.slane %v6711, 5
      %v6920 = vrot.slane %v6919, 4
      %v6921 = vrot.slane %v6712, 5
      %v6922 = vsel %vm2531, %v6920, %v6921
      %v6923 = vrot.slane %v6921, 4
      %v6924 = vrot.slane %v6713, 5
      %v6925 = vsel %vm2531, %v6923, %v6924
      %v6926 = vrot.slane %v6714, 5
      %v6927 = vrot.slane %v6926, 4
      %v6928 = vrot.slane %v6715, 5
      %v6929 = vsel %vm2531, %v6927, %v6928
      %v6930 = vrot.slane %v6928, 4
      %v6931 = vrot.slane %v6716, 5
      %v6932 = vsel %vm2531, %v6930, %v6931
      %v6933 = vrot.slane %v6717, 5
      %v6934 = vrot.slane %v6933, 4
      %v6935 = vrot.slane %v6718, 5
      %v6936 = vsel %vm2531, %v6934, %v6935
      %v6937 = vrot.slane %v6935, 4
      %v6938 = vrot.slane %v6719, 5
      %v6939 = vsel %vm2531, %v6937, %v6938
      %v6940 = vrot.slane %v6720, 5
      %v6941 = vrot.slane %v6940, 4
      %v6942 = vrot.slane %v6721, 5
      %v6943 = vsel %vm2531, %v6941, %v6942
      %v6944 = vrot.slane %v6942, 4
      %v6945 = vrot.slane %v6722, 5
      %v6946 = vsel %vm2531, %v6944, %v6945
      %v6947 = vrot.slane %v6723, 5
      %v6948 = vrot.slane %v6947, 4
      %v6949 = vrot.slane %v6724, 5
      %v6950 = vsel %vm2531, %v6948, %v6949
      %v6951 = vrot.slane %v6949, 4
      %v6952 = vrot.slane %v6725, 5
      %v6953 = vsel %vm2531, %v6951, %v6952
      %v6954 = vrot.slane %v6726, 5
      %v6955 = vrot.slane %v6954, 4
      %v6956 = vrot.slane %v6727, 5
      %v6957 = vsel %vm2531, %v6955, %v6956
      %v6958 = vrot.slane %v6956, 4
      %v6959 = vrot.slane %v6728, 5
      %v6960 = vsel %vm2531, %v6958, %v6959
      %v6961 = vrot.slane %v6729, 5
      %v6962 = vrot.slane %v6961, 4
      %v6963 = vrot.slane %v6730, 5
      %v6964 = vsel %vm2531, %v6962, %v6963
      %v6965 = vrot.slane %v6963, 4
      %v6966 = vrot.slane %v6731, 5
      %v6967 = vsel %vm2531, %v6965, %v6966
      %v6968 = vrot.slane %v6732, 5
      %v6969 = vrot.slane %v6968, 4
      %v6970 = vrot.slane %v6733, 5
      %v6971 = vsel %vm2531, %v6969, %v6970
      %v6972 = vrot.slane %v6970, 4
      %v6973 = vrot.slane %v6734, 5
      %v6974 = vsel %vm2531, %v6972, %v6973
      %v6975 = vrot.slane %v6735, 5
      %v6976 = vrot.slane %v6975, 4
      %v6977 = vrot.slane %v6736, 5
      %v6978 = vsel %vm2531, %v6976, %v6977
      %v6979 = vrot.slane %v6977, 4
      %v6980 = vrot.slane %v6737, 5
      %v6981 = vsel %vm2531, %v6979, %v6980
      %v6982 = vrot.slane %v6738, 5
      %v6983 = vrot.slane %v6982, 4
      %v6984 = vrot.slane %v6739, 5
      %v6985 = vsel %vm2531, %v6983, %v6984
      %v6986 = vrot.slane %v6984, 4
      %v6987 = vrot.slane %v6740, 5
      %v6988 = vsel %vm2531, %v6986, %v6987
      %v6989 = vrot.slane %v6741, 5
      %v6990 = vrot.slane %v6989, 4
      %v6991 = vrot.slane %v6742, 5
      %v6992 = vsel %vm2531, %v6990, %v6991
      %v6993 = vrot.slane %v6991, 4
      %v6994 = vrot.slane %v6743, 5
      %v6995 = vsel %vm2531, %v6993, %v6994
      %v6996 = vrot.slane %v6744, 5
      %v6997 = vrot.slane %v6996, 4
      %v6998 = vrot.slane %v6745, 5
      %v6999 = vsel %vm2531, %v6997, %v6998
      %v7000 = vrot.slane %v6998, 4
      %v7001 = vrot.slane %v6746, 5
      %v7002 = vsel %vm2531, %v7000, %v7001
      %v7003 = vrot.slane %v6747, 5
      %v7004 = vrot.slane %v7003, 4
      %v7005 = vrot.slane %v6748, 5
      %v7006 = vsel %vm2531, %v7004, %v7005
      %v7007 = vrot.slane %v7005, 4
      %v7008 = vrot.slane %v6749, 5
      %v7009 = vsel %vm2531, %v7007, %v7008
      %v7010 = vrot.slane %v6750, 5
      %v7011 = vrot.slane %v7010, 4
      %v7012 = vrot.slane %v6751, 5
      %v7013 = vsel %vm2531, %v7011, %v7012
      %v7014 = vrot.slane %v7012, 4
      %v7015 = vrot.slane %v6752, 5
      %v7016 = vsel %vm2531, %v7014, %v7015
      %v7017 = vrot.slane %v6753, 5
      %v7018 = vrot.slane %v7017, 4
      %v7019 = vrot.slane %v6754, 5
      %v7020 = vsel %vm2531, %v7018, %v7019
      %v7021 = vrot.slane %v7019, 4
      %v7022 = vrot.slane %v6755, 5
      %v7023 = vsel %vm2531, %v7021, %v7022
      %v7024 = vrot.slane %v6756, 5
      %v7025 = vrot.slane %v7024, 4
      %v7026 = vrot.slane %v6757, 5
      %v7027 = vsel %vm2531, %v7025, %v7026
      %v7028 = vrot.slane %v7026, 4
      %v7029 = vrot.slane %v6758, 5
      %v7030 = vsel %vm2531, %v7028, %v7029
      %v7031 = vrot.slane %v6759, 5
      %v7032 = vrot.slane %v7031, 4
      %v7033 = vrot.slane %v6760, 5
      %v7034 = vsel %vm2531, %v7032, %v7033
      %v7035 = vrot.slane %v7033, 4
      %v7036 = vrot.slane %v6761, 5
      %v7037 = vsel %vm2531, %v7035, %v7036
      %v7038 = vrot.slane %v6762, 5
      %v7039 = vrot.slane %v7038, 4
      %v7040 = vrot.slane %v6763, 5
      %v7041 = vsel %vm2531, %v7039, %v7040
      %v7042 = vrot.slane %v7040, 4
      %v7043 = vrot.slane %v6764, 5
      %v7044 = vsel %vm2531, %v7042, %v7043
      %v7045 = vrot.slane %v6765, 5
      %v7046 = vrot.slane %v7045, 4
      %v7047 = vrot.slane %v6766, 5
      %v7048 = vsel %vm2531, %v7046, %v7047
      %v7049 = vrot.slane %v7047, 4
      %v7050 = vrot.slane %v6767, 5
      %v7051 = vsel %vm2531, %v7049, %v7050
      %v7052 = vrot.slane %v6768, 5
      %v7053 = vrot.slane %v7052, 4
      %v7054 = vrot.slane %v6769, 5
      %v7055 = vsel %vm2531, %v7053, %v7054
      %v7056 = vrot.slane %v7054, 4
      %v7057 = vrot.slane %v6770, 5
      %v7058 = vsel %vm2531, %v7056, %v7057
      %v7059 = vrot.slane %v6771, 5
      %v7060 = vrot.slane %v7059, 4
      %v7061 = vrot.slane %v6772, 5
      %v7062 = vsel %vm2531, %v7060, %v7061
      %v7063 = vrot.slane %v7061, 4
      %v7064 = vrot.slane %v6773, 5
      %v7065 = vsel %vm2531, %v7063, %v7064
      %v7066 = vrot.slane %v6774, 5
      %v7067 = vrot.slane %v7066, 4
      %v7068 = vrot.slane %v6775, 5
      %v7069 = vsel %vm2531, %v7067, %v7068
      %v7070 = vrot.slane %v7068, 4
      %v7071 = vrot.slane %v6776, 5
      %v7072 = vsel %vm2531, %v7070, %v7071
      %v7073 = vrot.slane %v6777, 5
      %v7074 = vrot.slane %v7073, 4
      %v7075 = vrot.slane %v6778, 5
      %v7076 = vsel %vm2531, %v7074, %v7075
      %v7077 = vrot.slane %v7075, 4
      %v7078 = vrot.slane %v6779, 5
      %v7079 = vsel %vm2531, %v7077, %v7078
      %v7080 = vrot.slane %v6780, 5
      %v7081 = vrot.slane %v7080, 4
      %v7082 = vrot.slane %v6781, 5
      %v7083 = vsel %vm2531, %v7081, %v7082
      %v7084 = vrot.slane %v7082, 4
      %v7085 = vrot.slane %v6782, 5
      %v7086 = vsel %vm2531, %v7084, %v7085
      %v7087 = vrot.slane %v6783, 5
      %v7088 = vrot.slane %v7087, 4
      %v7089 = vrot.slane %v6784, 5
      %v7090 = vsel %vm2531, %v7088, %v7089
      %v7091 = vrot.slane %v7089, 4
      %v7092 = vrot.slane %v6785, 5
      %v7093 = vsel %vm2531, %v7091, %v7092
      %v7094 = vrot.slane %v6786, 5
      %v7095 = vrot.slane %v7094, 4
      %v7096 = vrot.slane %v6787, 5
      %v7097 = vsel %vm2531, %v7095, %v7096
      %v7098 = vrot.slane %v7096, 4
      %v7099 = vrot.slane %v6788, 5
      %v7100 = vsel %vm2531, %v7098, %v7099
      %v7101 = vrot.slane %v6789, 5
      %v7102 = vrot.slane %v7101, 4
      %v7103 = vrot.slane %v6790, 5
      %v7104 = vsel %vm2531, %v7102, %v7103
      %v7105 = vrot.slane %v7103, 4
      %v7106 = vrot.slane %v6791, 5
      %v7107 = vsel %vm2531, %v7105, %v7106
      %v7108 = vrot.slane %v6792, 5
      %v7109 = vrot.slane %v7108, 4
      %v7110 = vrot.slane %v6793, 5
      %v7111 = vsel %vm2531, %v7109, %v7110
      %v7112 = vrot.slane %v7110, 4
      %v7113 = vrot.slane %v6794, 5
      %v7114 = vsel %vm2531, %v7112, %v7113
      %7179 = vst.msk [vmem:[#allocation3 + $0x4] sm:$0xf] %vm38, %v6894
      %7180 = vst.msk [vmem:[#allocation3 + $0xc] sm:$0xf] %vm38, %v6897
      %7181 = vst.msk [vmem:[#allocation3 + $0x14] sm:$0xf] %vm38, %v6901
      %7182 = vst.msk [vmem:[#allocation3 + $0x1c] sm:$0xf] %vm38, %v6904
      %7183 = vst.msk [vmem:[#allocation3 + $0x24] sm:$0xf] %vm38, %v6908
      %7184 = vst.msk [vmem:[#allocation3 + $0x2c] sm:$0xf] %vm38, %v6911
      %7185 = vst.msk [vmem:[#allocation3 + $0x34] sm:$0xf] %vm38, %v6915
      %7186 = vst.msk [vmem:[#allocation3 + $0x3c] sm:$0xf] %vm38, %v6918
      %7187 = vst.msk [vmem:[#allocation3 + $0x44] sm:$0xf] %vm38, %v6922
      %7188 = vst.msk [vmem:[#allocation3 + $0x4c] sm:$0xf] %vm38, %v6925
      %7189 = vst.msk [vmem:[#allocation3 + $0x54] sm:$0xf] %vm38, %v6929
      %7190 = vst.msk [vmem:[#allocation3 + $0x5c] sm:$0xf] %vm38, %v6932
      %7191 = vst.msk [vmem:[#allocation3 + $0x64] sm:$0xf] %vm38, %v6936
      %7192 = vst.msk [vmem:[#allocation3 + $0x6c] sm:$0xf] %vm38, %v6939
      %7193 = vst.msk [vmem:[#allocation3 + $0x74] sm:$0xf] %vm38, %v6943
      %7194 = vst.msk [vmem:[#allocation3 + $0x7c] sm:$0xf] %vm38, %v6946
      %7195 = vst.msk [vmem:[#allocation3 + $0x84] sm:$0xf] %vm38, %v6950
      %7196 = vst.msk [vmem:[#allocation3 + $0x8c] sm:$0xf] %vm38, %v6953
      %7197 = vst.msk [vmem:[#allocation3 + $0x94] sm:$0xf] %vm38, %v6957
      %7198 = vst.msk [vmem:[#allocation3 + $0x9c] sm:$0xf] %vm38, %v6960
      %7199 = vst.msk [vmem:[#allocation3 + $0xa4] sm:$0xf] %vm38, %v6964
      %7200 = vst.msk [vmem:[#allocation3 + $0xac] sm:$0xf] %vm38, %v6967
      %7201 = vst.msk [vmem:[#allocation3 + $0xb4] sm:$0xf] %vm38, %v6971
      %7202 = vst.msk [vmem:[#allocation3 + $0xbc] sm:$0xf] %vm38, %v6974
      %7203 = vst.msk [vmem:[#allocation3 + $0xc4] sm:$0xf] %vm38, %v6978
      %7204 = vst.msk [vmem:[#allocation3 + $0xcc] sm:$0xf] %vm38, %v6981
      %7205 = vst.msk [vmem:[#allocation3 + $0xd4] sm:$0xf] %vm38, %v6985
      %7206 = vst.msk [vmem:[#allocation3 + $0xdc] sm:$0xf] %vm38, %v6988
      %7207 = vst.msk [vmem:[#allocation3 + $0xe4] sm:$0xf] %vm38, %v6992
      %7208 = vst.msk [vmem:[#allocation3 + $0xec] sm:$0xf] %vm38, %v6995
      %7209 = vst.msk [vmem:[#allocation3 + $0xf4] sm:$0xf] %vm38, %v6999
      %7210 = vst.msk [vmem:[#allocation3 + $0xfc] sm:$0xf] %vm38, %v7002
      %7211 = vst.msk [vmem:[#allocation3 + $0x104] sm:$0xf] %vm38, %v7006
      %7212 = vst.msk [vmem:[#allocation3 + $0x10c] sm:$0xf] %vm38, %v7009
      %7213 = vst.msk [vmem:[#allocation3 + $0x114] sm:$0xf] %vm38, %v7013
      %7214 = vst.msk [vmem:[#allocation3 + $0x11c] sm:$0xf] %vm38, %v7016
      %7215 = vst.msk [vmem:[#allocation3 + $0x124] sm:$0xf] %vm38, %v7020
      %7216 = vst.msk [vmem:[#allocation3 + $0x12c] sm:$0xf] %vm38, %v7023
      %7217 = vst.msk [vmem:[#allocation3 + $0x134] sm:$0xf] %vm38, %v7027
      %7218 = vst.msk [vmem:[#allocation3 + $0x13c] sm:$0xf] %vm38, %v7030
      %7219 = vst.msk [vmem:[#allocation3 + $0x144] sm:$0xf] %vm38, %v7034
      %7220 = vst.msk [vmem:[#allocation3 + $0x14c] sm:$0xf] %vm38, %v7037
      %7221 = vst.msk [vmem:[#allocation3 + $0x154] sm:$0xf] %vm38, %v7041
      %7222 = vst.msk [vmem:[#allocation3 + $0x15c] sm:$0xf] %vm38, %v7044
      %7223 = vst.msk [vmem:[#allocation3 + $0x164] sm:$0xf] %vm38, %v7048
      %7224 = vst.msk [vmem:[#allocation3 + $0x16c] sm:$0xf] %vm38, %v7051
      %7225 = vst.msk [vmem:[#allocation3 + $0x174] sm:$0xf] %vm38, %v7055
      %7226 = vst.msk [vmem:[#allocation3 + $0x17c] sm:$0xf] %vm38, %v7058
      %7227 = vst.msk [vmem:[#allocation3 + $0x184] sm:$0xf] %vm38, %v7062
      %7228 = vst.msk [vmem:[#allocation3 + $0x18c] sm:$0xf] %vm38, %v7065
      %7229 = vst.msk [vmem:[#allocation3 + $0x194] sm:$0xf] %vm38, %v7069
      %7230 = vst.msk [vmem:[#allocation3 + $0x19c] sm:$0xf] %vm38, %v7072
      %7231 = vst.msk [vmem:[#allocation3 + $0x1a4] sm:$0xf] %vm38, %v7076
      %7232 = vst.msk [vmem:[#allocation3 + $0x1ac] sm:$0xf] %vm38, %v7079
      %7233 = vst.msk [vmem:[#allocation3 + $0x1b4] sm:$0xf] %vm38, %v7083
      %7234 = vst.msk [vmem:[#allocation3 + $0x1bc] sm:$0xf] %vm38, %v7086
      %7235 = vst.msk [vmem:[#allocation3 + $0x1c4] sm:$0xf] %vm38, %v7090
      %7236 = vst.msk [vmem:[#allocation3 + $0x1cc] sm:$0xf] %vm38, %v7093
      %7237 = vst.msk [vmem:[#allocation3 + $0x1d4] sm:$0xf] %vm38, %v7097
      %7238 = vst.msk [vmem:[#allocation3 + $0x1dc] sm:$0xf] %vm38, %v7100
      %7239 = vst.msk [vmem:[#allocation3 + $0x1e4] sm:$0xf] %vm38, %v7104
      %7240 = vst.msk [vmem:[#allocation3 + $0x1ec] sm:$0xf] %vm38, %v7107
      %7241 = vst.msk [vmem:[#allocation3 + $0x1f4] sm:$0xf] %vm38, %v7111
      %7242 = vst.msk [vmem:[#allocation3 + $0x1fc] sm:$0xf] %vm38, %v7114
    $region25: #{tpu_custom_call.1} parent=1 // pred_fallthru
      _
    %v7243 = vld [vmem:[#allocation3] sm:$0xff]
    %v7244 = vld [vmem:[#allocation3 + $0x8] sm:$0xff]
    %v7245 = vld [vmem:[#allocation3 + $0x10] sm:$0xff]
    %v7246 = vld [vmem:[#allocation3 + $0x18] sm:$0xff]
    %v7247 = vld [vmem:[#allocation3 + $0x20] sm:$0xff]
    %v7248 = vld [vmem:[#allocation3 + $0x28] sm:$0xff]
    %v7249 = vld [vmem:[#allocation3 + $0x30] sm:$0xff]
    %v7250 = vld [vmem:[#allocation3 + $0x38] sm:$0xff]
    %v7251 = vld [vmem:[#allocation3 + $0x40] sm:$0xff]
    %v7252 = vld [vmem:[#allocation3 + $0x48] sm:$0xff]
    %v7253 = vld [vmem:[#allocation3 + $0x50] sm:$0xff]
    %v7254 = vld [vmem:[#allocation3 + $0x58] sm:$0xff]
    %v7255 = vld [vmem:[#allocation3 + $0x60] sm:$0xff]
    %v7256 = vld [vmem:[#allocation3 + $0x68] sm:$0xff]
    %v7257 = vld [vmem:[#allocation3 + $0x70] sm:$0xff]
    %v7258 = vld [vmem:[#allocation3 + $0x78] sm:$0xff]
    %v7259 = vld [vmem:[#allocation3 + $0x80] sm:$0xff]
    %v7260 = vld [vmem:[#allocation3 + $0x88] sm:$0xff]
    %v7261 = vld [vmem:[#allocation3 + $0x90] sm:$0xff]
    %v7262 = vld [vmem:[#allocation3 + $0x98] sm:$0xff]
    %v7263 = vld [vmem:[#allocation3 + $0xa0] sm:$0xff]
    %v7264 = vld [vmem:[#allocation3 + $0xa8] sm:$0xff]
    %v7265 = vld [vmem:[#allocation3 + $0xb0] sm:$0xff]
    %v7266 = vld [vmem:[#allocation3 + $0xb8] sm:$0xff]
    %v7267 = vld [vmem:[#allocation3 + $0xc0] sm:$0xff]
    %v7268 = vld [vmem:[#allocation3 + $0xc8] sm:$0xff]
    %v7269 = vld [vmem:[#allocation3 + $0xd0] sm:$0xff]
    %v7270 = vld [vmem:[#allocation3 + $0xd8] sm:$0xff]
    %v7271 = vld [vmem:[#allocation3 + $0xe0] sm:$0xff]
    %v7272 = vld [vmem:[#allocation3 + $0xe8] sm:$0xff]
    %v7273 = vld [vmem:[#allocation3 + $0xf0] sm:$0xff]
    %v7274 = vld [vmem:[#allocation3 + $0xf8] sm:$0xff]
    %v7275 = vld [vmem:[#allocation3 + $0x100] sm:$0xff]
    %v7276 = vld [vmem:[#allocation3 + $0x108] sm:$0xff]
    %v7277 = vld [vmem:[#allocation3 + $0x110] sm:$0xff]
    %v7278 = vld [vmem:[#allocation3 + $0x118] sm:$0xff]
    %v7279 = vld [vmem:[#allocation3 + $0x120] sm:$0xff]
    %v7280 = vld [vmem:[#allocation3 + $0x128] sm:$0xff]
    %v7281 = vld [vmem:[#allocation3 + $0x130] sm:$0xff]
    %v7282 = vld [vmem:[#allocation3 + $0x138] sm:$0xff]
    %v7283 = vld [vmem:[#allocation3 + $0x140] sm:$0xff]
    %v7284 = vld [vmem:[#allocation3 + $0x148] sm:$0xff]
    %v7285 = vld [vmem:[#allocation3 + $0x150] sm:$0xff]
    %v7286 = vld [vmem:[#allocation3 + $0x158] sm:$0xff]
    %v7287 = vld [vmem:[#allocation3 + $0x160] sm:$0xff]
    %v7288 = vld [vmem:[#allocation3 + $0x168] sm:$0xff]
    %v7289 = vld [vmem:[#allocation3 + $0x170] sm:$0xff]
    %v7290 = vld [vmem:[#allocation3 + $0x178] sm:$0xff]
    %v7291 = vld [vmem:[#allocation3 + $0x180] sm:$0xff]
    %v7292 = vld [vmem:[#allocation3 + $0x188] sm:$0xff]
    %v7293 = vld [vmem:[#allocation3 + $0x190] sm:$0xff]
    %v7294 = vld [vmem:[#allocation3 + $0x198] sm:$0xff]
    %v7295 = vld [vmem:[#allocation3 + $0x1a0] sm:$0xff]
    %v7296 = vld [vmem:[#allocation3 + $0x1a8] sm:$0xff]
    %v7297 = vld [vmem:[#allocation3 + $0x1b0] sm:$0xff]
    %v7298 = vld [vmem:[#allocation3 + $0x1b8] sm:$0xff]
    %v7299 = vld [vmem:[#allocation3 + $0x1c0] sm:$0xff]
    %v7300 = vld [vmem:[#allocation3 + $0x1c8] sm:$0xff]
    %v7301 = vld [vmem:[#allocation3 + $0x1d0] sm:$0xff]
    %v7302 = vld [vmem:[#allocation3 + $0x1d8] sm:$0xff]
    %v7303 = vld [vmem:[#allocation3 + $0x1e0] sm:$0xff]
    %v7304 = vld [vmem:[#allocation3 + $0x1e8] sm:$0xff]
    %v7305 = vld [vmem:[#allocation3 + $0x1f0] sm:$0xff]
    %v7306 = vld [vmem:[#allocation3 + $0x1f8] sm:$0xff]
    %v7307 = vld [vmem:[%s1] sm:$0xf]
    %v7308 = vld [vmem:[%s1 + $0x4] sm:$0xf]
    %v7309 = vld [vmem:[%s1 + $0x8] sm:$0xf]
    %v7310 = vld [vmem:[%s1 + $0xc] sm:$0xf]
    %v7311 = vld [vmem:[%s1 + $0x10] sm:$0xf]
    %v7312 = vld [vmem:[%s1 + $0x14] sm:$0xf]
    %v7313 = vld [vmem:[%s1 + $0x18] sm:$0xf]
    %v7314 = vld [vmem:[%s1 + $0x1c] sm:$0xf]
    %v7315 = vld [vmem:[%s1 + $0x20] sm:$0xf]
    %v7316 = vld [vmem:[%s1 + $0x24] sm:$0xf]
    %v7317 = vld [vmem:[%s1 + $0x28] sm:$0xf]
    %v7318 = vld [vmem:[%s1 + $0x2c] sm:$0xf]
    %v7319 = vld [vmem:[%s1 + $0x30] sm:$0xf]
    %v7320 = vld [vmem:[%s1 + $0x34] sm:$0xf]
    %v7321 = vld [vmem:[%s1 + $0x38] sm:$0xf]
    %v7322 = vld [vmem:[%s1 + $0x3c] sm:$0xf]
    %v7323 = vld [vmem:[%s1 + $0x40] sm:$0xf]
    %v7324 = vld [vmem:[%s1 + $0x44] sm:$0xf]
    %v7389 = vunpack.c.l.b16 %v7243
    %v7390 = vunpack.c.h.b16 %v7243
    %v7391 = vunpack.c.l.b16 %v7244
    %v7392 = vunpack.c.h.b16 %v7244
    %v7393 = vunpack.c.l.b16 %v7245
    %v7394 = vunpack.c.h.b16 %v7245
    %v7395 = vunpack.c.l.b16 %v7246
    %v7396 = vunpack.c.h.b16 %v7246
    %v7397 = vunpack.c.l.b16 %v7247
    %v7398 = vunpack.c.h.b16 %v7247
    %v7399 = vunpack.c.l.b16 %v7248
    %v7400 = vunpack.c.h.b16 %v7248
    %v7401 = vunpack.c.l.b16 %v7249
    %v7402 = vunpack.c.h.b16 %v7249
    %v7403 = vunpack.c.l.b16 %v7250
    %v7404 = vunpack.c.h.b16 %v7250
    %v7405 = vunpack.c.l.b16 %v7251
    %v7406 = vunpack.c.h.b16 %v7251
    %v7407 = vunpack.c.l.b16 %v7252
    %v7408 = vunpack.c.h.b16 %v7252
    %v7409 = vunpack.c.l.b16 %v7253
    %v7410 = vunpack.c.h.b16 %v7253
    %v7411 = vunpack.c.l.b16 %v7254
    %v7412 = vunpack.c.h.b16 %v7254
    %v7413 = vunpack.c.l.b16 %v7255
    %v7414 = vunpack.c.h.b16 %v7255
    %v7415 = vunpack.c.l.b16 %v7256
    %v7416 = vunpack.c.h.b16 %v7256
    %v7417 = vunpack.c.l.b16 %v7257
    %v7418 = vunpack.c.h.b16 %v7257
    %v7419 = vunpack.c.l.b16 %v7258
    %v7420 = vunpack.c.h.b16 %v7258
    %v7421 = vunpack.c.l.b16 %v7259
    %v7422 = vunpack.c.h.b16 %v7259
    %v7423 = vunpack.c.l.b16 %v7260
    %v7424 = vunpack.c.h.b16 %v7260
    %v7425 = vunpack.c.l.b16 %v7261
    %v7426 = vunpack.c.h.b16 %v7261
    %v7427 = vunpack.c.l.b16 %v7262
    %v7428 = vunpack.c.h.b16 %v7262
    %v7429 = vunpack.c.l.b16 %v7263
    %v7430 = vunpack.c.h.b16 %v7263
    %v7431 = vunpack.c.l.b16 %v7264
    %v7432 = vunpack.c.h.b16 %v7264
    %v7433 = vunpack.c.l.b16 %v7265
    %v7434 = vunpack.c.h.b16 %v7265
    %v7435 = vunpack.c.l.b16 %v7266
    %v7436 = vunpack.c.h.b16 %v7266
    %v7437 = vunpack.c.l.b16 %v7267
    %v7438 = vunpack.c.h.b16 %v7267
    %v7439 = vunpack.c.l.b16 %v7268
    %v7440 = vunpack.c.h.b16 %v7268
    %v7441 = vunpack.c.l.b16 %v7269
    %v7442 = vunpack.c.h.b16 %v7269
    %v7443 = vunpack.c.l.b16 %v7270
    %v7444 = vunpack.c.h.b16 %v7270
    %v7445 = vunpack.c.l.b16 %v7271
    %v7446 = vunpack.c.h.b16 %v7271
    %v7447 = vunpack.c.l.b16 %v7272
    %v7448 = vunpack.c.h.b16 %v7272
    %v7449 = vunpack.c.l.b16 %v7273
    %v7450 = vunpack.c.h.b16 %v7273
    %v7451 = vunpack.c.l.b16 %v7274
    %v7452 = vunpack.c.h.b16 %v7274
    %v7453 = vunpack.c.l.b16 %v7275
    %v7454 = vunpack.c.h.b16 %v7275
    %v7455 = vunpack.c.l.b16 %v7276
    %v7456 = vunpack.c.h.b16 %v7276
    %v7457 = vunpack.c.l.b16 %v7277
    %v7458 = vunpack.c.h.b16 %v7277
    %v7459 = vunpack.c.l.b16 %v7278
    %v7460 = vunpack.c.h.b16 %v7278
    %v7461 = vunpack.c.l.b16 %v7279
    %v7462 = vunpack.c.h.b16 %v7279
    %v7463 = vunpack.c.l.b16 %v7280
    %v7464 = vunpack.c.h.b16 %v7280
    %v7465 = vunpack.c.l.b16 %v7281
    %v7466 = vunpack.c.h.b16 %v7281
    %v7467 = vunpack.c.l.b16 %v7282
    %v7468 = vunpack.c.h.b16 %v7282
    %v7469 = vunpack.c.l.b16 %v7283
    %v7470 = vunpack.c.h.b16 %v7283
    %v7471 = vunpack.c.l.b16 %v7284
    %v7472 = vunpack.c.h.b16 %v7284
    %v7473 = vunpack.c.l.b16 %v7285
    %v7474 = vunpack.c.h.b16 %v7285
    %v7475 = vunpack.c.l.b16 %v7286
    %v7476 = vunpack.c.h.b16 %v7286
    %v7477 = vunpack.c.l.b16 %v7287
    %v7478 = vunpack.c.h.b16 %v7287
    %v7479 = vunpack.c.l.b16 %v7288
    %v7480 = vunpack.c.h.b16 %v7288
    %v7481 = vunpack.c.l.b16 %v7289
    %v7482 = vunpack.c.h.b16 %v7289
    %v7483 = vunpack.c.l.b16 %v7290
    %v7484 = vunpack.c.h.b16 %v7290
    %v7485 = vunpack.c.l.b16 %v7291
    %v7486 = vunpack.c.h.b16 %v7291
    %v7487 = vunpack.c.l.b16 %v7292
    %v7488 = vunpack.c.h.b16 %v7292
    %v7489 = vunpack.c.l.b16 %v7293
    %v7490 = vunpack.c.h.b16 %v7293
    %v7491 = vunpack.c.l.b16 %v7294
    %v7492 = vunpack.c.h.b16 %v7294
    %v7493 = vunpack.c.l.b16 %v7295
    %v7494 = vunpack.c.h.b16 %v7295
    %v7495 = vunpack.c.l.b16 %v7296
    %v7496 = vunpack.c.h.b16 %v7296
    %v7497 = vunpack.c.l.b16 %v7297
    %v7498 = vunpack.c.h.b16 %v7297
    %v7499 = vunpack.c.l.b16 %v7298
    %v7500 = vunpack.c.h.b16 %v7298
    %v7501 = vunpack.c.l.b16 %v7299
    %v7502 = vunpack.c.h.b16 %v7299
    %v7503 = vunpack.c.l.b16 %v7300
    %v7504 = vunpack.c.h.b16 %v7300
    %v7505 = vunpack.c.l.b16 %v7301
    %v7506 = vunpack.c.h.b16 %v7301
    %v7507 = vunpack.c.l.b16 %v7302
    %v7508 = vunpack.c.h.b16 %v7302
    %v7509 = vunpack.c.l.b16 %v7303
    %v7510 = vunpack.c.h.b16 %v7303
    %v7511 = vunpack.c.l.b16 %v7304
    %v7512 = vunpack.c.h.b16 %v7304
    %v7513 = vunpack.c.l.b16 %v7305
    %v7514 = vunpack.c.h.b16 %v7305
    %v7515 = vunpack.c.l.b16 %v7306
    %v7516 = vunpack.c.h.b16 %v7306
    %v7517 = vpack.c.b16 %v7391, %v7389
    %v7518 = vpack.c.b16 %v7392, %v7390
    %v7519 = vpack.c.b16 %v7395, %v7393
    %v7520 = vpack.c.b16 %v7396, %v7394
    %v7521 = vpack.c.b16 %v7399, %v7397
    %v7522 = vpack.c.b16 %v7400, %v7398
    %v7523 = vpack.c.b16 %v7403, %v7401
    %v7524 = vpack.c.b16 %v7404, %v7402
    %v7525 = vpack.c.b16 %v7407, %v7405
    %v7526 = vpack.c.b16 %v7408, %v7406
    %v7527 = vpack.c.b16 %v7411, %v7409
    %v7528 = vpack.c.b16 %v7412, %v7410
    %v7529 = vpack.c.b16 %v7415, %v7413
    %v7530 = vpack.c.b16 %v7416, %v7414
    %v7531 = vpack.c.b16 %v7419, %v7417
    %v7532 = vpack.c.b16 %v7420, %v7418
    %v7533 = vpack.c.b16 %v7423, %v7421
    %v7534 = vpack.c.b16 %v7424, %v7422
    %v7535 = vpack.c.b16 %v7427, %v7425
    %v7536 = vpack.c.b16 %v7428, %v7426
    %v7537 = vpack.c.b16 %v7431, %v7429
    %v7538 = vpack.c.b16 %v7432, %v7430
    %v7539 = vpack.c.b16 %v7435, %v7433
    %v7540 = vpack.c.b16 %v7436, %v7434
    %v7541 = vpack.c.b16 %v7439, %v7437
    %v7542 = vpack.c.b16 %v7440, %v7438
    %v7543 = vpack.c.b16 %v7443, %v7441
    %v7544 = vpack.c.b16 %v7444, %v7442
    %v7545 = vpack.c.b16 %v7447, %v7445
    %v7546 = vpack.c.b16 %v7448, %v7446
    %v7547 = vpack.c.b16 %v7451, %v7449
    %v7548 = vpack.c.b16 %v7452, %v7450
    %v7549 = vpack.c.b16 %v7455, %v7453
    %v7550 = vpack.c.b16 %v7456, %v7454
    %v7551 = vpack.c.b16 %v7459, %v7457
    %v7552 = vpack.c.b16 %v7460, %v7458
    %v7553 = vpack.c.b16 %v7463, %v7461
    %v7554 = vpack.c.b16 %v7464, %v7462
    %v7555 = vpack.c.b16 %v7467, %v7465
    %v7556 = vpack.c.b16 %v7468, %v7466
    %v7557 = vpack.c.b16 %v7471, %v7469
    %v7558 = vpack.c.b16 %v7472, %v7470
    %v7559 = vpack.c.b16 %v7475, %v7473
    %v7560 = vpack.c.b16 %v7476, %v7474
    %v7561 = vpack.c.b16 %v7479, %v7477
    %v7562 = vpack.c.b16 %v7480, %v7478
    %v7563 = vpack.c.b16 %v7483, %v7481
    %v7564 = vpack.c.b16 %v7484, %v7482
    %v7565 = vpack.c.b16 %v7487, %v7485
    %v7566 = vpack.c.b16 %v7488, %v7486
    %v7567 = vpack.c.b16 %v7491, %v7489
    %v7568 = vpack.c.b16 %v7492, %v7490
    %v7569 = vpack.c.b16 %v7495, %v7493
    %v7570 = vpack.c.b16 %v7496, %v7494
    %v7571 = vpack.c.b16 %v7499, %v7497
    %v7572 = vpack.c.b16 %v7500, %v7498
    %v7573 = vpack.c.b16 %v7503, %v7501
    %v7574 = vpack.c.b16 %v7504, %v7502
    %v7575 = vpack.c.b16 %v7507, %v7505
    %v7576 = vpack.c.b16 %v7508, %v7506
    %v7577 = vpack.c.b16 %v7511, %v7509
    %v7578 = vpack.c.b16 %v7512, %v7510
    %v7579 = vpack.c.b16 %v7515, %v7513
    %v7580 = vpack.c.b16 %v7516, %v7514
    %v7631 = vunpack.c.l.b16 %v7307
    %v7632 = vunpack.c.l.b16 %v7308
    %v7633 = vunpack.c.l.b16 %v7309
    %v7634 = vunpack.c.l.b16 %v7310
    %v7635 = vunpack.c.l.b16 %v7311
    %v7636 = vunpack.c.l.b16 %v7312
    %v7637 = vunpack.c.l.b16 %v7313
    %v7638 = vunpack.c.l.b16 %v7314
    %v7639 = vunpack.c.l.b16 %v7315
    %v7640 = vunpack.c.l.b16 %v7316
    %v7641 = vunpack.c.l.b16 %v7317
    %v7642 = vunpack.c.l.b16 %v7318
    %v7643 = vunpack.c.l.b16 %v7319
    %v7644 = vunpack.c.l.b16 %v7320
    %v7645 = vunpack.c.l.b16 %v7321
    %v7646 = vunpack.c.l.b16 %v7322
    %v7647 = vunpack.c.l.b16 %v7323
    %v7648 = vunpack.c.l.b16 %v7324
    %v7649 = vpack.c.b16 %v7632, %v7631
    %v7650 = vpack.c.b16 %v7634, %v7633
    %v7651 = vpack.c.b16 %v7636, %v7635
    %v7652 = vpack.c.b16 %v7638, %v7637
    %v7653 = vpack.c.b16 %v7640, %v7639
    %v7654 = vpack.c.b16 %v7642, %v7641
    %v7655 = vpack.c.b16 %v7644, %v7643
    %v7656 = vpack.c.b16 %v7646, %v7645
    %v7657 = vpack.c.b16 %v7648, %v7647
    %vm7667 = vcmask 130048
    %v7669 = vsel %vm7667, %v7518, 0
    %v7672 = vsel %vm7667, %v7520, 0
    %v7675 = vsel %vm7667, %v7522, 0
    %v7678 = vsel %vm7667, %v7524, 0
    %v7681 = vsel %vm7667, %v7526, 0
    %v7684 = vsel %vm7667, %v7528, 0
    %v7687 = vsel %vm7667, %v7530, 0
    %v7690 = vsel %vm7667, %v7532, 0
    %v7693 = vsel %vm7667, %v7534, 0
    %v7696 = vsel %vm7667, %v7536, 0
    %v7699 = vsel %vm7667, %v7538, 0
    %v7702 = vsel %vm7667, %v7540, 0
    %v7705 = vsel %vm7667, %v7542, 0
    %v7708 = vsel %vm7667, %v7544, 0
    %v7711 = vsel %vm7667, %v7546, 0
    %v7714 = vsel %vm7667, %v7548, 0
    %v7717 = vsel %vm7667, %v7550, 0
    %v7720 = vsel %vm7667, %v7552, 0
    %v7723 = vsel %vm7667, %v7554, 0
    %v7726 = vsel %vm7667, %v7556, 0
    %v7729 = vsel %vm7667, %v7558, 0
    %v7732 = vsel %vm7667, %v7560, 0
    %v7735 = vsel %vm7667, %v7562, 0
    %v7738 = vsel %vm7667, %v7564, 0
    %v7741 = vsel %vm7667, %v7566, 0
    %v7744 = vsel %vm7667, %v7568, 0
    %v7747 = vsel %vm7667, %v7570, 0
    %v7750 = vsel %vm7667, %v7572, 0
    %v7753 = vsel %vm7667, %v7574, 0
    %v7756 = vsel %vm7667, %v7576, 0
    %v7759 = vsel %vm7667, %v7578, 0
    %v7762 = vsel %vm7667, %v7580, 0
    %7764 = vmatpush.bf16.msra.mxu0 %v7656
    %7765 = vmatpush.bf16.msra.mxu0 %v7655
    %7766 = vmatpush.bf16.msra.mxu0 %v7654
    %7767 = vmatpush.bf16.msra.mxu0 %v7653
    %7768 = vmatpush.bf16.msra.mxu0 %v7652
    %7769 = vmatpush.bf16.msra.mxu0 %v7651
    %7770 = vmatpush.bf16.msra.mxu0 %v7650
    %7771 = vmatpush.bf16.msra.mxu0 %v7649
    %7772 = vmatmul.bf16.gmra.mxu0 %v7517
    %v7773 = vpop.f32.mrf.mxu0
    %v7774 = vadd.f32 0.0, %v7773
    %v7775 = vpop.f32.mrf.mxu0
    %v7776 = vadd.f32 0.0, %v7775
    %7777 = vmatmul.bf16.gmra.mxu0 %v7519
    %v7778 = vpop.f32.mrf.mxu0
    %v7779 = vadd.f32 0.0, %v7778
    %v7780 = vpop.f32.mrf.mxu0
    %v7781 = vadd.f32 0.0, %v7780
    %7782 = vmatmul.bf16.gmra.mxu0 %v7521
    %v7783 = vpop.f32.mrf.mxu0
    %v7784 = vadd.f32 0.0, %v7783
    %v7785 = vpop.f32.mrf.mxu0
    %v7786 = vadd.f32 0.0, %v7785
    %7787 = vmatmul.bf16.gmra.mxu0 %v7523
    %v7788 = vpop.f32.mrf.mxu0
    %v7789 = vadd.f32 0.0, %v7788
    %v7790 = vpop.f32.mrf.mxu0
    %v7791 = vadd.f32 0.0, %v7790
    %7792 = vmatmul.bf16.gmra.mxu0 %v7525
    %v7793 = vpop.f32.mrf.mxu0
    %v7794 = vadd.f32 0.0, %v7793
    %v7795 = vpop.f32.mrf.mxu0
    %v7796 = vadd.f32 0.0, %v7795
    %7797 = vmatmul.bf16.gmra.mxu0 %v7527
    %v7798 = vpop.f32.mrf.mxu0
    %v7799 = vadd.f32 0.0, %v7798
    %v7800 = vpop.f32.mrf.mxu0
    %v7801 = vadd.f32 0.0, %v7800
    %7802 = vmatmul.bf16.gmra.mxu0 %v7529
    %v7803 = vpop.f32.mrf.mxu0
    %v7804 = vadd.f32 0.0, %v7803
    %v7805 = vpop.f32.mrf.mxu0
    %v7806 = vadd.f32 0.0, %v7805
    %7807 = vmatmul.bf16.gmra.mxu0 %v7531
    %v7808 = vpop.f32.mrf.mxu0
    %v7809 = vadd.f32 0.0, %v7808
    %v7810 = vpop.f32.mrf.mxu0
    %v7811 = vadd.f32 0.0, %v7810
    %7812 = vmatmul.bf16.gmra.mxu0 %v7533
    %v7813 = vpop.f32.mrf.mxu0
    %v7814 = vadd.f32 0.0, %v7813
    %v7815 = vpop.f32.mrf.mxu0
    %v7816 = vadd.f32 0.0, %v7815
    %7817 = vmatmul.bf16.gmra.mxu0 %v7535
    %v7818 = vpop.f32.mrf.mxu0
    %v7819 = vadd.f32 0.0, %v7818
    %v7820 = vpop.f32.mrf.mxu0
    %v7821 = vadd.f32 0.0, %v7820
    %7822 = vmatmul.bf16.gmra.mxu0 %v7537
    %v7823 = vpop.f32.mrf.mxu0
    %v7824 = vadd.f32 0.0, %v7823
    %v7825 = vpop.f32.mrf.mxu0
    %v7826 = vadd.f32 0.0, %v7825
    %7827 = vmatmul.bf16.gmra.mxu0 %v7539
    %v7828 = vpop.f32.mrf.mxu0
    %v7829 = vadd.f32 0.0, %v7828
    %v7830 = vpop.f32.mrf.mxu0
    %v7831 = vadd.f32 0.0, %v7830
    %7832 = vmatmul.bf16.gmra.mxu0 %v7541
    %v7833 = vpop.f32.mrf.mxu0
    %v7834 = vadd.f32 0.0, %v7833
    %v7835 = vpop.f32.mrf.mxu0
    %v7836 = vadd.f32 0.0, %v7835
    %7837 = vmatmul.bf16.gmra.mxu0 %v7543
    %v7838 = vpop.f32.mrf.mxu0
    %v7839 = vadd.f32 0.0, %v7838
    %v7840 = vpop.f32.mrf.mxu0
    %v7841 = vadd.f32 0.0, %v7840
    %7842 = vmatmul.bf16.gmra.mxu0 %v7545
    %v7843 = vpop.f32.mrf.mxu0
    %v7844 = vadd.f32 0.0, %v7843
    %v7845 = vpop.f32.mrf.mxu0
    %v7846 = vadd.f32 0.0, %v7845
    %7847 = vmatmul.bf16.gmra.mxu0 %v7547
    %v7848 = vpop.f32.mrf.mxu0
    %v7849 = vadd.f32 0.0, %v7848
    %v7850 = vpop.f32.mrf.mxu0
    %v7851 = vadd.f32 0.0, %v7850
    %7852 = vmatmul.bf16.gmra.mxu0 %v7549
    %v7853 = vpop.f32.mrf.mxu0
    %v7854 = vadd.f32 0.0, %v7853
    %v7855 = vpop.f32.mrf.mxu0
    %v7856 = vadd.f32 0.0, %v7855
    %7857 = vmatmul.bf16.gmra.mxu0 %v7551
    %v7858 = vpop.f32.mrf.mxu0
    %v7859 = vadd.f32 0.0, %v7858
    %v7860 = vpop.f32.mrf.mxu0
    %v7861 = vadd.f32 0.0, %v7860
    %7862 = vmatmul.bf16.gmra.mxu0 %v7553
    %v7863 = vpop.f32.mrf.mxu0
    %v7864 = vadd.f32 0.0, %v7863
    %v7865 = vpop.f32.mrf.mxu0
    %v7866 = vadd.f32 0.0, %v7865
    %7867 = vmatmul.bf16.gmra.mxu0 %v7555
    %v7868 = vpop.f32.mrf.mxu0
    %v7869 = vadd.f32 0.0, %v7868
    %v7870 = vpop.f32.mrf.mxu0
    %v7871 = vadd.f32 0.0, %v7870
    %7872 = vmatmul.bf16.gmra.mxu0 %v7557
    %v7873 = vpop.f32.mrf.mxu0
    %v7874 = vadd.f32 0.0, %v7873
    %v7875 = vpop.f32.mrf.mxu0
    %v7876 = vadd.f32 0.0, %v7875
    %7877 = vmatmul.bf16.gmra.mxu0 %v7559
    %v7878 = vpop.f32.mrf.mxu0
    %v7879 = vadd.f32 0.0, %v7878
    %v7880 = vpop.f32.mrf.mxu0
    %v7881 = vadd.f32 0.0, %v7880
    %7882 = vmatmul.bf16.gmra.mxu0 %v7561
    %v7883 = vpop.f32.mrf.mxu0
    %v7884 = vadd.f32 0.0, %v7883
    %v7885 = vpop.f32.mrf.mxu0
    %v7886 = vadd.f32 0.0, %v7885
    %7887 = vmatmul.bf16.gmra.mxu0 %v7563
    %v7888 = vpop.f32.mrf.mxu0
    %v7889 = vadd.f32 0.0, %v7888
    %v7890 = vpop.f32.mrf.mxu0
    %v7891 = vadd.f32 0.0, %v7890
    %7892 = vmatmul.bf16.gmra.mxu0 %v7565
    %v7893 = vpop.f32.mrf.mxu0
    %v7894 = vadd.f32 0.0, %v7893
    %v7895 = vpop.f32.mrf.mxu0
    %v7896 = vadd.f32 0.0, %v7895
    %7897 = vmatmul.bf16.gmra.mxu0 %v7567
    %v7898 = vpop.f32.mrf.mxu0
    %v7899 = vadd.f32 0.0, %v7898
    %v7900 = vpop.f32.mrf.mxu0
    %v7901 = vadd.f32 0.0, %v7900
    %7902 = vmatmul.bf16.gmra.mxu0 %v7569
    %v7903 = vpop.f32.mrf.mxu0
    %v7904 = vadd.f32 0.0, %v7903
    %v7905 = vpop.f32.mrf.mxu0
    %v7906 = vadd.f32 0.0, %v7905
    %7907 = vmatmul.bf16.gmra.mxu0 %v7571
    %v7908 = vpop.f32.mrf.mxu0
    %v7909 = vadd.f32 0.0, %v7908
    %v7910 = vpop.f32.mrf.mxu0
    %v7911 = vadd.f32 0.0, %v7910
    %7912 = vmatmul.bf16.gmra.mxu0 %v7573
    %v7913 = vpop.f32.mrf.mxu0
    %v7914 = vadd.f32 0.0, %v7913
    %v7915 = vpop.f32.mrf.mxu0
    %v7916 = vadd.f32 0.0, %v7915
    %7917 = vmatmul.bf16.gmra.mxu0 %v7575
    %v7918 = vpop.f32.mrf.mxu0
    %v7919 = vadd.f32 0.0, %v7918
    %v7920 = vpop.f32.mrf.mxu0
    %v7921 = vadd.f32 0.0, %v7920
    %7922 = vmatmul.bf16.gmra.mxu0 %v7577
    %v7923 = vpop.f32.mrf.mxu0
    %v7924 = vadd.f32 0.0, %v7923
    %v7925 = vpop.f32.mrf.mxu0
    %v7926 = vadd.f32 0.0, %v7925
    %7927 = vmatmul.bf16.gmra.mxu0 %v7579
    %v7928 = vpop.f32.mrf.mxu0
    %v7929 = vadd.f32 0.0, %v7928
    %v7930 = vpop.f32.mrf.mxu0
    %v7931 = vadd.f32 0.0, %v7930
    %7932 = vdwg.mxu0
    %7933 = vmatpush.bf16.msra.mxu0 0
    %7934 = vmatpush.bf16.msra.mxu0 0
    %7935 = vmatpush.bf16.msra.mxu0 0
    %7936 = vmatpush.bf16.msra.mxu0 0
    %7937 = vmatpush.bf16.msra.mxu0 0
    %7938 = vmatpush.bf16.msra.mxu0 0
    %7939 = vmatpush.bf16.msra.mxu0 0
    %7940 = vmatpush.bf16.msra.mxu0 %v7657
    %7941 = vmatmul.bf16.gmra.mxu0 %v7669
    %v7942 = vpop.f32.mrf.mxu0
    %v7943 = vadd.f32 %v7774, %v7942
    %v7944 = vpop.f32.mrf.mxu0
    %v7945 = vadd.f32 %v7776, %v7944
    %7946 = vmatmul.bf16.gmra.mxu0 %v7672
    %v7947 = vpop.f32.mrf.mxu0
    %v7948 = vadd.f32 %v7779, %v7947
    %v7949 = vpop.f32.mrf.mxu0
    %v7950 = vadd.f32 %v7781, %v7949
    %7951 = vmatmul.bf16.gmra.mxu0 %v7675
    %v7952 = vpop.f32.mrf.mxu0
    %v7953 = vadd.f32 %v7784, %v7952
    %v7954 = vpop.f32.mrf.mxu0
    %v7955 = vadd.f32 %v7786, %v7954
    %7956 = vmatmul.bf16.gmra.mxu0 %v7678
    %v7957 = vpop.f32.mrf.mxu0
    %v7958 = vadd.f32 %v7789, %v7957
    %v7959 = vpop.f32.mrf.mxu0
    %v7960 = vadd.f32 %v7791, %v7959
    %7961 = vmatmul.bf16.gmra.mxu0 %v7681
    %v7962 = vpop.f32.mrf.mxu0
    %v7963 = vadd.f32 %v7794, %v7962
    %v7964 = vpop.f32.mrf.mxu0
    %v7965 = vadd.f32 %v7796, %v7964
    %7966 = vmatmul.bf16.gmra.mxu0 %v7684
    %v7967 = vpop.f32.mrf.mxu0
    %v7968 = vadd.f32 %v7799, %v7967
    %v7969 = vpop.f32.mrf.mxu0
    %v7970 = vadd.f32 %v7801, %v7969
    %7971 = vmatmul.bf16.gmra.mxu0 %v7687
    %v7972 = vpop.f32.mrf.mxu0
    %v7973 = vadd.f32 %v7804, %v7972
    %v7974 = vpop.f32.mrf.mxu0
    %v7975 = vadd.f32 %v7806, %v7974
    %7976 = vmatmul.bf16.gmra.mxu0 %v7690
    %v7977 = vpop.f32.mrf.mxu0
    %v7978 = vadd.f32 %v7809, %v7977
    %v7979 = vpop.f32.mrf.mxu0
    %v7980 = vadd.f32 %v7811, %v7979
    %7981 = vmatmul.bf16.gmra.mxu0 %v7693
    %v7982 = vpop.f32.mrf.mxu0
    %v7983 = vadd.f32 %v7814, %v7982
    %v7984 = vpop.f32.mrf.mxu0
    %v7985 = vadd.f32 %v7816, %v7984
    %7986 = vmatmul.bf16.gmra.mxu0 %v7696
    %v7987 = vpop.f32.mrf.mxu0
    %v7988 = vadd.f32 %v7819, %v7987
    %v7989 = vpop.f32.mrf.mxu0
    %v7990 = vadd.f32 %v7821, %v7989
    %7991 = vmatmul.bf16.gmra.mxu0 %v7699
    %v7992 = vpop.f32.mrf.mxu0
    %v7993 = vadd.f32 %v7824, %v7992
    %v7994 = vpop.f32.mrf.mxu0
    %v7995 = vadd.f32 %v7826, %v7994
    %7996 = vmatmul.bf16.gmra.mxu0 %v7702
    %v7997 = vpop.f32.mrf.mxu0
    %v7998 = vadd.f32 %v7829, %v7997
    %v7999 = vpop.f32.mrf.mxu0
    %v8000 = vadd.f32 %v7831, %v7999
    %8001 = vmatmul.bf16.gmra.mxu0 %v7705
    %v8002 = vpop.f32.mrf.mxu0
    %v8003 = vadd.f32 %v7834, %v8002
    %v8004 = vpop.f32.mrf.mxu0
    %v8005 = vadd.f32 %v7836, %v8004
    %8006 = vmatmul.bf16.gmra.mxu0 %v7708
    %v8007 = vpop.f32.mrf.mxu0
    %v8008 = vadd.f32 %v7839, %v8007
    %v8009 = vpop.f32.mrf.mxu0
    %v8010 = vadd.f32 %v7841, %v8009
    %8011 = vmatmul.bf16.gmra.mxu0 %v7711
    %v8012 = vpop.f32.mrf.mxu0
    %v8013 = vadd.f32 %v7844, %v8012
    %v8014 = vpop.f32.mrf.mxu0
    %v8015 = vadd.f32 %v7846, %v8014
    %8016 = vmatmul.bf16.gmra.mxu0 %v7714
    %v8017 = vpop.f32.mrf.mxu0
    %v8018 = vadd.f32 %v7849, %v8017
    %v8019 = vpop.f32.mrf.mxu0
    %v8020 = vadd.f32 %v7851, %v8019
    %8021 = vmatmul.bf16.gmra.mxu0 %v7717
    %v8022 = vpop.f32.mrf.mxu0
    %v8023 = vadd.f32 %v7854, %v8022
    %v8024 = vpop.f32.mrf.mxu0
    %v8025 = vadd.f32 %v7856, %v8024
    %8026 = vmatmul.bf16.gmra.mxu0 %v7720
    %v8027 = vpop.f32.mrf.mxu0
    %v8028 = vadd.f32 %v7859, %v8027
    %v8029 = vpop.f32.mrf.mxu0
    %v8030 = vadd.f32 %v7861, %v8029
    %8031 = vmatmul.bf16.gmra.mxu0 %v7723
    %v8032 = vpop.f32.mrf.mxu0
    %v8033 = vadd.f32 %v7864, %v8032
    %v8034 = vpop.f32.mrf.mxu0
    %v8035 = vadd.f32 %v7866, %v8034
    %8036 = vmatmul.bf16.gmra.mxu0 %v7726
    %v8037 = vpop.f32.mrf.mxu0
    %v8038 = vadd.f32 %v7869, %v8037
    %v8039 = vpop.f32.mrf.mxu0
    %v8040 = vadd.f32 %v7871, %v8039
    %8041 = vmatmul.bf16.gmra.mxu0 %v7729
    %v8042 = vpop.f32.mrf.mxu0
    %v8043 = vadd.f32 %v7874, %v8042
    %v8044 = vpop.f32.mrf.mxu0
    %v8045 = vadd.f32 %v7876, %v8044
    %8046 = vmatmul.bf16.gmra.mxu0 %v7732
    %v8047 = vpop.f32.mrf.mxu0
    %v8048 = vadd.f32 %v7879, %v8047
    %v8049 = vpop.f32.mrf.mxu0
    %v8050 = vadd.f32 %v7881, %v8049
    %8051 = vmatmul.bf16.gmra.mxu0 %v7735
    %v8052 = vpop.f32.mrf.mxu0
    %v8053 = vadd.f32 %v7884, %v8052
    %v8054 = vpop.f32.mrf.mxu0
    %v8055 = vadd.f32 %v7886, %v8054
    %8056 = vmatmul.bf16.gmra.mxu0 %v7738
    %v8057 = vpop.f32.mrf.mxu0
    %v8058 = vadd.f32 %v7889, %v8057
    %v8059 = vpop.f32.mrf.mxu0
    %v8060 = vadd.f32 %v7891, %v8059
    %8061 = vmatmul.bf16.gmra.mxu0 %v7741
    %v8062 = vpop.f32.mrf.mxu0
    %v8063 = vadd.f32 %v7894, %v8062
    %v8064 = vpop.f32.mrf.mxu0
    %v8065 = vadd.f32 %v7896, %v8064
    %8066 = vmatmul.bf16.gmra.mxu0 %v7744
    %v8067 = vpop.f32.mrf.mxu0
    %v8068 = vadd.f32 %v7899, %v8067
    %v8069 = vpop.f32.mrf.mxu0
    %v8070 = vadd.f32 %v7901, %v8069
    %8071 = vmatmul.bf16.gmra.mxu0 %v7747
    %v8072 = vpop.f32.mrf.mxu0
    %v8073 = vadd.f32 %v7904, %v8072
    %v8074 = vpop.f32.mrf.mxu0
    %v8075 = vadd.f32 %v7906, %v8074
    %8076 = vmatmul.bf16.gmra.mxu0 %v7750
    %v8077 = vpop.f32.mrf.mxu0
    %v8078 = vadd.f32 %v7909, %v8077
    %v8079 = vpop.f32.mrf.mxu0
    %v8080 = vadd.f32 %v7911, %v8079
    %8081 = vmatmul.bf16.gmra.mxu0 %v7753
    %v8082 = vpop.f32.mrf.mxu0
    %v8083 = vadd.f32 %v7914, %v8082
    %v8084 = vpop.f32.mrf.mxu0
    %v8085 = vadd.f32 %v7916, %v8084
    %8086 = vmatmul.bf16.gmra.mxu0 %v7756
    %v8087 = vpop.f32.mrf.mxu0
    %v8088 = vadd.f32 %v7919, %v8087
    %v8089 = vpop.f32.mrf.mxu0
    %v8090 = vadd.f32 %v7921, %v8089
    %8091 = vmatmul.bf16.gmra.mxu0 %v7759
    %v8092 = vpop.f32.mrf.mxu0
    %v8093 = vadd.f32 %v7924, %v8092
    %v8094 = vpop.f32.mrf.mxu0
    %v8095 = vadd.f32 %v7926, %v8094
    %8096 = vmatmul.bf16.gmra.mxu0 %v7762
    %v8097 = vpop.f32.mrf.mxu0
    %v8098 = vadd.f32 %v7929, %v8097
    %v8099 = vpop.f32.mrf.mxu0
    %v8100 = vadd.f32 %v7931, %v8099
    %8101 = vdwg.mxu0
    %vm8102 = vcmask 261120
    %v8103 = vsel %vm8102, %v7943, 0.0
    %v8104 = vsel %vm8102, %v7945, 0.0
    %v8105 = vadd.f32 %v8103, %v8104
    %v8106 = vsel %vm8102, %v7948, 0.0
    %v8107 = vadd.f32 %v8105, %v8106
    %v8108 = vsel %vm8102, %v7950, 0.0
    %v8109 = vadd.f32 %v8107, %v8108
    %v8110 = vsel %vm8102, %v7953, 0.0
    %v8111 = vadd.f32 %v8109, %v8110
    %v8112 = vsel %vm8102, %v7955, 0.0
    %v8113 = vadd.f32 %v8111, %v8112
    %v8114 = vsel %vm8102, %v7958, 0.0
    %v8115 = vadd.f32 %v8113, %v8114
    %v8116 = vsel %vm8102, %v7960, 0.0
    %v8117 = vadd.f32 %v8115, %v8116
    %v8118 = vsel %vm8102, %v7963, 0.0
    %v8119 = vadd.f32 %v8117, %v8118
    %v8120 = vsel %vm8102, %v7965, 0.0
    %v8121 = vadd.f32 %v8119, %v8120
    %v8122 = vsel %vm8102, %v7968, 0.0
    %v8123 = vadd.f32 %v8121, %v8122
    %v8124 = vsel %vm8102, %v7970, 0.0
    %v8125 = vadd.f32 %v8123, %v8124
    %v8126 = vsel %vm8102, %v7973, 0.0
    %v8127 = vadd.f32 %v8125, %v8126
    %v8128 = vsel %vm8102, %v7975, 0.0
    %v8129 = vadd.f32 %v8127, %v8128
    %v8130 = vsel %vm8102, %v7978, 0.0
    %v8131 = vadd.f32 %v8129, %v8130
    %v8132 = vsel %vm8102, %v7980, 0.0
    %v8133 = vadd.f32 %v8131, %v8132
    %v8134 = vsel %vm8102, %v7983, 0.0
    %v8135 = vadd.f32 %v8133, %v8134
    %v8136 = vsel %vm8102, %v7985, 0.0
    %v8137 = vadd.f32 %v8135, %v8136
    %v8138 = vsel %vm8102, %v7988, 0.0
    %v8139 = vadd.f32 %v8137, %v8138
    %v8140 = vsel %vm8102, %v7990, 0.0
    %v8141 = vadd.f32 %v8139, %v8140
    %v8142 = vsel %vm8102, %v7993, 0.0
    %v8143 = vadd.f32 %v8141, %v8142
    %v8144 = vsel %vm8102, %v7995, 0.0
    %v8145 = vadd.f32 %v8143, %v8144
    %v8146 = vsel %vm8102, %v7998, 0.0
    %v8147 = vadd.f32 %v8145, %v8146
    %v8148 = vsel %vm8102, %v8000, 0.0
    %v8149 = vadd.f32 %v8147, %v8148
    %v8150 = vsel %vm8102, %v8003, 0.0
    %v8151 = vadd.f32 %v8149, %v8150
    %v8152 = vsel %vm8102, %v8005, 0.0
    %v8153 = vadd.f32 %v8151, %v8152
    %v8154 = vsel %vm8102, %v8008, 0.0
    %v8155 = vadd.f32 %v8153, %v8154
    %v8156 = vsel %vm8102, %v8010, 0.0
    %v8157 = vadd.f32 %v8155, %v8156
    %v8158 = vsel %vm8102, %v8013, 0.0
    %v8159 = vadd.f32 %v8157, %v8158
    %v8160 = vsel %vm8102, %v8015, 0.0
    %v8161 = vadd.f32 %v8159, %v8160
    %v8162 = vsel %vm8102, %v8018, 0.0
    %v8163 = vadd.f32 %v8161, %v8162
    %v8164 = vsel %vm8102, %v8020, 0.0
    %v8165 = vadd.f32 %v8163, %v8164
    %v8166 = vsel %vm8102, %v8023, 0.0
    %v8167 = vadd.f32 %v8165, %v8166
    %v8168 = vsel %vm8102, %v8025, 0.0
    %v8169 = vadd.f32 %v8167, %v8168
    %v8170 = vsel %vm8102, %v8028, 0.0
    %v8171 = vadd.f32 %v8169, %v8170
    %v8172 = vsel %vm8102, %v8030, 0.0
    %v8173 = vadd.f32 %v8171, %v8172
    %v8174 = vsel %vm8102, %v8033, 0.0
    %v8175 = vadd.f32 %v8173, %v8174
    %v8176 = vsel %vm8102, %v8035, 0.0
    %v8177 = vadd.f32 %v8175, %v8176
    %v8178 = vsel %vm8102, %v8038, 0.0
    %v8179 = vadd.f32 %v8177, %v8178
    %v8180 = vsel %vm8102, %v8040, 0.0
    %v8181 = vadd.f32 %v8179, %v8180
    %v8182 = vsel %vm8102, %v8043, 0.0
    %v8183 = vadd.f32 %v8181, %v8182
    %v8184 = vsel %vm8102, %v8045, 0.0
    %v8185 = vadd.f32 %v8183, %v8184
    %v8186 = vsel %vm8102, %v8048, 0.0
    %v8187 = vadd.f32 %v8185, %v8186
    %v8188 = vsel %vm8102, %v8050, 0.0
    %v8189 = vadd.f32 %v8187, %v8188
    %v8190 = vsel %vm8102, %v8053, 0.0
    %v8191 = vadd.f32 %v8189, %v8190
    %v8192 = vsel %vm8102, %v8055, 0.0
    %v8193 = vadd.f32 %v8191, %v8192
    %v8194 = vsel %vm8102, %v8058, 0.0
    %v8195 = vadd.f32 %v8193, %v8194
    %v8196 = vsel %vm8102, %v8060, 0.0
    %v8197 = vadd.f32 %v8195, %v8196
    %v8198 = vsel %vm8102, %v8063, 0.0
    %v8199 = vadd.f32 %v8197, %v8198
    %v8200 = vsel %vm8102, %v8065, 0.0
    %v8201 = vadd.f32 %v8199, %v8200
    %v8202 = vsel %vm8102, %v8068, 0.0
    %v8203 = vadd.f32 %v8201, %v8202
    %v8204 = vsel %vm8102, %v8070, 0.0
    %v8205 = vadd.f32 %v8203, %v8204
    %v8206 = vsel %vm8102, %v8073, 0.0
    %v8207 = vadd.f32 %v8205, %v8206
    %v8208 = vsel %vm8102, %v8075, 0.0
    %v8209 = vadd.f32 %v8207, %v8208
    %v8210 = vsel %vm8102, %v8078, 0.0
    %v8211 = vadd.f32 %v8209, %v8210
    %v8212 = vsel %vm8102, %v8080, 0.0
    %v8213 = vadd.f32 %v8211, %v8212
    %v8214 = vsel %vm8102, %v8083, 0.0
    %v8215 = vadd.f32 %v8213, %v8214
    %v8216 = vsel %vm8102, %v8085, 0.0
    %v8217 = vadd.f32 %v8215, %v8216
    %v8218 = vsel %vm8102, %v8088, 0.0
    %v8219 = vadd.f32 %v8217, %v8218
    %v8220 = vsel %vm8102, %v8090, 0.0
    %v8221 = vadd.f32 %v8219, %v8220
    %v8222 = vsel %vm8102, %v8093, 0.0
    %v8223 = vadd.f32 %v8221, %v8222
    %v8224 = vsel %vm8102, %v8095, 0.0
    %v8225 = vadd.f32 %v8223, %v8224
    %v8226 = vsel %vm8102, %v8098, 0.0
    %v8227 = vadd.f32 %v8225, %v8226
    %v8228 = vsel %vm8102, %v8100, 0.0
    %v8229 = vadd.f32 %v8227, %v8228
    %v8230 = vrot.slane %v8229, 4
    %v8231 = vadd.f32 %v8229, %v8230
    %v8232 = vrot.slane %v8231, 2
    %v8233 = vadd.f32 %v8231, %v8232
    %v8234 = vrot.slane %v8233, 1
    %v8235 = vadd.f32 %v8233, %v8234
    %v8236 = vrcp.pop 512.0
    %v8237 = vmul.f32 512.0, %v8236
    %v8238 = vsub.f32 1.0, %v8237
    %v8239 = vmul.f32 %v8236, %v8238
    %v8240 = vadd.f32 %v8236, %v8239
    %vm8241 = vweird.f32 %v8236
    %v8242 = vsel %vm8241, %v8236, %v8240
    %v8243 = vmul.f32 %v8235, %v8242
    %v8244 = vmul.f32 %v7943, %v7943
    %v8245 = vmul.f32 %v7945, %v7945
    %v8246 = vmul.f32 %v7948, %v7948
    %v8247 = vmul.f32 %v7950, %v7950
    %v8248 = vmul.f32 %v7953, %v7953
    %v8249 = vmul.f32 %v7955, %v7955
    %v8250 = vmul.f32 %v7958, %v7958
    %v8251 = vmul.f32 %v7960, %v7960
    %v8252 = vmul.f32 %v7963, %v7963
    %v8253 = vmul.f32 %v7965, %v7965
    %v8254 = vmul.f32 %v7968, %v7968
    %v8255 = vmul.f32 %v7970, %v7970
    %v8256 = vmul.f32 %v7973, %v7973
    %v8257 = vmul.f32 %v7975, %v7975
    %v8258 = vmul.f32 %v7978, %v7978
    %v8259 = vmul.f32 %v7980, %v7980
    %v8260 = vmul.f32 %v7983, %v7983
    %v8261 = vmul.f32 %v7985, %v7985
    %v8262 = vmul.f32 %v7988, %v7988
    %v8263 = vmul.f32 %v7990, %v7990
    %v8264 = vmul.f32 %v7993, %v7993
    %v8265 = vmul.f32 %v7995, %v7995
    %v8266 = vmul.f32 %v7998, %v7998
    %v8267 = vmul.f32 %v8000, %v8000
    %v8268 = vmul.f32 %v8003, %v8003
    %v8269 = vmul.f32 %v8005, %v8005
    %v8270 = vmul.f32 %v8008, %v8008
    %v8271 = vmul.f32 %v8010, %v8010
    %v8272 = vmul.f32 %v8013, %v8013
    %v8273 = vmul.f32 %v8015, %v8015
    %v8274 = vmul.f32 %v8018, %v8018
    %v8275 = vmul.f32 %v8020, %v8020
    %v8276 = vmul.f32 %v8023, %v8023
    %v8277 = vmul.f32 %v8025, %v8025
    %v8278 = vmul.f32 %v8028, %v8028
    %v8279 = vmul.f32 %v8030, %v8030
    %v8280 = vmul.f32 %v8033, %v8033
    %v8281 = vmul.f32 %v8035, %v8035
    %v8282 = vmul.f32 %v8038, %v8038
    %v8283 = vmul.f32 %v8040, %v8040
    %v8284 = vmul.f32 %v8043, %v8043
    %v8285 = vmul.f32 %v8045, %v8045
    %v8286 = vmul.f32 %v8048, %v8048
    %v8287 = vmul.f32 %v8050, %v8050
    %v8288 = vmul.f32 %v8053, %v8053
    %v8289 = vmul.f32 %v8055, %v8055
    %v8290 = vmul.f32 %v8058, %v8058
    %v8291 = vmul.f32 %v8060, %v8060
    %v8292 = vmul.f32 %v8063, %v8063
    %v8293 = vmul.f32 %v8065, %v8065
    %v8294 = vmul.f32 %v8068, %v8068
    %v8295 = vmul.f32 %v8070, %v8070
    %v8296 = vmul.f32 %v8073, %v8073
    %v8297 = vmul.f32 %v8075, %v8075
    %v8298 = vmul.f32 %v8078, %v8078
    %v8299 = vmul.f32 %v8080, %v8080
    %v8300 = vmul.f32 %v8083, %v8083
    %v8301 = vmul.f32 %v8085, %v8085
    %v8302 = vmul.f32 %v8088, %v8088
    %v8303 = vmul.f32 %v8090, %v8090
    %v8304 = vmul.f32 %v8093, %v8093
    %v8305 = vmul.f32 %v8095, %v8095
    %v8306 = vmul.f32 %v8098, %v8098
    %v8307 = vmul.f32 %v8100, %v8100
    %v8308 = vsel %vm8102, %v8244, 0.0
    %v8309 = vsel %vm8102, %v8245, 0.0
    %v8310 = vadd.f32 %v8308, %v8309
    %v8311 = vsel %vm8102, %v8246, 0.0
    %v8312 = vadd.f32 %v8310, %v8311
    %v8313 = vsel %vm8102, %v8247, 0.0
    %v8314 = vadd.f32 %v8312, %v8313
    %v8315 = vsel %vm8102, %v8248, 0.0
    %v8316 = vadd.f32 %v8314, %v8315
    %v8317 = vsel %vm8102, %v8249, 0.0
    %v8318 = vadd.f32 %v8316, %v8317
    %v8319 = vsel %vm8102, %v8250, 0.0
    %v8320 = vadd.f32 %v8318, %v8319
    %v8321 = vsel %vm8102, %v8251, 0.0
    %v8322 = vadd.f32 %v8320, %v8321
    %v8323 = vsel %vm8102, %v8252, 0.0
    %v8324 = vadd.f32 %v8322, %v8323
    %v8325 = vsel %vm8102, %v8253, 0.0
    %v8326 = vadd.f32 %v8324, %v8325
    %v8327 = vsel %vm8102, %v8254, 0.0
    %v8328 = vadd.f32 %v8326, %v8327
    %v8329 = vsel %vm8102, %v8255, 0.0
    %v8330 = vadd.f32 %v8328, %v8329
    %v8331 = vsel %vm8102, %v8256, 0.0
    %v8332 = vadd.f32 %v8330, %v8331
    %v8333 = vsel %vm8102, %v8257, 0.0
    %v8334 = vadd.f32 %v8332, %v8333
    %v8335 = vsel %vm8102, %v8258, 0.0
    %v8336 = vadd.f32 %v8334, %v8335
    %v8337 = vsel %vm8102, %v8259, 0.0
    %v8338 = vadd.f32 %v8336, %v8337
    %v8339 = vsel %vm8102, %v8260, 0.0
    %v8340 = vadd.f32 %v8338, %v8339
    %v8341 = vsel %vm8102, %v8261, 0.0
    %v8342 = vadd.f32 %v8340, %v8341
    %v8343 = vsel %vm8102, %v8262, 0.0
    %v8344 = vadd.f32 %v8342, %v8343
    %v8345 = vsel %vm8102, %v8263, 0.0
    %v8346 = vadd.f32 %v8344, %v8345
    %v8347 = vsel %vm8102, %v8264, 0.0
    %v8348 = vadd.f32 %v8346, %v8347
    %v8349 = vsel %vm8102, %v8265, 0.0
    %v8350 = vadd.f32 %v8348, %v8349
    %v8351 = vsel %vm8102, %v8266, 0.0
    %v8352 = vadd.f32 %v8350, %v8351
    %v8353 = vsel %vm8102, %v8267, 0.0
    %v8354 = vadd.f32 %v8352, %v8353
    %v8355 = vsel %vm8102, %v8268, 0.0
    %v8356 = vadd.f32 %v8354, %v8355
    %v8357 = vsel %vm8102, %v8269, 0.0
    %v8358 = vadd.f32 %v8356, %v8357
    %v8359 = vsel %vm8102, %v8270, 0.0
    %v8360 = vadd.f32 %v8358, %v8359
    %v8361 = vsel %vm8102, %v8271, 0.0
    %v8362 = vadd.f32 %v8360, %v8361
    %v8363 = vsel %vm8102, %v8272, 0.0
    %v8364 = vadd.f32 %v8362, %v8363
    %v8365 = vsel %vm8102, %v8273, 0.0
    %v8366 = vadd.f32 %v8364, %v8365
    %v8367 = vsel %vm8102, %v8274, 0.0
    %v8368 = vadd.f32 %v8366, %v8367
    %v8369 = vsel %vm8102, %v8275, 0.0
    %v8370 = vadd.f32 %v8368, %v8369
    %v8371 = vsel %vm8102, %v8276, 0.0
    %v8372 = vadd.f32 %v8370, %v8371
    %v8373 = vsel %vm8102, %v8277, 0.0
    %v8374 = vadd.f32 %v8372, %v8373
    %v8375 = vsel %vm8102, %v8278, 0.0
    %v8376 = vadd.f32 %v8374, %v8375
    %v8377 = vsel %vm8102, %v8279, 0.0
    %v8378 = vadd.f32 %v8376, %v8377
    %v8379 = vsel %vm8102, %v8280, 0.0
    %v8380 = vadd.f32 %v8378, %v8379
    %v8381 = vsel %vm8102, %v8281, 0.0
    %v8382 = vadd.f32 %v8380, %v8381
    %v8383 = vsel %vm8102, %v8282, 0.0
    %v8384 = vadd.f32 %v8382, %v8383
    %v8385 = vsel %vm8102, %v8283, 0.0
    %v8386 = vadd.f32 %v8384, %v8385
    %v8387 = vsel %vm8102, %v8284, 0.0
    %v8388 = vadd.f32 %v8386, %v8387
    %v8389 = vsel %vm8102, %v8285, 0.0
    %v8390 = vadd.f32 %v8388, %v8389
    %v8391 = vsel %vm8102, %v8286, 0.0
    %v8392 = vadd.f32 %v8390, %v8391
    %v8393 = vsel %vm8102, %v8287, 0.0
    %v8394 = vadd.f32 %v8392, %v8393
    %v8395 = vsel %vm8102, %v8288, 0.0
    %v8396 = vadd.f32 %v8394, %v8395
    %v8397 = vsel %vm8102, %v8289, 0.0
    %v8398 = vadd.f32 %v8396, %v8397
    %v8399 = vsel %vm8102, %v8290, 0.0
    %v8400 = vadd.f32 %v8398, %v8399
    %v8401 = vsel %vm8102, %v8291, 0.0
    %v8402 = vadd.f32 %v8400, %v8401
    %v8403 = vsel %vm8102, %v8292, 0.0
    %v8404 = vadd.f32 %v8402, %v8403
    %v8405 = vsel %vm8102, %v8293, 0.0
    %v8406 = vadd.f32 %v8404, %v8405
    %v8407 = vsel %vm8102, %v8294, 0.0
    %v8408 = vadd.f32 %v8406, %v8407
    %v8409 = vsel %vm8102, %v8295, 0.0
    %v8410 = vadd.f32 %v8408, %v8409
    %v8411 = vsel %vm8102, %v8296, 0.0
    %v8412 = vadd.f32 %v8410, %v8411
    %v8413 = vsel %vm8102, %v8297, 0.0
    %v8414 = vadd.f32 %v8412, %v8413
    %v8415 = vsel %vm8102, %v8298, 0.0
    %v8416 = vadd.f32 %v8414, %v8415
    %v8417 = vsel %vm8102, %v8299, 0.0
    %v8418 = vadd.f32 %v8416, %v8417
    %v8419 = vsel %vm8102, %v8300, 0.0
    %v8420 = vadd.f32 %v8418, %v8419
    %v8421 = vsel %vm8102, %v8301, 0.0
    %v8422 = vadd.f32 %v8420, %v8421
    %v8423 = vsel %vm8102, %v8302, 0.0
    %v8424 = vadd.f32 %v8422, %v8423
    %v8425 = vsel %vm8102, %v8303, 0.0
    %v8426 = vadd.f32 %v8424, %v8425
    %v8427 = vsel %vm8102, %v8304, 0.0
    %v8428 = vadd.f32 %v8426, %v8427
    %v8429 = vsel %vm8102, %v8305, 0.0
    %v8430 = vadd.f32 %v8428, %v8429
    %v8431 = vsel %vm8102, %v8306, 0.0
    %v8432 = vadd.f32 %v8430, %v8431
    %v8433 = vsel %vm8102, %v8307, 0.0
    %v8434 = vadd.f32 %v8432, %v8433
    %v8435 = vrot.slane %v8434, 4
    %v8436 = vadd.f32 %v8434, %v8435
    %v8437 = vrot.slane %v8436, 2
    %v8438 = vadd.f32 %v8436, %v8437
    %v8439 = vrot.slane %v8438, 1
    %v8440 = vadd.f32 %v8438, %v8439
    %v8441 = vmul.f32 %v8440, %v8242
    %v8442 = vmul.f32 %v8243, %v8243
    %v8443 = vsub.f32 %v8441, %v8442
    %v8444 = vmax.f32 %v8443, 0.0
    %v8445 = vld [vmem:[%s2] sm:$0x1]
    %v8446 = vadd.f32 %v8444, 1e-05
    %v8447 = vrsqrt.pop %v8446
    %v8448 = vmul.f32 %v8447, %v8446
    %v8449 = vmul.f32 %v8448, %v8447
    %v8450 = vmul.f32 0.5, %v8449
    %v8451 = vsub.f32 1.5, %v8450
    %v8452 = vmul.f32 %v8447, %v8451
    %vm8453 = vweird.f32 %v8446
    %vm8454 = vweird.f32 %v8447
    %vm8455 = vmor %vm8453, %vm8454
    %v8456 = vsel %vm8455, %v8447, %v8452
    %v8457 = vmul.f32 %v8445, %v8456
    %v8458 = vld [vmem:[%s3] sm:$0x1]
    %v8459 = vmul.f32 %v8243, %v8457
    %v8460 = vsub.f32 %v8458, %v8459
    %v8462 = vperm.slane %v8457, 0
    %v8464 = vmul.f32 %v7943, %v8462
    %v8465 = vmul.f32 %v7945, %v8462
    %v8466 = vmul.f32 %v7948, %v8462
    %v8467 = vmul.f32 %v7950, %v8462
    %v8468 = vmul.f32 %v7953, %v8462
    %v8469 = vmul.f32 %v7955, %v8462
    %v8470 = vmul.f32 %v7958, %v8462
    %v8471 = vmul.f32 %v7960, %v8462
    %v8472 = vmul.f32 %v7963, %v8462
    %v8473 = vmul.f32 %v7965, %v8462
    %v8474 = vmul.f32 %v7968, %v8462
    %v8475 = vmul.f32 %v7970, %v8462
    %v8476 = vmul.f32 %v7973, %v8462
    %v8477 = vmul.f32 %v7975, %v8462
    %v8478 = vmul.f32 %v7978, %v8462
    %v8479 = vmul.f32 %v7980, %v8462
    %v8480 = vmul.f32 %v7983, %v8462
    %v8481 = vmul.f32 %v7985, %v8462
    %v8482 = vmul.f32 %v7988, %v8462
    %v8483 = vmul.f32 %v7990, %v8462
    %v8484 = vmul.f32 %v7993, %v8462
    %v8485 = vmul.f32 %v7995, %v8462
    %v8486 = vmul.f32 %v7998, %v8462
    %v8487 = vmul.f32 %v8000, %v8462
    %v8488 = vmul.f32 %v8003, %v8462
    %v8489 = vmul.f32 %v8005, %v8462
    %v8490 = vmul.f32 %v8008, %v8462
    %v8491 = vmul.f32 %v8010, %v8462
    %v8492 = vmul.f32 %v8013, %v8462
    %v8493 = vmul.f32 %v8015, %v8462
    %v8494 = vmul.f32 %v8018, %v8462
    %v8495 = vmul.f32 %v8020, %v8462
    %v8496 = vmul.f32 %v8023, %v8462
    %v8497 = vmul.f32 %v8025, %v8462
    %v8498 = vmul.f32 %v8028, %v8462
    %v8499 = vmul.f32 %v8030, %v8462
    %v8500 = vmul.f32 %v8033, %v8462
    %v8501 = vmul.f32 %v8035, %v8462
    %v8502 = vmul.f32 %v8038, %v8462
    %v8503 = vmul.f32 %v8040, %v8462
    %v8504 = vmul.f32 %v8043, %v8462
    %v8505 = vmul.f32 %v8045, %v8462
    %v8506 = vmul.f32 %v8048, %v8462
    %v8507 = vmul.f32 %v8050, %v8462
    %v8508 = vmul.f32 %v8053, %v8462
    %v8509 = vmul.f32 %v8055, %v8462
    %v8510 = vmul.f32 %v8058, %v8462
    %v8511 = vmul.f32 %v8060, %v8462
    %v8512 = vmul.f32 %v8063, %v8462
    %v8513 = vmul.f32 %v8065, %v8462
    %v8514 = vmul.f32 %v8068, %v8462
    %v8515 = vmul.f32 %v8070, %v8462
    %v8516 = vmul.f32 %v8073, %v8462
    %v8517 = vmul.f32 %v8075, %v8462
    %v8518 = vmul.f32 %v8078, %v8462
    %v8519 = vmul.f32 %v8080, %v8462
    %v8520 = vmul.f32 %v8083, %v8462
    %v8521 = vmul.f32 %v8085, %v8462
    %v8522 = vmul.f32 %v8088, %v8462
    %v8523 = vmul.f32 %v8090, %v8462
    %v8524 = vmul.f32 %v8093, %v8462
    %v8525 = vmul.f32 %v8095, %v8462
    %v8526 = vmul.f32 %v8098, %v8462
    %v8527 = vmul.f32 %v8100, %v8462
    %v8529 = vperm.slane %v8460, 0
    %v8531 = vadd.f32 %v8464, %v8529
    %v8532 = vadd.f32 %v8465, %v8529
    %v8533 = vadd.f32 %v8466, %v8529
    %v8534 = vadd.f32 %v8467, %v8529
    %v8535 = vadd.f32 %v8468, %v8529
    %v8536 = vadd.f32 %v8469, %v8529
    %v8537 = vadd.f32 %v8470, %v8529
    %v8538 = vadd.f32 %v8471, %v8529
    %v8539 = vadd.f32 %v8472, %v8529
    %v8540 = vadd.f32 %v8473, %v8529
    %v8541 = vadd.f32 %v8474, %v8529
    %v8542 = vadd.f32 %v8475, %v8529
    %v8543 = vadd.f32 %v8476, %v8529
    %v8544 = vadd.f32 %v8477, %v8529
    %v8545 = vadd.f32 %v8478, %v8529
    %v8546 = vadd.f32 %v8479, %v8529
    %v8547 = vadd.f32 %v8480, %v8529
    %v8548 = vadd.f32 %v8481, %v8529
    %v8549 = vadd.f32 %v8482, %v8529
    %v8550 = vadd.f32 %v8483, %v8529
    %v8551 = vadd.f32 %v8484, %v8529
    %v8552 = vadd.f32 %v8485, %v8529
    %v8553 = vadd.f32 %v8486, %v8529
    %v8554 = vadd.f32 %v8487, %v8529
    %v8555 = vadd.f32 %v8488, %v8529
    %v8556 = vadd.f32 %v8489, %v8529
    %v8557 = vadd.f32 %v8490, %v8529
    %v8558 = vadd.f32 %v8491, %v8529
    %v8559 = vadd.f32 %v8492, %v8529
    %v8560 = vadd.f32 %v8493, %v8529
    %v8561 = vadd.f32 %v8494, %v8529
    %v8562 = vadd.f32 %v8495, %v8529
    %v8563 = vadd.f32 %v8496, %v8529
    %v8564 = vadd.f32 %v8497, %v8529
    %v8565 = vadd.f32 %v8498, %v8529
    %v8566 = vadd.f32 %v8499, %v8529
    %v8567 = vadd.f32 %v8500, %v8529
    %v8568 = vadd.f32 %v8501, %v8529
    %v8569 = vadd.f32 %v8502, %v8529
    %v8570 = vadd.f32 %v8503, %v8529
    %v8571 = vadd.f32 %v8504, %v8529
    %v8572 = vadd.f32 %v8505, %v8529
    %v8573 = vadd.f32 %v8506, %v8529
    %v8574 = vadd.f32 %v8507, %v8529
    %v8575 = vadd.f32 %v8508, %v8529
    %v8576 = vadd.f32 %v8509, %v8529
    %v8577 = vadd.f32 %v8510, %v8529
    %v8578 = vadd.f32 %v8511, %v8529
    %v8579 = vadd.f32 %v8512, %v8529
    %v8580 = vadd.f32 %v8513, %v8529
    %v8581 = vadd.f32 %v8514, %v8529
    %v8582 = vadd.f32 %v8515, %v8529
    %v8583 = vadd.f32 %v8516, %v8529
    %v8584 = vadd.f32 %v8517, %v8529
    %v8585 = vadd.f32 %v8518, %v8529
    %v8586 = vadd.f32 %v8519, %v8529
    %v8587 = vadd.f32 %v8520, %v8529
    %v8588 = vadd.f32 %v8521, %v8529
    %v8589 = vadd.f32 %v8522, %v8529
    %v8590 = vadd.f32 %v8523, %v8529
    %v8591 = vadd.f32 %v8524, %v8529
    %v8592 = vadd.f32 %v8525, %v8529
    %v8593 = vadd.f32 %v8526, %v8529
    %v8594 = vadd.f32 %v8527, %v8529
    %v8595 = vmax.f32 %v8531, 0.0
    %v8596 = vmax.f32 %v8532, 0.0
    %v8597 = vmax.f32 %v8533, 0.0
    %v8598 = vmax.f32 %v8534, 0.0
    %v8599 = vmax.f32 %v8535, 0.0
    %v8600 = vmax.f32 %v8536, 0.0
    %v8601 = vmax.f32 %v8537, 0.0
    %v8602 = vmax.f32 %v8538, 0.0
    %v8603 = vmax.f32 %v8539, 0.0
    %v8604 = vmax.f32 %v8540, 0.0
    %v8605 = vmax.f32 %v8541, 0.0
    %v8606 = vmax.f32 %v8542, 0.0
    %v8607 = vmax.f32 %v8543, 0.0
    %v8608 = vmax.f32 %v8544, 0.0
    %v8609 = vmax.f32 %v8545, 0.0
    %v8610 = vmax.f32 %v8546, 0.0
    %v8611 = vmax.f32 %v8547, 0.0
    %v8612 = vmax.f32 %v8548, 0.0
    %v8613 = vmax.f32 %v8549, 0.0
    %v8614 = vmax.f32 %v8550, 0.0
    %v8615 = vmax.f32 %v8551, 0.0
    %v8616 = vmax.f32 %v8552, 0.0
    %v8617 = vmax.f32 %v8553, 0.0
    %v8618 = vmax.f32 %v8554, 0.0
    %v8619 = vmax.f32 %v8555, 0.0
    %v8620 = vmax.f32 %v8556, 0.0
    %v8621 = vmax.f32 %v8557, 0.0
    %v8622 = vmax.f32 %v8558, 0.0
    %v8623 = vmax.f32 %v8559, 0.0
    %v8624 = vmax.f32 %v8560, 0.0
    %v8625 = vmax.f32 %v8561, 0.0
    %v8626 = vmax.f32 %v8562, 0.0
    %v8627 = vmax.f32 %v8563, 0.0
    %v8628 = vmax.f32 %v8564, 0.0
    %v8629 = vmax.f32 %v8565, 0.0
    %v8630 = vmax.f32 %v8566, 0.0
    %v8631 = vmax.f32 %v8567, 0.0
    %v8632 = vmax.f32 %v8568, 0.0
    %v8633 = vmax.f32 %v8569, 0.0
    %v8634 = vmax.f32 %v8570, 0.0
    %v8635 = vmax.f32 %v8571, 0.0
    %v8636 = vmax.f32 %v8572, 0.0
    %v8637 = vmax.f32 %v8573, 0.0
    %v8638 = vmax.f32 %v8574, 0.0
    %v8639 = vmax.f32 %v8575, 0.0
    %v8640 = vmax.f32 %v8576, 0.0
    %v8641 = vmax.f32 %v8577, 0.0
    %v8642 = vmax.f32 %v8578, 0.0
    %v8643 = vmax.f32 %v8579, 0.0
    %v8644 = vmax.f32 %v8580, 0.0
    %v8645 = vmax.f32 %v8581, 0.0
    %v8646 = vmax.f32 %v8582, 0.0
    %v8647 = vmax.f32 %v8583, 0.0
    %v8648 = vmax.f32 %v8584, 0.0
    %v8649 = vmax.f32 %v8585, 0.0
    %v8650 = vmax.f32 %v8586, 0.0
    %v8651 = vmax.f32 %v8587, 0.0
    %v8652 = vmax.f32 %v8588, 0.0
    %v8653 = vmax.f32 %v8589, 0.0
    %v8654 = vmax.f32 %v8590, 0.0
    %v8655 = vmax.f32 %v8591, 0.0
    %v8656 = vmax.f32 %v8592, 0.0
    %v8657 = vmax.f32 %v8593, 0.0
    %v8658 = vmax.f32 %v8594, 0.0
    %v8659 = vpack.c.bf16 %v8595, %v8595
    %v8660 = vpack.c.bf16 %v8596, %v8596
    %v8661 = vpack.c.bf16 %v8597, %v8597
    %v8662 = vpack.c.bf16 %v8598, %v8598
    %v8663 = vpack.c.bf16 %v8599, %v8599
    %v8664 = vpack.c.bf16 %v8600, %v8600
    %v8665 = vpack.c.bf16 %v8601, %v8601
    %v8666 = vpack.c.bf16 %v8602, %v8602
    %v8667 = vpack.c.bf16 %v8603, %v8603
    %v8668 = vpack.c.bf16 %v8604, %v8604
    %v8669 = vpack.c.bf16 %v8605, %v8605
    %v8670 = vpack.c.bf16 %v8606, %v8606
    %v8671 = vpack.c.bf16 %v8607, %v8607
    %v8672 = vpack.c.bf16 %v8608, %v8608
    %v8673 = vpack.c.bf16 %v8609, %v8609
    %v8674 = vpack.c.bf16 %v8610, %v8610
    %v8675 = vpack.c.bf16 %v8611, %v8611
    %v8676 = vpack.c.bf16 %v8612, %v8612
    %v8677 = vpack.c.bf16 %v8613, %v8613
    %v8678 = vpack.c.bf16 %v8614, %v8614
    %v8679 = vpack.c.bf16 %v8615, %v8615
    %v8680 = vpack.c.bf16 %v8616, %v8616
    %v8681 = vpack.c.bf16 %v8617, %v8617
    %v8682 = vpack.c.bf16 %v8618, %v8618
    %v8683 = vpack.c.bf16 %v8619, %v8619
    %v8684 = vpack.c.bf16 %v8620, %v8620
    %v8685 = vpack.c.bf16 %v8621, %v8621
    %v8686 = vpack.c.bf16 %v8622, %v8622
    %v8687 = vpack.c.bf16 %v8623, %v8623
    %v8688 = vpack.c.bf16 %v8624, %v8624
    %v8689 = vpack.c.bf16 %v8625, %v8625
    %v8690 = vpack.c.bf16 %v8626, %v8626
    %v8691 = vpack.c.bf16 %v8627, %v8627
    %v8692 = vpack.c.bf16 %v8628, %v8628
    %v8693 = vpack.c.bf16 %v8629, %v8629
    %v8694 = vpack.c.bf16 %v8630, %v8630
    %v8695 = vpack.c.bf16 %v8631, %v8631
    %v8696 = vpack.c.bf16 %v8632, %v8632
    %v8697 = vpack.c.bf16 %v8633, %v8633
    %v8698 = vpack.c.bf16 %v8634, %v8634
    %v8699 = vpack.c.bf16 %v8635, %v8635
    %v8700 = vpack.c.bf16 %v8636, %v8636
    %v8701 = vpack.c.bf16 %v8637, %v8637
    %v8702 = vpack.c.bf16 %v8638, %v8638
    %v8703 = vpack.c.bf16 %v8639, %v8639
    %v8704 = vpack.c.bf16 %v8640, %v8640
    %v8705 = vpack.c.bf16 %v8641, %v8641
    %v8706 = vpack.c.bf16 %v8642, %v8642
    %v8707 = vpack.c.bf16 %v8643, %v8643
    %v8708 = vpack.c.bf16 %v8644, %v8644
    %v8709 = vpack.c.bf16 %v8645, %v8645
    %v8710 = vpack.c.bf16 %v8646, %v8646
    %v8711 = vpack.c.bf16 %v8647, %v8647
    %v8712 = vpack.c.bf16 %v8648, %v8648
    %v8713 = vpack.c.bf16 %v8649, %v8649
    %v8714 = vpack.c.bf16 %v8650, %v8650
    %v8715 = vpack.c.bf16 %v8651, %v8651
    %v8716 = vpack.c.bf16 %v8652, %v8652
    %v8717 = vpack.c.bf16 %v8653, %v8653
    %v8718 = vpack.c.bf16 %v8654, %v8654
    %v8719 = vpack.c.bf16 %v8655, %v8655
    %v8720 = vpack.c.bf16 %v8656, %v8656
    %v8721 = vpack.c.bf16 %v8657, %v8657
    %v8722 = vpack.c.bf16 %v8658, %v8658
    %vm8723 = vcmask 257024
    %8724 = vst.msk [vmem:[%s4] sm:$0xf] %vm8723, %v8659
    %8725 = vst.msk [vmem:[%s4 + $0x4] sm:$0xf] %vm8723, %v8660
    %8726 = vst.msk [vmem:[%s4 + $0x8] sm:$0xf] %vm8723, %v8661
    %8727 = vst.msk [vmem:[%s4 + $0xc] sm:$0xf] %vm8723, %v8662
    %8728 = vst.msk [vmem:[%s4 + $0x10] sm:$0xf] %vm8723, %v8663
    %8729 = vst.msk [vmem:[%s4 + $0x14] sm:$0xf] %vm8723, %v8664
    %8730 = vst.msk [vmem:[%s4 + $0x18] sm:$0xf] %vm8723, %v8665
    %8731 = vst.msk [vmem:[%s4 + $0x1c] sm:$0xf] %vm8723, %v8666
    %8732 = vst.msk [vmem:[%s4 + $0x20] sm:$0xf] %vm8723, %v8667
    %8733 = vst.msk [vmem:[%s4 + $0x24] sm:$0xf] %vm8723, %v8668
    %8734 = vst.msk [vmem:[%s4 + $0x28] sm:$0xf] %vm8723, %v8669
    %8735 = vst.msk [vmem:[%s4 + $0x2c] sm:$0xf] %vm8723, %v8670
    %8736 = vst.msk [vmem:[%s4 + $0x30] sm:$0xf] %vm8723, %v8671
    %8737 = vst.msk [vmem:[%s4 + $0x34] sm:$0xf] %vm8723, %v8672
    %8738 = vst.msk [vmem:[%s4 + $0x38] sm:$0xf] %vm8723, %v8673
    %8739 = vst.msk [vmem:[%s4 + $0x3c] sm:$0xf] %vm8723, %v8674
    %8740 = vst.msk [vmem:[%s4 + $0x40] sm:$0xf] %vm8723, %v8675
    %8741 = vst.msk [vmem:[%s4 + $0x44] sm:$0xf] %vm8723, %v8676
    %8742 = vst.msk [vmem:[%s4 + $0x48] sm:$0xf] %vm8723, %v8677
    %8743 = vst.msk [vmem:[%s4 + $0x4c] sm:$0xf] %vm8723, %v8678
    %8744 = vst.msk [vmem:[%s4 + $0x50] sm:$0xf] %vm8723, %v8679
    %8745 = vst.msk [vmem:[%s4 + $0x54] sm:$0xf] %vm8723, %v8680
    %8746 = vst.msk [vmem:[%s4 + $0x58] sm:$0xf] %vm8723, %v8681
    %8747 = vst.msk [vmem:[%s4 + $0x5c] sm:$0xf] %vm8723, %v8682
    %8748 = vst.msk [vmem:[%s4 + $0x60] sm:$0xf] %vm8723, %v8683
    %8749 = vst.msk [vmem:[%s4 + $0x64] sm:$0xf] %vm8723, %v8684
    %8750 = vst.msk [vmem:[%s4 + $0x68] sm:$0xf] %vm8723, %v8685
    %8751 = vst.msk [vmem:[%s4 + $0x6c] sm:$0xf] %vm8723, %v8686
    %8752 = vst.msk [vmem:[%s4 + $0x70] sm:$0xf] %vm8723, %v8687
    %8753 = vst.msk [vmem:[%s4 + $0x74] sm:$0xf] %vm8723, %v8688
    %8754 = vst.msk [vmem:[%s4 + $0x78] sm:$0xf] %vm8723, %v8689
    %8755 = vst.msk [vmem:[%s4 + $0x7c] sm:$0xf] %vm8723, %v8690
    %8756 = vst.msk [vmem:[%s4 + $0x80] sm:$0xf] %vm8723, %v8691
    %8757 = vst.msk [vmem:[%s4 + $0x84] sm:$0xf] %vm8723, %v8692
    %8758 = vst.msk [vmem:[%s4 + $0x88] sm:$0xf] %vm8723, %v8693
    %8759 = vst.msk [vmem:[%s4 + $0x8c] sm:$0xf] %vm8723, %v8694
    %8760 = vst.msk [vmem:[%s4 + $0x90] sm:$0xf] %vm8723, %v8695
    %8761 = vst.msk [vmem:[%s4 + $0x94] sm:$0xf] %vm8723, %v8696
    %8762 = vst.msk [vmem:[%s4 + $0x98] sm:$0xf] %vm8723, %v8697
    %8763 = vst.msk [vmem:[%s4 + $0x9c] sm:$0xf] %vm8723, %v8698
    %8764 = vst.msk [vmem:[%s4 + $0xa0] sm:$0xf] %vm8723, %v8699
    %8765 = vst.msk [vmem:[%s4 + $0xa4] sm:$0xf] %vm8723, %v8700
    %8766 = vst.msk [vmem:[%s4 + $0xa8] sm:$0xf] %vm8723, %v8701
    %8767 = vst.msk [vmem:[%s4 + $0xac] sm:$0xf] %vm8723, %v8702
    %8768 = vst.msk [vmem:[%s4 + $0xb0] sm:$0xf] %vm8723, %v8703
    %8769 = vst.msk [vmem:[%s4 + $0xb4] sm:$0xf] %vm8723, %v8704
    %8770 = vst.msk [vmem:[%s4 + $0xb8] sm:$0xf] %vm8723, %v8705
    %8771 = vst.msk [vmem:[%s4 + $0xbc] sm:$0xf] %vm8723, %v8706
    %8772 = vst.msk [vmem:[%s4 + $0xc0] sm:$0xf] %vm8723, %v8707
    %8773 = vst.msk [vmem:[%s4 + $0xc4] sm:$0xf] %vm8723, %v8708
    %8774 = vst.msk [vmem:[%s4 + $0xc8] sm:$0xf] %vm8723, %v8709
    %8775 = vst.msk [vmem:[%s4 + $0xcc] sm:$0xf] %vm8723, %v8710
    %8776 = vst.msk [vmem:[%s4 + $0xd0] sm:$0xf] %vm8723, %v8711
    %8777 = vst.msk [vmem:[%s4 + $0xd4] sm:$0xf] %vm8723, %v8712
    %8778 = vst.msk [vmem:[%s4 + $0xd8] sm:$0xf] %vm8723, %v8713
    %8779 = vst.msk [vmem:[%s4 + $0xdc] sm:$0xf] %vm8723, %v8714
    %8780 = vst.msk [vmem:[%s4 + $0xe0] sm:$0xf] %vm8723, %v8715
    %8781 = vst.msk [vmem:[%s4 + $0xe4] sm:$0xf] %vm8723, %v8716
    %8782 = vst.msk [vmem:[%s4 + $0xe8] sm:$0xf] %vm8723, %v8717
    %8783 = vst.msk [vmem:[%s4 + $0xec] sm:$0xf] %vm8723, %v8718
    %8784 = vst.msk [vmem:[%s4 + $0xf0] sm:$0xf] %vm8723, %v8719
    %8785 = vst.msk [vmem:[%s4 + $0xf4] sm:$0xf] %vm8723, %v8720
    %8786 = vst.msk [vmem:[%s4 + $0xf8] sm:$0xf] %vm8723, %v8721
    %8787 = vst.msk [vmem:[%s4 + $0xfc] sm:$0xf] %vm8723, %v8722
    // Predicated region
    $region26: #{tpu_custom_call.1} parent=1 // pred_check
      _
    $region27: #{tpu_custom_call.1} parent=1 // pred_check_branch
      %8789 = sbr.rel (0) target = $region29
    $region28: #{tpu_custom_call.1} parent=1 // pred_region
      _
    $region29: #{tpu_custom_call.1} parent=1 // pred_fallthru
      _
    // Predicated region
    $region30: #{tpu_custom_call.1} parent=1 // pred_check
      _
    $region31: #{tpu_custom_call.1} parent=1 // pred_check_branch
      %8791 = sbr.rel (0) target = $region33
    $region32: #{tpu_custom_call.1} parent=1 // pred_region
      _
    $region33: #{tpu_custom_call.1} parent=1 // pred_fallthru
      _
    %8792 = vsyncpa [#allocation5], 1

</llo_original>
